<compile_context>
chip_gen: v6e
topology: v6e:2x2x1
jax: 0.10.0
libtpu: 0.0.40
codegen_flags: <defaults>
</compile_context>

<pallas_src>
import math
import functools

import jax
import jax.numpy as jnp
from jax import lax
from jax.experimental import pallas as pl
from jax.experimental.pallas import tpu as pltpu


ENC_KEYS = ('wqkv', 'bqkv', 'wo', 'bo', 'ln1_g', 'ln1_b',
            'w1', 'b1', 'w2', 'b2', 'ln2_g', 'ln2_b')
DEC_KEYS = ('wqkv', 'bqkv', 'wo1', 'bo1', 'ln1_g', 'ln1_b',
            'wq', 'bq', 'wkv', 'bkv', 'wo2', 'bo2', 'ln2_g', 'ln2_b',
            'w1', 'b1', 'w2', 'b2', 'ln3_g', 'ln3_b')


# --------------------------- in-kernel helpers -------------------------------

def _ln(x, g, b, eps=1e-5):
    mu = jnp.mean(x, axis=-1, keepdims=True)
    xc = x - mu
    var = jnp.mean(xc * xc, axis=-1, keepdims=True)
    return xc * lax.rsqrt(var + eps) * g + b


def _dense(x, w, b):
    # bf16 operands on the MXU, f32 accumulation, f32 bias/epilogue.
    return jnp.dot(x.astype(w.dtype), w, preferred_element_type=jnp.float32) + b


def _embed(tok_col, table, pe_rows, B, S):
    # Embedding lookup as a one-hot matmul (robust in-kernel gather) + pos-enc.
    # tok_col: (B*S, 1) int32, table: (V, D) f32, pe_rows: (S, D) f32.
    V, D = table.shape
    onehot = (tok_col == lax.broadcasted_iota(jnp.int32, (B * S, V), 1)
              ).astype(jnp.float32)
    emb = jnp.dot(onehot, table, preferred_element_type=jnp.float32)
    return (emb.reshape(B, S, D) + pe_rows[None]).reshape(B * S, D)


def _mha(q2d, k2d, v2d, wo, bo, mask_add, bqk, n_heads, scale):
    # q2d: (B*Sq, D), k2d/v2d: (B*Sk, D), mask_add: (B, Sq, Sk) additive.
    # Heads use B-batched einsums; bf16 casts are hoisted out of the head
    # loop; the out-projection is one (B*Sq, D)@(D, D) matmul on the
    # re-concatenated per-head contexts.
    B, Sq, Sk = bqk
    D = q2d.shape[-1]
    Dh = D // n_heads
    qb = q2d.reshape(B, Sq, D).astype(jnp.bfloat16)
    kb = k2d.reshape(B, Sk, D).astype(jnp.bfloat16)
    vb = v2d.reshape(B, Sk, D).astype(jnp.bfloat16)
    ctx = []
    for h in range(n_heads):
        sl = slice(h * Dh, (h + 1) * Dh)
        s = jnp.einsum('bqd,bkd->bqk', qb[..., sl], kb[..., sl],
                       preferred_element_type=jnp.float32) * scale
        s = s + mask_add
        s = s - jnp.max(s, axis=-1, keepdims=True)
        p = jnp.exp(s)
        p = p * pl.reciprocal(jnp.sum(p, axis=-1, keepdims=True), approx=True)
        o = jnp.einsum('bqk,bkd->bqd', p.astype(jnp.bfloat16), vb[..., sl],
                       preferred_element_type=jnp.float32)
        ctx.append(o.reshape(B * Sq, Dh))
    c = jnp.concatenate(ctx, axis=-1).astype(jnp.bfloat16)      # (B*Sq, D)
    return jnp.dot(c, wo, preferred_element_type=jnp.float32) + bo


# ----------------------------- fused kernel ----------------------------------

def _fwd_kernel(*refs, n_heads, scale, pad_idx):
    (etok_col_ref, dtok_col_ref, etok_row_ref, dtok_row_ref,
     e_emb_ref, d_emb_ref, pe_ref) = refs[:7]
    i = 7
    enc = dict(zip(ENC_KEYS, refs[i:i + len(ENC_KEYS)])); i += len(ENC_KEYS)
    dec = dict(zip(DEC_KEYS, refs[i:i + len(DEC_KEYS)])); i += len(DEC_KEYS)
    hw_ref, hb_ref, logits_ref = refs[i:i + 3]

    B, _, Se = etok_row_ref.shape
    _, _, Sd = dtok_row_ref.shape
    D = e_emb_ref.shape[1]
    n_enc = enc['wqkv'].shape[0]
    n_dec = dec['wqkv'].shape[0]
    NEG = jnp.float32(-1e9)

    # ---- additive attention masks built in-kernel from token ids ----
    enc_kpad = jnp.where(etok_row_ref[...] == pad_idx, NEG, 0.0)   # (B,1,Se)
    dec_kpad = jnp.where(dtok_row_ref[...] == pad_idx, NEG, 0.0)   # (B,1,Sd)
    rows = lax.broadcasted_iota(jnp.int32, (1, Sd, Sd), 1)
    cols = lax.broadcasted_iota(jnp.int32, (1, Sd, Sd), 2)
    causal = jnp.where(cols > rows, NEG, 0.0)                      # (1,Sd,Sd)
    enc_mask = jnp.broadcast_to(enc_kpad, (B, Se, Se))
    cross_mask = jnp.broadcast_to(enc_kpad, (B, Sd, Se))
    dec_mask = dec_kpad + causal                                   # (B,Sd,Sd)

    # ---- embeddings + positional encoding ----
    # TODO(synk): emb/pos-enc dropout and the final head dropout are identity
    # (eval mode).
    # TODO(synk): pad_idx=-1 tokens one-hot to a zero embedding row (PyTorch
    # nn.Embedding would raise on -1); the test batch contains no pad tokens.
    x = _embed(etok_col_ref[...], e_emb_ref[...], pe_ref[0:Se, :], B, Se)
    y = _embed(dtok_col_ref[...], d_emb_ref[...], pe_ref[0:Sd, :], B, Sd)

    # ---- encoder stack (post-LN), statically unrolled ----
    for l in range(n_enc):
        qkv = _dense(x, enc['wqkv'][l], enc['bqkv'][l])            # fused QKV
        a = _mha(qkv[:, :D], qkv[:, D:2 * D], qkv[:, 2 * D:],
                 enc['wo'][l], enc['bo'][l], enc_mask, (B, Se, Se),
                 n_heads, scale)
        h1 = _ln(x + a, enc['ln1_g'][l], enc['ln1_b'][l])
        f = jnp.maximum(_dense(h1, enc['w1'][l], enc['b1'][l]), 0.0)
        f = _dense(f, enc['w2'][l], enc['b2'][l])
        x = _ln(h1 + f, enc['ln2_g'][l], enc['ln2_b'][l])
    mem = x                                                        # (B*Se, D)

    # ---- decoder stack (masked self-attn + cross-attn + FFN, post-LN) ----
    for l in range(n_dec):
        qkv = _dense(y, dec['wqkv'][l], dec['bqkv'][l])
        a = _mha(qkv[:, :D], qkv[:, D:2 * D], qkv[:, 2 * D:],
                 dec['wo1'][l], dec['bo1'][l], dec_mask, (B, Sd, Sd),
                 n_heads, scale)
        h1 = _ln(y + a, dec['ln1_g'][l], dec['ln1_b'][l])
        qc = _dense(h1, dec['wq'][l], dec['bq'][l])
        kv = _dense(mem, dec['wkv'][l], dec['bkv'][l])             # fused K/V
        c = _mha(qc, kv[:, :D], kv[:, D:], dec['wo2'][l], dec['bo2'][l],
                 cross_mask, (B, Sd, Se), n_heads, scale)
        h2 = _ln(h1 + c, dec['ln2_g'][l], dec['ln2_b'][l])
        f = jnp.maximum(_dense(h2, dec['w1'][l], dec['b1'][l]), 0.0)
        f = _dense(f, dec['w2'][l], dec['b2'][l])
        y = _ln(h2 + f, dec['ln3_g'][l], dec['ln3_b'][l])

    # ---- vocab head: the only HBM store, lane-dense (padded to 128) ----
    logits_ref[...] = (jnp.dot(y.astype(hw_ref.dtype), hw_ref[...],
                               preferred_element_type=jnp.float32)
                       + hb_ref[...])


# ------------------------------ call wrapper ---------------------------------

def transformer_forward(params, inputs, targets, cfg):
    B, Se = inputs.shape
    _, Sd = targets.shape
    D = cfg['d_model']
    nv = cfg['n_tokens_dec']
    Vp = params['out_w_pad'].shape[1]

    operands = [
        inputs.reshape(B * Se, 1).astype(jnp.int32),    # embedding (col) form
        targets.reshape(B * Sd, 1).astype(jnp.int32),
        inputs.reshape(B, 1, Se).astype(jnp.int32),     # key-pad mask form
        targets.reshape(B, 1, Sd).astype(jnp.int32),
        params['enc_emb'], params['dec_emb'], params['pos_enc'],
    ]
    operands += [params['enc_stack'][k] for k in ENC_KEYS]
    operands += [params['dec_stack'][k] for k in DEC_KEYS]
    operands += [params['out_w_pad'], params['out_b_pad']]

    kernel = functools.partial(
        _fwd_kernel,
        n_heads=cfg['n_heads'],
        scale=1.0 / math.sqrt(D // cfg['n_heads']),
        pad_idx=cfg['pad_idx'])

    vmem = pl.BlockSpec(memory_space=pltpu.MemorySpace.VMEM)
    logits_pad = pl.pallas_call(
        kernel,
        in_specs=[vmem] * len(operands),
        out_specs=vmem,
        out_shape=jax.ShapeDtypeStruct((B * Sd, Vp), jnp.float32),
        compiler_params=pltpu.CompilerParams(
            vmem_limit_bytes=32 * 1024 * 1024),
    )(*operands)

    return logits_pad.reshape(B, Sd, Vp)[:, :, :nv]


# ------------------------------ parameter init --------------------------------

def positional_encoding(max_len, d_model):
    pos = jnp.arange(max_len, dtype=jnp.float32)[:, None]
    div = jnp.exp(jnp.arange(0, d_model, 2, dtype=jnp.float32)
                  * (-math.log(10000.0) / d_model))
    pe = jnp.zeros((max_len, d_model), jnp.float32)
    pe = pe.at[:, 0::2].set(jnp.sin(pos * div))
    pe = pe.at[:, 1::2].set(jnp.cos(pos * div))
    return pe


def _xavier(key, fan_in, fan_out):
    std = math.sqrt(2.0 / (fan_in + fan_out))
    return jax.random.normal(key, (fan_in, fan_out), jnp.float32) * std


def _lin(key, fi, fo):
    # weights stored (in, out), pre-cast to bf16 for the MXU; biases stay f32.
    return (_xavier(key, fi, fo).astype(jnp.bfloat16),
            jnp.zeros((1, fo), jnp.float32))


def _fused(key, fi, fo, n):
    ks = jax.random.split(key, n)
    w = jnp.concatenate([_xavier(k, fi, fo) for k in ks], axis=1)
    return w.astype(jnp.bfloat16), jnp.zeros((1, n * fo), jnp.float32)


def _ln_params(d):
    return jnp.ones((1, d), jnp.float32), jnp.zeros((1, d), jnp.float32)


def _init_enc_layer(key, d, dff):
    ka, ko, k1, k2 = jax.random.split(key, 4)
    wqkv, bqkv = _fused(ka, d, d, 3)
    wo, bo = _lin(ko, d, d)
    w1, b1 = _lin(k1, d, dff)
    w2, b2 = _lin(k2, dff, d)
    g1, be1 = _ln_params(d)
    g2, be2 = _ln_params(d)
    return dict(wqkv=wqkv, bqkv=bqkv, wo=wo, bo=bo,
                ln1_g=g1, ln1_b=be1,
                w1=w1, b1=b1, w2=w2, b2=b2,
                ln2_g=g2, ln2_b=be2)


def _init_dec_layer(key, d, dff):
    ka, ko1, kq, kkv, ko2, k1, k2 = jax.random.split(key, 7)
    wqkv, bqkv = _fused(ka, d, d, 3)
    wo1, bo1 = _lin(ko1, d, d)
    wq, bq = _lin(kq, d, d)
    wkv, bkv = _fused(kkv, d, d, 2)
    wo2, bo2 = _lin(ko2, d, d)
    w1, b1 = _lin(k1, d, dff)
    w2, b2 = _lin(k2, dff, d)
    g1, be1 = _ln_params(d)
    g2, be2 = _ln_params(d)
    g3, be3 = _ln_params(d)
    return dict(wqkv=wqkv, bqkv=bqkv, wo1=wo1, bo1=bo1,
                ln1_g=g1, ln1_b=be1,
                wq=wq, bq=bq, wkv=wkv, bkv=bkv, wo2=wo2, bo2=bo2,
                ln2_g=g2, ln2_b=be2,
                w1=w1, b1=b1, w2=w2, b2=b2,
                ln3_g=g3, ln3_b=be3)


def init_params(key, cfg):
    d = cfg['d_model']
    ne, nd = cfg['n_encoders'], cfg['n_decoders']
    keys = jax.random.split(key, 3 + ne + nd)
    params = {}
    # embeddings: N(0, d_model^-0.5) as in reset_parameters()
    params['enc_emb'] = (jax.random.normal(keys[0], (cfg['n_tokens_enc'], d),
                                           jnp.float32) * d ** (-0.5))
    params['dec_emb'] = (jax.random.normal(keys[1], (cfg['n_tokens_dec'], d),
                                           jnp.float32) * d ** (-0.5))
    params['pos_enc'] = positional_encoding(cfg['max_len'], d)
    # output head: xavier weight / zero bias, padded to a lane-dense width
    nv = cfg['n_tokens_dec']
    nvp = ((nv + 127) // 128) * 128
    w = _xavier(keys[2], d, nv)
    params['out_w_pad'] = (jnp.zeros((d, nvp), jnp.float32)
                           .at[:, :nv].set(w).astype(jnp.bfloat16))
    params['out_b_pad'] = jnp.zeros((1, nvp), jnp.float32)
    enc_layers = [_init_enc_layer(keys[3 + i], d, cfg['d_hidden_ffnn'])
                  for i in range(ne)]
    dec_layers = [_init_dec_layer(keys[3 + ne + i], d, cfg['d_hidden_ffnn'])
                  for i in range(nd)]
    # stacked over layers so the fused kernel indexes [l] on resident refs
    params['enc_stack'] = {k: jnp.stack([lp[k] for lp in enc_layers])
                           for k in ENC_KEYS}
    params['dec_stack'] = {k: jnp.stack([lp[k] for lp in dec_layers])
                           for k in DEC_KEYS}
    return params


# ----------------------------------- main -------------------------------------

if __name__ == "__main__":
    cfg = dict(n_tokens_enc=13, n_tokens_dec=11,
               n_encoders=2, n_decoders=2, n_heads=4,
               d_model=64, max_len=64, d_hidden_ffnn=128,
               drop_prob=0.1, pad_idx=-1)

    root = jax.random.PRNGKey(0)
    k_par, k_in, k_tg = jax.random.split(root, 3)

    params = init_params(k_par, cfg)

    B, S_enc, S_dec = 2, 8, 8
    inputs = jax.random.randint(k_in, (B, S_enc), 0, cfg['n_tokens_enc'],
                                dtype=jnp.int32)
    targets = jax.random.randint(k_tg, (B, S_dec), 0, cfg['n_tokens_dec'],
                                 dtype=jnp.int32)

    fwd = jax.jit(functools.partial(transformer_forward, cfg=cfg))
    out = jax.block_until_ready(fwd(params, inputs, targets))

    assert out.shape == (B, S_dec, cfg['n_tokens_dec'])
    assert jnp.all(jnp.isfinite(out))
    print("KERNEL_OK")
</pallas_src>

<mosaic_0001>
module attributes {stable_mosaic.version = 11 : i64} {
  func.func @_fwd_kernel(%arg0: memref<16x1xi32, #tpu.memory_space<vmem>>, %arg1: memref<16x1xi32, #tpu.memory_space<vmem>>, %arg2: memref<2x1x8xi32, #tpu.memory_space<vmem>>, %arg3: memref<2x1x8xi32, #tpu.memory_space<vmem>>, %arg4: memref<13x64xf32, #tpu.memory_space<vmem>>, %arg5: memref<11x64xf32, #tpu.memory_space<vmem>>, %arg6: memref<64x64xf32, #tpu.memory_space<vmem>>, %arg7: memref<2x64x192xbf16, #tpu.memory_space<vmem>>, %arg8: memref<2x1x192xf32, #tpu.memory_space<vmem>>, %arg9: memref<2x64x64xbf16, #tpu.memory_space<vmem>>, %arg10: memref<2x1x64xf32, #tpu.memory_space<vmem>>, %arg11: memref<2x1x64xf32, #tpu.memory_space<vmem>>, %arg12: memref<2x1x64xf32, #tpu.memory_space<vmem>>, %arg13: memref<2x64x128xbf16, #tpu.memory_space<vmem>>, %arg14: memref<2x1x128xf32, #tpu.memory_space<vmem>>, %arg15: memref<2x128x64xbf16, #tpu.memory_space<vmem>>, %arg16: memref<2x1x64xf32, #tpu.memory_space<vmem>>, %arg17: memref<2x1x64xf32, #tpu.memory_space<vmem>>, %arg18: memref<2x1x64xf32, #tpu.memory_space<vmem>>, %arg19: memref<2x64x192xbf16, #tpu.memory_space<vmem>>, %arg20: memref<2x1x192xf32, #tpu.memory_space<vmem>>, %arg21: memref<2x64x64xbf16, #tpu.memory_space<vmem>>, %arg22: memref<2x1x64xf32, #tpu.memory_space<vmem>>, %arg23: memref<2x1x64xf32, #tpu.memory_space<vmem>>, %arg24: memref<2x1x64xf32, #tpu.memory_space<vmem>>, %arg25: memref<2x64x64xbf16, #tpu.memory_space<vmem>>, %arg26: memref<2x1x64xf32, #tpu.memory_space<vmem>>, %arg27: memref<2x64x128xbf16, #tpu.memory_space<vmem>>, %arg28: memref<2x1x128xf32, #tpu.memory_space<vmem>>, %arg29: memref<2x64x64xbf16, #tpu.memory_space<vmem>>, %arg30: memref<2x1x64xf32, #tpu.memory_space<vmem>>, %arg31: memref<2x1x64xf32, #tpu.memory_space<vmem>>, %arg32: memref<2x1x64xf32, #tpu.memory_space<vmem>>, %arg33: memref<2x64x128xbf16, #tpu.memory_space<vmem>>, %arg34: memref<2x1x128xf32, #tpu.memory_space<vmem>>, %arg35: memref<2x128x64xbf16, #tpu.memory_space<vmem>>, %arg36: memref<2x1x64xf32, #tpu.memory_space<vmem>>, %arg37: memref<2x1x64xf32, #tpu.memory_space<vmem>>, %arg38: memref<2x1x64xf32, #tpu.memory_space<vmem>>, %arg39: memref<64x128xbf16, #tpu.memory_space<vmem>>, %arg40: memref<1x128xf32, #tpu.memory_space<vmem>>, %arg41: memref<16x128xf32, #tpu.memory_space<vmem>>) attributes {dimension_semantics = [], scalar_prefetch = 0 : i64, scratch_operands = 0 : i64, tpu.core_type = #tpu.core_type<tc>} {
    %c0 = arith.constant 0 : index
    %c0_0 = arith.constant 0 : index
    %c0_1 = arith.constant 0 : index
    %0 = vector.load %arg2[%c0, %c0_0, %c0_1] : memref<2x1x8xi32, #tpu.memory_space<vmem>>, vector<2x1x8xi32>
    %c-1_i32 = arith.constant -1 : i32
    %1 = vector.broadcast %c-1_i32 : i32 to vector<2x1x8xi32>
    %2 = arith.cmpi eq, %0, %1 : vector<2x1x8xi32>
    %cst = arith.constant -1.000000e+09 : f32
    %cst_2 = arith.constant 0.000000e+00 : f32
    %3 = vector.broadcast %cst : f32 to vector<2x1x8xf32>
    %4 = vector.broadcast %cst_2 : f32 to vector<2x1x8xf32>
    %5 = arith.select %2, %3, %4 : vector<2x1x8xi1>, vector<2x1x8xf32>
    %c0_3 = arith.constant 0 : index
    %c0_4 = arith.constant 0 : index
    %c0_5 = arith.constant 0 : index
    %6 = vector.load %arg3[%c0_3, %c0_4, %c0_5] : memref<2x1x8xi32, #tpu.memory_space<vmem>>, vector<2x1x8xi32>
    %c-1_i32_6 = arith.constant -1 : i32
    %7 = vector.broadcast %c-1_i32_6 : i32 to vector<2x1x8xi32>
    %8 = arith.cmpi eq, %6, %7 : vector<2x1x8xi32>
    %cst_7 = arith.constant -1.000000e+09 : f32
    %cst_8 = arith.constant 0.000000e+00 : f32
    %9 = vector.broadcast %cst_7 : f32 to vector<2x1x8xf32>
    %10 = vector.broadcast %cst_8 : f32 to vector<2x1x8xf32>
    %11 = arith.select %8, %9, %10 : vector<2x1x8xi1>, vector<2x1x8xf32>
    %12 = tpu.iota {dimensions = array<i32: 1>} : vector<1x8x8xi32>
    %13 = tpu.iota {dimensions = array<i32: 2>} : vector<1x8x8xi32>
    %14 = arith.cmpi sgt, %13, %12 : vector<1x8x8xi32>
    %cst_9 = arith.constant -1.000000e+09 : f32
    %cst_10 = arith.constant 0.000000e+00 : f32
    %15 = vector.broadcast %cst_9 : f32 to vector<1x8x8xf32>
    %16 = vector.broadcast %cst_10 : f32 to vector<1x8x8xf32>
    %17 = arith.select %14, %15, %16 : vector<1x8x8xi1>, vector<1x8x8xf32>
    %18 = vector.shape_cast %5 : vector<2x1x8xf32> to vector<2x1x8xf32>
    %19 = vector.broadcast %18 : vector<2x1x8xf32> to vector<2x8x8xf32>
    %20 = vector.shape_cast %5 : vector<2x1x8xf32> to vector<2x1x8xf32>
    %21 = vector.broadcast %20 : vector<2x1x8xf32> to vector<2x8x8xf32>
    %22 = vector.broadcast %11 : vector<2x1x8xf32> to vector<2x8x8xf32>
    %23 = vector.broadcast %17 : vector<1x8x8xf32> to vector<2x8x8xf32>
    %24 = arith.addf %22, %23 : vector<2x8x8xf32>
    %c0_11 = arith.constant 0 : index
    %c0_12 = arith.constant 0 : index
    %25 = vector.load %arg0[%c0_11, %c0_12] : memref<16x1xi32, #tpu.memory_space<vmem>>, vector<16x1xi32>
    %c0_13 = arith.constant 0 : index
    %c0_14 = arith.constant 0 : index
    %26 = vector.load %arg4[%c0_13, %c0_14] : memref<13x64xf32, #tpu.memory_space<vmem>>, vector<13x64xf32>
    %c0_15 = arith.constant 0 : index
    %c0_16 = arith.constant 0 : index
    %27 = vector.load %arg6[%c0_15, %c0_16] : memref<64x64xf32, #tpu.memory_space<vmem>>, vector<8x64xf32>
    %28 = tpu.iota {dimensions = array<i32: 1>} : vector<16x13xi32>
    %29 = vector.broadcast %25 : vector<16x1xi32> to vector<16x13xi32>
    %30 = arith.cmpi eq, %29, %28 : vector<16x13xi32>
    %31 = arith.extui %30 : vector<16x13xi1> to vector<16x13xi32>
    %32 = arith.sitofp %31 : vector<16x13xi32> to vector<16x13xf32>
    %cst_17 = arith.constant dense<0.000000e+00> : vector<16x64xf32>
    %33 = tpu.matmul %32, %26, %cst_17 {dimension_numbers = #tpu.dot_dimension_numbers<[1], [0], [0], [1], [0, 0, 1, 1], [], []>} : vector<16x13xf32>, vector<13x64xf32>, vector<16x64xf32> -> vector<16x64xf32>
    %34 = vector.shape_cast %33 : vector<16x64xf32> to vector<2x8x64xf32>
    %35 = vector.shape_cast %27 : vector<8x64xf32> to vector<1x8x64xf32>
    %36 = vector.broadcast %35 : vector<1x8x64xf32> to vector<2x8x64xf32>
    %37 = arith.addf %34, %36 : vector<2x8x64xf32>
    %38 = vector.shape_cast %37 : vector<2x8x64xf32> to vector<16x64xf32>
    %c0_18 = arith.constant 0 : index
    %c0_19 = arith.constant 0 : index
    %39 = vector.load %arg1[%c0_18, %c0_19] : memref<16x1xi32, #tpu.memory_space<vmem>>, vector<16x1xi32>
    %c0_20 = arith.constant 0 : index
    %c0_21 = arith.constant 0 : index
    %40 = vector.load %arg5[%c0_20, %c0_21] : memref<11x64xf32, #tpu.memory_space<vmem>>, vector<11x64xf32>
    %c0_22 = arith.constant 0 : index
    %c0_23 = arith.constant 0 : index
    %41 = vector.load %arg6[%c0_22, %c0_23] : memref<64x64xf32, #tpu.memory_space<vmem>>, vector<8x64xf32>
    %42 = tpu.iota {dimensions = array<i32: 1>} : vector<16x11xi32>
    %43 = vector.broadcast %39 : vector<16x1xi32> to vector<16x11xi32>
    %44 = arith.cmpi eq, %43, %42 : vector<16x11xi32>
    %45 = arith.extui %44 : vector<16x11xi1> to vector<16x11xi32>
    %46 = arith.sitofp %45 : vector<16x11xi32> to vector<16x11xf32>
    %cst_24 = arith.constant dense<0.000000e+00> : vector<16x64xf32>
    %47 = tpu.matmul %46, %40, %cst_24 {dimension_numbers = #tpu.dot_dimension_numbers<[1], [0], [0], [1], [0, 0, 1, 1], [], []>} : vector<16x11xf32>, vector<11x64xf32>, vector<16x64xf32> -> vector<16x64xf32>
    %48 = vector.shape_cast %47 : vector<16x64xf32> to vector<2x8x64xf32>
    %49 = vector.shape_cast %41 : vector<8x64xf32> to vector<1x8x64xf32>
    %50 = vector.broadcast %49 : vector<1x8x64xf32> to vector<2x8x64xf32>
    %51 = arith.addf %48, %50 : vector<2x8x64xf32>
    %52 = vector.shape_cast %51 : vector<2x8x64xf32> to vector<16x64xf32>
    %c0_25 = arith.constant 0 : index
    %c0_26 = arith.constant 0 : index
    %c0_27 = arith.constant 0 : index
    %53 = vector.load %arg7[%c0_25, %c0_26, %c0_27] : memref<2x64x192xbf16, #tpu.memory_space<vmem>>, vector<1x64x192xbf16>
    %54 = vector.shape_cast %53 : vector<1x64x192xbf16> to vector<64x192xbf16>
    %c0_28 = arith.constant 0 : index
    %c0_29 = arith.constant 0 : index
    %c0_30 = arith.constant 0 : index
    %55 = vector.load %arg8[%c0_28, %c0_29, %c0_30] : memref<2x1x192xf32, #tpu.memory_space<vmem>>, vector<1x1x192xf32>
    %56 = vector.shape_cast %55 : vector<1x1x192xf32> to vector<1x192xf32>
    %57 = arith.truncf %38 : vector<16x64xf32> to vector<16x64xbf16>
    %cst_31 = arith.constant dense<0.000000e+00> : vector<16x192xf32>
    %58 = tpu.matmul %57, %54, %cst_31 {dimension_numbers = #tpu.dot_dimension_numbers<[1], [0], [0], [1], [0, 0, 1, 1], [], []>} : vector<16x64xbf16>, vector<64x192xbf16>, vector<16x192xf32> -> vector<16x192xf32>
    %59 = vector.broadcast %56 : vector<1x192xf32> to vector<16x192xf32>
    %60 = arith.addf %58, %59 : vector<16x192xf32>
    %61 = vector.extract_strided_slice %60 {offsets = [0, 0], sizes = [16, 64], strides = [1, 1]} : vector<16x192xf32> to vector<16x64xf32>
    %62 = vector.extract_strided_slice %60 {offsets = [0, 64], sizes = [16, 64], strides = [1, 1]} : vector<16x192xf32> to vector<16x64xf32>
    %63 = vector.extract_strided_slice %60 {offsets = [0, 128], sizes = [16, 64], strides = [1, 1]} : vector<16x192xf32> to vector<16x64xf32>
    %c0_32 = arith.constant 0 : index
    %c0_33 = arith.constant 0 : index
    %c0_34 = arith.constant 0 : index
    %64 = vector.load %arg9[%c0_32, %c0_33, %c0_34] : memref<2x64x64xbf16, #tpu.memory_space<vmem>>, vector<1x64x64xbf16>
    %65 = vector.shape_cast %64 : vector<1x64x64xbf16> to vector<64x64xbf16>
    %c0_35 = arith.constant 0 : index
    %c0_36 = arith.constant 0 : index
    %c0_37 = arith.constant 0 : index
    %66 = vector.load %arg10[%c0_35, %c0_36, %c0_37] : memref<2x1x64xf32, #tpu.memory_space<vmem>>, vector<1x1x64xf32>
    %67 = vector.shape_cast %66 : vector<1x1x64xf32> to vector<1x64xf32>
    %68 = vector.shape_cast %61 : vector<16x64xf32> to vector<2x8x64xf32>
    %69 = arith.truncf %68 : vector<2x8x64xf32> to vector<2x8x64xbf16>
    %70 = vector.shape_cast %62 : vector<16x64xf32> to vector<2x8x64xf32>
    %71 = arith.truncf %70 : vector<2x8x64xf32> to vector<2x8x64xbf16>
    %72 = vector.shape_cast %63 : vector<16x64xf32> to vector<2x8x64xf32>
    %73 = arith.truncf %72 : vector<2x8x64xf32> to vector<2x8x64xbf16>
    %74 = vector.extract_strided_slice %69 {offsets = [0, 0, 0], sizes = [2, 8, 16], strides = [1, 1, 1]} : vector<2x8x64xbf16> to vector<2x8x16xbf16>
    %75 = vector.extract_strided_slice %71 {offsets = [0, 0, 0], sizes = [2, 8, 16], strides = [1, 1, 1]} : vector<2x8x64xbf16> to vector<2x8x16xbf16>
    "tpu.trace_start"() <{level = 10 : i32, message = "bqd,bkd->bqk"}> : () -> ()
    %cst_38 = arith.constant dense<0.000000e+00> : vector<2x8x8xf32>
    %76 = tpu.matmul %74, %75, %cst_38 {dimension_numbers = #tpu.dot_dimension_numbers<[2], [2], [1], [1], [0, 0, 0, 1, 1, 1], [0], [0]>} : vector<2x8x16xbf16>, vector<2x8x16xbf16>, vector<2x8x8xf32> -> vector<2x8x8xf32>
    "tpu.trace_stop"() : () -> ()
    %cst_39 = arith.constant 2.500000e-01 : f32
    %77 = vector.broadcast %cst_39 : f32 to vector<2x8x8xf32>
    %78 = arith.mulf %76, %77 : vector<2x8x8xf32>
    %79 = arith.addf %78, %19 : vector<2x8x8xf32>
    %cst_40 = arith.constant dense<0xFF800000> : vector<2x8xf32>
    %80 = vector.multi_reduction <maximumf>, %79, %cst_40 [2] : vector<2x8x8xf32> to vector<2x8xf32>
    %81 = vector.shape_cast %80 : vector<2x8xf32> to vector<2x8x1xf32>
    %82 = vector.broadcast %81 : vector<2x8x1xf32> to vector<2x8x8xf32>
    %83 = arith.subf %79, %82 : vector<2x8x8xf32>
    %84 = math.exp %83 : vector<2x8x8xf32>
    %cst_41 = arith.constant dense<0.000000e+00> : vector<2x8xf32>
    %85 = vector.multi_reduction <add>, %84, %cst_41 [2] : vector<2x8x8xf32> to vector<2x8xf32>
    %86 = vector.shape_cast %85 : vector<2x8xf32> to vector<2x8x1xf32>
    %87 = tpu.reciprocal %86 {approx = true} : vector<2x8x1xf32> -> vector<2x8x1xf32>
    %88 = vector.broadcast %87 : vector<2x8x1xf32> to vector<2x8x8xf32>
    %89 = arith.mulf %84, %88 : vector<2x8x8xf32>
    %90 = arith.truncf %89 : vector<2x8x8xf32> to vector<2x8x8xbf16>
    %91 = vector.extract_strided_slice %73 {offsets = [0, 0, 0], sizes = [2, 8, 16], strides = [1, 1, 1]} : vector<2x8x64xbf16> to vector<2x8x16xbf16>
    "tpu.trace_start"() <{level = 10 : i32, message = "bqk,bkd->bqd"}> : () -> ()
    %cst_42 = arith.constant dense<0.000000e+00> : vector<2x8x16xf32>
    %92 = tpu.matmul %90, %91, %cst_42 {dimension_numbers = #tpu.dot_dimension_numbers<[2], [1], [1], [2], [0, 0, 0, 1, 1, 2], [0], [0]>} : vector<2x8x8xbf16>, vector<2x8x16xbf16>, vector<2x8x16xf32> -> vector<2x8x16xf32>
    "tpu.trace_stop"() : () -> ()
    %93 = vector.shape_cast %92 : vector<2x8x16xf32> to vector<16x16xf32>
    %94 = vector.extract_strided_slice %69 {offsets = [0, 0, 16], sizes = [2, 8, 16], strides = [1, 1, 1]} : vector<2x8x64xbf16> to vector<2x8x16xbf16>
    %95 = vector.extract_strided_slice %71 {offsets = [0, 0, 16], sizes = [2, 8, 16], strides = [1, 1, 1]} : vector<2x8x64xbf16> to vector<2x8x16xbf16>
    "tpu.trace_start"() <{level = 10 : i32, message = "bqd,bkd->bqk"}> : () -> ()
    %cst_43 = arith.constant dense<0.000000e+00> : vector<2x8x8xf32>
    %96 = tpu.matmul %94, %95, %cst_43 {dimension_numbers = #tpu.dot_dimension_numbers<[2], [2], [1], [1], [0, 0, 0, 1, 1, 1], [0], [0]>} : vector<2x8x16xbf16>, vector<2x8x16xbf16>, vector<2x8x8xf32> -> vector<2x8x8xf32>
    "tpu.trace_stop"() : () -> ()
    %cst_44 = arith.constant 2.500000e-01 : f32
    %97 = vector.broadcast %cst_44 : f32 to vector<2x8x8xf32>
    %98 = arith.mulf %96, %97 : vector<2x8x8xf32>
    %99 = arith.addf %98, %19 : vector<2x8x8xf32>
    %cst_45 = arith.constant dense<0xFF800000> : vector<2x8xf32>
    %100 = vector.multi_reduction <maximumf>, %99, %cst_45 [2] : vector<2x8x8xf32> to vector<2x8xf32>
    %101 = vector.shape_cast %100 : vector<2x8xf32> to vector<2x8x1xf32>
    %102 = vector.broadcast %101 : vector<2x8x1xf32> to vector<2x8x8xf32>
    %103 = arith.subf %99, %102 : vector<2x8x8xf32>
    %104 = math.exp %103 : vector<2x8x8xf32>
    %cst_46 = arith.constant dense<0.000000e+00> : vector<2x8xf32>
    %105 = vector.multi_reduction <add>, %104, %cst_46 [2] : vector<2x8x8xf32> to vector<2x8xf32>
    %106 = vector.shape_cast %105 : vector<2x8xf32> to vector<2x8x1xf32>
    %107 = tpu.reciprocal %106 {approx = true} : vector<2x8x1xf32> -> vector<2x8x1xf32>
    %108 = vector.broadcast %107 : vector<2x8x1xf32> to vector<2x8x8xf32>
    %109 = arith.mulf %104, %108 : vector<2x8x8xf32>
    %110 = arith.truncf %109 : vector<2x8x8xf32> to vector<2x8x8xbf16>
    %111 = vector.extract_strided_slice %73 {offsets = [0, 0, 16], sizes = [2, 8, 16], strides = [1, 1, 1]} : vector<2x8x64xbf16> to vector<2x8x16xbf16>
    "tpu.trace_start"() <{level = 10 : i32, message = "bqk,bkd->bqd"}> : () -> ()
    %cst_47 = arith.constant dense<0.000000e+00> : vector<2x8x16xf32>
    %112 = tpu.matmul %110, %111, %cst_47 {dimension_numbers = #tpu.dot_dimension_numbers<[2], [1], [1], [2], [0, 0, 0, 1, 1, 2], [0], [0]>} : vector<2x8x8xbf16>, vector<2x8x16xbf16>, vector<2x8x16xf32> -> vector<2x8x16xf32>
    "tpu.trace_stop"() : () -> ()
    %113 = vector.shape_cast %112 : vector<2x8x16xf32> to vector<16x16xf32>
    %114 = vector.extract_strided_slice %69 {offsets = [0, 0, 32], sizes = [2, 8, 16], strides = [1, 1, 1]} : vector<2x8x64xbf16> to vector<2x8x16xbf16>
    %115 = vector.extract_strided_slice %71 {offsets = [0, 0, 32], sizes = [2, 8, 16], strides = [1, 1, 1]} : vector<2x8x64xbf16> to vector<2x8x16xbf16>
    "tpu.trace_start"() <{level = 10 : i32, message = "bqd,bkd->bqk"}> : () -> ()
    %cst_48 = arith.constant dense<0.000000e+00> : vector<2x8x8xf32>
    %116 = tpu.matmul %114, %115, %cst_48 {dimension_numbers = #tpu.dot_dimension_numbers<[2], [2], [1], [1], [0, 0, 0, 1, 1, 1], [0], [0]>} : vector<2x8x16xbf16>, vector<2x8x16xbf16>, vector<2x8x8xf32> -> vector<2x8x8xf32>
    "tpu.trace_stop"() : () -> ()
    %cst_49 = arith.constant 2.500000e-01 : f32
    %117 = vector.broadcast %cst_49 : f32 to vector<2x8x8xf32>
    %118 = arith.mulf %116, %117 : vector<2x8x8xf32>
    %119 = arith.addf %118, %19 : vector<2x8x8xf32>
    %cst_50 = arith.constant dense<0xFF800000> : vector<2x8xf32>
    %120 = vector.multi_reduction <maximumf>, %119, %cst_50 [2] : vector<2x8x8xf32> to vector<2x8xf32>
    %121 = vector.shape_cast %120 : vector<2x8xf32> to vector<2x8x1xf32>
    %122 = vector.broadcast %121 : vector<2x8x1xf32> to vector<2x8x8xf32>
    %123 = arith.subf %119, %122 : vector<2x8x8xf32>
    %124 = math.exp %123 : vector<2x8x8xf32>
    %cst_51 = arith.constant dense<0.000000e+00> : vector<2x8xf32>
    %125 = vector.multi_reduction <add>, %124, %cst_51 [2] : vector<2x8x8xf32> to vector<2x8xf32>
    %126 = vector.shape_cast %125 : vector<2x8xf32> to vector<2x8x1xf32>
    %127 = tpu.reciprocal %126 {approx = true} : vector<2x8x1xf32> -> vector<2x8x1xf32>
    %128 = vector.broadcast %127 : vector<2x8x1xf32> to vector<2x8x8xf32>
    %129 = arith.mulf %124, %128 : vector<2x8x8xf32>
    %130 = arith.truncf %129 : vector<2x8x8xf32> to vector<2x8x8xbf16>
    %131 = vector.extract_strided_slice %73 {offsets = [0, 0, 32], sizes = [2, 8, 16], strides = [1, 1, 1]} : vector<2x8x64xbf16> to vector<2x8x16xbf16>
    "tpu.trace_start"() <{level = 10 : i32, message = "bqk,bkd->bqd"}> : () -> ()
    %cst_52 = arith.constant dense<0.000000e+00> : vector<2x8x16xf32>
    %132 = tpu.matmul %130, %131, %cst_52 {dimension_numbers = #tpu.dot_dimension_numbers<[2], [1], [1], [2], [0, 0, 0, 1, 1, 2], [0], [0]>} : vector<2x8x8xbf16>, vector<2x8x16xbf16>, vector<2x8x16xf32> -> vector<2x8x16xf32>
    "tpu.trace_stop"() : () -> ()
    %133 = vector.shape_cast %132 : vector<2x8x16xf32> to vector<16x16xf32>
    %134 = vector.extract_strided_slice %69 {offsets = [0, 0, 48], sizes = [2, 8, 16], strides = [1, 1, 1]} : vector<2x8x64xbf16> to vector<2x8x16xbf16>
    %135 = vector.extract_strided_slice %71 {offsets = [0, 0, 48], sizes = [2, 8, 16], strides = [1, 1, 1]} : vector<2x8x64xbf16> to vector<2x8x16xbf16>
    "tpu.trace_start"() <{level = 10 : i32, message = "bqd,bkd->bqk"}> : () -> ()
    %cst_53 = arith.constant dense<0.000000e+00> : vector<2x8x8xf32>
    %136 = tpu.matmul %134, %135, %cst_53 {dimension_numbers = #tpu.dot_dimension_numbers<[2], [2], [1], [1], [0, 0, 0, 1, 1, 1], [0], [0]>} : vector<2x8x16xbf16>, vector<2x8x16xbf16>, vector<2x8x8xf32> -> vector<2x8x8xf32>
    "tpu.trace_stop"() : () -> ()
    %cst_54 = arith.constant 2.500000e-01 : f32
    %137 = vector.broadcast %cst_54 : f32 to vector<2x8x8xf32>
    %138 = arith.mulf %136, %137 : vector<2x8x8xf32>
    %139 = arith.addf %138, %19 : vector<2x8x8xf32>
    %cst_55 = arith.constant dense<0xFF800000> : vector<2x8xf32>
    %140 = vector.multi_reduction <maximumf>, %139, %cst_55 [2] : vector<2x8x8xf32> to vector<2x8xf32>
    %141 = vector.shape_cast %140 : vector<2x8xf32> to vector<2x8x1xf32>
    %142 = vector.broadcast %141 : vector<2x8x1xf32> to vector<2x8x8xf32>
    %143 = arith.subf %139, %142 : vector<2x8x8xf32>
    %144 = math.exp %143 : vector<2x8x8xf32>
    %cst_56 = arith.constant dense<0.000000e+00> : vector<2x8xf32>
    %145 = vector.multi_reduction <add>, %144, %cst_56 [2] : vector<2x8x8xf32> to vector<2x8xf32>
    %146 = vector.shape_cast %145 : vector<2x8xf32> to vector<2x8x1xf32>
    %147 = tpu.reciprocal %146 {approx = true} : vector<2x8x1xf32> -> vector<2x8x1xf32>
    %148 = vector.broadcast %147 : vector<2x8x1xf32> to vector<2x8x8xf32>
    %149 = arith.mulf %144, %148 : vector<2x8x8xf32>
    %150 = arith.truncf %149 : vector<2x8x8xf32> to vector<2x8x8xbf16>
    %151 = vector.extract_strided_slice %73 {offsets = [0, 0, 48], sizes = [2, 8, 16], strides = [1, 1, 1]} : vector<2x8x64xbf16> to vector<2x8x16xbf16>
    "tpu.trace_start"() <{level = 10 : i32, message = "bqk,bkd->bqd"}> : () -> ()
    %cst_57 = arith.constant dense<0.000000e+00> : vector<2x8x16xf32>
    %152 = tpu.matmul %150, %151, %cst_57 {dimension_numbers = #tpu.dot_dimension_numbers<[2], [1], [1], [2], [0, 0, 0, 1, 1, 2], [0], [0]>} : vector<2x8x8xbf16>, vector<2x8x16xbf16>, vector<2x8x16xf32> -> vector<2x8x16xf32>
    "tpu.trace_stop"() : () -> ()
    %153 = vector.shape_cast %152 : vector<2x8x16xf32> to vector<16x16xf32>
    %154 = tpu.concatenate %93, %113, %133, %153 in 1 : vector<16x16xf32>, vector<16x16xf32>, vector<16x16xf32>, vector<16x16xf32> -> vector<16x64xf32>
    %155 = arith.truncf %154 : vector<16x64xf32> to vector<16x64xbf16>
    %cst_58 = arith.constant dense<0.000000e+00> : vector<16x64xf32>
    %156 = tpu.matmul %155, %65, %cst_58 {dimension_numbers = #tpu.dot_dimension_numbers<[1], [0], [0], [1], [0, 0, 1, 1], [], []>} : vector<16x64xbf16>, vector<64x64xbf16>, vector<16x64xf32> -> vector<16x64xf32>
    %157 = vector.broadcast %67 : vector<1x64xf32> to vector<16x64xf32>
    %158 = arith.addf %156, %157 : vector<16x64xf32>
    %159 = arith.addf %38, %158 : vector<16x64xf32>
    %c0_59 = arith.constant 0 : index
    %c0_60 = arith.constant 0 : index
    %c0_61 = arith.constant 0 : index
    %160 = vector.load %arg11[%c0_59, %c0_60, %c0_61] : memref<2x1x64xf32, #tpu.memory_space<vmem>>, vector<1x1x64xf32>
    %161 = vector.shape_cast %160 : vector<1x1x64xf32> to vector<1x64xf32>
    %c0_62 = arith.constant 0 : index
    %c0_63 = arith.constant 0 : index
    %c0_64 = arith.constant 0 : index
    %162 = vector.load %arg12[%c0_62, %c0_63, %c0_64] : memref<2x1x64xf32, #tpu.memory_space<vmem>>, vector<1x1x64xf32>
    %163 = vector.shape_cast %162 : vector<1x1x64xf32> to vector<1x64xf32>
    %cst_65 = arith.constant dense<0.000000e+00> : vector<16xf32>
    %164 = vector.multi_reduction <add>, %159, %cst_65 [1] : vector<16x64xf32> to vector<16xf32>
    %165 = vector.shape_cast %164 : vector<16xf32> to vector<16x1xf32>
    %cst_66 = arith.constant 6.400000e+01 : f32
    %166 = vector.broadcast %cst_66 : f32 to vector<16x1xf32>
    %167 = arith.divf %165, %166 : vector<16x1xf32>
    %168 = vector.broadcast %167 : vector<16x1xf32> to vector<16x64xf32>
    %169 = arith.subf %159, %168 : vector<16x64xf32>
    %170 = arith.mulf %169, %169 : vector<16x64xf32>
    %cst_67 = arith.constant dense<0.000000e+00> : vector<16xf32>
    %171 = vector.multi_reduction <add>, %170, %cst_67 [1] : vector<16x64xf32> to vector<16xf32>
    %172 = vector.shape_cast %171 : vector<16xf32> to vector<16x1xf32>
    %cst_68 = arith.constant 6.400000e+01 : f32
    %173 = vector.broadcast %cst_68 : f32 to vector<16x1xf32>
    %174 = arith.divf %172, %173 : vector<16x1xf32>
    %cst_69 = arith.constant 9.99999974E-6 : f32
    %175 = vector.broadcast %cst_69 : f32 to vector<16x1xf32>
    %176 = arith.addf %174, %175 : vector<16x1xf32>
    %177 = math.rsqrt %176 : vector<16x1xf32>
    %178 = vector.broadcast %177 : vector<16x1xf32> to vector<16x64xf32>
    %179 = arith.mulf %169, %178 : vector<16x64xf32>
    %180 = vector.broadcast %161 : vector<1x64xf32> to vector<16x64xf32>
    %181 = arith.mulf %179, %180 : vector<16x64xf32>
    %182 = vector.broadcast %163 : vector<1x64xf32> to vector<16x64xf32>
    %183 = arith.addf %181, %182 : vector<16x64xf32>
    %c0_70 = arith.constant 0 : index
    %c0_71 = arith.constant 0 : index
    %c0_72 = arith.constant 0 : index
    %184 = vector.load %arg13[%c0_70, %c0_71, %c0_72] : memref<2x64x128xbf16, #tpu.memory_space<vmem>>, vector<1x64x128xbf16>
    %185 = vector.shape_cast %184 : vector<1x64x128xbf16> to vector<64x128xbf16>
    %c0_73 = arith.constant 0 : index
    %c0_74 = arith.constant 0 : index
    %c0_75 = arith.constant 0 : index
    %186 = vector.load %arg14[%c0_73, %c0_74, %c0_75] : memref<2x1x128xf32, #tpu.memory_space<vmem>>, vector<1x1x128xf32>
    %187 = vector.shape_cast %186 : vector<1x1x128xf32> to vector<1x128xf32>
    %188 = arith.truncf %183 : vector<16x64xf32> to vector<16x64xbf16>
    %cst_76 = arith.constant dense<0.000000e+00> : vector<16x128xf32>
    %189 = tpu.matmul %188, %185, %cst_76 {dimension_numbers = #tpu.dot_dimension_numbers<[1], [0], [0], [1], [0, 0, 1, 1], [], []>} : vector<16x64xbf16>, vector<64x128xbf16>, vector<16x128xf32> -> vector<16x128xf32>
    %190 = vector.broadcast %187 : vector<1x128xf32> to vector<16x128xf32>
    %191 = arith.addf %189, %190 : vector<16x128xf32>
    %cst_77 = arith.constant 0.000000e+00 : f32
    %192 = vector.broadcast %cst_77 : f32 to vector<16x128xf32>
    %193 = arith.maximumf %191, %192 : vector<16x128xf32>
    %c0_78 = arith.constant 0 : index
    %c0_79 = arith.constant 0 : index
    %c0_80 = arith.constant 0 : index
    %194 = vector.load %arg15[%c0_78, %c0_79, %c0_80] : memref<2x128x64xbf16, #tpu.memory_space<vmem>>, vector<1x128x64xbf16>
    %195 = vector.shape_cast %194 : vector<1x128x64xbf16> to vector<128x64xbf16>
    %c0_81 = arith.constant 0 : index
    %c0_82 = arith.constant 0 : index
    %c0_83 = arith.constant 0 : index
    %196 = vector.load %arg16[%c0_81, %c0_82, %c0_83] : memref<2x1x64xf32, #tpu.memory_space<vmem>>, vector<1x1x64xf32>
    %197 = vector.shape_cast %196 : vector<1x1x64xf32> to vector<1x64xf32>
    %198 = arith.truncf %193 : vector<16x128xf32> to vector<16x128xbf16>
    %cst_84 = arith.constant dense<0.000000e+00> : vector<16x64xf32>
    %199 = tpu.matmul %198, %195, %cst_84 {dimension_numbers = #tpu.dot_dimension_numbers<[1], [0], [0], [1], [0, 0, 1, 1], [], []>} : vector<16x128xbf16>, vector<128x64xbf16>, vector<16x64xf32> -> vector<16x64xf32>
    %200 = vector.broadcast %197 : vector<1x64xf32> to vector<16x64xf32>
    %201 = arith.addf %199, %200 : vector<16x64xf32>
    %202 = arith.addf %183, %201 : vector<16x64xf32>
    %c0_85 = arith.constant 0 : index
    %c0_86 = arith.constant 0 : index
    %c0_87 = arith.constant 0 : index
    %203 = vector.load %arg17[%c0_85, %c0_86, %c0_87] : memref<2x1x64xf32, #tpu.memory_space<vmem>>, vector<1x1x64xf32>
    %204 = vector.shape_cast %203 : vector<1x1x64xf32> to vector<1x64xf32>
    %c0_88 = arith.constant 0 : index
    %c0_89 = arith.constant 0 : index
    %c0_90 = arith.constant 0 : index
    %205 = vector.load %arg18[%c0_88, %c0_89, %c0_90] : memref<2x1x64xf32, #tpu.memory_space<vmem>>, vector<1x1x64xf32>
    %206 = vector.shape_cast %205 : vector<1x1x64xf32> to vector<1x64xf32>
    %cst_91 = arith.constant dense<0.000000e+00> : vector<16xf32>
    %207 = vector.multi_reduction <add>, %202, %cst_91 [1] : vector<16x64xf32> to vector<16xf32>
    %208 = vector.shape_cast %207 : vector<16xf32> to vector<16x1xf32>
    %cst_92 = arith.constant 6.400000e+01 : f32
    %209 = vector.broadcast %cst_92 : f32 to vector<16x1xf32>
    %210 = arith.divf %208, %209 : vector<16x1xf32>
    %211 = vector.broadcast %210 : vector<16x1xf32> to vector<16x64xf32>
    %212 = arith.subf %202, %211 : vector<16x64xf32>
    %213 = arith.mulf %212, %212 : vector<16x64xf32>
    %cst_93 = arith.constant dense<0.000000e+00> : vector<16xf32>
    %214 = vector.multi_reduction <add>, %213, %cst_93 [1] : vector<16x64xf32> to vector<16xf32>
    %215 = vector.shape_cast %214 : vector<16xf32> to vector<16x1xf32>
    %cst_94 = arith.constant 6.400000e+01 : f32
    %216 = vector.broadcast %cst_94 : f32 to vector<16x1xf32>
    %217 = arith.divf %215, %216 : vector<16x1xf32>
    %cst_95 = arith.constant 9.99999974E-6 : f32
    %218 = vector.broadcast %cst_95 : f32 to vector<16x1xf32>
    %219 = arith.addf %217, %218 : vector<16x1xf32>
    %220 = math.rsqrt %219 : vector<16x1xf32>
    %221 = vector.broadcast %220 : vector<16x1xf32> to vector<16x64xf32>
    %222 = arith.mulf %212, %221 : vector<16x64xf32>
    %223 = vector.broadcast %204 : vector<1x64xf32> to vector<16x64xf32>
    %224 = arith.mulf %222, %223 : vector<16x64xf32>
    %225 = vector.broadcast %206 : vector<1x64xf32> to vector<16x64xf32>
    %226 = arith.addf %224, %225 : vector<16x64xf32>
    %c1 = arith.constant 1 : index
    %c0_96 = arith.constant 0 : index
    %c0_97 = arith.constant 0 : index
    %227 = vector.load %arg7[%c1, %c0_96, %c0_97] : memref<2x64x192xbf16, #tpu.memory_space<vmem>>, vector<1x64x192xbf16>
    %228 = vector.shape_cast %227 : vector<1x64x192xbf16> to vector<64x192xbf16>
    %c1_98 = arith.constant 1 : index
    %c0_99 = arith.constant 0 : index
    %c0_100 = arith.constant 0 : index
    %229 = vector.load %arg8[%c1_98, %c0_99, %c0_100] : memref<2x1x192xf32, #tpu.memory_space<vmem>>, vector<1x1x192xf32>
    %230 = vector.shape_cast %229 : vector<1x1x192xf32> to vector<1x192xf32>
    %231 = arith.truncf %226 : vector<16x64xf32> to vector<16x64xbf16>
    %cst_101 = arith.constant dense<0.000000e+00> : vector<16x192xf32>
    %232 = tpu.matmul %231, %228, %cst_101 {dimension_numbers = #tpu.dot_dimension_numbers<[1], [0], [0], [1], [0, 0, 1, 1], [], []>} : vector<16x64xbf16>, vector<64x192xbf16>, vector<16x192xf32> -> vector<16x192xf32>
    %233 = vector.broadcast %230 : vector<1x192xf32> to vector<16x192xf32>
    %234 = arith.addf %232, %233 : vector<16x192xf32>
    %235 = vector.extract_strided_slice %234 {offsets = [0, 0], sizes = [16, 64], strides = [1, 1]} : vector<16x192xf32> to vector<16x64xf32>
    %236 = vector.extract_strided_slice %234 {offsets = [0, 64], sizes = [16, 64], strides = [1, 1]} : vector<16x192xf32> to vector<16x64xf32>
    %237 = vector.extract_strided_slice %234 {offsets = [0, 128], sizes = [16, 64], strides = [1, 1]} : vector<16x192xf32> to vector<16x64xf32>
    %c1_102 = arith.constant 1 : index
    %c0_103 = arith.constant 0 : index
    %c0_104 = arith.constant 0 : index
    %238 = vector.load %arg9[%c1_102, %c0_103, %c0_104] : memref<2x64x64xbf16, #tpu.memory_space<vmem>>, vector<1x64x64xbf16>
    %239 = vector.shape_cast %238 : vector<1x64x64xbf16> to vector<64x64xbf16>
    %c1_105 = arith.constant 1 : index
    %c0_106 = arith.constant 0 : index
    %c0_107 = arith.constant 0 : index
    %240 = vector.load %arg10[%c1_105, %c0_106, %c0_107] : memref<2x1x64xf32, #tpu.memory_space<vmem>>, vector<1x1x64xf32>
    %241 = vector.shape_cast %240 : vector<1x1x64xf32> to vector<1x64xf32>
    %242 = vector.shape_cast %235 : vector<16x64xf32> to vector<2x8x64xf32>
    %243 = arith.truncf %242 : vector<2x8x64xf32> to vector<2x8x64xbf16>
    %244 = vector.shape_cast %236 : vector<16x64xf32> to vector<2x8x64xf32>
    %245 = arith.truncf %244 : vector<2x8x64xf32> to vector<2x8x64xbf16>
    %246 = vector.shape_cast %237 : vector<16x64xf32> to vector<2x8x64xf32>
    %247 = arith.truncf %246 : vector<2x8x64xf32> to vector<2x8x64xbf16>
    %248 = vector.extract_strided_slice %243 {offsets = [0, 0, 0], sizes = [2, 8, 16], strides = [1, 1, 1]} : vector<2x8x64xbf16> to vector<2x8x16xbf16>
    %249 = vector.extract_strided_slice %245 {offsets = [0, 0, 0], sizes = [2, 8, 16], strides = [1, 1, 1]} : vector<2x8x64xbf16> to vector<2x8x16xbf16>
    "tpu.trace_start"() <{level = 10 : i32, message = "bqd,bkd->bqk"}> : () -> ()
    %cst_108 = arith.constant dense<0.000000e+00> : vector<2x8x8xf32>
    %250 = tpu.matmul %248, %249, %cst_108 {dimension_numbers = #tpu.dot_dimension_numbers<[2], [2], [1], [1], [0, 0, 0, 1, 1, 1], [0], [0]>} : vector<2x8x16xbf16>, vector<2x8x16xbf16>, vector<2x8x8xf32> -> vector<2x8x8xf32>
    "tpu.trace_stop"() : () -> ()
    %cst_109 = arith.constant 2.500000e-01 : f32
    %251 = vector.broadcast %cst_109 : f32 to vector<2x8x8xf32>
    %252 = arith.mulf %250, %251 : vector<2x8x8xf32>
    %253 = arith.addf %252, %19 : vector<2x8x8xf32>
    %cst_110 = arith.constant dense<0xFF800000> : vector<2x8xf32>
    %254 = vector.multi_reduction <maximumf>, %253, %cst_110 [2] : vector<2x8x8xf32> to vector<2x8xf32>
    %255 = vector.shape_cast %254 : vector<2x8xf32> to vector<2x8x1xf32>
    %256 = vector.broadcast %255 : vector<2x8x1xf32> to vector<2x8x8xf32>
    %257 = arith.subf %253, %256 : vector<2x8x8xf32>
    %258 = math.exp %257 : vector<2x8x8xf32>
    %cst_111 = arith.constant dense<0.000000e+00> : vector<2x8xf32>
    %259 = vector.multi_reduction <add>, %258, %cst_111 [2] : vector<2x8x8xf32> to vector<2x8xf32>
    %260 = vector.shape_cast %259 : vector<2x8xf32> to vector<2x8x1xf32>
    %261 = tpu.reciprocal %260 {approx = true} : vector<2x8x1xf32> -> vector<2x8x1xf32>
    %262 = vector.broadcast %261 : vector<2x8x1xf32> to vector<2x8x8xf32>
    %263 = arith.mulf %258, %262 : vector<2x8x8xf32>
    %264 = arith.truncf %263 : vector<2x8x8xf32> to vector<2x8x8xbf16>
    %265 = vector.extract_strided_slice %247 {offsets = [0, 0, 0], sizes = [2, 8, 16], strides = [1, 1, 1]} : vector<2x8x64xbf16> to vector<2x8x16xbf16>
    "tpu.trace_start"() <{level = 10 : i32, message = "bqk,bkd->bqd"}> : () -> ()
    %cst_112 = arith.constant dense<0.000000e+00> : vector<2x8x16xf32>
    %266 = tpu.matmul %264, %265, %cst_112 {dimension_numbers = #tpu.dot_dimension_numbers<[2], [1], [1], [2], [0, 0, 0, 1, 1, 2], [0], [0]>} : vector<2x8x8xbf16>, vector<2x8x16xbf16>, vector<2x8x16xf32> -> vector<2x8x16xf32>
    "tpu.trace_stop"() : () -> ()
    %267 = vector.shape_cast %266 : vector<2x8x16xf32> to vector<16x16xf32>
    %268 = vector.extract_strided_slice %243 {offsets = [0, 0, 16], sizes = [2, 8, 16], strides = [1, 1, 1]} : vector<2x8x64xbf16> to vector<2x8x16xbf16>
    %269 = vector.extract_strided_slice %245 {offsets = [0, 0, 16], sizes = [2, 8, 16], strides = [1, 1, 1]} : vector<2x8x64xbf16> to vector<2x8x16xbf16>
    "tpu.trace_start"() <{level = 10 : i32, message = "bqd,bkd->bqk"}> : () -> ()
    %cst_113 = arith.constant dense<0.000000e+00> : vector<2x8x8xf32>
    %270 = tpu.matmul %268, %269, %cst_113 {dimension_numbers = #tpu.dot_dimension_numbers<[2], [2], [1], [1], [0, 0, 0, 1, 1, 1], [0], [0]>} : vector<2x8x16xbf16>, vector<2x8x16xbf16>, vector<2x8x8xf32> -> vector<2x8x8xf32>
    "tpu.trace_stop"() : () -> ()
    %cst_114 = arith.constant 2.500000e-01 : f32
    %271 = vector.broadcast %cst_114 : f32 to vector<2x8x8xf32>
    %272 = arith.mulf %270, %271 : vector<2x8x8xf32>
    %273 = arith.addf %272, %19 : vector<2x8x8xf32>
    %cst_115 = arith.constant dense<0xFF800000> : vector<2x8xf32>
    %274 = vector.multi_reduction <maximumf>, %273, %cst_115 [2] : vector<2x8x8xf32> to vector<2x8xf32>
    %275 = vector.shape_cast %274 : vector<2x8xf32> to vector<2x8x1xf32>
    %276 = vector.broadcast %275 : vector<2x8x1xf32> to vector<2x8x8xf32>
    %277 = arith.subf %273, %276 : vector<2x8x8xf32>
    %278 = math.exp %277 : vector<2x8x8xf32>
    %cst_116 = arith.constant dense<0.000000e+00> : vector<2x8xf32>
    %279 = vector.multi_reduction <add>, %278, %cst_116 [2] : vector<2x8x8xf32> to vector<2x8xf32>
    %280 = vector.shape_cast %279 : vector<2x8xf32> to vector<2x8x1xf32>
    %281 = tpu.reciprocal %280 {approx = true} : vector<2x8x1xf32> -> vector<2x8x1xf32>
    %282 = vector.broadcast %281 : vector<2x8x1xf32> to vector<2x8x8xf32>
    %283 = arith.mulf %278, %282 : vector<2x8x8xf32>
    %284 = arith.truncf %283 : vector<2x8x8xf32> to vector<2x8x8xbf16>
    %285 = vector.extract_strided_slice %247 {offsets = [0, 0, 16], sizes = [2, 8, 16], strides = [1, 1, 1]} : vector<2x8x64xbf16> to vector<2x8x16xbf16>
    "tpu.trace_start"() <{level = 10 : i32, message = "bqk,bkd->bqd"}> : () -> ()
    %cst_117 = arith.constant dense<0.000000e+00> : vector<2x8x16xf32>
    %286 = tpu.matmul %284, %285, %cst_117 {dimension_numbers = #tpu.dot_dimension_numbers<[2], [1], [1], [2], [0, 0, 0, 1, 1, 2], [0], [0]>} : vector<2x8x8xbf16>, vector<2x8x16xbf16>, vector<2x8x16xf32> -> vector<2x8x16xf32>
    "tpu.trace_stop"() : () -> ()
    %287 = vector.shape_cast %286 : vector<2x8x16xf32> to vector<16x16xf32>
    %288 = vector.extract_strided_slice %243 {offsets = [0, 0, 32], sizes = [2, 8, 16], strides = [1, 1, 1]} : vector<2x8x64xbf16> to vector<2x8x16xbf16>
    %289 = vector.extract_strided_slice %245 {offsets = [0, 0, 32], sizes = [2, 8, 16], strides = [1, 1, 1]} : vector<2x8x64xbf16> to vector<2x8x16xbf16>
    "tpu.trace_start"() <{level = 10 : i32, message = "bqd,bkd->bqk"}> : () -> ()
    %cst_118 = arith.constant dense<0.000000e+00> : vector<2x8x8xf32>
    %290 = tpu.matmul %288, %289, %cst_118 {dimension_numbers = #tpu.dot_dimension_numbers<[2], [2], [1], [1], [0, 0, 0, 1, 1, 1], [0], [0]>} : vector<2x8x16xbf16>, vector<2x8x16xbf16>, vector<2x8x8xf32> -> vector<2x8x8xf32>
    "tpu.trace_stop"() : () -> ()
    %cst_119 = arith.constant 2.500000e-01 : f32
    %291 = vector.broadcast %cst_119 : f32 to vector<2x8x8xf32>
    %292 = arith.mulf %290, %291 : vector<2x8x8xf32>
    %293 = arith.addf %292, %19 : vector<2x8x8xf32>
    %cst_120 = arith.constant dense<0xFF800000> : vector<2x8xf32>
    %294 = vector.multi_reduction <maximumf>, %293, %cst_120 [2] : vector<2x8x8xf32> to vector<2x8xf32>
    %295 = vector.shape_cast %294 : vector<2x8xf32> to vector<2x8x1xf32>
    %296 = vector.broadcast %295 : vector<2x8x1xf32> to vector<2x8x8xf32>
    %297 = arith.subf %293, %296 : vector<2x8x8xf32>
    %298 = math.exp %297 : vector<2x8x8xf32>
    %cst_121 = arith.constant dense<0.000000e+00> : vector<2x8xf32>
    %299 = vector.multi_reduction <add>, %298, %cst_121 [2] : vector<2x8x8xf32> to vector<2x8xf32>
    %300 = vector.shape_cast %299 : vector<2x8xf32> to vector<2x8x1xf32>
    %301 = tpu.reciprocal %300 {approx = true} : vector<2x8x1xf32> -> vector<2x8x1xf32>
    %302 = vector.broadcast %301 : vector<2x8x1xf32> to vector<2x8x8xf32>
    %303 = arith.mulf %298, %302 : vector<2x8x8xf32>
    %304 = arith.truncf %303 : vector<2x8x8xf32> to vector<2x8x8xbf16>
    %305 = vector.extract_strided_slice %247 {offsets = [0, 0, 32], sizes = [2, 8, 16], strides = [1, 1, 1]} : vector<2x8x64xbf16> to vector<2x8x16xbf16>
    "tpu.trace_start"() <{level = 10 : i32, message = "bqk,bkd->bqd"}> : () -> ()
    %cst_122 = arith.constant dense<0.000000e+00> : vector<2x8x16xf32>
    %306 = tpu.matmul %304, %305, %cst_122 {dimension_numbers = #tpu.dot_dimension_numbers<[2], [1], [1], [2], [0, 0, 0, 1, 1, 2], [0], [0]>} : vector<2x8x8xbf16>, vector<2x8x16xbf16>, vector<2x8x16xf32> -> vector<2x8x16xf32>
    "tpu.trace_stop"() : () -> ()
    %307 = vector.shape_cast %306 : vector<2x8x16xf32> to vector<16x16xf32>
    %308 = vector.extract_strided_slice %243 {offsets = [0, 0, 48], sizes = [2, 8, 16], strides = [1, 1, 1]} : vector<2x8x64xbf16> to vector<2x8x16xbf16>
    %309 = vector.extract_strided_slice %245 {offsets = [0, 0, 48], sizes = [2, 8, 16], strides = [1, 1, 1]} : vector<2x8x64xbf16> to vector<2x8x16xbf16>
    "tpu.trace_start"() <{level = 10 : i32, message = "bqd,bkd->bqk"}> : () -> ()
    %cst_123 = arith.constant dense<0.000000e+00> : vector<2x8x8xf32>
    %310 = tpu.matmul %308, %309, %cst_123 {dimension_numbers = #tpu.dot_dimension_numbers<[2], [2], [1], [1], [0, 0, 0, 1, 1, 1], [0], [0]>} : vector<2x8x16xbf16>, vector<2x8x16xbf16>, vector<2x8x8xf32> -> vector<2x8x8xf32>
    "tpu.trace_stop"() : () -> ()
    %cst_124 = arith.constant 2.500000e-01 : f32
    %311 = vector.broadcast %cst_124 : f32 to vector<2x8x8xf32>
    %312 = arith.mulf %310, %311 : vector<2x8x8xf32>
    %313 = arith.addf %312, %19 : vector<2x8x8xf32>
    %cst_125 = arith.constant dense<0xFF800000> : vector<2x8xf32>
    %314 = vector.multi_reduction <maximumf>, %313, %cst_125 [2] : vector<2x8x8xf32> to vector<2x8xf32>
    %315 = vector.shape_cast %314 : vector<2x8xf32> to vector<2x8x1xf32>
    %316 = vector.broadcast %315 : vector<2x8x1xf32> to vector<2x8x8xf32>
    %317 = arith.subf %313, %316 : vector<2x8x8xf32>
    %318 = math.exp %317 : vector<2x8x8xf32>
    %cst_126 = arith.constant dense<0.000000e+00> : vector<2x8xf32>
    %319 = vector.multi_reduction <add>, %318, %cst_126 [2] : vector<2x8x8xf32> to vector<2x8xf32>
    %320 = vector.shape_cast %319 : vector<2x8xf32> to vector<2x8x1xf32>
    %321 = tpu.reciprocal %320 {approx = true} : vector<2x8x1xf32> -> vector<2x8x1xf32>
    %322 = vector.broadcast %321 : vector<2x8x1xf32> to vector<2x8x8xf32>
    %323 = arith.mulf %318, %322 : vector<2x8x8xf32>
    %324 = arith.truncf %323 : vector<2x8x8xf32> to vector<2x8x8xbf16>
    %325 = vector.extract_strided_slice %247 {offsets = [0, 0, 48], sizes = [2, 8, 16], strides = [1, 1, 1]} : vector<2x8x64xbf16> to vector<2x8x16xbf16>
    "tpu.trace_start"() <{level = 10 : i32, message = "bqk,bkd->bqd"}> : () -> ()
    %cst_127 = arith.constant dense<0.000000e+00> : vector<2x8x16xf32>
    %326 = tpu.matmul %324, %325, %cst_127 {dimension_numbers = #tpu.dot_dimension_numbers<[2], [1], [1], [2], [0, 0, 0, 1, 1, 2], [0], [0]>} : vector<2x8x8xbf16>, vector<2x8x16xbf16>, vector<2x8x16xf32> -> vector<2x8x16xf32>
    "tpu.trace_stop"() : () -> ()
    %327 = vector.shape_cast %326 : vector<2x8x16xf32> to vector<16x16xf32>
    %328 = tpu.concatenate %267, %287, %307, %327 in 1 : vector<16x16xf32>, vector<16x16xf32>, vector<16x16xf32>, vector<16x16xf32> -> vector<16x64xf32>
    %329 = arith.truncf %328 : vector<16x64xf32> to vector<16x64xbf16>
    %cst_128 = arith.constant dense<0.000000e+00> : vector<16x64xf32>
    %330 = tpu.matmul %329, %239, %cst_128 {dimension_numbers = #tpu.dot_dimension_numbers<[1], [0], [0], [1], [0, 0, 1, 1], [], []>} : vector<16x64xbf16>, vector<64x64xbf16>, vector<16x64xf32> -> vector<16x64xf32>
    %331 = vector.broadcast %241 : vector<1x64xf32> to vector<16x64xf32>
    %332 = arith.addf %330, %331 : vector<16x64xf32>
    %333 = arith.addf %226, %332 : vector<16x64xf32>
    %c1_129 = arith.constant 1 : index
    %c0_130 = arith.constant 0 : index
    %c0_131 = arith.constant 0 : index
    %334 = vector.load %arg11[%c1_129, %c0_130, %c0_131] : memref<2x1x64xf32, #tpu.memory_space<vmem>>, vector<1x1x64xf32>
    %335 = vector.shape_cast %334 : vector<1x1x64xf32> to vector<1x64xf32>
    %c1_132 = arith.constant 1 : index
    %c0_133 = arith.constant 0 : index
    %c0_134 = arith.constant 0 : index
    %336 = vector.load %arg12[%c1_132, %c0_133, %c0_134] : memref<2x1x64xf32, #tpu.memory_space<vmem>>, vector<1x1x64xf32>
    %337 = vector.shape_cast %336 : vector<1x1x64xf32> to vector<1x64xf32>
    %cst_135 = arith.constant dense<0.000000e+00> : vector<16xf32>
    %338 = vector.multi_reduction <add>, %333, %cst_135 [1] : vector<16x64xf32> to vector<16xf32>
    %339 = vector.shape_cast %338 : vector<16xf32> to vector<16x1xf32>
    %cst_136 = arith.constant 6.400000e+01 : f32
    %340 = vector.broadcast %cst_136 : f32 to vector<16x1xf32>
    %341 = arith.divf %339, %340 : vector<16x1xf32>
    %342 = vector.broadcast %341 : vector<16x1xf32> to vector<16x64xf32>
    %343 = arith.subf %333, %342 : vector<16x64xf32>
    %344 = arith.mulf %343, %343 : vector<16x64xf32>
    %cst_137 = arith.constant dense<0.000000e+00> : vector<16xf32>
    %345 = vector.multi_reduction <add>, %344, %cst_137 [1] : vector<16x64xf32> to vector<16xf32>
    %346 = vector.shape_cast %345 : vector<16xf32> to vector<16x1xf32>
    %cst_138 = arith.constant 6.400000e+01 : f32
    %347 = vector.broadcast %cst_138 : f32 to vector<16x1xf32>
    %348 = arith.divf %346, %347 : vector<16x1xf32>
    %cst_139 = arith.constant 9.99999974E-6 : f32
    %349 = vector.broadcast %cst_139 : f32 to vector<16x1xf32>
    %350 = arith.addf %348, %349 : vector<16x1xf32>
    %351 = math.rsqrt %350 : vector<16x1xf32>
    %352 = vector.broadcast %351 : vector<16x1xf32> to vector<16x64xf32>
    %353 = arith.mulf %343, %352 : vector<16x64xf32>
    %354 = vector.broadcast %335 : vector<1x64xf32> to vector<16x64xf32>
    %355 = arith.mulf %353, %354 : vector<16x64xf32>
    %356 = vector.broadcast %337 : vector<1x64xf32> to vector<16x64xf32>
    %357 = arith.addf %355, %356 : vector<16x64xf32>
    %c1_140 = arith.constant 1 : index
    %c0_141 = arith.constant 0 : index
    %c0_142 = arith.constant 0 : index
    %358 = vector.load %arg13[%c1_140, %c0_141, %c0_142] : memref<2x64x128xbf16, #tpu.memory_space<vmem>>, vector<1x64x128xbf16>
    %359 = vector.shape_cast %358 : vector<1x64x128xbf16> to vector<64x128xbf16>
    %c1_143 = arith.constant 1 : index
    %c0_144 = arith.constant 0 : index
    %c0_145 = arith.constant 0 : index
    %360 = vector.load %arg14[%c1_143, %c0_144, %c0_145] : memref<2x1x128xf32, #tpu.memory_space<vmem>>, vector<1x1x128xf32>
    %361 = vector.shape_cast %360 : vector<1x1x128xf32> to vector<1x128xf32>
    %362 = arith.truncf %357 : vector<16x64xf32> to vector<16x64xbf16>
    %cst_146 = arith.constant dense<0.000000e+00> : vector<16x128xf32>
    %363 = tpu.matmul %362, %359, %cst_146 {dimension_numbers = #tpu.dot_dimension_numbers<[1], [0], [0], [1], [0, 0, 1, 1], [], []>} : vector<16x64xbf16>, vector<64x128xbf16>, vector<16x128xf32> -> vector<16x128xf32>
    %364 = vector.broadcast %361 : vector<1x128xf32> to vector<16x128xf32>
    %365 = arith.addf %363, %364 : vector<16x128xf32>
    %cst_147 = arith.constant 0.000000e+00 : f32
    %366 = vector.broadcast %cst_147 : f32 to vector<16x128xf32>
    %367 = arith.maximumf %365, %366 : vector<16x128xf32>
    %c1_148 = arith.constant 1 : index
    %c0_149 = arith.constant 0 : index
    %c0_150 = arith.constant 0 : index
    %368 = vector.load %arg15[%c1_148, %c0_149, %c0_150] : memref<2x128x64xbf16, #tpu.memory_space<vmem>>, vector<1x128x64xbf16>
    %369 = vector.shape_cast %368 : vector<1x128x64xbf16> to vector<128x64xbf16>
    %c1_151 = arith.constant 1 : index
    %c0_152 = arith.constant 0 : index
    %c0_153 = arith.constant 0 : index
    %370 = vector.load %arg16[%c1_151, %c0_152, %c0_153] : memref<2x1x64xf32, #tpu.memory_space<vmem>>, vector<1x1x64xf32>
    %371 = vector.shape_cast %370 : vector<1x1x64xf32> to vector<1x64xf32>
    %372 = arith.truncf %367 : vector<16x128xf32> to vector<16x128xbf16>
    %cst_154 = arith.constant dense<0.000000e+00> : vector<16x64xf32>
    %373 = tpu.matmul %372, %369, %cst_154 {dimension_numbers = #tpu.dot_dimension_numbers<[1], [0], [0], [1], [0, 0, 1, 1], [], []>} : vector<16x128xbf16>, vector<128x64xbf16>, vector<16x64xf32> -> vector<16x64xf32>
    %374 = vector.broadcast %371 : vector<1x64xf32> to vector<16x64xf32>
    %375 = arith.addf %373, %374 : vector<16x64xf32>
    %376 = arith.addf %357, %375 : vector<16x64xf32>
    %c1_155 = arith.constant 1 : index
    %c0_156 = arith.constant 0 : index
    %c0_157 = arith.constant 0 : index
    %377 = vector.load %arg17[%c1_155, %c0_156, %c0_157] : memref<2x1x64xf32, #tpu.memory_space<vmem>>, vector<1x1x64xf32>
    %378 = vector.shape_cast %377 : vector<1x1x64xf32> to vector<1x64xf32>
    %c1_158 = arith.constant 1 : index
    %c0_159 = arith.constant 0 : index
    %c0_160 = arith.constant 0 : index
    %379 = vector.load %arg18[%c1_158, %c0_159, %c0_160] : memref<2x1x64xf32, #tpu.memory_space<vmem>>, vector<1x1x64xf32>
    %380 = vector.shape_cast %379 : vector<1x1x64xf32> to vector<1x64xf32>
    %cst_161 = arith.constant dense<0.000000e+00> : vector<16xf32>
    %381 = vector.multi_reduction <add>, %376, %cst_161 [1] : vector<16x64xf32> to vector<16xf32>
    %382 = vector.shape_cast %381 : vector<16xf32> to vector<16x1xf32>
    %cst_162 = arith.constant 6.400000e+01 : f32
    %383 = vector.broadcast %cst_162 : f32 to vector<16x1xf32>
    %384 = arith.divf %382, %383 : vector<16x1xf32>
    %385 = vector.broadcast %384 : vector<16x1xf32> to vector<16x64xf32>
    %386 = arith.subf %376, %385 : vector<16x64xf32>
    %387 = arith.mulf %386, %386 : vector<16x64xf32>
    %cst_163 = arith.constant dense<0.000000e+00> : vector<16xf32>
    %388 = vector.multi_reduction <add>, %387, %cst_163 [1] : vector<16x64xf32> to vector<16xf32>
    %389 = vector.shape_cast %388 : vector<16xf32> to vector<16x1xf32>
    %cst_164 = arith.constant 6.400000e+01 : f32
    %390 = vector.broadcast %cst_164 : f32 to vector<16x1xf32>
    %391 = arith.divf %389, %390 : vector<16x1xf32>
    %cst_165 = arith.constant 9.99999974E-6 : f32
    %392 = vector.broadcast %cst_165 : f32 to vector<16x1xf32>
    %393 = arith.addf %391, %392 : vector<16x1xf32>
    %394 = math.rsqrt %393 : vector<16x1xf32>
    %395 = vector.broadcast %394 : vector<16x1xf32> to vector<16x64xf32>
    %396 = arith.mulf %386, %395 : vector<16x64xf32>
    %397 = vector.broadcast %378 : vector<1x64xf32> to vector<16x64xf32>
    %398 = arith.mulf %396, %397 : vector<16x64xf32>
    %399 = vector.broadcast %380 : vector<1x64xf32> to vector<16x64xf32>
    %400 = arith.addf %398, %399 : vector<16x64xf32>
    %c0_166 = arith.constant 0 : index
    %c0_167 = arith.constant 0 : index
    %c0_168 = arith.constant 0 : index
    %401 = vector.load %arg19[%c0_166, %c0_167, %c0_168] : memref<2x64x192xbf16, #tpu.memory_space<vmem>>, vector<1x64x192xbf16>
    %402 = vector.shape_cast %401 : vector<1x64x192xbf16> to vector<64x192xbf16>
    %c0_169 = arith.constant 0 : index
    %c0_170 = arith.constant 0 : index
    %c0_171 = arith.constant 0 : index
    %403 = vector.load %arg20[%c0_169, %c0_170, %c0_171] : memref<2x1x192xf32, #tpu.memory_space<vmem>>, vector<1x1x192xf32>
    %404 = vector.shape_cast %403 : vector<1x1x192xf32> to vector<1x192xf32>
    %405 = arith.truncf %52 : vector<16x64xf32> to vector<16x64xbf16>
    %cst_172 = arith.constant dense<0.000000e+00> : vector<16x192xf32>
    %406 = tpu.matmul %405, %402, %cst_172 {dimension_numbers = #tpu.dot_dimension_numbers<[1], [0], [0], [1], [0, 0, 1, 1], [], []>} : vector<16x64xbf16>, vector<64x192xbf16>, vector<16x192xf32> -> vector<16x192xf32>
    %407 = vector.broadcast %404 : vector<1x192xf32> to vector<16x192xf32>
    %408 = arith.addf %406, %407 : vector<16x192xf32>
    %409 = vector.extract_strided_slice %408 {offsets = [0, 0], sizes = [16, 64], strides = [1, 1]} : vector<16x192xf32> to vector<16x64xf32>
    %410 = vector.extract_strided_slice %408 {offsets = [0, 64], sizes = [16, 64], strides = [1, 1]} : vector<16x192xf32> to vector<16x64xf32>
    %411 = vector.extract_strided_slice %408 {offsets = [0, 128], sizes = [16, 64], strides = [1, 1]} : vector<16x192xf32> to vector<16x64xf32>
    %c0_173 = arith.constant 0 : index
    %c0_174 = arith.constant 0 : index
    %c0_175 = arith.constant 0 : index
    %412 = vector.load %arg21[%c0_173, %c0_174, %c0_175] : memref<2x64x64xbf16, #tpu.memory_space<vmem>>, vector<1x64x64xbf16>
    %413 = vector.shape_cast %412 : vector<1x64x64xbf16> to vector<64x64xbf16>
    %c0_176 = arith.constant 0 : index
    %c0_177 = arith.constant 0 : index
    %c0_178 = arith.constant 0 : index
    %414 = vector.load %arg22[%c0_176, %c0_177, %c0_178] : memref<2x1x64xf32, #tpu.memory_space<vmem>>, vector<1x1x64xf32>
    %415 = vector.shape_cast %414 : vector<1x1x64xf32> to vector<1x64xf32>
    %416 = vector.shape_cast %409 : vector<16x64xf32> to vector<2x8x64xf32>
    %417 = arith.truncf %416 : vector<2x8x64xf32> to vector<2x8x64xbf16>
    %418 = vector.shape_cast %410 : vector<16x64xf32> to vector<2x8x64xf32>
    %419 = arith.truncf %418 : vector<2x8x64xf32> to vector<2x8x64xbf16>
    %420 = vector.shape_cast %411 : vector<16x64xf32> to vector<2x8x64xf32>
    %421 = arith.truncf %420 : vector<2x8x64xf32> to vector<2x8x64xbf16>
    %422 = vector.extract_strided_slice %417 {offsets = [0, 0, 0], sizes = [2, 8, 16], strides = [1, 1, 1]} : vector<2x8x64xbf16> to vector<2x8x16xbf16>
    %423 = vector.extract_strided_slice %419 {offsets = [0, 0, 0], sizes = [2, 8, 16], strides = [1, 1, 1]} : vector<2x8x64xbf16> to vector<2x8x16xbf16>
    "tpu.trace_start"() <{level = 10 : i32, message = "bqd,bkd->bqk"}> : () -> ()
    %cst_179 = arith.constant dense<0.000000e+00> : vector<2x8x8xf32>
    %424 = tpu.matmul %422, %423, %cst_179 {dimension_numbers = #tpu.dot_dimension_numbers<[2], [2], [1], [1], [0, 0, 0, 1, 1, 1], [0], [0]>} : vector<2x8x16xbf16>, vector<2x8x16xbf16>, vector<2x8x8xf32> -> vector<2x8x8xf32>
    "tpu.trace_stop"() : () -> ()
    %cst_180 = arith.constant 2.500000e-01 : f32
    %425 = vector.broadcast %cst_180 : f32 to vector<2x8x8xf32>
    %426 = arith.mulf %424, %425 : vector<2x8x8xf32>
    %427 = arith.addf %426, %24 : vector<2x8x8xf32>
    %cst_181 = arith.constant dense<0xFF800000> : vector<2x8xf32>
    %428 = vector.multi_reduction <maximumf>, %427, %cst_181 [2] : vector<2x8x8xf32> to vector<2x8xf32>
    %429 = vector.shape_cast %428 : vector<2x8xf32> to vector<2x8x1xf32>
    %430 = vector.broadcast %429 : vector<2x8x1xf32> to vector<2x8x8xf32>
    %431 = arith.subf %427, %430 : vector<2x8x8xf32>
    %432 = math.exp %431 : vector<2x8x8xf32>
    %cst_182 = arith.constant dense<0.000000e+00> : vector<2x8xf32>
    %433 = vector.multi_reduction <add>, %432, %cst_182 [2] : vector<2x8x8xf32> to vector<2x8xf32>
    %434 = vector.shape_cast %433 : vector<2x8xf32> to vector<2x8x1xf32>
    %435 = tpu.reciprocal %434 {approx = true} : vector<2x8x1xf32> -> vector<2x8x1xf32>
    %436 = vector.broadcast %435 : vector<2x8x1xf32> to vector<2x8x8xf32>
    %437 = arith.mulf %432, %436 : vector<2x8x8xf32>
    %438 = arith.truncf %437 : vector<2x8x8xf32> to vector<2x8x8xbf16>
    %439 = vector.extract_strided_slice %421 {offsets = [0, 0, 0], sizes = [2, 8, 16], strides = [1, 1, 1]} : vector<2x8x64xbf16> to vector<2x8x16xbf16>
    "tpu.trace_start"() <{level = 10 : i32, message = "bqk,bkd->bqd"}> : () -> ()
    %cst_183 = arith.constant dense<0.000000e+00> : vector<2x8x16xf32>
    %440 = tpu.matmul %438, %439, %cst_183 {dimension_numbers = #tpu.dot_dimension_numbers<[2], [1], [1], [2], [0, 0, 0, 1, 1, 2], [0], [0]>} : vector<2x8x8xbf16>, vector<2x8x16xbf16>, vector<2x8x16xf32> -> vector<2x8x16xf32>
    "tpu.trace_stop"() : () -> ()
    %441 = vector.shape_cast %440 : vector<2x8x16xf32> to vector<16x16xf32>
    %442 = vector.extract_strided_slice %417 {offsets = [0, 0, 16], sizes = [2, 8, 16], strides = [1, 1, 1]} : vector<2x8x64xbf16> to vector<2x8x16xbf16>
    %443 = vector.extract_strided_slice %419 {offsets = [0, 0, 16], sizes = [2, 8, 16], strides = [1, 1, 1]} : vector<2x8x64xbf16> to vector<2x8x16xbf16>
    "tpu.trace_start"() <{level = 10 : i32, message = "bqd,bkd->bqk"}> : () -> ()
    %cst_184 = arith.constant dense<0.000000e+00> : vector<2x8x8xf32>
    %444 = tpu.matmul %442, %443, %cst_184 {dimension_numbers = #tpu.dot_dimension_numbers<[2], [2], [1], [1], [0, 0, 0, 1, 1, 1], [0], [0]>} : vector<2x8x16xbf16>, vector<2x8x16xbf16>, vector<2x8x8xf32> -> vector<2x8x8xf32>
    "tpu.trace_stop"() : () -> ()
    %cst_185 = arith.constant 2.500000e-01 : f32
    %445 = vector.broadcast %cst_185 : f32 to vector<2x8x8xf32>
    %446 = arith.mulf %444, %445 : vector<2x8x8xf32>
    %447 = arith.addf %446, %24 : vector<2x8x8xf32>
    %cst_186 = arith.constant dense<0xFF800000> : vector<2x8xf32>
    %448 = vector.multi_reduction <maximumf>, %447, %cst_186 [2] : vector<2x8x8xf32> to vector<2x8xf32>
    %449 = vector.shape_cast %448 : vector<2x8xf32> to vector<2x8x1xf32>
    %450 = vector.broadcast %449 : vector<2x8x1xf32> to vector<2x8x8xf32>
    %451 = arith.subf %447, %450 : vector<2x8x8xf32>
    %452 = math.exp %451 : vector<2x8x8xf32>
    %cst_187 = arith.constant dense<0.000000e+00> : vector<2x8xf32>
    %453 = vector.multi_reduction <add>, %452, %cst_187 [2] : vector<2x8x8xf32> to vector<2x8xf32>
    %454 = vector.shape_cast %453 : vector<2x8xf32> to vector<2x8x1xf32>
    %455 = tpu.reciprocal %454 {approx = true} : vector<2x8x1xf32> -> vector<2x8x1xf32>
    %456 = vector.broadcast %455 : vector<2x8x1xf32> to vector<2x8x8xf32>
    %457 = arith.mulf %452, %456 : vector<2x8x8xf32>
    %458 = arith.truncf %457 : vector<2x8x8xf32> to vector<2x8x8xbf16>
    %459 = vector.extract_strided_slice %421 {offsets = [0, 0, 16], sizes = [2, 8, 16], strides = [1, 1, 1]} : vector<2x8x64xbf16> to vector<2x8x16xbf16>
    "tpu.trace_start"() <{level = 10 : i32, message = "bqk,bkd->bqd"}> : () -> ()
    %cst_188 = arith.constant dense<0.000000e+00> : vector<2x8x16xf32>
    %460 = tpu.matmul %458, %459, %cst_188 {dimension_numbers = #tpu.dot_dimension_numbers<[2], [1], [1], [2], [0, 0, 0, 1, 1, 2], [0], [0]>} : vector<2x8x8xbf16>, vector<2x8x16xbf16>, vector<2x8x16xf32> -> vector<2x8x16xf32>
    "tpu.trace_stop"() : () -> ()
    %461 = vector.shape_cast %460 : vector<2x8x16xf32> to vector<16x16xf32>
    %462 = vector.extract_strided_slice %417 {offsets = [0, 0, 32], sizes = [2, 8, 16], strides = [1, 1, 1]} : vector<2x8x64xbf16> to vector<2x8x16xbf16>
    %463 = vector.extract_strided_slice %419 {offsets = [0, 0, 32], sizes = [2, 8, 16], strides = [1, 1, 1]} : vector<2x8x64xbf16> to vector<2x8x16xbf16>
    "tpu.trace_start"() <{level = 10 : i32, message = "bqd,bkd->bqk"}> : () -> ()
    %cst_189 = arith.constant dense<0.000000e+00> : vector<2x8x8xf32>
    %464 = tpu.matmul %462, %463, %cst_189 {dimension_numbers = #tpu.dot_dimension_numbers<[2], [2], [1], [1], [0, 0, 0, 1, 1, 1], [0], [0]>} : vector<2x8x16xbf16>, vector<2x8x16xbf16>, vector<2x8x8xf32> -> vector<2x8x8xf32>
    "tpu.trace_stop"() : () -> ()
    %cst_190 = arith.constant 2.500000e-01 : f32
    %465 = vector.broadcast %cst_190 : f32 to vector<2x8x8xf32>
    %466 = arith.mulf %464, %465 : vector<2x8x8xf32>
    %467 = arith.addf %466, %24 : vector<2x8x8xf32>
    %cst_191 = arith.constant dense<0xFF800000> : vector<2x8xf32>
    %468 = vector.multi_reduction <maximumf>, %467, %cst_191 [2] : vector<2x8x8xf32> to vector<2x8xf32>
    %469 = vector.shape_cast %468 : vector<2x8xf32> to vector<2x8x1xf32>
    %470 = vector.broadcast %469 : vector<2x8x1xf32> to vector<2x8x8xf32>
    %471 = arith.subf %467, %470 : vector<2x8x8xf32>
    %472 = math.exp %471 : vector<2x8x8xf32>
    %cst_192 = arith.constant dense<0.000000e+00> : vector<2x8xf32>
    %473 = vector.multi_reduction <add>, %472, %cst_192 [2] : vector<2x8x8xf32> to vector<2x8xf32>
    %474 = vector.shape_cast %473 : vector<2x8xf32> to vector<2x8x1xf32>
    %475 = tpu.reciprocal %474 {approx = true} : vector<2x8x1xf32> -> vector<2x8x1xf32>
    %476 = vector.broadcast %475 : vector<2x8x1xf32> to vector<2x8x8xf32>
    %477 = arith.mulf %472, %476 : vector<2x8x8xf32>
    %478 = arith.truncf %477 : vector<2x8x8xf32> to vector<2x8x8xbf16>
    %479 = vector.extract_strided_slice %421 {offsets = [0, 0, 32], sizes = [2, 8, 16], strides = [1, 1, 1]} : vector<2x8x64xbf16> to vector<2x8x16xbf16>
    "tpu.trace_start"() <{level = 10 : i32, message = "bqk,bkd->bqd"}> : () -> ()
    %cst_193 = arith.constant dense<0.000000e+00> : vector<2x8x16xf32>
    %480 = tpu.matmul %478, %479, %cst_193 {dimension_numbers = #tpu.dot_dimension_numbers<[2], [1], [1], [2], [0, 0, 0, 1, 1, 2], [0], [0]>} : vector<2x8x8xbf16>, vector<2x8x16xbf16>, vector<2x8x16xf32> -> vector<2x8x16xf32>
    "tpu.trace_stop"() : () -> ()
    %481 = vector.shape_cast %480 : vector<2x8x16xf32> to vector<16x16xf32>
    %482 = vector.extract_strided_slice %417 {offsets = [0, 0, 48], sizes = [2, 8, 16], strides = [1, 1, 1]} : vector<2x8x64xbf16> to vector<2x8x16xbf16>
    %483 = vector.extract_strided_slice %419 {offsets = [0, 0, 48], sizes = [2, 8, 16], strides = [1, 1, 1]} : vector<2x8x64xbf16> to vector<2x8x16xbf16>
    "tpu.trace_start"() <{level = 10 : i32, message = "bqd,bkd->bqk"}> : () -> ()
    %cst_194 = arith.constant dense<0.000000e+00> : vector<2x8x8xf32>
    %484 = tpu.matmul %482, %483, %cst_194 {dimension_numbers = #tpu.dot_dimension_numbers<[2], [2], [1], [1], [0, 0, 0, 1, 1, 1], [0], [0]>} : vector<2x8x16xbf16>, vector<2x8x16xbf16>, vector<2x8x8xf32> -> vector<2x8x8xf32>
    "tpu.trace_stop"() : () -> ()
    %cst_195 = arith.constant 2.500000e-01 : f32
    %485 = vector.broadcast %cst_195 : f32 to vector<2x8x8xf32>
    %486 = arith.mulf %484, %485 : vector<2x8x8xf32>
    %487 = arith.addf %486, %24 : vector<2x8x8xf32>
    %cst_196 = arith.constant dense<0xFF800000> : vector<2x8xf32>
    %488 = vector.multi_reduction <maximumf>, %487, %cst_196 [2] : vector<2x8x8xf32> to vector<2x8xf32>
    %489 = vector.shape_cast %488 : vector<2x8xf32> to vector<2x8x1xf32>
    %490 = vector.broadcast %489 : vector<2x8x1xf32> to vector<2x8x8xf32>
    %491 = arith.subf %487, %490 : vector<2x8x8xf32>
    %492 = math.exp %491 : vector<2x8x8xf32>
    %cst_197 = arith.constant dense<0.000000e+00> : vector<2x8xf32>
    %493 = vector.multi_reduction <add>, %492, %cst_197 [2] : vector<2x8x8xf32> to vector<2x8xf32>
    %494 = vector.shape_cast %493 : vector<2x8xf32> to vector<2x8x1xf32>
    %495 = tpu.reciprocal %494 {approx = true} : vector<2x8x1xf32> -> vector<2x8x1xf32>
    %496 = vector.broadcast %495 : vector<2x8x1xf32> to vector<2x8x8xf32>
    %497 = arith.mulf %492, %496 : vector<2x8x8xf32>
    %498 = arith.truncf %497 : vector<2x8x8xf32> to vector<2x8x8xbf16>
    %499 = vector.extract_strided_slice %421 {offsets = [0, 0, 48], sizes = [2, 8, 16], strides = [1, 1, 1]} : vector<2x8x64xbf16> to vector<2x8x16xbf16>
    "tpu.trace_start"() <{level = 10 : i32, message = "bqk,bkd->bqd"}> : () -> ()
    %cst_198 = arith.constant dense<0.000000e+00> : vector<2x8x16xf32>
    %500 = tpu.matmul %498, %499, %cst_198 {dimension_numbers = #tpu.dot_dimension_numbers<[2], [1], [1], [2], [0, 0, 0, 1, 1, 2], [0], [0]>} : vector<2x8x8xbf16>, vector<2x8x16xbf16>, vector<2x8x16xf32> -> vector<2x8x16xf32>
    "tpu.trace_stop"() : () -> ()
    %501 = vector.shape_cast %500 : vector<2x8x16xf32> to vector<16x16xf32>
    %502 = tpu.concatenate %441, %461, %481, %501 in 1 : vector<16x16xf32>, vector<16x16xf32>, vector<16x16xf32>, vector<16x16xf32> -> vector<16x64xf32>
    %503 = arith.truncf %502 : vector<16x64xf32> to vector<16x64xbf16>
    %cst_199 = arith.constant dense<0.000000e+00> : vector<16x64xf32>
    %504 = tpu.matmul %503, %413, %cst_199 {dimension_numbers = #tpu.dot_dimension_numbers<[1], [0], [0], [1], [0, 0, 1, 1], [], []>} : vector<16x64xbf16>, vector<64x64xbf16>, vector<16x64xf32> -> vector<16x64xf32>
    %505 = vector.broadcast %415 : vector<1x64xf32> to vector<16x64xf32>
    %506 = arith.addf %504, %505 : vector<16x64xf32>
    %507 = arith.addf %52, %506 : vector<16x64xf32>
    %c0_200 = arith.constant 0 : index
    %c0_201 = arith.constant 0 : index
    %c0_202 = arith.constant 0 : index
    %508 = vector.load %arg23[%c0_200, %c0_201, %c0_202] : memref<2x1x64xf32, #tpu.memory_space<vmem>>, vector<1x1x64xf32>
    %509 = vector.shape_cast %508 : vector<1x1x64xf32> to vector<1x64xf32>
    %c0_203 = arith.constant 0 : index
    %c0_204 = arith.constant 0 : index
    %c0_205 = arith.constant 0 : index
    %510 = vector.load %arg24[%c0_203, %c0_204, %c0_205] : memref<2x1x64xf32, #tpu.memory_space<vmem>>, vector<1x1x64xf32>
    %511 = vector.shape_cast %510 : vector<1x1x64xf32> to vector<1x64xf32>
    %cst_206 = arith.constant dense<0.000000e+00> : vector<16xf32>
    %512 = vector.multi_reduction <add>, %507, %cst_206 [1] : vector<16x64xf32> to vector<16xf32>
    %513 = vector.shape_cast %512 : vector<16xf32> to vector<16x1xf32>
    %cst_207 = arith.constant 6.400000e+01 : f32
    %514 = vector.broadcast %cst_207 : f32 to vector<16x1xf32>
    %515 = arith.divf %513, %514 : vector<16x1xf32>
    %516 = vector.broadcast %515 : vector<16x1xf32> to vector<16x64xf32>
    %517 = arith.subf %507, %516 : vector<16x64xf32>
    %518 = arith.mulf %517, %517 : vector<16x64xf32>
    %cst_208 = arith.constant dense<0.000000e+00> : vector<16xf32>
    %519 = vector.multi_reduction <add>, %518, %cst_208 [1] : vector<16x64xf32> to vector<16xf32>
    %520 = vector.shape_cast %519 : vector<16xf32> to vector<16x1xf32>
    %cst_209 = arith.constant 6.400000e+01 : f32
    %521 = vector.broadcast %cst_209 : f32 to vector<16x1xf32>
    %522 = arith.divf %520, %521 : vector<16x1xf32>
    %cst_210 = arith.constant 9.99999974E-6 : f32
    %523 = vector.broadcast %cst_210 : f32 to vector<16x1xf32>
    %524 = arith.addf %522, %523 : vector<16x1xf32>
    %525 = math.rsqrt %524 : vector<16x1xf32>
    %526 = vector.broadcast %525 : vector<16x1xf32> to vector<16x64xf32>
    %527 = arith.mulf %517, %526 : vector<16x64xf32>
    %528 = vector.broadcast %509 : vector<1x64xf32> to vector<16x64xf32>
    %529 = arith.mulf %527, %528 : vector<16x64xf32>
    %530 = vector.broadcast %511 : vector<1x64xf32> to vector<16x64xf32>
    %531 = arith.addf %529, %530 : vector<16x64xf32>
    %c0_211 = arith.constant 0 : index
    %c0_212 = arith.constant 0 : index
    %c0_213 = arith.constant 0 : index
    %532 = vector.load %arg25[%c0_211, %c0_212, %c0_213] : memref<2x64x64xbf16, #tpu.memory_space<vmem>>, vector<1x64x64xbf16>
    %533 = vector.shape_cast %532 : vector<1x64x64xbf16> to vector<64x64xbf16>
    %c0_214 = arith.constant 0 : index
    %c0_215 = arith.constant 0 : index
    %c0_216 = arith.constant 0 : index
    %534 = vector.load %arg26[%c0_214, %c0_215, %c0_216] : memref<2x1x64xf32, #tpu.memory_space<vmem>>, vector<1x1x64xf32>
    %535 = vector.shape_cast %534 : vector<1x1x64xf32> to vector<1x64xf32>
    %536 = arith.truncf %531 : vector<16x64xf32> to vector<16x64xbf16>
    %cst_217 = arith.constant dense<0.000000e+00> : vector<16x64xf32>
    %537 = tpu.matmul %536, %533, %cst_217 {dimension_numbers = #tpu.dot_dimension_numbers<[1], [0], [0], [1], [0, 0, 1, 1], [], []>} : vector<16x64xbf16>, vector<64x64xbf16>, vector<16x64xf32> -> vector<16x64xf32>
    %538 = vector.broadcast %535 : vector<1x64xf32> to vector<16x64xf32>
    %539 = arith.addf %537, %538 : vector<16x64xf32>
    %c0_218 = arith.constant 0 : index
    %c0_219 = arith.constant 0 : index
    %c0_220 = arith.constant 0 : index
    %540 = vector.load %arg27[%c0_218, %c0_219, %c0_220] : memref<2x64x128xbf16, #tpu.memory_space<vmem>>, vector<1x64x128xbf16>
    %541 = vector.shape_cast %540 : vector<1x64x128xbf16> to vector<64x128xbf16>
    %c0_221 = arith.constant 0 : index
    %c0_222 = arith.constant 0 : index
    %c0_223 = arith.constant 0 : index
    %542 = vector.load %arg28[%c0_221, %c0_222, %c0_223] : memref<2x1x128xf32, #tpu.memory_space<vmem>>, vector<1x1x128xf32>
    %543 = vector.shape_cast %542 : vector<1x1x128xf32> to vector<1x128xf32>
    %544 = arith.truncf %400 : vector<16x64xf32> to vector<16x64xbf16>
    %cst_224 = arith.constant dense<0.000000e+00> : vector<16x128xf32>
    %545 = tpu.matmul %544, %541, %cst_224 {dimension_numbers = #tpu.dot_dimension_numbers<[1], [0], [0], [1], [0, 0, 1, 1], [], []>} : vector<16x64xbf16>, vector<64x128xbf16>, vector<16x128xf32> -> vector<16x128xf32>
    %546 = vector.broadcast %543 : vector<1x128xf32> to vector<16x128xf32>
    %547 = arith.addf %545, %546 : vector<16x128xf32>
    %548 = vector.extract_strided_slice %547 {offsets = [0, 0], sizes = [16, 64], strides = [1, 1]} : vector<16x128xf32> to vector<16x64xf32>
    %549 = vector.extract_strided_slice %547 {offsets = [0, 64], sizes = [16, 64], strides = [1, 1]} : vector<16x128xf32> to vector<16x64xf32>
    %c0_225 = arith.constant 0 : index
    %c0_226 = arith.constant 0 : index
    %c0_227 = arith.constant 0 : index
    %550 = vector.load %arg29[%c0_225, %c0_226, %c0_227] : memref<2x64x64xbf16, #tpu.memory_space<vmem>>, vector<1x64x64xbf16>
    %551 = vector.shape_cast %550 : vector<1x64x64xbf16> to vector<64x64xbf16>
    %c0_228 = arith.constant 0 : index
    %c0_229 = arith.constant 0 : index
    %c0_230 = arith.constant 0 : index
    %552 = vector.load %arg30[%c0_228, %c0_229, %c0_230] : memref<2x1x64xf32, #tpu.memory_space<vmem>>, vector<1x1x64xf32>
    %553 = vector.shape_cast %552 : vector<1x1x64xf32> to vector<1x64xf32>
    %554 = vector.shape_cast %539 : vector<16x64xf32> to vector<2x8x64xf32>
    %555 = arith.truncf %554 : vector<2x8x64xf32> to vector<2x8x64xbf16>
    %556 = vector.shape_cast %548 : vector<16x64xf32> to vector<2x8x64xf32>
    %557 = arith.truncf %556 : vector<2x8x64xf32> to vector<2x8x64xbf16>
    %558 = vector.shape_cast %549 : vector<16x64xf32> to vector<2x8x64xf32>
    %559 = arith.truncf %558 : vector<2x8x64xf32> to vector<2x8x64xbf16>
    %560 = vector.extract_strided_slice %555 {offsets = [0, 0, 0], sizes = [2, 8, 16], strides = [1, 1, 1]} : vector<2x8x64xbf16> to vector<2x8x16xbf16>
    %561 = vector.extract_strided_slice %557 {offsets = [0, 0, 0], sizes = [2, 8, 16], strides = [1, 1, 1]} : vector<2x8x64xbf16> to vector<2x8x16xbf16>
    "tpu.trace_start"() <{level = 10 : i32, message = "bqd,bkd->bqk"}> : () -> ()
    %cst_231 = arith.constant dense<0.000000e+00> : vector<2x8x8xf32>
    %562 = tpu.matmul %560, %561, %cst_231 {dimension_numbers = #tpu.dot_dimension_numbers<[2], [2], [1], [1], [0, 0, 0, 1, 1, 1], [0], [0]>} : vector<2x8x16xbf16>, vector<2x8x16xbf16>, vector<2x8x8xf32> -> vector<2x8x8xf32>
    "tpu.trace_stop"() : () -> ()
    %cst_232 = arith.constant 2.500000e-01 : f32
    %563 = vector.broadcast %cst_232 : f32 to vector<2x8x8xf32>
    %564 = arith.mulf %562, %563 : vector<2x8x8xf32>
    %565 = arith.addf %564, %21 : vector<2x8x8xf32>
    %cst_233 = arith.constant dense<0xFF800000> : vector<2x8xf32>
    %566 = vector.multi_reduction <maximumf>, %565, %cst_233 [2] : vector<2x8x8xf32> to vector<2x8xf32>
    %567 = vector.shape_cast %566 : vector<2x8xf32> to vector<2x8x1xf32>
    %568 = vector.broadcast %567 : vector<2x8x1xf32> to vector<2x8x8xf32>
    %569 = arith.subf %565, %568 : vector<2x8x8xf32>
    %570 = math.exp %569 : vector<2x8x8xf32>
    %cst_234 = arith.constant dense<0.000000e+00> : vector<2x8xf32>
    %571 = vector.multi_reduction <add>, %570, %cst_234 [2] : vector<2x8x8xf32> to vector<2x8xf32>
    %572 = vector.shape_cast %571 : vector<2x8xf32> to vector<2x8x1xf32>
    %573 = tpu.reciprocal %572 {approx = true} : vector<2x8x1xf32> -> vector<2x8x1xf32>
    %574 = vector.broadcast %573 : vector<2x8x1xf32> to vector<2x8x8xf32>
    %575 = arith.mulf %570, %574 : vector<2x8x8xf32>
    %576 = arith.truncf %575 : vector<2x8x8xf32> to vector<2x8x8xbf16>
    %577 = vector.extract_strided_slice %559 {offsets = [0, 0, 0], sizes = [2, 8, 16], strides = [1, 1, 1]} : vector<2x8x64xbf16> to vector<2x8x16xbf16>
    "tpu.trace_start"() <{level = 10 : i32, message = "bqk,bkd->bqd"}> : () -> ()
    %cst_235 = arith.constant dense<0.000000e+00> : vector<2x8x16xf32>
    %578 = tpu.matmul %576, %577, %cst_235 {dimension_numbers = #tpu.dot_dimension_numbers<[2], [1], [1], [2], [0, 0, 0, 1, 1, 2], [0], [0]>} : vector<2x8x8xbf16>, vector<2x8x16xbf16>, vector<2x8x16xf32> -> vector<2x8x16xf32>
    "tpu.trace_stop"() : () -> ()
    %579 = vector.shape_cast %578 : vector<2x8x16xf32> to vector<16x16xf32>
    %580 = vector.extract_strided_slice %555 {offsets = [0, 0, 16], sizes = [2, 8, 16], strides = [1, 1, 1]} : vector<2x8x64xbf16> to vector<2x8x16xbf16>
    %581 = vector.extract_strided_slice %557 {offsets = [0, 0, 16], sizes = [2, 8, 16], strides = [1, 1, 1]} : vector<2x8x64xbf16> to vector<2x8x16xbf16>
    "tpu.trace_start"() <{level = 10 : i32, message = "bqd,bkd->bqk"}> : () -> ()
    %cst_236 = arith.constant dense<0.000000e+00> : vector<2x8x8xf32>
    %582 = tpu.matmul %580, %581, %cst_236 {dimension_numbers = #tpu.dot_dimension_numbers<[2], [2], [1], [1], [0, 0, 0, 1, 1, 1], [0], [0]>} : vector<2x8x16xbf16>, vector<2x8x16xbf16>, vector<2x8x8xf32> -> vector<2x8x8xf32>
    "tpu.trace_stop"() : () -> ()
    %cst_237 = arith.constant 2.500000e-01 : f32
    %583 = vector.broadcast %cst_237 : f32 to vector<2x8x8xf32>
    %584 = arith.mulf %582, %583 : vector<2x8x8xf32>
    %585 = arith.addf %584, %21 : vector<2x8x8xf32>
    %cst_238 = arith.constant dense<0xFF800000> : vector<2x8xf32>
    %586 = vector.multi_reduction <maximumf>, %585, %cst_238 [2] : vector<2x8x8xf32> to vector<2x8xf32>
    %587 = vector.shape_cast %586 : vector<2x8xf32> to vector<2x8x1xf32>
    %588 = vector.broadcast %587 : vector<2x8x1xf32> to vector<2x8x8xf32>
    %589 = arith.subf %585, %588 : vector<2x8x8xf32>
    %590 = math.exp %589 : vector<2x8x8xf32>
    %cst_239 = arith.constant dense<0.000000e+00> : vector<2x8xf32>
    %591 = vector.multi_reduction <add>, %590, %cst_239 [2] : vector<2x8x8xf32> to vector<2x8xf32>
    %592 = vector.shape_cast %591 : vector<2x8xf32> to vector<2x8x1xf32>
    %593 = tpu.reciprocal %592 {approx = true} : vector<2x8x1xf32> -> vector<2x8x1xf32>
    %594 = vector.broadcast %593 : vector<2x8x1xf32> to vector<2x8x8xf32>
    %595 = arith.mulf %590, %594 : vector<2x8x8xf32>
    %596 = arith.truncf %595 : vector<2x8x8xf32> to vector<2x8x8xbf16>
    %597 = vector.extract_strided_slice %559 {offsets = [0, 0, 16], sizes = [2, 8, 16], strides = [1, 1, 1]} : vector<2x8x64xbf16> to vector<2x8x16xbf16>
    "tpu.trace_start"() <{level = 10 : i32, message = "bqk,bkd->bqd"}> : () -> ()
    %cst_240 = arith.constant dense<0.000000e+00> : vector<2x8x16xf32>
    %598 = tpu.matmul %596, %597, %cst_240 {dimension_numbers = #tpu.dot_dimension_numbers<[2], [1], [1], [2], [0, 0, 0, 1, 1, 2], [0], [0]>} : vector<2x8x8xbf16>, vector<2x8x16xbf16>, vector<2x8x16xf32> -> vector<2x8x16xf32>
    "tpu.trace_stop"() : () -> ()
    %599 = vector.shape_cast %598 : vector<2x8x16xf32> to vector<16x16xf32>
    %600 = vector.extract_strided_slice %555 {offsets = [0, 0, 32], sizes = [2, 8, 16], strides = [1, 1, 1]} : vector<2x8x64xbf16> to vector<2x8x16xbf16>
    %601 = vector.extract_strided_slice %557 {offsets = [0, 0, 32], sizes = [2, 8, 16], strides = [1, 1, 1]} : vector<2x8x64xbf16> to vector<2x8x16xbf16>
    "tpu.trace_start"() <{level = 10 : i32, message = "bqd,bkd->bqk"}> : () -> ()
    %cst_241 = arith.constant dense<0.000000e+00> : vector<2x8x8xf32>
    %602 = tpu.matmul %600, %601, %cst_241 {dimension_numbers = #tpu.dot_dimension_numbers<[2], [2], [1], [1], [0, 0, 0, 1, 1, 1], [0], [0]>} : vector<2x8x16xbf16>, vector<2x8x16xbf16>, vector<2x8x8xf32> -> vector<2x8x8xf32>
    "tpu.trace_stop"() : () -> ()
    %cst_242 = arith.constant 2.500000e-01 : f32
    %603 = vector.broadcast %cst_242 : f32 to vector<2x8x8xf32>
    %604 = arith.mulf %602, %603 : vector<2x8x8xf32>
    %605 = arith.addf %604, %21 : vector<2x8x8xf32>
    %cst_243 = arith.constant dense<0xFF800000> : vector<2x8xf32>
    %606 = vector.multi_reduction <maximumf>, %605, %cst_243 [2] : vector<2x8x8xf32> to vector<2x8xf32>
    %607 = vector.shape_cast %606 : vector<2x8xf32> to vector<2x8x1xf32>
    %608 = vector.broadcast %607 : vector<2x8x1xf32> to vector<2x8x8xf32>
    %609 = arith.subf %605, %608 : vector<2x8x8xf32>
    %610 = math.exp %609 : vector<2x8x8xf32>
    %cst_244 = arith.constant dense<0.000000e+00> : vector<2x8xf32>
    %611 = vector.multi_reduction <add>, %610, %cst_244 [2] : vector<2x8x8xf32> to vector<2x8xf32>
    %612 = vector.shape_cast %611 : vector<2x8xf32> to vector<2x8x1xf32>
    %613 = tpu.reciprocal %612 {approx = true} : vector<2x8x1xf32> -> vector<2x8x1xf32>
    %614 = vector.broadcast %613 : vector<2x8x1xf32> to vector<2x8x8xf32>
    %615 = arith.mulf %610, %614 : vector<2x8x8xf32>
    %616 = arith.truncf %615 : vector<2x8x8xf32> to vector<2x8x8xbf16>
    %617 = vector.extract_strided_slice %559 {offsets = [0, 0, 32], sizes = [2, 8, 16], strides = [1, 1, 1]} : vector<2x8x64xbf16> to vector<2x8x16xbf16>
    "tpu.trace_start"() <{level = 10 : i32, message = "bqk,bkd->bqd"}> : () -> ()
    %cst_245 = arith.constant dense<0.000000e+00> : vector<2x8x16xf32>
    %618 = tpu.matmul %616, %617, %cst_245 {dimension_numbers = #tpu.dot_dimension_numbers<[2], [1], [1], [2], [0, 0, 0, 1, 1, 2], [0], [0]>} : vector<2x8x8xbf16>, vector<2x8x16xbf16>, vector<2x8x16xf32> -> vector<2x8x16xf32>
    "tpu.trace_stop"() : () -> ()
    %619 = vector.shape_cast %618 : vector<2x8x16xf32> to vector<16x16xf32>
    %620 = vector.extract_strided_slice %555 {offsets = [0, 0, 48], sizes = [2, 8, 16], strides = [1, 1, 1]} : vector<2x8x64xbf16> to vector<2x8x16xbf16>
    %621 = vector.extract_strided_slice %557 {offsets = [0, 0, 48], sizes = [2, 8, 16], strides = [1, 1, 1]} : vector<2x8x64xbf16> to vector<2x8x16xbf16>
    "tpu.trace_start"() <{level = 10 : i32, message = "bqd,bkd->bqk"}> : () -> ()
    %cst_246 = arith.constant dense<0.000000e+00> : vector<2x8x8xf32>
    %622 = tpu.matmul %620, %621, %cst_246 {dimension_numbers = #tpu.dot_dimension_numbers<[2], [2], [1], [1], [0, 0, 0, 1, 1, 1], [0], [0]>} : vector<2x8x16xbf16>, vector<2x8x16xbf16>, vector<2x8x8xf32> -> vector<2x8x8xf32>
    "tpu.trace_stop"() : () -> ()
    %cst_247 = arith.constant 2.500000e-01 : f32
    %623 = vector.broadcast %cst_247 : f32 to vector<2x8x8xf32>
    %624 = arith.mulf %622, %623 : vector<2x8x8xf32>
    %625 = arith.addf %624, %21 : vector<2x8x8xf32>
    %cst_248 = arith.constant dense<0xFF800000> : vector<2x8xf32>
    %626 = vector.multi_reduction <maximumf>, %625, %cst_248 [2] : vector<2x8x8xf32> to vector<2x8xf32>
    %627 = vector.shape_cast %626 : vector<2x8xf32> to vector<2x8x1xf32>
    %628 = vector.broadcast %627 : vector<2x8x1xf32> to vector<2x8x8xf32>
    %629 = arith.subf %625, %628 : vector<2x8x8xf32>
    %630 = math.exp %629 : vector<2x8x8xf32>
    %cst_249 = arith.constant dense<0.000000e+00> : vector<2x8xf32>
    %631 = vector.multi_reduction <add>, %630, %cst_249 [2] : vector<2x8x8xf32> to vector<2x8xf32>
    %632 = vector.shape_cast %631 : vector<2x8xf32> to vector<2x8x1xf32>
    %633 = tpu.reciprocal %632 {approx = true} : vector<2x8x1xf32> -> vector<2x8x1xf32>
    %634 = vector.broadcast %633 : vector<2x8x1xf32> to vector<2x8x8xf32>
    %635 = arith.mulf %630, %634 : vector<2x8x8xf32>
    %636 = arith.truncf %635 : vector<2x8x8xf32> to vector<2x8x8xbf16>
    %637 = vector.extract_strided_slice %559 {offsets = [0, 0, 48], sizes = [2, 8, 16], strides = [1, 1, 1]} : vector<2x8x64xbf16> to vector<2x8x16xbf16>
    "tpu.trace_start"() <{level = 10 : i32, message = "bqk,bkd->bqd"}> : () -> ()
    %cst_250 = arith.constant dense<0.000000e+00> : vector<2x8x16xf32>
    %638 = tpu.matmul %636, %637, %cst_250 {dimension_numbers = #tpu.dot_dimension_numbers<[2], [1], [1], [2], [0, 0, 0, 1, 1, 2], [0], [0]>} : vector<2x8x8xbf16>, vector<2x8x16xbf16>, vector<2x8x16xf32> -> vector<2x8x16xf32>
    "tpu.trace_stop"() : () -> ()
    %639 = vector.shape_cast %638 : vector<2x8x16xf32> to vector<16x16xf32>
    %640 = tpu.concatenate %579, %599, %619, %639 in 1 : vector<16x16xf32>, vector<16x16xf32>, vector<16x16xf32>, vector<16x16xf32> -> vector<16x64xf32>
    %641 = arith.truncf %640 : vector<16x64xf32> to vector<16x64xbf16>
    %cst_251 = arith.constant dense<0.000000e+00> : vector<16x64xf32>
    %642 = tpu.matmul %641, %551, %cst_251 {dimension_numbers = #tpu.dot_dimension_numbers<[1], [0], [0], [1], [0, 0, 1, 1], [], []>} : vector<16x64xbf16>, vector<64x64xbf16>, vector<16x64xf32> -> vector<16x64xf32>
    %643 = vector.broadcast %553 : vector<1x64xf32> to vector<16x64xf32>
    %644 = arith.addf %642, %643 : vector<16x64xf32>
    %645 = arith.addf %531, %644 : vector<16x64xf32>
    %c0_252 = arith.constant 0 : index
    %c0_253 = arith.constant 0 : index
    %c0_254 = arith.constant 0 : index
    %646 = vector.load %arg31[%c0_252, %c0_253, %c0_254] : memref<2x1x64xf32, #tpu.memory_space<vmem>>, vector<1x1x64xf32>
    %647 = vector.shape_cast %646 : vector<1x1x64xf32> to vector<1x64xf32>
    %c0_255 = arith.constant 0 : index
    %c0_256 = arith.constant 0 : index
    %c0_257 = arith.constant 0 : index
    %648 = vector.load %arg32[%c0_255, %c0_256, %c0_257] : memref<2x1x64xf32, #tpu.memory_space<vmem>>, vector<1x1x64xf32>
    %649 = vector.shape_cast %648 : vector<1x1x64xf32> to vector<1x64xf32>
    %cst_258 = arith.constant dense<0.000000e+00> : vector<16xf32>
    %650 = vector.multi_reduction <add>, %645, %cst_258 [1] : vector<16x64xf32> to vector<16xf32>
    %651 = vector.shape_cast %650 : vector<16xf32> to vector<16x1xf32>
    %cst_259 = arith.constant 6.400000e+01 : f32
    %652 = vector.broadcast %cst_259 : f32 to vector<16x1xf32>
    %653 = arith.divf %651, %652 : vector<16x1xf32>
    %654 = vector.broadcast %653 : vector<16x1xf32> to vector<16x64xf32>
    %655 = arith.subf %645, %654 : vector<16x64xf32>
    %656 = arith.mulf %655, %655 : vector<16x64xf32>
    %cst_260 = arith.constant dense<0.000000e+00> : vector<16xf32>
    %657 = vector.multi_reduction <add>, %656, %cst_260 [1] : vector<16x64xf32> to vector<16xf32>
    %658 = vector.shape_cast %657 : vector<16xf32> to vector<16x1xf32>
    %cst_261 = arith.constant 6.400000e+01 : f32
    %659 = vector.broadcast %cst_261 : f32 to vector<16x1xf32>
    %660 = arith.divf %658, %659 : vector<16x1xf32>
    %cst_262 = arith.constant 9.99999974E-6 : f32
    %661 = vector.broadcast %cst_262 : f32 to vector<16x1xf32>
    %662 = arith.addf %660, %661 : vector<16x1xf32>
    %663 = math.rsqrt %662 : vector<16x1xf32>
    %664 = vector.broadcast %663 : vector<16x1xf32> to vector<16x64xf32>
    %665 = arith.mulf %655, %664 : vector<16x64xf32>
    %666 = vector.broadcast %647 : vector<1x64xf32> to vector<16x64xf32>
    %667 = arith.mulf %665, %666 : vector<16x64xf32>
    %668 = vector.broadcast %649 : vector<1x64xf32> to vector<16x64xf32>
    %669 = arith.addf %667, %668 : vector<16x64xf32>
    %c0_263 = arith.constant 0 : index
    %c0_264 = arith.constant 0 : index
    %c0_265 = arith.constant 0 : index
    %670 = vector.load %arg33[%c0_263, %c0_264, %c0_265] : memref<2x64x128xbf16, #tpu.memory_space<vmem>>, vector<1x64x128xbf16>
    %671 = vector.shape_cast %670 : vector<1x64x128xbf16> to vector<64x128xbf16>
    %c0_266 = arith.constant 0 : index
    %c0_267 = arith.constant 0 : index
    %c0_268 = arith.constant 0 : index
    %672 = vector.load %arg34[%c0_266, %c0_267, %c0_268] : memref<2x1x128xf32, #tpu.memory_space<vmem>>, vector<1x1x128xf32>
    %673 = vector.shape_cast %672 : vector<1x1x128xf32> to vector<1x128xf32>
    %674 = arith.truncf %669 : vector<16x64xf32> to vector<16x64xbf16>
    %cst_269 = arith.constant dense<0.000000e+00> : vector<16x128xf32>
    %675 = tpu.matmul %674, %671, %cst_269 {dimension_numbers = #tpu.dot_dimension_numbers<[1], [0], [0], [1], [0, 0, 1, 1], [], []>} : vector<16x64xbf16>, vector<64x128xbf16>, vector<16x128xf32> -> vector<16x128xf32>
    %676 = vector.broadcast %673 : vector<1x128xf32> to vector<16x128xf32>
    %677 = arith.addf %675, %676 : vector<16x128xf32>
    %cst_270 = arith.constant 0.000000e+00 : f32
    %678 = vector.broadcast %cst_270 : f32 to vector<16x128xf32>
    %679 = arith.maximumf %677, %678 : vector<16x128xf32>
    %c0_271 = arith.constant 0 : index
    %c0_272 = arith.constant 0 : index
    %c0_273 = arith.constant 0 : index
    %680 = vector.load %arg35[%c0_271, %c0_272, %c0_273] : memref<2x128x64xbf16, #tpu.memory_space<vmem>>, vector<1x128x64xbf16>
    %681 = vector.shape_cast %680 : vector<1x128x64xbf16> to vector<128x64xbf16>
    %c0_274 = arith.constant 0 : index
    %c0_275 = arith.constant 0 : index
    %c0_276 = arith.constant 0 : index
    %682 = vector.load %arg36[%c0_274, %c0_275, %c0_276] : memref<2x1x64xf32, #tpu.memory_space<vmem>>, vector<1x1x64xf32>
    %683 = vector.shape_cast %682 : vector<1x1x64xf32> to vector<1x64xf32>
    %684 = arith.truncf %679 : vector<16x128xf32> to vector<16x128xbf16>
    %cst_277 = arith.constant dense<0.000000e+00> : vector<16x64xf32>
    %685 = tpu.matmul %684, %681, %cst_277 {dimension_numbers = #tpu.dot_dimension_numbers<[1], [0], [0], [1], [0, 0, 1, 1], [], []>} : vector<16x128xbf16>, vector<128x64xbf16>, vector<16x64xf32> -> vector<16x64xf32>
    %686 = vector.broadcast %683 : vector<1x64xf32> to vector<16x64xf32>
    %687 = arith.addf %685, %686 : vector<16x64xf32>
    %688 = arith.addf %669, %687 : vector<16x64xf32>
    %c0_278 = arith.constant 0 : index
    %c0_279 = arith.constant 0 : index
    %c0_280 = arith.constant 0 : index
    %689 = vector.load %arg37[%c0_278, %c0_279, %c0_280] : memref<2x1x64xf32, #tpu.memory_space<vmem>>, vector<1x1x64xf32>
    %690 = vector.shape_cast %689 : vector<1x1x64xf32> to vector<1x64xf32>
    %c0_281 = arith.constant 0 : index
    %c0_282 = arith.constant 0 : index
    %c0_283 = arith.constant 0 : index
    %691 = vector.load %arg38[%c0_281, %c0_282, %c0_283] : memref<2x1x64xf32, #tpu.memory_space<vmem>>, vector<1x1x64xf32>
    %692 = vector.shape_cast %691 : vector<1x1x64xf32> to vector<1x64xf32>
    %cst_284 = arith.constant dense<0.000000e+00> : vector<16xf32>
    %693 = vector.multi_reduction <add>, %688, %cst_284 [1] : vector<16x64xf32> to vector<16xf32>
    %694 = vector.shape_cast %693 : vector<16xf32> to vector<16x1xf32>
    %cst_285 = arith.constant 6.400000e+01 : f32
    %695 = vector.broadcast %cst_285 : f32 to vector<16x1xf32>
    %696 = arith.divf %694, %695 : vector<16x1xf32>
    %697 = vector.broadcast %696 : vector<16x1xf32> to vector<16x64xf32>
    %698 = arith.subf %688, %697 : vector<16x64xf32>
    %699 = arith.mulf %698, %698 : vector<16x64xf32>
    %cst_286 = arith.constant dense<0.000000e+00> : vector<16xf32>
    %700 = vector.multi_reduction <add>, %699, %cst_286 [1] : vector<16x64xf32> to vector<16xf32>
    %701 = vector.shape_cast %700 : vector<16xf32> to vector<16x1xf32>
    %cst_287 = arith.constant 6.400000e+01 : f32
    %702 = vector.broadcast %cst_287 : f32 to vector<16x1xf32>
    %703 = arith.divf %701, %702 : vector<16x1xf32>
    %cst_288 = arith.constant 9.99999974E-6 : f32
    %704 = vector.broadcast %cst_288 : f32 to vector<16x1xf32>
    %705 = arith.addf %703, %704 : vector<16x1xf32>
    %706 = math.rsqrt %705 : vector<16x1xf32>
    %707 = vector.broadcast %706 : vector<16x1xf32> to vector<16x64xf32>
    %708 = arith.mulf %698, %707 : vector<16x64xf32>
    %709 = vector.broadcast %690 : vector<1x64xf32> to vector<16x64xf32>
    %710 = arith.mulf %708, %709 : vector<16x64xf32>
    %711 = vector.broadcast %692 : vector<1x64xf32> to vector<16x64xf32>
    %712 = arith.addf %710, %711 : vector<16x64xf32>
    %c1_289 = arith.constant 1 : index
    %c0_290 = arith.constant 0 : index
    %c0_291 = arith.constant 0 : index
    %713 = vector.load %arg19[%c1_289, %c0_290, %c0_291] : memref<2x64x192xbf16, #tpu.memory_space<vmem>>, vector<1x64x192xbf16>
    %714 = vector.shape_cast %713 : vector<1x64x192xbf16> to vector<64x192xbf16>
    %c1_292 = arith.constant 1 : index
    %c0_293 = arith.constant 0 : index
    %c0_294 = arith.constant 0 : index
    %715 = vector.load %arg20[%c1_292, %c0_293, %c0_294] : memref<2x1x192xf32, #tpu.memory_space<vmem>>, vector<1x1x192xf32>
    %716 = vector.shape_cast %715 : vector<1x1x192xf32> to vector<1x192xf32>
    %717 = arith.truncf %712 : vector<16x64xf32> to vector<16x64xbf16>
    %cst_295 = arith.constant dense<0.000000e+00> : vector<16x192xf32>
    %718 = tpu.matmul %717, %714, %cst_295 {dimension_numbers = #tpu.dot_dimension_numbers<[1], [0], [0], [1], [0, 0, 1, 1], [], []>} : vector<16x64xbf16>, vector<64x192xbf16>, vector<16x192xf32> -> vector<16x192xf32>
    %719 = vector.broadcast %716 : vector<1x192xf32> to vector<16x192xf32>
    %720 = arith.addf %718, %719 : vector<16x192xf32>
    %721 = vector.extract_strided_slice %720 {offsets = [0, 0], sizes = [16, 64], strides = [1, 1]} : vector<16x192xf32> to vector<16x64xf32>
    %722 = vector.extract_strided_slice %720 {offsets = [0, 64], sizes = [16, 64], strides = [1, 1]} : vector<16x192xf32> to vector<16x64xf32>
    %723 = vector.extract_strided_slice %720 {offsets = [0, 128], sizes = [16, 64], strides = [1, 1]} : vector<16x192xf32> to vector<16x64xf32>
    %c1_296 = arith.constant 1 : index
    %c0_297 = arith.constant 0 : index
    %c0_298 = arith.constant 0 : index
    %724 = vector.load %arg21[%c1_296, %c0_297, %c0_298] : memref<2x64x64xbf16, #tpu.memory_space<vmem>>, vector<1x64x64xbf16>
    %725 = vector.shape_cast %724 : vector<1x64x64xbf16> to vector<64x64xbf16>
    %c1_299 = arith.constant 1 : index
    %c0_300 = arith.constant 0 : index
    %c0_301 = arith.constant 0 : index
    %726 = vector.load %arg22[%c1_299, %c0_300, %c0_301] : memref<2x1x64xf32, #tpu.memory_space<vmem>>, vector<1x1x64xf32>
    %727 = vector.shape_cast %726 : vector<1x1x64xf32> to vector<1x64xf32>
    %728 = vector.shape_cast %721 : vector<16x64xf32> to vector<2x8x64xf32>
    %729 = arith.truncf %728 : vector<2x8x64xf32> to vector<2x8x64xbf16>
    %730 = vector.shape_cast %722 : vector<16x64xf32> to vector<2x8x64xf32>
    %731 = arith.truncf %730 : vector<2x8x64xf32> to vector<2x8x64xbf16>
    %732 = vector.shape_cast %723 : vector<16x64xf32> to vector<2x8x64xf32>
    %733 = arith.truncf %732 : vector<2x8x64xf32> to vector<2x8x64xbf16>
    %734 = vector.extract_strided_slice %729 {offsets = [0, 0, 0], sizes = [2, 8, 16], strides = [1, 1, 1]} : vector<2x8x64xbf16> to vector<2x8x16xbf16>
    %735 = vector.extract_strided_slice %731 {offsets = [0, 0, 0], sizes = [2, 8, 16], strides = [1, 1, 1]} : vector<2x8x64xbf16> to vector<2x8x16xbf16>
    "tpu.trace_start"() <{level = 10 : i32, message = "bqd,bkd->bqk"}> : () -> ()
    %cst_302 = arith.constant dense<0.000000e+00> : vector<2x8x8xf32>
    %736 = tpu.matmul %734, %735, %cst_302 {dimension_numbers = #tpu.dot_dimension_numbers<[2], [2], [1], [1], [0, 0, 0, 1, 1, 1], [0], [0]>} : vector<2x8x16xbf16>, vector<2x8x16xbf16>, vector<2x8x8xf32> -> vector<2x8x8xf32>
    "tpu.trace_stop"() : () -> ()
    %cst_303 = arith.constant 2.500000e-01 : f32
    %737 = vector.broadcast %cst_303 : f32 to vector<2x8x8xf32>
    %738 = arith.mulf %736, %737 : vector<2x8x8xf32>
    %739 = arith.addf %738, %24 : vector<2x8x8xf32>
    %cst_304 = arith.constant dense<0xFF800000> : vector<2x8xf32>
    %740 = vector.multi_reduction <maximumf>, %739, %cst_304 [2] : vector<2x8x8xf32> to vector<2x8xf32>
    %741 = vector.shape_cast %740 : vector<2x8xf32> to vector<2x8x1xf32>
    %742 = vector.broadcast %741 : vector<2x8x1xf32> to vector<2x8x8xf32>
    %743 = arith.subf %739, %742 : vector<2x8x8xf32>
    %744 = math.exp %743 : vector<2x8x8xf32>
    %cst_305 = arith.constant dense<0.000000e+00> : vector<2x8xf32>
    %745 = vector.multi_reduction <add>, %744, %cst_305 [2] : vector<2x8x8xf32> to vector<2x8xf32>
    %746 = vector.shape_cast %745 : vector<2x8xf32> to vector<2x8x1xf32>
    %747 = tpu.reciprocal %746 {approx = true} : vector<2x8x1xf32> -> vector<2x8x1xf32>
    %748 = vector.broadcast %747 : vector<2x8x1xf32> to vector<2x8x8xf32>
    %749 = arith.mulf %744, %748 : vector<2x8x8xf32>
    %750 = arith.truncf %749 : vector<2x8x8xf32> to vector<2x8x8xbf16>
    %751 = vector.extract_strided_slice %733 {offsets = [0, 0, 0], sizes = [2, 8, 16], strides = [1, 1, 1]} : vector<2x8x64xbf16> to vector<2x8x16xbf16>
    "tpu.trace_start"() <{level = 10 : i32, message = "bqk,bkd->bqd"}> : () -> ()
    %cst_306 = arith.constant dense<0.000000e+00> : vector<2x8x16xf32>
    %752 = tpu.matmul %750, %751, %cst_306 {dimension_numbers = #tpu.dot_dimension_numbers<[2], [1], [1], [2], [0, 0, 0, 1, 1, 2], [0], [0]>} : vector<2x8x8xbf16>, vector<2x8x16xbf16>, vector<2x8x16xf32> -> vector<2x8x16xf32>
    "tpu.trace_stop"() : () -> ()
    %753 = vector.shape_cast %752 : vector<2x8x16xf32> to vector<16x16xf32>
    %754 = vector.extract_strided_slice %729 {offsets = [0, 0, 16], sizes = [2, 8, 16], strides = [1, 1, 1]} : vector<2x8x64xbf16> to vector<2x8x16xbf16>
    %755 = vector.extract_strided_slice %731 {offsets = [0, 0, 16], sizes = [2, 8, 16], strides = [1, 1, 1]} : vector<2x8x64xbf16> to vector<2x8x16xbf16>
    "tpu.trace_start"() <{level = 10 : i32, message = "bqd,bkd->bqk"}> : () -> ()
    %cst_307 = arith.constant dense<0.000000e+00> : vector<2x8x8xf32>
    %756 = tpu.matmul %754, %755, %cst_307 {dimension_numbers = #tpu.dot_dimension_numbers<[2], [2], [1], [1], [0, 0, 0, 1, 1, 1], [0], [0]>} : vector<2x8x16xbf16>, vector<2x8x16xbf16>, vector<2x8x8xf32> -> vector<2x8x8xf32>
    "tpu.trace_stop"() : () -> ()
    %cst_308 = arith.constant 2.500000e-01 : f32
    %757 = vector.broadcast %cst_308 : f32 to vector<2x8x8xf32>
    %758 = arith.mulf %756, %757 : vector<2x8x8xf32>
    %759 = arith.addf %758, %24 : vector<2x8x8xf32>
    %cst_309 = arith.constant dense<0xFF800000> : vector<2x8xf32>
    %760 = vector.multi_reduction <maximumf>, %759, %cst_309 [2] : vector<2x8x8xf32> to vector<2x8xf32>
    %761 = vector.shape_cast %760 : vector<2x8xf32> to vector<2x8x1xf32>
    %762 = vector.broadcast %761 : vector<2x8x1xf32> to vector<2x8x8xf32>
    %763 = arith.subf %759, %762 : vector<2x8x8xf32>
    %764 = math.exp %763 : vector<2x8x8xf32>
    %cst_310 = arith.constant dense<0.000000e+00> : vector<2x8xf32>
    %765 = vector.multi_reduction <add>, %764, %cst_310 [2] : vector<2x8x8xf32> to vector<2x8xf32>
    %766 = vector.shape_cast %765 : vector<2x8xf32> to vector<2x8x1xf32>
    %767 = tpu.reciprocal %766 {approx = true} : vector<2x8x1xf32> -> vector<2x8x1xf32>
    %768 = vector.broadcast %767 : vector<2x8x1xf32> to vector<2x8x8xf32>
    %769 = arith.mulf %764, %768 : vector<2x8x8xf32>
    %770 = arith.truncf %769 : vector<2x8x8xf32> to vector<2x8x8xbf16>
    %771 = vector.extract_strided_slice %733 {offsets = [0, 0, 16], sizes = [2, 8, 16], strides = [1, 1, 1]} : vector<2x8x64xbf16> to vector<2x8x16xbf16>
    "tpu.trace_start"() <{level = 10 : i32, message = "bqk,bkd->bqd"}> : () -> ()
    %cst_311 = arith.constant dense<0.000000e+00> : vector<2x8x16xf32>
    %772 = tpu.matmul %770, %771, %cst_311 {dimension_numbers = #tpu.dot_dimension_numbers<[2], [1], [1], [2], [0, 0, 0, 1, 1, 2], [0], [0]>} : vector<2x8x8xbf16>, vector<2x8x16xbf16>, vector<2x8x16xf32> -> vector<2x8x16xf32>
    "tpu.trace_stop"() : () -> ()
    %773 = vector.shape_cast %772 : vector<2x8x16xf32> to vector<16x16xf32>
    %774 = vector.extract_strided_slice %729 {offsets = [0, 0, 32], sizes = [2, 8, 16], strides = [1, 1, 1]} : vector<2x8x64xbf16> to vector<2x8x16xbf16>
    %775 = vector.extract_strided_slice %731 {offsets = [0, 0, 32], sizes = [2, 8, 16], strides = [1, 1, 1]} : vector<2x8x64xbf16> to vector<2x8x16xbf16>
    "tpu.trace_start"() <{level = 10 : i32, message = "bqd,bkd->bqk"}> : () -> ()
    %cst_312 = arith.constant dense<0.000000e+00> : vector<2x8x8xf32>
    %776 = tpu.matmul %774, %775, %cst_312 {dimension_numbers = #tpu.dot_dimension_numbers<[2], [2], [1], [1], [0, 0, 0, 1, 1, 1], [0], [0]>} : vector<2x8x16xbf16>, vector<2x8x16xbf16>, vector<2x8x8xf32> -> vector<2x8x8xf32>
    "tpu.trace_stop"() : () -> ()
    %cst_313 = arith.constant 2.500000e-01 : f32
    %777 = vector.broadcast %cst_313 : f32 to vector<2x8x8xf32>
    %778 = arith.mulf %776, %777 : vector<2x8x8xf32>
    %779 = arith.addf %778, %24 : vector<2x8x8xf32>
    %cst_314 = arith.constant dense<0xFF800000> : vector<2x8xf32>
    %780 = vector.multi_reduction <maximumf>, %779, %cst_314 [2] : vector<2x8x8xf32> to vector<2x8xf32>
    %781 = vector.shape_cast %780 : vector<2x8xf32> to vector<2x8x1xf32>
    %782 = vector.broadcast %781 : vector<2x8x1xf32> to vector<2x8x8xf32>
    %783 = arith.subf %779, %782 : vector<2x8x8xf32>
    %784 = math.exp %783 : vector<2x8x8xf32>
    %cst_315 = arith.constant dense<0.000000e+00> : vector<2x8xf32>
    %785 = vector.multi_reduction <add>, %784, %cst_315 [2] : vector<2x8x8xf32> to vector<2x8xf32>
    %786 = vector.shape_cast %785 : vector<2x8xf32> to vector<2x8x1xf32>
    %787 = tpu.reciprocal %786 {approx = true} : vector<2x8x1xf32> -> vector<2x8x1xf32>
    %788 = vector.broadcast %787 : vector<2x8x1xf32> to vector<2x8x8xf32>
    %789 = arith.mulf %784, %788 : vector<2x8x8xf32>
    %790 = arith.truncf %789 : vector<2x8x8xf32> to vector<2x8x8xbf16>
    %791 = vector.extract_strided_slice %733 {offsets = [0, 0, 32], sizes = [2, 8, 16], strides = [1, 1, 1]} : vector<2x8x64xbf16> to vector<2x8x16xbf16>
    "tpu.trace_start"() <{level = 10 : i32, message = "bqk,bkd->bqd"}> : () -> ()
    %cst_316 = arith.constant dense<0.000000e+00> : vector<2x8x16xf32>
    %792 = tpu.matmul %790, %791, %cst_316 {dimension_numbers = #tpu.dot_dimension_numbers<[2], [1], [1], [2], [0, 0, 0, 1, 1, 2], [0], [0]>} : vector<2x8x8xbf16>, vector<2x8x16xbf16>, vector<2x8x16xf32> -> vector<2x8x16xf32>
    "tpu.trace_stop"() : () -> ()
    %793 = vector.shape_cast %792 : vector<2x8x16xf32> to vector<16x16xf32>
    %794 = vector.extract_strided_slice %729 {offsets = [0, 0, 48], sizes = [2, 8, 16], strides = [1, 1, 1]} : vector<2x8x64xbf16> to vector<2x8x16xbf16>
    %795 = vector.extract_strided_slice %731 {offsets = [0, 0, 48], sizes = [2, 8, 16], strides = [1, 1, 1]} : vector<2x8x64xbf16> to vector<2x8x16xbf16>
    "tpu.trace_start"() <{level = 10 : i32, message = "bqd,bkd->bqk"}> : () -> ()
    %cst_317 = arith.constant dense<0.000000e+00> : vector<2x8x8xf32>
    %796 = tpu.matmul %794, %795, %cst_317 {dimension_numbers = #tpu.dot_dimension_numbers<[2], [2], [1], [1], [0, 0, 0, 1, 1, 1], [0], [0]>} : vector<2x8x16xbf16>, vector<2x8x16xbf16>, vector<2x8x8xf32> -> vector<2x8x8xf32>
    "tpu.trace_stop"() : () -> ()
    %cst_318 = arith.constant 2.500000e-01 : f32
    %797 = vector.broadcast %cst_318 : f32 to vector<2x8x8xf32>
    %798 = arith.mulf %796, %797 : vector<2x8x8xf32>
    %799 = arith.addf %798, %24 : vector<2x8x8xf32>
    %cst_319 = arith.constant dense<0xFF800000> : vector<2x8xf32>
    %800 = vector.multi_reduction <maximumf>, %799, %cst_319 [2] : vector<2x8x8xf32> to vector<2x8xf32>
    %801 = vector.shape_cast %800 : vector<2x8xf32> to vector<2x8x1xf32>
    %802 = vector.broadcast %801 : vector<2x8x1xf32> to vector<2x8x8xf32>
    %803 = arith.subf %799, %802 : vector<2x8x8xf32>
    %804 = math.exp %803 : vector<2x8x8xf32>
    %cst_320 = arith.constant dense<0.000000e+00> : vector<2x8xf32>
    %805 = vector.multi_reduction <add>, %804, %cst_320 [2] : vector<2x8x8xf32> to vector<2x8xf32>
    %806 = vector.shape_cast %805 : vector<2x8xf32> to vector<2x8x1xf32>
    %807 = tpu.reciprocal %806 {approx = true} : vector<2x8x1xf32> -> vector<2x8x1xf32>
    %808 = vector.broadcast %807 : vector<2x8x1xf32> to vector<2x8x8xf32>
    %809 = arith.mulf %804, %808 : vector<2x8x8xf32>
    %810 = arith.truncf %809 : vector<2x8x8xf32> to vector<2x8x8xbf16>
    %811 = vector.extract_strided_slice %733 {offsets = [0, 0, 48], sizes = [2, 8, 16], strides = [1, 1, 1]} : vector<2x8x64xbf16> to vector<2x8x16xbf16>
    "tpu.trace_start"() <{level = 10 : i32, message = "bqk,bkd->bqd"}> : () -> ()
    %cst_321 = arith.constant dense<0.000000e+00> : vector<2x8x16xf32>
    %812 = tpu.matmul %810, %811, %cst_321 {dimension_numbers = #tpu.dot_dimension_numbers<[2], [1], [1], [2], [0, 0, 0, 1, 1, 2], [0], [0]>} : vector<2x8x8xbf16>, vector<2x8x16xbf16>, vector<2x8x16xf32> -> vector<2x8x16xf32>
    "tpu.trace_stop"() : () -> ()
    %813 = vector.shape_cast %812 : vector<2x8x16xf32> to vector<16x16xf32>
    %814 = tpu.concatenate %753, %773, %793, %813 in 1 : vector<16x16xf32>, vector<16x16xf32>, vector<16x16xf32>, vector<16x16xf32> -> vector<16x64xf32>
    %815 = arith.truncf %814 : vector<16x64xf32> to vector<16x64xbf16>
    %cst_322 = arith.constant dense<0.000000e+00> : vector<16x64xf32>
    %816 = tpu.matmul %815, %725, %cst_322 {dimension_numbers = #tpu.dot_dimension_numbers<[1], [0], [0], [1], [0, 0, 1, 1], [], []>} : vector<16x64xbf16>, vector<64x64xbf16>, vector<16x64xf32> -> vector<16x64xf32>
    %817 = vector.broadcast %727 : vector<1x64xf32> to vector<16x64xf32>
    %818 = arith.addf %816, %817 : vector<16x64xf32>
    %819 = arith.addf %712, %818 : vector<16x64xf32>
    %c1_323 = arith.constant 1 : index
    %c0_324 = arith.constant 0 : index
    %c0_325 = arith.constant 0 : index
    %820 = vector.load %arg23[%c1_323, %c0_324, %c0_325] : memref<2x1x64xf32, #tpu.memory_space<vmem>>, vector<1x1x64xf32>
    %821 = vector.shape_cast %820 : vector<1x1x64xf32> to vector<1x64xf32>
    %c1_326 = arith.constant 1 : index
    %c0_327 = arith.constant 0 : index
    %c0_328 = arith.constant 0 : index
    %822 = vector.load %arg24[%c1_326, %c0_327, %c0_328] : memref<2x1x64xf32, #tpu.memory_space<vmem>>, vector<1x1x64xf32>
    %823 = vector.shape_cast %822 : vector<1x1x64xf32> to vector<1x64xf32>
    %cst_329 = arith.constant dense<0.000000e+00> : vector<16xf32>
    %824 = vector.multi_reduction <add>, %819, %cst_329 [1] : vector<16x64xf32> to vector<16xf32>
    %825 = vector.shape_cast %824 : vector<16xf32> to vector<16x1xf32>
    %cst_330 = arith.constant 6.400000e+01 : f32
    %826 = vector.broadcast %cst_330 : f32 to vector<16x1xf32>
    %827 = arith.divf %825, %826 : vector<16x1xf32>
    %828 = vector.broadcast %827 : vector<16x1xf32> to vector<16x64xf32>
    %829 = arith.subf %819, %828 : vector<16x64xf32>
    %830 = arith.mulf %829, %829 : vector<16x64xf32>
    %cst_331 = arith.constant dense<0.000000e+00> : vector<16xf32>
    %831 = vector.multi_reduction <add>, %830, %cst_331 [1] : vector<16x64xf32> to vector<16xf32>
    %832 = vector.shape_cast %831 : vector<16xf32> to vector<16x1xf32>
    %cst_332 = arith.constant 6.400000e+01 : f32
    %833 = vector.broadcast %cst_332 : f32 to vector<16x1xf32>
    %834 = arith.divf %832, %833 : vector<16x1xf32>
    %cst_333 = arith.constant 9.99999974E-6 : f32
    %835 = vector.broadcast %cst_333 : f32 to vector<16x1xf32>
    %836 = arith.addf %834, %835 : vector<16x1xf32>
    %837 = math.rsqrt %836 : vector<16x1xf32>
    %838 = vector.broadcast %837 : vector<16x1xf32> to vector<16x64xf32>
    %839 = arith.mulf %829, %838 : vector<16x64xf32>
    %840 = vector.broadcast %821 : vector<1x64xf32> to vector<16x64xf32>
    %841 = arith.mulf %839, %840 : vector<16x64xf32>
    %842 = vector.broadcast %823 : vector<1x64xf32> to vector<16x64xf32>
    %843 = arith.addf %841, %842 : vector<16x64xf32>
    %c1_334 = arith.constant 1 : index
    %c0_335 = arith.constant 0 : index
    %c0_336 = arith.constant 0 : index
    %844 = vector.load %arg25[%c1_334, %c0_335, %c0_336] : memref<2x64x64xbf16, #tpu.memory_space<vmem>>, vector<1x64x64xbf16>
    %845 = vector.shape_cast %844 : vector<1x64x64xbf16> to vector<64x64xbf16>
    %c1_337 = arith.constant 1 : index
    %c0_338 = arith.constant 0 : index
    %c0_339 = arith.constant 0 : index
    %846 = vector.load %arg26[%c1_337, %c0_338, %c0_339] : memref<2x1x64xf32, #tpu.memory_space<vmem>>, vector<1x1x64xf32>
    %847 = vector.shape_cast %846 : vector<1x1x64xf32> to vector<1x64xf32>
    %848 = arith.truncf %843 : vector<16x64xf32> to vector<16x64xbf16>
    %cst_340 = arith.constant dense<0.000000e+00> : vector<16x64xf32>
    %849 = tpu.matmul %848, %845, %cst_340 {dimension_numbers = #tpu.dot_dimension_numbers<[1], [0], [0], [1], [0, 0, 1, 1], [], []>} : vector<16x64xbf16>, vector<64x64xbf16>, vector<16x64xf32> -> vector<16x64xf32>
    %850 = vector.broadcast %847 : vector<1x64xf32> to vector<16x64xf32>
    %851 = arith.addf %849, %850 : vector<16x64xf32>
    %c1_341 = arith.constant 1 : index
    %c0_342 = arith.constant 0 : index
    %c0_343 = arith.constant 0 : index
    %852 = vector.load %arg27[%c1_341, %c0_342, %c0_343] : memref<2x64x128xbf16, #tpu.memory_space<vmem>>, vector<1x64x128xbf16>
    %853 = vector.shape_cast %852 : vector<1x64x128xbf16> to vector<64x128xbf16>
    %c1_344 = arith.constant 1 : index
    %c0_345 = arith.constant 0 : index
    %c0_346 = arith.constant 0 : index
    %854 = vector.load %arg28[%c1_344, %c0_345, %c0_346] : memref<2x1x128xf32, #tpu.memory_space<vmem>>, vector<1x1x128xf32>
    %855 = vector.shape_cast %854 : vector<1x1x128xf32> to vector<1x128xf32>
    %856 = arith.truncf %400 : vector<16x64xf32> to vector<16x64xbf16>
    %cst_347 = arith.constant dense<0.000000e+00> : vector<16x128xf32>
    %857 = tpu.matmul %856, %853, %cst_347 {dimension_numbers = #tpu.dot_dimension_numbers<[1], [0], [0], [1], [0, 0, 1, 1], [], []>} : vector<16x64xbf16>, vector<64x128xbf16>, vector<16x128xf32> -> vector<16x128xf32>
    %858 = vector.broadcast %855 : vector<1x128xf32> to vector<16x128xf32>
    %859 = arith.addf %857, %858 : vector<16x128xf32>
    %860 = vector.extract_strided_slice %859 {offsets = [0, 0], sizes = [16, 64], strides = [1, 1]} : vector<16x128xf32> to vector<16x64xf32>
    %861 = vector.extract_strided_slice %859 {offsets = [0, 64], sizes = [16, 64], strides = [1, 1]} : vector<16x128xf32> to vector<16x64xf32>
    %c1_348 = arith.constant 1 : index
    %c0_349 = arith.constant 0 : index
    %c0_350 = arith.constant 0 : index
    %862 = vector.load %arg29[%c1_348, %c0_349, %c0_350] : memref<2x64x64xbf16, #tpu.memory_space<vmem>>, vector<1x64x64xbf16>
    %863 = vector.shape_cast %862 : vector<1x64x64xbf16> to vector<64x64xbf16>
    %c1_351 = arith.constant 1 : index
    %c0_352 = arith.constant 0 : index
    %c0_353 = arith.constant 0 : index
    %864 = vector.load %arg30[%c1_351, %c0_352, %c0_353] : memref<2x1x64xf32, #tpu.memory_space<vmem>>, vector<1x1x64xf32>
    %865 = vector.shape_cast %864 : vector<1x1x64xf32> to vector<1x64xf32>
    %866 = vector.shape_cast %851 : vector<16x64xf32> to vector<2x8x64xf32>
    %867 = arith.truncf %866 : vector<2x8x64xf32> to vector<2x8x64xbf16>
    %868 = vector.shape_cast %860 : vector<16x64xf32> to vector<2x8x64xf32>
    %869 = arith.truncf %868 : vector<2x8x64xf32> to vector<2x8x64xbf16>
    %870 = vector.shape_cast %861 : vector<16x64xf32> to vector<2x8x64xf32>
    %871 = arith.truncf %870 : vector<2x8x64xf32> to vector<2x8x64xbf16>
    %872 = vector.extract_strided_slice %867 {offsets = [0, 0, 0], sizes = [2, 8, 16], strides = [1, 1, 1]} : vector<2x8x64xbf16> to vector<2x8x16xbf16>
    %873 = vector.extract_strided_slice %869 {offsets = [0, 0, 0], sizes = [2, 8, 16], strides = [1, 1, 1]} : vector<2x8x64xbf16> to vector<2x8x16xbf16>
    "tpu.trace_start"() <{level = 10 : i32, message = "bqd,bkd->bqk"}> : () -> ()
    %cst_354 = arith.constant dense<0.000000e+00> : vector<2x8x8xf32>
    %874 = tpu.matmul %872, %873, %cst_354 {dimension_numbers = #tpu.dot_dimension_numbers<[2], [2], [1], [1], [0, 0, 0, 1, 1, 1], [0], [0]>} : vector<2x8x16xbf16>, vector<2x8x16xbf16>, vector<2x8x8xf32> -> vector<2x8x8xf32>
    "tpu.trace_stop"() : () -> ()
    %cst_355 = arith.constant 2.500000e-01 : f32
    %875 = vector.broadcast %cst_355 : f32 to vector<2x8x8xf32>
    %876 = arith.mulf %874, %875 : vector<2x8x8xf32>
    %877 = arith.addf %876, %21 : vector<2x8x8xf32>
    %cst_356 = arith.constant dense<0xFF800000> : vector<2x8xf32>
    %878 = vector.multi_reduction <maximumf>, %877, %cst_356 [2] : vector<2x8x8xf32> to vector<2x8xf32>
    %879 = vector.shape_cast %878 : vector<2x8xf32> to vector<2x8x1xf32>
    %880 = vector.broadcast %879 : vector<2x8x1xf32> to vector<2x8x8xf32>
    %881 = arith.subf %877, %880 : vector<2x8x8xf32>
    %882 = math.exp %881 : vector<2x8x8xf32>
    %cst_357 = arith.constant dense<0.000000e+00> : vector<2x8xf32>
    %883 = vector.multi_reduction <add>, %882, %cst_357 [2] : vector<2x8x8xf32> to vector<2x8xf32>
    %884 = vector.shape_cast %883 : vector<2x8xf32> to vector<2x8x1xf32>
    %885 = tpu.reciprocal %884 {approx = true} : vector<2x8x1xf32> -> vector<2x8x1xf32>
    %886 = vector.broadcast %885 : vector<2x8x1xf32> to vector<2x8x8xf32>
    %887 = arith.mulf %882, %886 : vector<2x8x8xf32>
    %888 = arith.truncf %887 : vector<2x8x8xf32> to vector<2x8x8xbf16>
    %889 = vector.extract_strided_slice %871 {offsets = [0, 0, 0], sizes = [2, 8, 16], strides = [1, 1, 1]} : vector<2x8x64xbf16> to vector<2x8x16xbf16>
    "tpu.trace_start"() <{level = 10 : i32, message = "bqk,bkd->bqd"}> : () -> ()
    %cst_358 = arith.constant dense<0.000000e+00> : vector<2x8x16xf32>
    %890 = tpu.matmul %888, %889, %cst_358 {dimension_numbers = #tpu.dot_dimension_numbers<[2], [1], [1], [2], [0, 0, 0, 1, 1, 2], [0], [0]>} : vector<2x8x8xbf16>, vector<2x8x16xbf16>, vector<2x8x16xf32> -> vector<2x8x16xf32>
    "tpu.trace_stop"() : () -> ()
    %891 = vector.shape_cast %890 : vector<2x8x16xf32> to vector<16x16xf32>
    %892 = vector.extract_strided_slice %867 {offsets = [0, 0, 16], sizes = [2, 8, 16], strides = [1, 1, 1]} : vector<2x8x64xbf16> to vector<2x8x16xbf16>
    %893 = vector.extract_strided_slice %869 {offsets = [0, 0, 16], sizes = [2, 8, 16], strides = [1, 1, 1]} : vector<2x8x64xbf16> to vector<2x8x16xbf16>
    "tpu.trace_start"() <{level = 10 : i32, message = "bqd,bkd->bqk"}> : () -> ()
    %cst_359 = arith.constant dense<0.000000e+00> : vector<2x8x8xf32>
    %894 = tpu.matmul %892, %893, %cst_359 {dimension_numbers = #tpu.dot_dimension_numbers<[2], [2], [1], [1], [0, 0, 0, 1, 1, 1], [0], [0]>} : vector<2x8x16xbf16>, vector<2x8x16xbf16>, vector<2x8x8xf32> -> vector<2x8x8xf32>
    "tpu.trace_stop"() : () -> ()
    %cst_360 = arith.constant 2.500000e-01 : f32
    %895 = vector.broadcast %cst_360 : f32 to vector<2x8x8xf32>
    %896 = arith.mulf %894, %895 : vector<2x8x8xf32>
    %897 = arith.addf %896, %21 : vector<2x8x8xf32>
    %cst_361 = arith.constant dense<0xFF800000> : vector<2x8xf32>
    %898 = vector.multi_reduction <maximumf>, %897, %cst_361 [2] : vector<2x8x8xf32> to vector<2x8xf32>
    %899 = vector.shape_cast %898 : vector<2x8xf32> to vector<2x8x1xf32>
    %900 = vector.broadcast %899 : vector<2x8x1xf32> to vector<2x8x8xf32>
    %901 = arith.subf %897, %900 : vector<2x8x8xf32>
    %902 = math.exp %901 : vector<2x8x8xf32>
    %cst_362 = arith.constant dense<0.000000e+00> : vector<2x8xf32>
    %903 = vector.multi_reduction <add>, %902, %cst_362 [2] : vector<2x8x8xf32> to vector<2x8xf32>
    %904 = vector.shape_cast %903 : vector<2x8xf32> to vector<2x8x1xf32>
    %905 = tpu.reciprocal %904 {approx = true} : vector<2x8x1xf32> -> vector<2x8x1xf32>
    %906 = vector.broadcast %905 : vector<2x8x1xf32> to vector<2x8x8xf32>
    %907 = arith.mulf %902, %906 : vector<2x8x8xf32>
    %908 = arith.truncf %907 : vector<2x8x8xf32> to vector<2x8x8xbf16>
    %909 = vector.extract_strided_slice %871 {offsets = [0, 0, 16], sizes = [2, 8, 16], strides = [1, 1, 1]} : vector<2x8x64xbf16> to vector<2x8x16xbf16>
    "tpu.trace_start"() <{level = 10 : i32, message = "bqk,bkd->bqd"}> : () -> ()
    %cst_363 = arith.constant dense<0.000000e+00> : vector<2x8x16xf32>
    %910 = tpu.matmul %908, %909, %cst_363 {dimension_numbers = #tpu.dot_dimension_numbers<[2], [1], [1], [2], [0, 0, 0, 1, 1, 2], [0], [0]>} : vector<2x8x8xbf16>, vector<2x8x16xbf16>, vector<2x8x16xf32> -> vector<2x8x16xf32>
    "tpu.trace_stop"() : () -> ()
    %911 = vector.shape_cast %910 : vector<2x8x16xf32> to vector<16x16xf32>
    %912 = vector.extract_strided_slice %867 {offsets = [0, 0, 32], sizes = [2, 8, 16], strides = [1, 1, 1]} : vector<2x8x64xbf16> to vector<2x8x16xbf16>
    %913 = vector.extract_strided_slice %869 {offsets = [0, 0, 32], sizes = [2, 8, 16], strides = [1, 1, 1]} : vector<2x8x64xbf16> to vector<2x8x16xbf16>
    "tpu.trace_start"() <{level = 10 : i32, message = "bqd,bkd->bqk"}> : () -> ()
    %cst_364 = arith.constant dense<0.000000e+00> : vector<2x8x8xf32>
    %914 = tpu.matmul %912, %913, %cst_364 {dimension_numbers = #tpu.dot_dimension_numbers<[2], [2], [1], [1], [0, 0, 0, 1, 1, 1], [0], [0]>} : vector<2x8x16xbf16>, vector<2x8x16xbf16>, vector<2x8x8xf32> -> vector<2x8x8xf32>
    "tpu.trace_stop"() : () -> ()
    %cst_365 = arith.constant 2.500000e-01 : f32
    %915 = vector.broadcast %cst_365 : f32 to vector<2x8x8xf32>
    %916 = arith.mulf %914, %915 : vector<2x8x8xf32>
    %917 = arith.addf %916, %21 : vector<2x8x8xf32>
    %cst_366 = arith.constant dense<0xFF800000> : vector<2x8xf32>
    %918 = vector.multi_reduction <maximumf>, %917, %cst_366 [2] : vector<2x8x8xf32> to vector<2x8xf32>
    %919 = vector.shape_cast %918 : vector<2x8xf32> to vector<2x8x1xf32>
    %920 = vector.broadcast %919 : vector<2x8x1xf32> to vector<2x8x8xf32>
    %921 = arith.subf %917, %920 : vector<2x8x8xf32>
    %922 = math.exp %921 : vector<2x8x8xf32>
    %cst_367 = arith.constant dense<0.000000e+00> : vector<2x8xf32>
    %923 = vector.multi_reduction <add>, %922, %cst_367 [2] : vector<2x8x8xf32> to vector<2x8xf32>
    %924 = vector.shape_cast %923 : vector<2x8xf32> to vector<2x8x1xf32>
    %925 = tpu.reciprocal %924 {approx = true} : vector<2x8x1xf32> -> vector<2x8x1xf32>
    %926 = vector.broadcast %925 : vector<2x8x1xf32> to vector<2x8x8xf32>
    %927 = arith.mulf %922, %926 : vector<2x8x8xf32>
    %928 = arith.truncf %927 : vector<2x8x8xf32> to vector<2x8x8xbf16>
    %929 = vector.extract_strided_slice %871 {offsets = [0, 0, 32], sizes = [2, 8, 16], strides = [1, 1, 1]} : vector<2x8x64xbf16> to vector<2x8x16xbf16>
    "tpu.trace_start"() <{level = 10 : i32, message = "bqk,bkd->bqd"}> : () -> ()
    %cst_368 = arith.constant dense<0.000000e+00> : vector<2x8x16xf32>
    %930 = tpu.matmul %928, %929, %cst_368 {dimension_numbers = #tpu.dot_dimension_numbers<[2], [1], [1], [2], [0, 0, 0, 1, 1, 2], [0], [0]>} : vector<2x8x8xbf16>, vector<2x8x16xbf16>, vector<2x8x16xf32> -> vector<2x8x16xf32>
    "tpu.trace_stop"() : () -> ()
    %931 = vector.shape_cast %930 : vector<2x8x16xf32> to vector<16x16xf32>
    %932 = vector.extract_strided_slice %867 {offsets = [0, 0, 48], sizes = [2, 8, 16], strides = [1, 1, 1]} : vector<2x8x64xbf16> to vector<2x8x16xbf16>
    %933 = vector.extract_strided_slice %869 {offsets = [0, 0, 48], sizes = [2, 8, 16], strides = [1, 1, 1]} : vector<2x8x64xbf16> to vector<2x8x16xbf16>
    "tpu.trace_start"() <{level = 10 : i32, message = "bqd,bkd->bqk"}> : () -> ()
    %cst_369 = arith.constant dense<0.000000e+00> : vector<2x8x8xf32>
    %934 = tpu.matmul %932, %933, %cst_369 {dimension_numbers = #tpu.dot_dimension_numbers<[2], [2], [1], [1], [0, 0, 0, 1, 1, 1], [0], [0]>} : vector<2x8x16xbf16>, vector<2x8x16xbf16>, vector<2x8x8xf32> -> vector<2x8x8xf32>
    "tpu.trace_stop"() : () -> ()
    %cst_370 = arith.constant 2.500000e-01 : f32
    %935 = vector.broadcast %cst_370 : f32 to vector<2x8x8xf32>
    %936 = arith.mulf %934, %935 : vector<2x8x8xf32>
    %937 = arith.addf %936, %21 : vector<2x8x8xf32>
    %cst_371 = arith.constant dense<0xFF800000> : vector<2x8xf32>
    %938 = vector.multi_reduction <maximumf>, %937, %cst_371 [2] : vector<2x8x8xf32> to vector<2x8xf32>
    %939 = vector.shape_cast %938 : vector<2x8xf32> to vector<2x8x1xf32>
    %940 = vector.broadcast %939 : vector<2x8x1xf32> to vector<2x8x8xf32>
    %941 = arith.subf %937, %940 : vector<2x8x8xf32>
    %942 = math.exp %941 : vector<2x8x8xf32>
    %cst_372 = arith.constant dense<0.000000e+00> : vector<2x8xf32>
    %943 = vector.multi_reduction <add>, %942, %cst_372 [2] : vector<2x8x8xf32> to vector<2x8xf32>
    %944 = vector.shape_cast %943 : vector<2x8xf32> to vector<2x8x1xf32>
    %945 = tpu.reciprocal %944 {approx = true} : vector<2x8x1xf32> -> vector<2x8x1xf32>
    %946 = vector.broadcast %945 : vector<2x8x1xf32> to vector<2x8x8xf32>
    %947 = arith.mulf %942, %946 : vector<2x8x8xf32>
    %948 = arith.truncf %947 : vector<2x8x8xf32> to vector<2x8x8xbf16>
    %949 = vector.extract_strided_slice %871 {offsets = [0, 0, 48], sizes = [2, 8, 16], strides = [1, 1, 1]} : vector<2x8x64xbf16> to vector<2x8x16xbf16>
    "tpu.trace_start"() <{level = 10 : i32, message = "bqk,bkd->bqd"}> : () -> ()
    %cst_373 = arith.constant dense<0.000000e+00> : vector<2x8x16xf32>
    %950 = tpu.matmul %948, %949, %cst_373 {dimension_numbers = #tpu.dot_dimension_numbers<[2], [1], [1], [2], [0, 0, 0, 1, 1, 2], [0], [0]>} : vector<2x8x8xbf16>, vector<2x8x16xbf16>, vector<2x8x16xf32> -> vector<2x8x16xf32>
    "tpu.trace_stop"() : () -> ()
    %951 = vector.shape_cast %950 : vector<2x8x16xf32> to vector<16x16xf32>
    %952 = tpu.concatenate %891, %911, %931, %951 in 1 : vector<16x16xf32>, vector<16x16xf32>, vector<16x16xf32>, vector<16x16xf32> -> vector<16x64xf32>
    %953 = arith.truncf %952 : vector<16x64xf32> to vector<16x64xbf16>
    %cst_374 = arith.constant dense<0.000000e+00> : vector<16x64xf32>
    %954 = tpu.matmul %953, %863, %cst_374 {dimension_numbers = #tpu.dot_dimension_numbers<[1], [0], [0], [1], [0, 0, 1, 1], [], []>} : vector<16x64xbf16>, vector<64x64xbf16>, vector<16x64xf32> -> vector<16x64xf32>
    %955 = vector.broadcast %865 : vector<1x64xf32> to vector<16x64xf32>
    %956 = arith.addf %954, %955 : vector<16x64xf32>
    %957 = arith.addf %843, %956 : vector<16x64xf32>
    %c1_375 = arith.constant 1 : index
    %c0_376 = arith.constant 0 : index
    %c0_377 = arith.constant 0 : index
    %958 = vector.load %arg31[%c1_375, %c0_376, %c0_377] : memref<2x1x64xf32, #tpu.memory_space<vmem>>, vector<1x1x64xf32>
    %959 = vector.shape_cast %958 : vector<1x1x64xf32> to vector<1x64xf32>
    %c1_378 = arith.constant 1 : index
    %c0_379 = arith.constant 0 : index
    %c0_380 = arith.constant 0 : index
    %960 = vector.load %arg32[%c1_378, %c0_379, %c0_380] : memref<2x1x64xf32, #tpu.memory_space<vmem>>, vector<1x1x64xf32>
    %961 = vector.shape_cast %960 : vector<1x1x64xf32> to vector<1x64xf32>
    %cst_381 = arith.constant dense<0.000000e+00> : vector<16xf32>
    %962 = vector.multi_reduction <add>, %957, %cst_381 [1] : vector<16x64xf32> to vector<16xf32>
    %963 = vector.shape_cast %962 : vector<16xf32> to vector<16x1xf32>
    %cst_382 = arith.constant 6.400000e+01 : f32
    %964 = vector.broadcast %cst_382 : f32 to vector<16x1xf32>
    %965 = arith.divf %963, %964 : vector<16x1xf32>
    %966 = vector.broadcast %965 : vector<16x1xf32> to vector<16x64xf32>
    %967 = arith.subf %957, %966 : vector<16x64xf32>
    %968 = arith.mulf %967, %967 : vector<16x64xf32>
    %cst_383 = arith.constant dense<0.000000e+00> : vector<16xf32>
    %969 = vector.multi_reduction <add>, %968, %cst_383 [1] : vector<16x64xf32> to vector<16xf32>
    %970 = vector.shape_cast %969 : vector<16xf32> to vector<16x1xf32>
    %cst_384 = arith.constant 6.400000e+01 : f32
    %971 = vector.broadcast %cst_384 : f32 to vector<16x1xf32>
    %972 = arith.divf %970, %971 : vector<16x1xf32>
    %cst_385 = arith.constant 9.99999974E-6 : f32
    %973 = vector.broadcast %cst_385 : f32 to vector<16x1xf32>
    %974 = arith.addf %972, %973 : vector<16x1xf32>
    %975 = math.rsqrt %974 : vector<16x1xf32>
    %976 = vector.broadcast %975 : vector<16x1xf32> to vector<16x64xf32>
    %977 = arith.mulf %967, %976 : vector<16x64xf32>
    %978 = vector.broadcast %959 : vector<1x64xf32> to vector<16x64xf32>
    %979 = arith.mulf %977, %978 : vector<16x64xf32>
    %980 = vector.broadcast %961 : vector<1x64xf32> to vector<16x64xf32>
    %981 = arith.addf %979, %980 : vector<16x64xf32>
    %c1_386 = arith.constant 1 : index
    %c0_387 = arith.constant 0 : index
    %c0_388 = arith.constant 0 : index
    %982 = vector.load %arg33[%c1_386, %c0_387, %c0_388] : memref<2x64x128xbf16, #tpu.memory_space<vmem>>, vector<1x64x128xbf16>
    %983 = vector.shape_cast %982 : vector<1x64x128xbf16> to vector<64x128xbf16>
    %c1_389 = arith.constant 1 : index
    %c0_390 = arith.constant 0 : index
    %c0_391 = arith.constant 0 : index
    %984 = vector.load %arg34[%c1_389, %c0_390, %c0_391] : memref<2x1x128xf32, #tpu.memory_space<vmem>>, vector<1x1x128xf32>
    %985 = vector.shape_cast %984 : vector<1x1x128xf32> to vector<1x128xf32>
    %986 = arith.truncf %981 : vector<16x64xf32> to vector<16x64xbf16>
    %cst_392 = arith.constant dense<0.000000e+00> : vector<16x128xf32>
    %987 = tpu.matmul %986, %983, %cst_392 {dimension_numbers = #tpu.dot_dimension_numbers<[1], [0], [0], [1], [0, 0, 1, 1], [], []>} : vector<16x64xbf16>, vector<64x128xbf16>, vector<16x128xf32> -> vector<16x128xf32>
    %988 = vector.broadcast %985 : vector<1x128xf32> to vector<16x128xf32>
    %989 = arith.addf %987, %988 : vector<16x128xf32>
    %cst_393 = arith.constant 0.000000e+00 : f32
    %990 = vector.broadcast %cst_393 : f32 to vector<16x128xf32>
    %991 = arith.maximumf %989, %990 : vector<16x128xf32>
    %c1_394 = arith.constant 1 : index
    %c0_395 = arith.constant 0 : index
    %c0_396 = arith.constant 0 : index
    %992 = vector.load %arg35[%c1_394, %c0_395, %c0_396] : memref<2x128x64xbf16, #tpu.memory_space<vmem>>, vector<1x128x64xbf16>
    %993 = vector.shape_cast %992 : vector<1x128x64xbf16> to vector<128x64xbf16>
    %c1_397 = arith.constant 1 : index
    %c0_398 = arith.constant 0 : index
    %c0_399 = arith.constant 0 : index
    %994 = vector.load %arg36[%c1_397, %c0_398, %c0_399] : memref<2x1x64xf32, #tpu.memory_space<vmem>>, vector<1x1x64xf32>
    %995 = vector.shape_cast %994 : vector<1x1x64xf32> to vector<1x64xf32>
    %996 = arith.truncf %991 : vector<16x128xf32> to vector<16x128xbf16>
    %cst_400 = arith.constant dense<0.000000e+00> : vector<16x64xf32>
    %997 = tpu.matmul %996, %993, %cst_400 {dimension_numbers = #tpu.dot_dimension_numbers<[1], [0], [0], [1], [0, 0, 1, 1], [], []>} : vector<16x128xbf16>, vector<128x64xbf16>, vector<16x64xf32> -> vector<16x64xf32>
    %998 = vector.broadcast %995 : vector<1x64xf32> to vector<16x64xf32>
    %999 = arith.addf %997, %998 : vector<16x64xf32>
    %1000 = arith.addf %981, %999 : vector<16x64xf32>
    %c1_401 = arith.constant 1 : index
    %c0_402 = arith.constant 0 : index
    %c0_403 = arith.constant 0 : index
    %1001 = vector.load %arg37[%c1_401, %c0_402, %c0_403] : memref<2x1x64xf32, #tpu.memory_space<vmem>>, vector<1x1x64xf32>
    %1002 = vector.shape_cast %1001 : vector<1x1x64xf32> to vector<1x64xf32>
    %c1_404 = arith.constant 1 : index
    %c0_405 = arith.constant 0 : index
    %c0_406 = arith.constant 0 : index
    %1003 = vector.load %arg38[%c1_404, %c0_405, %c0_406] : memref<2x1x64xf32, #tpu.memory_space<vmem>>, vector<1x1x64xf32>
    %1004 = vector.shape_cast %1003 : vector<1x1x64xf32> to vector<1x64xf32>
    %cst_407 = arith.constant dense<0.000000e+00> : vector<16xf32>
    %1005 = vector.multi_reduction <add>, %1000, %cst_407 [1] : vector<16x64xf32> to vector<16xf32>
    %1006 = vector.shape_cast %1005 : vector<16xf32> to vector<16x1xf32>
    %cst_408 = arith.constant 6.400000e+01 : f32
    %1007 = vector.broadcast %cst_408 : f32 to vector<16x1xf32>
    %1008 = arith.divf %1006, %1007 : vector<16x1xf32>
    %1009 = vector.broadcast %1008 : vector<16x1xf32> to vector<16x64xf32>
    %1010 = arith.subf %1000, %1009 : vector<16x64xf32>
    %1011 = arith.mulf %1010, %1010 : vector<16x64xf32>
    %cst_409 = arith.constant dense<0.000000e+00> : vector<16xf32>
    %1012 = vector.multi_reduction <add>, %1011, %cst_409 [1] : vector<16x64xf32> to vector<16xf32>
    %1013 = vector.shape_cast %1012 : vector<16xf32> to vector<16x1xf32>
    %cst_410 = arith.constant 6.400000e+01 : f32
    %1014 = vector.broadcast %cst_410 : f32 to vector<16x1xf32>
    %1015 = arith.divf %1013, %1014 : vector<16x1xf32>
    %cst_411 = arith.constant 9.99999974E-6 : f32
    %1016 = vector.broadcast %cst_411 : f32 to vector<16x1xf32>
    %1017 = arith.addf %1015, %1016 : vector<16x1xf32>
    %1018 = math.rsqrt %1017 : vector<16x1xf32>
    %1019 = vector.broadcast %1018 : vector<16x1xf32> to vector<16x64xf32>
    %1020 = arith.mulf %1010, %1019 : vector<16x64xf32>
    %1021 = vector.broadcast %1002 : vector<1x64xf32> to vector<16x64xf32>
    %1022 = arith.mulf %1020, %1021 : vector<16x64xf32>
    %1023 = vector.broadcast %1004 : vector<1x64xf32> to vector<16x64xf32>
    %1024 = arith.addf %1022, %1023 : vector<16x64xf32>
    %1025 = arith.truncf %1024 : vector<16x64xf32> to vector<16x64xbf16>
    %c0_412 = arith.constant 0 : index
    %c0_413 = arith.constant 0 : index
    %1026 = vector.load %arg39[%c0_412, %c0_413] : memref<64x128xbf16, #tpu.memory_space<vmem>>, vector<64x128xbf16>
    %cst_414 = arith.constant dense<0.000000e+00> : vector<16x128xf32>
    %1027 = tpu.matmul %1025, %1026, %cst_414 {dimension_numbers = #tpu.dot_dimension_numbers<[1], [0], [0], [1], [0, 0, 1, 1], [], []>} : vector<16x64xbf16>, vector<64x128xbf16>, vector<16x128xf32> -> vector<16x128xf32>
    %c0_415 = arith.constant 0 : index
    %c0_416 = arith.constant 0 : index
    %1028 = vector.load %arg40[%c0_415, %c0_416] : memref<1x128xf32, #tpu.memory_space<vmem>>, vector<1x128xf32>
    %1029 = vector.broadcast %1028 : vector<1x128xf32> to vector<16x128xf32>
    %1030 = arith.addf %1027, %1029 : vector<16x128xf32>
    %c0_417 = arith.constant 0 : index
    %c0_418 = arith.constant 0 : index
    %1031 = vector.load %arg41[%c0_417, %c0_418] : memref<16x128xf32, #tpu.memory_space<vmem>>, vector<16x128xf32>
    tpu.vector_store %arg41[%c0_417, %c0_418], %1030 {strides = array<i32>} : memref<16x128xf32, #tpu.memory_space<vmem>>, vector<16x128xf32>,
    return
  }
}

</mosaic_0001>

<llo_original>
// kernel: transformer_forward.1
$region0: #{transformer_forward.1}
  #allocation0 [shape = 'u32[]', space=smem, size = 0x4, offset = 0x4, fixed_abs, tag = 'smem constant byte address 0x4 - core index']
  #allocation1 [shape = 'u32[144,128]{1,0:T(1,128)}', space=vmem, size = 0x12000, scoped, tag = 'internal scratch']
  %s0 = inlined_call_operand.smem [shape: u32[42], index: -1, kind: input, shape index: {}]
  %s1 = sld [smem:[%s0]]
  %s2 = scalar_lea.smem %s0, 1
  %s3 = sld [smem:[%s2]]
  %s4 = scalar_lea.smem %s0, 2
  %s5 = sld [smem:[%s4]]
  %s6 = scalar_lea.smem %s0, 3
  %s7 = sld [smem:[%s6]]
  %s8 = scalar_lea.smem %s0, 4
  %s9 = sld [smem:[%s8]]
  %s10 = scalar_lea.smem %s0, 5
  %s11 = sld [smem:[%s10]]
  %s12 = scalar_lea.smem %s0, 6
  %s13 = sld [smem:[%s12]]
  %s14 = scalar_lea.smem %s0, 7
  %s15 = sld [smem:[%s14]]
  %s16 = scalar_lea.smem %s0, 8
  %s17 = sld [smem:[%s16]]
  %s18 = scalar_lea.smem %s0, 9
  %s19 = sld [smem:[%s18]]
  %s20 = scalar_lea.smem %s0, 10
  %s21 = sld [smem:[%s20]]
  %s22 = scalar_lea.smem %s0, 11
  %s23 = sld [smem:[%s22]]
  %s24 = scalar_lea.smem %s0, 12
  %s25 = sld [smem:[%s24]]
  %s26 = scalar_lea.smem %s0, 13
  %s27 = sld [smem:[%s26]]
  %s28 = scalar_lea.smem %s0, 14
  %s29 = sld [smem:[%s28]]
  %s30 = scalar_lea.smem %s0, 15
  %s31 = sld [smem:[%s30]]
  %s32 = scalar_lea.smem %s0, 16
  %s33 = sld [smem:[%s32]]
  %s34 = scalar_lea.smem %s0, 17
  %s35 = sld [smem:[%s34]]
  %s36 = scalar_lea.smem %s0, 18
  %s37 = sld [smem:[%s36]]
  %s38 = scalar_lea.smem %s0, 19
  %s39 = sld [smem:[%s38]]
  %s40 = scalar_lea.smem %s0, 20
  %s41 = sld [smem:[%s40]]
  %s42 = scalar_lea.smem %s0, 21
  %s43 = sld [smem:[%s42]]
  %s44 = scalar_lea.smem %s0, 22
  %s45 = sld [smem:[%s44]]
  %s46 = scalar_lea.smem %s0, 23
  %s47 = sld [smem:[%s46]]
  %s48 = scalar_lea.smem %s0, 24
  %s49 = sld [smem:[%s48]]
  %s50 = scalar_lea.smem %s0, 25
  %s51 = sld [smem:[%s50]]
  %s52 = scalar_lea.smem %s0, 26
  %s53 = sld [smem:[%s52]]
  %s54 = scalar_lea.smem %s0, 27
  %s55 = sld [smem:[%s54]]
  %s56 = scalar_lea.smem %s0, 28
  %s57 = sld [smem:[%s56]]
  %s58 = scalar_lea.smem %s0, 29
  %s59 = sld [smem:[%s58]]
  %s60 = scalar_lea.smem %s0, 30
  %s61 = sld [smem:[%s60]]
  %s62 = scalar_lea.smem %s0, 31
  %s63 = sld [smem:[%s62]]
  %s64 = scalar_lea.smem %s0, 32
  %s65 = sld [smem:[%s64]]
  %s66 = scalar_lea.smem %s0, 33
  %s67 = sld [smem:[%s66]]
  %s68 = scalar_lea.smem %s0, 34
  %s69 = sld [smem:[%s68]]
  %s70 = scalar_lea.smem %s0, 35
  %s71 = sld [smem:[%s70]]
  %s72 = scalar_lea.smem %s0, 36
  %s73 = sld [smem:[%s72]]
  %s74 = scalar_lea.smem %s0, 37
  %s75 = sld [smem:[%s74]]
  %s76 = scalar_lea.smem %s0, 38
  %s77 = sld [smem:[%s76]]
  %s78 = scalar_lea.smem %s0, 39
  %s79 = sld [smem:[%s78]]
  %s80 = scalar_lea.smem %s0, 40
  %s81 = sld [smem:[%s80]]
  %s82 = scalar_lea.smem %s0, 41
  %s83 = sld [smem:[%s82]]
  %s84 = sld [smem:[#allocation0]]
  $region294: #{transformer_forward.1} parent=0
    _
  %s86 = ssub.s32 1, %s84
  %s87 = scalar_select 0, %s86, %s84
  $region1: #{transformer_forward.1} parent=0
    #allocation2 [shape = 'u8[8192]{0}', space=vmem, size = 0x2000, scoped, tag = 'input window, operand 4, single buffered']
    #allocation3 [shape = 's32[1]{0}', space=sflag, size = 0x4, scoped, tag = 'scoped memory for transformer_forward.1']
    #allocation4 [shape = 's32[1]{0}', space=sflag, size = 0x4, scoped, tag = 'scoped memory for transformer_forward.1']
    #allocation5 [shape = 'u8[8192]{0}', space=vmem, size = 0x2000, scoped, tag = 'input window, operand 5, single buffered']
    #allocation6 [shape = 's32[1]{0}', space=sflag, size = 0x4, scoped, tag = 'scoped memory for transformer_forward.1']
    #allocation7 [shape = 'u8[2048]{0}', space=vmem, size = 0x800, scoped, tag = 'input window, operand 8, single buffered']
    #allocation8 [shape = 'u8[32768]{0}', space=vmem, size = 0x8000, scoped, tag = 'input window, operand 9, single buffered']
    #allocation9 [shape = 's32[1]{0}', space=sflag, size = 0x4, scoped, tag = 'scoped memory for transformer_forward.1']
    #allocation10 [shape = 'u8[1024]{0}', space=vmem, size = 0x400, scoped, tag = 'input window, operand 10, single buffered']
    #allocation11 [shape = 'u8[1024]{0}', space=vmem, size = 0x400, scoped, tag = 'input window, operand 11, single buffered']
    #allocation12 [shape = 's32[1]{0}', space=sflag, size = 0x4, scoped, tag = 'scoped memory for transformer_forward.1']
    #allocation13 [shape = 'u8[1024]{0}', space=vmem, size = 0x400, scoped, tag = 'input window, operand 12, single buffered']
    #allocation14 [shape = 'u8[32768]{0}', space=vmem, size = 0x8000, scoped, tag = 'input window, operand 13, single buffered']
    #allocation15 [shape = 's32[1]{0}', space=sflag, size = 0x4, scoped, tag = 'scoped memory for transformer_forward.1']
    #allocation16 [shape = 'u8[1024]{0}', space=vmem, size = 0x400, scoped, tag = 'input window, operand 14, single buffered']
    #allocation17 [shape = 'u8[1024]{0}', space=vmem, size = 0x400, scoped, tag = 'input window, operand 16, single buffered']
    #allocation18 [shape = 's32[1]{0}', space=sflag, size = 0x4, scoped, tag = 'scoped memory for transformer_forward.1']
    #allocation19 [shape = 'u8[1024]{0}', space=vmem, size = 0x400, scoped, tag = 'input window, operand 17, single buffered']
    #allocation20 [shape = 'u8[1024]{0}', space=vmem, size = 0x400, scoped, tag = 'input window, operand 18, single buffered']
    #allocation21 [shape = 's32[1]{0}', space=sflag, size = 0x4, scoped, tag = 'scoped memory for transformer_forward.1']
    #allocation22 [shape = 'u8[2048]{0}', space=vmem, size = 0x800, scoped, tag = 'input window, operand 20, single buffered']
    #allocation23 [shape = 'u8[32768]{0}', space=vmem, size = 0x8000, scoped, tag = 'input window, operand 21, single buffered']
    #allocation24 [shape = 's32[1]{0}', space=sflag, size = 0x4, scoped, tag = 'scoped memory for transformer_forward.1']
    #allocation25 [shape = 'u8[1024]{0}', space=vmem, size = 0x400, scoped, tag = 'input window, operand 22, single buffered']
    #allocation26 [shape = 'u8[1024]{0}', space=vmem, size = 0x400, scoped, tag = 'input window, operand 23, single buffered']
    #allocation27 [shape = 's32[1]{0}', space=sflag, size = 0x4, scoped, tag = 'scoped memory for transformer_forward.1']
    #allocation28 [shape = 'u8[1024]{0}', space=vmem, size = 0x400, scoped, tag = 'input window, operand 24, single buffered']
    #allocation29 [shape = 'u8[32768]{0}', space=vmem, size = 0x8000, scoped, tag = 'input window, operand 25, single buffered']
    #allocation30 [shape = 's32[1]{0}', space=sflag, size = 0x4, scoped, tag = 'scoped memory for transformer_forward.1']
    #allocation31 [shape = 'u8[1024]{0}', space=vmem, size = 0x400, scoped, tag = 'input window, operand 26, single buffered']
    #allocation32 [shape = 'u8[32768]{0}', space=vmem, size = 0x8000, scoped, tag = 'input window, operand 27, single buffered']
    #allocation33 [shape = 's32[1]{0}', space=sflag, size = 0x4, scoped, tag = 'scoped memory for transformer_forward.1']
    #allocation34 [shape = 'u8[1024]{0}', space=vmem, size = 0x400, scoped, tag = 'input window, operand 28, single buffered']
    #allocation35 [shape = 'u8[32768]{0}', space=vmem, size = 0x8000, scoped, tag = 'input window, operand 29, single buffered']
    #allocation36 [shape = 's32[1]{0}', space=sflag, size = 0x4, scoped, tag = 'scoped memory for transformer_forward.1']
    #allocation37 [shape = 'u8[1024]{0}', space=vmem, size = 0x400, scoped, tag = 'input window, operand 30, single buffered']
    #allocation38 [shape = 'u8[1024]{0}', space=vmem, size = 0x400, scoped, tag = 'input window, operand 31, single buffered']
    #allocation39 [shape = 's32[1]{0}', space=sflag, size = 0x4, scoped, tag = 'scoped memory for transformer_forward.1']
    #allocation40 [shape = 'u8[1024]{0}', space=vmem, size = 0x400, scoped, tag = 'input window, operand 32, single buffered']
    #allocation41 [shape = 'u8[32768]{0}', space=vmem, size = 0x8000, scoped, tag = 'input window, operand 33, single buffered']
    #allocation42 [shape = 's32[1]{0}', space=sflag, size = 0x4, scoped, tag = 'scoped memory for transformer_forward.1']
    #allocation43 [shape = 'u8[1024]{0}', space=vmem, size = 0x400, scoped, tag = 'input window, operand 34, single buffered']
    #allocation44 [shape = 'u8[1024]{0}', space=vmem, size = 0x400, scoped, tag = 'input window, operand 36, single buffered']
    #allocation45 [shape = 's32[1]{0}', space=sflag, size = 0x4, scoped, tag = 'scoped memory for transformer_forward.1']
    #allocation46 [shape = 'u8[1024]{0}', space=vmem, size = 0x400, scoped, tag = 'input window, operand 37, single buffered']
    #allocation47 [shape = 'u8[1024]{0}', space=vmem, size = 0x400, scoped, tag = 'input window, operand 38, single buffered']
    #allocation48 [shape = 's32[1]{0}', space=sflag, size = 0x4, scoped, tag = 'scoped memory for transformer_forward.1']
    #allocation49 [shape = 'u8[8192]{0}', space=vmem, size = 0x2000, scoped, tag = 'output window, operand 0, single buffered']
    %88 = vsyncpa [#allocation3], 0
    %89 = vsyncpa [#allocation6], 0
    %90 = vsyncpa [#allocation9], 0
    %91 = vsyncpa [#allocation12], 0
    %92 = vsyncpa [#allocation15], 0
    %93 = vsyncpa [#allocation18], 0
    %94 = vsyncpa [#allocation21], 0
    %95 = vsyncpa [#allocation24], 0
    %96 = vsyncpa [#allocation27], 0
    %97 = vsyncpa [#allocation30], 0
    %98 = vsyncpa [#allocation33], 0
    %99 = vsyncpa [#allocation36], 0
    %100 = vsyncpa [#allocation39], 0
    %101 = vsyncpa [#allocation42], 0
    %102 = vsyncpa [#allocation45], 0
    %103 = vsyncpa [#allocation48], 0
    %104 = vsyncpa [#allocation4], 0
    // Predicated region
    $region2: #{transformer_forward.1} parent=1 // pred_check
      _
    $region3: #{transformer_forward.1} parent=1 // pred_check_branch
      %106 = sbr.rel (0) target = $region5
    $region4: #{transformer_forward.1} parent=1 // pred_region
      _
    $region5: #{transformer_forward.1} parent=1 // pred_fallthru
      _
    // Predicated region
    $region6: #{transformer_forward.1} parent=1 // pred_check
      _
    $region7: #{transformer_forward.1} parent=1 // pred_check_branch
      %108 = sbr.rel (0) target = $region9
    $region8: #{transformer_forward.1} parent=1 // pred_region
      _
    $region9: #{transformer_forward.1} parent=1 // pred_fallthru
      _
    // Predicated region
    $region10: #{transformer_forward.1} parent=1 // pred_check
      _
    $region11: #{transformer_forward.1} parent=1 // pred_check_branch
      %110 = sbr.rel (0) target = $region13
    $region12: #{transformer_forward.1} parent=1 // pred_region
      _
    $region13: #{transformer_forward.1} parent=1 // pred_fallthru
      _
    // Predicated region
    $region14: #{transformer_forward.1} parent=1 // pred_check
      _
    $region15: #{transformer_forward.1} parent=1 // pred_check_branch
      %112 = sbr.rel (0) target = $region17
    $region16: #{transformer_forward.1} parent=1 // pred_region
      _
    $region17: #{transformer_forward.1} parent=1 // pred_fallthru
      _
    // Predicated region
    $region18: #{transformer_forward.1} parent=1 // pred_check
      _
    $region19: #{transformer_forward.1} parent=1 // pred_check_branch
      %114 = sbr.rel (0) target = $region21
    $region20: #{transformer_forward.1} parent=1 // pred_region
      %s116 = ssub.s32 256, 256
      %117 = vsyncadd [#allocation3], %s116
      %s118 = sshll.u32 [#allocation2], 4
      %s119 = int_to_ptr.vmem [resolvable:$true] %s118
      %124 = dma.hbm_to_vmem [thread:$0]  %s9, 256, %s119, [#allocation3], 128, 128, 8
    $region21: #{transformer_forward.1} parent=1 // pred_fallthru
      _
    // Predicated region
    $region22: #{transformer_forward.1} parent=1 // pred_check
      _
    $region23: #{transformer_forward.1} parent=1 // pred_check_branch
      %126 = sbr.rel (0) target = $region25
    $region24: #{transformer_forward.1} parent=1 // pred_region
      %s128 = ssub.s32 256, 256
      %129 = vsyncadd [#allocation6], %s128
      %s130 = sshll.u32 [#allocation5], 4
      %s131 = int_to_ptr.vmem [resolvable:$true] %s130
      %136 = dma.hbm_to_vmem [thread:$0]  %s11, 256, %s131, [#allocation6], 128, 128, 8
    $region25: #{transformer_forward.1} parent=1 // pred_fallthru
      _
    // Predicated region
    $region26: #{transformer_forward.1} parent=1 // pred_check
      _
    $region27: #{transformer_forward.1} parent=1 // pred_check_branch
      %138 = sbr.rel (0) target = $region29
    $region28: #{transformer_forward.1} parent=1 // pred_region
      _
    $region29: #{transformer_forward.1} parent=1 // pred_fallthru
      _
    // Predicated region
    $region30: #{transformer_forward.1} parent=1 // pred_check
      _
    $region31: #{transformer_forward.1} parent=1 // pred_check_branch
      %140 = sbr.rel (0) target = $region33
    $region32: #{transformer_forward.1} parent=1 // pred_region
      _
    $region33: #{transformer_forward.1} parent=1 // pred_fallthru
      _
    // Predicated region
    $region34: #{transformer_forward.1} parent=1 // pred_check
      _
    $region35: #{transformer_forward.1} parent=1 // pred_check_branch
      %142 = sbr.rel (0) target = $region37
    $region36: #{transformer_forward.1} parent=1 // pred_region
      %s144 = ssub.s32 64, 64
      %145 = vsyncadd [#allocation6], %s144
      %s146 = sshll.u32 [#allocation7], 4
      %s147 = int_to_ptr.vmem [resolvable:$true] %s146
      %152 = dma.hbm_to_vmem [thread:$0]  %s17, 64, %s147, [#allocation6], 32, 32, 2
    $region37: #{transformer_forward.1} parent=1 // pred_fallthru
      _
    // Predicated region
    $region38: #{transformer_forward.1} parent=1 // pred_check
      _
    $region39: #{transformer_forward.1} parent=1 // pred_check_branch
      %154 = sbr.rel (0) target = $region41
    $region40: #{transformer_forward.1} parent=1 // pred_region
      %s156 = ssub.s32 1024, 1024
      %157 = vsyncadd [#allocation9], %s156
      %s158 = sshll.u32 [#allocation8], 4
      %s159 = int_to_ptr.vmem [resolvable:$true] %s158
      %164 = dma.hbm_to_vmem [thread:$0]  %s19, 1024, %s159, [#allocation9], 64, 64, 4
    $region41: #{transformer_forward.1} parent=1 // pred_fallthru
      _
    // Predicated region
    $region42: #{transformer_forward.1} parent=1 // pred_check
      _
    $region43: #{transformer_forward.1} parent=1 // pred_check_branch
      %166 = sbr.rel (0) target = $region45
    $region44: #{transformer_forward.1} parent=1 // pred_region
      %s168 = ssub.s32 32, 32
      %169 = vsyncadd [#allocation9], %s168
      %s170 = sshll.u32 [#allocation10], 4
      %s171 = int_to_ptr.vmem [resolvable:$true] %s170
      %176 = dma.hbm_to_vmem [thread:$0]  %s21, 32, %s171, [#allocation9], 16, 16, 1
    $region45: #{transformer_forward.1} parent=1 // pred_fallthru
      _
    // Predicated region
    $region46: #{transformer_forward.1} parent=1 // pred_check
      _
    $region47: #{transformer_forward.1} parent=1 // pred_check_branch
      %178 = sbr.rel (0) target = $region49
    $region48: #{transformer_forward.1} parent=1 // pred_region
      %s180 = ssub.s32 32, 32
      %181 = vsyncadd [#allocation12], %s180
      %s182 = sshll.u32 [#allocation11], 4
      %s183 = int_to_ptr.vmem [resolvable:$true] %s182
      %188 = dma.hbm_to_vmem [thread:$0]  %s23, 32, %s183, [#allocation12], 16, 16, 1
    $region49: #{transformer_forward.1} parent=1 // pred_fallthru
      _
    // Predicated region
    $region50: #{transformer_forward.1} parent=1 // pred_check
      _
    $region51: #{transformer_forward.1} parent=1 // pred_check_branch
      %190 = sbr.rel (0) target = $region53
    $region52: #{transformer_forward.1} parent=1 // pred_region
      %s192 = ssub.s32 32, 32
      %193 = vsyncadd [#allocation12], %s192
      %s194 = sshll.u32 [#allocation13], 4
      %s195 = int_to_ptr.vmem [resolvable:$true] %s194
      %200 = dma.hbm_to_vmem [thread:$0]  %s25, 32, %s195, [#allocation12], 16, 16, 1
    $region53: #{transformer_forward.1} parent=1 // pred_fallthru
      _
    // Predicated region
    $region54: #{transformer_forward.1} parent=1 // pred_check
      _
    $region55: #{transformer_forward.1} parent=1 // pred_check_branch
      %202 = sbr.rel (0) target = $region57
    $region56: #{transformer_forward.1} parent=1 // pred_region
      %s204 = ssub.s32 1024, 1024
      %205 = vsyncadd [#allocation15], %s204
      %s206 = sshll.u32 [#allocation14], 4
      %s207 = int_to_ptr.vmem [resolvable:$true] %s206
      %212 = dma.hbm_to_vmem [thread:$0]  %s27, 1024, %s207, [#allocation15], 64, 64, 4
    $region57: #{transformer_forward.1} parent=1 // pred_fallthru
      _
    // Predicated region
    $region58: #{transformer_forward.1} parent=1 // pred_check
      _
    $region59: #{transformer_forward.1} parent=1 // pred_check_branch
      %214 = sbr.rel (0) target = $region61
    $region60: #{transformer_forward.1} parent=1 // pred_region
      %s216 = ssub.s32 32, 32
      %217 = vsyncadd [#allocation15], %s216
      %s218 = sshll.u32 [#allocation16], 4
      %s219 = int_to_ptr.vmem [resolvable:$true] %s218
      %224 = dma.hbm_to_vmem [thread:$0]  %s29, 32, %s219, [#allocation15], 16, 16, 1
    $region61: #{transformer_forward.1} parent=1 // pred_fallthru
      _
    // Predicated region
    $region62: #{transformer_forward.1} parent=1 // pred_check
      _
    $region63: #{transformer_forward.1} parent=1 // pred_check_branch
      %226 = sbr.rel (0) target = $region65
    $region64: #{transformer_forward.1} parent=1 // pred_region
      _
    $region65: #{transformer_forward.1} parent=1 // pred_fallthru
      _
    // Predicated region
    $region66: #{transformer_forward.1} parent=1 // pred_check
      _
    $region67: #{transformer_forward.1} parent=1 // pred_check_branch
      %228 = sbr.rel (0) target = $region69
    $region68: #{transformer_forward.1} parent=1 // pred_region
      %s230 = ssub.s32 32, 32
      %231 = vsyncadd [#allocation18], %s230
      %s232 = sshll.u32 [#allocation17], 4
      %s233 = int_to_ptr.vmem [resolvable:$true] %s232
      %238 = dma.hbm_to_vmem [thread:$0]  %s33, 32, %s233, [#allocation18], 16, 16, 1
    $region69: #{transformer_forward.1} parent=1 // pred_fallthru
      _
    // Predicated region
    $region70: #{transformer_forward.1} parent=1 // pred_check
      _
    $region71: #{transformer_forward.1} parent=1 // pred_check_branch
      %240 = sbr.rel (0) target = $region73
    $region72: #{transformer_forward.1} parent=1 // pred_region
      %s242 = ssub.s32 32, 32
      %243 = vsyncadd [#allocation18], %s242
      %s244 = sshll.u32 [#allocation19], 4
      %s245 = int_to_ptr.vmem [resolvable:$true] %s244
      %250 = dma.hbm_to_vmem [thread:$0]  %s35, 32, %s245, [#allocation18], 16, 16, 1
    $region73: #{transformer_forward.1} parent=1 // pred_fallthru
      _
    // Predicated region
    $region74: #{transformer_forward.1} parent=1 // pred_check
      _
    $region75: #{transformer_forward.1} parent=1 // pred_check_branch
      %252 = sbr.rel (0) target = $region77
    $region76: #{transformer_forward.1} parent=1 // pred_region
      %s254 = ssub.s32 32, 32
      %255 = vsyncadd [#allocation21], %s254
      %s256 = sshll.u32 [#allocation20], 4
      %s257 = int_to_ptr.vmem [resolvable:$true] %s256
      %262 = dma.hbm_to_vmem [thread:$0]  %s37, 32, %s257, [#allocation21], 16, 16, 1
    $region77: #{transformer_forward.1} parent=1 // pred_fallthru
      _
    // Predicated region
    $region78: #{transformer_forward.1} parent=1 // pred_check
      _
    $region79: #{transformer_forward.1} parent=1 // pred_check_branch
      %264 = sbr.rel (0) target = $region81
    $region80: #{transformer_forward.1} parent=1 // pred_region
      _
    $region81: #{transformer_forward.1} parent=1 // pred_fallthru
      _
    // Predicated region
    $region82: #{transformer_forward.1} parent=1 // pred_check
      _
    $region83: #{transformer_forward.1} parent=1 // pred_check_branch
      %266 = sbr.rel (0) target = $region85
    $region84: #{transformer_forward.1} parent=1 // pred_region
      %s268 = ssub.s32 64, 64
      %269 = vsyncadd [#allocation21], %s268
      %s270 = sshll.u32 [#allocation22], 4
      %s271 = int_to_ptr.vmem [resolvable:$true] %s270
      %276 = dma.hbm_to_vmem [thread:$0]  %s41, 64, %s271, [#allocation21], 32, 32, 2
    $region85: #{transformer_forward.1} parent=1 // pred_fallthru
      _
    // Predicated region
    $region86: #{transformer_forward.1} parent=1 // pred_check
      _
    $region87: #{transformer_forward.1} parent=1 // pred_check_branch
      %278 = sbr.rel (0) target = $region89
    $region88: #{transformer_forward.1} parent=1 // pred_region
      %s280 = ssub.s32 1024, 1024
      %281 = vsyncadd [#allocation24], %s280
      %s282 = sshll.u32 [#allocation23], 4
      %s283 = int_to_ptr.vmem [resolvable:$true] %s282
      %288 = dma.hbm_to_vmem [thread:$0]  %s43, 1024, %s283, [#allocation24], 64, 64, 4
    $region89: #{transformer_forward.1} parent=1 // pred_fallthru
      _
    // Predicated region
    $region90: #{transformer_forward.1} parent=1 // pred_check
      _
    $region91: #{transformer_forward.1} parent=1 // pred_check_branch
      %290 = sbr.rel (0) target = $region93
    $region92: #{transformer_forward.1} parent=1 // pred_region
      %s292 = ssub.s32 32, 32
      %293 = vsyncadd [#allocation24], %s292
      %s294 = sshll.u32 [#allocation25], 4
      %s295 = int_to_ptr.vmem [resolvable:$true] %s294
      %300 = dma.hbm_to_vmem [thread:$0]  %s45, 32, %s295, [#allocation24], 16, 16, 1
    $region93: #{transformer_forward.1} parent=1 // pred_fallthru
      _
    // Predicated region
    $region94: #{transformer_forward.1} parent=1 // pred_check
      _
    $region95: #{transformer_forward.1} parent=1 // pred_check_branch
      %302 = sbr.rel (0) target = $region97
    $region96: #{transformer_forward.1} parent=1 // pred_region
      %s304 = ssub.s32 32, 32
      %305 = vsyncadd [#allocation27], %s304
      %s306 = sshll.u32 [#allocation26], 4
      %s307 = int_to_ptr.vmem [resolvable:$true] %s306
      %312 = dma.hbm_to_vmem [thread:$0]  %s47, 32, %s307, [#allocation27], 16, 16, 1
    $region97: #{transformer_forward.1} parent=1 // pred_fallthru
      _
    // Predicated region
    $region98: #{transformer_forward.1} parent=1 // pred_check
      _
    $region99: #{transformer_forward.1} parent=1 // pred_check_branch
      %314 = sbr.rel (0) target = $region101
    $region100: #{transformer_forward.1} parent=1 // pred_region
      %s316 = ssub.s32 32, 32
      %317 = vsyncadd [#allocation27], %s316
      %s318 = sshll.u32 [#allocation28], 4
      %s319 = int_to_ptr.vmem [resolvable:$true] %s318
      %324 = dma.hbm_to_vmem [thread:$0]  %s49, 32, %s319, [#allocation27], 16, 16, 1
    $region101: #{transformer_forward.1} parent=1 // pred_fallthru
      _
    // Predicated region
    $region102: #{transformer_forward.1} parent=1 // pred_check
      _
    $region103: #{transformer_forward.1} parent=1 // pred_check_branch
      %326 = sbr.rel (0) target = $region105
    $region104: #{transformer_forward.1} parent=1 // pred_region
      %s328 = ssub.s32 1024, 1024
      %329 = vsyncadd [#allocation30], %s328
      %s330 = sshll.u32 [#allocation29], 4
      %s331 = int_to_ptr.vmem [resolvable:$true] %s330
      %336 = dma.hbm_to_vmem [thread:$0]  %s51, 1024, %s331, [#allocation30], 64, 64, 4
    $region105: #{transformer_forward.1} parent=1 // pred_fallthru
      _
    // Predicated region
    $region106: #{transformer_forward.1} parent=1 // pred_check
      _
    $region107: #{transformer_forward.1} parent=1 // pred_check_branch
      %338 = sbr.rel (0) target = $region109
    $region108: #{transformer_forward.1} parent=1 // pred_region
      %s340 = ssub.s32 32, 32
      %341 = vsyncadd [#allocation30], %s340
      %s342 = sshll.u32 [#allocation31], 4
      %s343 = int_to_ptr.vmem [resolvable:$true] %s342
      %348 = dma.hbm_to_vmem [thread:$0]  %s53, 32, %s343, [#allocation30], 16, 16, 1
    $region109: #{transformer_forward.1} parent=1 // pred_fallthru
      _
    // Predicated region
    $region110: #{transformer_forward.1} parent=1 // pred_check
      _
    $region111: #{transformer_forward.1} parent=1 // pred_check_branch
      %350 = sbr.rel (0) target = $region113
    $region112: #{transformer_forward.1} parent=1 // pred_region
      %s352 = ssub.s32 1024, 1024
      %353 = vsyncadd [#allocation33], %s352
      %s354 = sshll.u32 [#allocation32], 4
      %s355 = int_to_ptr.vmem [resolvable:$true] %s354
      %360 = dma.hbm_to_vmem [thread:$0]  %s55, 1024, %s355, [#allocation33], 64, 64, 4
    $region113: #{transformer_forward.1} parent=1 // pred_fallthru
      _
    // Predicated region
    $region114: #{transformer_forward.1} parent=1 // pred_check
      _
    $region115: #{transformer_forward.1} parent=1 // pred_check_branch
      %362 = sbr.rel (0) target = $region117
    $region116: #{transformer_forward.1} parent=1 // pred_region
      %s364 = ssub.s32 32, 32
      %365 = vsyncadd [#allocation33], %s364
      %s366 = sshll.u32 [#allocation34], 4
      %s367 = int_to_ptr.vmem [resolvable:$true] %s366
      %372 = dma.hbm_to_vmem [thread:$0]  %s57, 32, %s367, [#allocation33], 16, 16, 1
    $region117: #{transformer_forward.1} parent=1 // pred_fallthru
      _
    // Predicated region
    $region118: #{transformer_forward.1} parent=1 // pred_check
      _
    $region119: #{transformer_forward.1} parent=1 // pred_check_branch
      %374 = sbr.rel (0) target = $region121
    $region120: #{transformer_forward.1} parent=1 // pred_region
      %s376 = ssub.s32 1024, 1024
      %377 = vsyncadd [#allocation36], %s376
      %s378 = sshll.u32 [#allocation35], 4
      %s379 = int_to_ptr.vmem [resolvable:$true] %s378
      %384 = dma.hbm_to_vmem [thread:$0]  %s59, 1024, %s379, [#allocation36], 64, 64, 4
    $region121: #{transformer_forward.1} parent=1 // pred_fallthru
      _
    // Predicated region
    $region122: #{transformer_forward.1} parent=1 // pred_check
      _
    $region123: #{transformer_forward.1} parent=1 // pred_check_branch
      %386 = sbr.rel (0) target = $region125
    $region124: #{transformer_forward.1} parent=1 // pred_region
      %s388 = ssub.s32 32, 32
      %389 = vsyncadd [#allocation36], %s388
      %s390 = sshll.u32 [#allocation37], 4
      %s391 = int_to_ptr.vmem [resolvable:$true] %s390
      %396 = dma.hbm_to_vmem [thread:$0]  %s61, 32, %s391, [#allocation36], 16, 16, 1
    $region125: #{transformer_forward.1} parent=1 // pred_fallthru
      _
    // Predicated region
    $region126: #{transformer_forward.1} parent=1 // pred_check
      _
    $region127: #{transformer_forward.1} parent=1 // pred_check_branch
      %398 = sbr.rel (0) target = $region129
    $region128: #{transformer_forward.1} parent=1 // pred_region
      %s400 = ssub.s32 32, 32
      %401 = vsyncadd [#allocation39], %s400
      %s402 = sshll.u32 [#allocation38], 4
      %s403 = int_to_ptr.vmem [resolvable:$true] %s402
      %408 = dma.hbm_to_vmem [thread:$0]  %s63, 32, %s403, [#allocation39], 16, 16, 1
    $region129: #{transformer_forward.1} parent=1 // pred_fallthru
      _
    // Predicated region
    $region130: #{transformer_forward.1} parent=1 // pred_check
      _
    $region131: #{transformer_forward.1} parent=1 // pred_check_branch
      %410 = sbr.rel (0) target = $region133
    $region132: #{transformer_forward.1} parent=1 // pred_region
      %s412 = ssub.s32 32, 32
      %413 = vsyncadd [#allocation39], %s412
      %s414 = sshll.u32 [#allocation40], 4
      %s415 = int_to_ptr.vmem [resolvable:$true] %s414
      %420 = dma.hbm_to_vmem [thread:$0]  %s65, 32, %s415, [#allocation39], 16, 16, 1
    $region133: #{transformer_forward.1} parent=1 // pred_fallthru
      _
    // Predicated region
    $region134: #{transformer_forward.1} parent=1 // pred_check
      _
    $region135: #{transformer_forward.1} parent=1 // pred_check_branch
      %422 = sbr.rel (0) target = $region137
    $region136: #{transformer_forward.1} parent=1 // pred_region
      %s424 = ssub.s32 1024, 1024
      %425 = vsyncadd [#allocation42], %s424
      %s426 = sshll.u32 [#allocation41], 4
      %s427 = int_to_ptr.vmem [resolvable:$true] %s426
      %432 = dma.hbm_to_vmem [thread:$0]  %s67, 1024, %s427, [#allocation42], 64, 64, 4
    $region137: #{transformer_forward.1} parent=1 // pred_fallthru
      _
    // Predicated region
    $region138: #{transformer_forward.1} parent=1 // pred_check
      _
    $region139: #{transformer_forward.1} parent=1 // pred_check_branch
      %434 = sbr.rel (0) target = $region141
    $region140: #{transformer_forward.1} parent=1 // pred_region
      %s436 = ssub.s32 32, 32
      %437 = vsyncadd [#allocation42], %s436
      %s438 = sshll.u32 [#allocation43], 4
      %s439 = int_to_ptr.vmem [resolvable:$true] %s438
      %444 = dma.hbm_to_vmem [thread:$0]  %s69, 32, %s439, [#allocation42], 16, 16, 1
    $region141: #{transformer_forward.1} parent=1 // pred_fallthru
      _
    // Predicated region
    $region142: #{transformer_forward.1} parent=1 // pred_check
      _
    $region143: #{transformer_forward.1} parent=1 // pred_check_branch
      %446 = sbr.rel (0) target = $region145
    $region144: #{transformer_forward.1} parent=1 // pred_region
      _
    $region145: #{transformer_forward.1} parent=1 // pred_fallthru
      _
    // Predicated region
    $region146: #{transformer_forward.1} parent=1 // pred_check
      _
    $region147: #{transformer_forward.1} parent=1 // pred_check_branch
      %448 = sbr.rel (0) target = $region149
    $region148: #{transformer_forward.1} parent=1 // pred_region
      %s450 = ssub.s32 32, 32
      %451 = vsyncadd [#allocation45], %s450
      %s452 = sshll.u32 [#allocation44], 4
      %s453 = int_to_ptr.vmem [resolvable:$true] %s452
      %458 = dma.hbm_to_vmem [thread:$0]  %s73, 32, %s453, [#allocation45], 16, 16, 1
    $region149: #{transformer_forward.1} parent=1 // pred_fallthru
      _
    // Predicated region
    $region150: #{transformer_forward.1} parent=1 // pred_check
      _
    $region151: #{transformer_forward.1} parent=1 // pred_check_branch
      %460 = sbr.rel (0) target = $region153
    $region152: #{transformer_forward.1} parent=1 // pred_region
      %s462 = ssub.s32 32, 32
      %463 = vsyncadd [#allocation45], %s462
      %s464 = sshll.u32 [#allocation46], 4
      %s465 = int_to_ptr.vmem [resolvable:$true] %s464
      %470 = dma.hbm_to_vmem [thread:$0]  %s75, 32, %s465, [#allocation45], 16, 16, 1
    $region153: #{transformer_forward.1} parent=1 // pred_fallthru
      _
    // Predicated region
    $region154: #{transformer_forward.1} parent=1 // pred_check
      _
    $region155: #{transformer_forward.1} parent=1 // pred_check_branch
      %472 = sbr.rel (0) target = $region157
    $region156: #{transformer_forward.1} parent=1 // pred_region
      %s474 = ssub.s32 32, 32
      %475 = vsyncadd [#allocation48], %s474
      %s476 = sshll.u32 [#allocation47], 4
      %s477 = int_to_ptr.vmem [resolvable:$true] %s476
      %482 = dma.hbm_to_vmem [thread:$0]  %s77, 32, %s477, [#allocation48], 16, 16, 1
    $region157: #{transformer_forward.1} parent=1 // pred_fallthru
      _
    // Predicated region
    $region158: #{transformer_forward.1} parent=1 // pred_check
      _
    $region159: #{transformer_forward.1} parent=1 // pred_check_branch
      %484 = sbr.rel (0) target = $region161
    $region160: #{transformer_forward.1} parent=1 // pred_region
      _
    $region161: #{transformer_forward.1} parent=1 // pred_fallthru
      _
    // Predicated region
    $region162: #{transformer_forward.1} parent=1 // pred_check
      _
    $region163: #{transformer_forward.1} parent=1 // pred_check_branch
      %486 = sbr.rel (0) target = $region165
    $region164: #{transformer_forward.1} parent=1 // pred_region
      _
    $region165: #{transformer_forward.1} parent=1 // pred_fallthru
      _
    // Predicated region
    $region166: #{transformer_forward.1} parent=1 // pred_check
      _
    $region167: #{transformer_forward.1} parent=1 // pred_check_branch
      %488 = sbr.rel (0) target = $region169
    $region168: #{transformer_forward.1} parent=1 // pred_region
      %489 = dma.done [#allocation3], 256
    $region169: #{transformer_forward.1} parent=1 // pred_fallthru
      _
    // Predicated region
    $region170: #{transformer_forward.1} parent=1 // pred_check
      _
    $region171: #{transformer_forward.1} parent=1 // pred_check_branch
      %491 = sbr.rel (0) target = $region173
    $region172: #{transformer_forward.1} parent=1 // pred_region
      %492 = dma.done [#allocation6], 256
    $region173: #{transformer_forward.1} parent=1 // pred_fallthru
      _
    // Predicated region
    $region174: #{transformer_forward.1} parent=1 // pred_check
      _
    $region175: #{transformer_forward.1} parent=1 // pred_check_branch
      %494 = sbr.rel (0) target = $region177
    $region176: #{transformer_forward.1} parent=1 // pred_region
      %495 = dma.done [#allocation6], 64
    $region177: #{transformer_forward.1} parent=1 // pred_fallthru
      _
    // Predicated region
    $region178: #{transformer_forward.1} parent=1 // pred_check
      _
    $region179: #{transformer_forward.1} parent=1 // pred_check_branch
      %497 = sbr.rel (0) target = $region181
    $region180: #{transformer_forward.1} parent=1 // pred_region
      %498 = dma.done [#allocation9], 1024
    $region181: #{transformer_forward.1} parent=1 // pred_fallthru
      _
    // Predicated region
    $region182: #{transformer_forward.1} parent=1 // pred_check
      _
    $region183: #{transformer_forward.1} parent=1 // pred_check_branch
      %500 = sbr.rel (0) target = $region185
    $region184: #{transformer_forward.1} parent=1 // pred_region
      %501 = dma.done [#allocation9], 32
    $region185: #{transformer_forward.1} parent=1 // pred_fallthru
      _
    // Predicated region
    $region186: #{transformer_forward.1} parent=1 // pred_check
      _
    $region187: #{transformer_forward.1} parent=1 // pred_check_branch
      %503 = sbr.rel (0) target = $region189
    $region188: #{transformer_forward.1} parent=1 // pred_region
      %504 = dma.done [#allocation12], 32
    $region189: #{transformer_forward.1} parent=1 // pred_fallthru
      _
    // Predicated region
    $region190: #{transformer_forward.1} parent=1 // pred_check
      _
    $region191: #{transformer_forward.1} parent=1 // pred_check_branch
      %506 = sbr.rel (0) target = $region193
    $region192: #{transformer_forward.1} parent=1 // pred_region
      %507 = dma.done [#allocation12], 32
    $region193: #{transformer_forward.1} parent=1 // pred_fallthru
      _
    // Predicated region
    $region194: #{transformer_forward.1} parent=1 // pred_check
      _
    $region195: #{transformer_forward.1} parent=1 // pred_check_branch
      %509 = sbr.rel (0) target = $region197
    $region196: #{transformer_forward.1} parent=1 // pred_region
      %510 = dma.done [#allocation15], 1024
    $region197: #{transformer_forward.1} parent=1 // pred_fallthru
      _
    // Predicated region
    $region198: #{transformer_forward.1} parent=1 // pred_check
      _
    $region199: #{transformer_forward.1} parent=1 // pred_check_branch
      %512 = sbr.rel (0) target = $region201
    $region200: #{transformer_forward.1} parent=1 // pred_region
      %513 = dma.done [#allocation15], 32
    $region201: #{transformer_forward.1} parent=1 // pred_fallthru
      _
    // Predicated region
    $region202: #{transformer_forward.1} parent=1 // pred_check
      _
    $region203: #{transformer_forward.1} parent=1 // pred_check_branch
      %515 = sbr.rel (0) target = $region205
    $region204: #{transformer_forward.1} parent=1 // pred_region
      %516 = dma.done [#allocation18], 32
    $region205: #{transformer_forward.1} parent=1 // pred_fallthru
      _
    // Predicated region
    $region206: #{transformer_forward.1} parent=1 // pred_check
      _
    $region207: #{transformer_forward.1} parent=1 // pred_check_branch
      %518 = sbr.rel (0) target = $region209
    $region208: #{transformer_forward.1} parent=1 // pred_region
      %519 = dma.done [#allocation18], 32
    $region209: #{transformer_forward.1} parent=1 // pred_fallthru
      _
    // Predicated region
    $region210: #{transformer_forward.1} parent=1 // pred_check
      _
    $region211: #{transformer_forward.1} parent=1 // pred_check_branch
      %521 = sbr.rel (0) target = $region213
    $region212: #{transformer_forward.1} parent=1 // pred_region
      %522 = dma.done [#allocation21], 32
    $region213: #{transformer_forward.1} parent=1 // pred_fallthru
      _
    // Predicated region
    $region214: #{transformer_forward.1} parent=1 // pred_check
      _
    $region215: #{transformer_forward.1} parent=1 // pred_check_branch
      %524 = sbr.rel (0) target = $region217
    $region216: #{transformer_forward.1} parent=1 // pred_region
      %525 = dma.done [#allocation21], 64
    $region217: #{transformer_forward.1} parent=1 // pred_fallthru
      _
    // Predicated region
    $region218: #{transformer_forward.1} parent=1 // pred_check
      _
    $region219: #{transformer_forward.1} parent=1 // pred_check_branch
      %527 = sbr.rel (0) target = $region221
    $region220: #{transformer_forward.1} parent=1 // pred_region
      %528 = dma.done [#allocation24], 1024
    $region221: #{transformer_forward.1} parent=1 // pred_fallthru
      _
    // Predicated region
    $region222: #{transformer_forward.1} parent=1 // pred_check
      _
    $region223: #{transformer_forward.1} parent=1 // pred_check_branch
      %530 = sbr.rel (0) target = $region225
    $region224: #{transformer_forward.1} parent=1 // pred_region
      %531 = dma.done [#allocation24], 32
    $region225: #{transformer_forward.1} parent=1 // pred_fallthru
      _
    // Predicated region
    $region226: #{transformer_forward.1} parent=1 // pred_check
      _
    $region227: #{transformer_forward.1} parent=1 // pred_check_branch
      %533 = sbr.rel (0) target = $region229
    $region228: #{transformer_forward.1} parent=1 // pred_region
      %534 = dma.done [#allocation27], 32
    $region229: #{transformer_forward.1} parent=1 // pred_fallthru
      _
    // Predicated region
    $region230: #{transformer_forward.1} parent=1 // pred_check
      _
    $region231: #{transformer_forward.1} parent=1 // pred_check_branch
      %536 = sbr.rel (0) target = $region233
    $region232: #{transformer_forward.1} parent=1 // pred_region
      %537 = dma.done [#allocation27], 32
    $region233: #{transformer_forward.1} parent=1 // pred_fallthru
      _
    // Predicated region
    $region234: #{transformer_forward.1} parent=1 // pred_check
      _
    $region235: #{transformer_forward.1} parent=1 // pred_check_branch
      %539 = sbr.rel (0) target = $region237
    $region236: #{transformer_forward.1} parent=1 // pred_region
      %540 = dma.done [#allocation30], 1024
    $region237: #{transformer_forward.1} parent=1 // pred_fallthru
      _
    // Predicated region
    $region238: #{transformer_forward.1} parent=1 // pred_check
      _
    $region239: #{transformer_forward.1} parent=1 // pred_check_branch
      %542 = sbr.rel (0) target = $region241
    $region240: #{transformer_forward.1} parent=1 // pred_region
      %543 = dma.done [#allocation30], 32
    $region241: #{transformer_forward.1} parent=1 // pred_fallthru
      _
    // Predicated region
    $region242: #{transformer_forward.1} parent=1 // pred_check
      _
    $region243: #{transformer_forward.1} parent=1 // pred_check_branch
      %545 = sbr.rel (0) target = $region245
    $region244: #{transformer_forward.1} parent=1 // pred_region
      %546 = dma.done [#allocation33], 1024
    $region245: #{transformer_forward.1} parent=1 // pred_fallthru
      _
    // Predicated region
    $region246: #{transformer_forward.1} parent=1 // pred_check
      _
    $region247: #{transformer_forward.1} parent=1 // pred_check_branch
      %548 = sbr.rel (0) target = $region249
    $region248: #{transformer_forward.1} parent=1 // pred_region
      %549 = dma.done [#allocation33], 32
    $region249: #{transformer_forward.1} parent=1 // pred_fallthru
      _
    // Predicated region
    $region250: #{transformer_forward.1} parent=1 // pred_check
      _
    $region251: #{transformer_forward.1} parent=1 // pred_check_branch
      %551 = sbr.rel (0) target = $region253
    $region252: #{transformer_forward.1} parent=1 // pred_region
      %552 = dma.done [#allocation36], 1024
    $region253: #{transformer_forward.1} parent=1 // pred_fallthru
      _
    // Predicated region
    $region254: #{transformer_forward.1} parent=1 // pred_check
      _
    $region255: #{transformer_forward.1} parent=1 // pred_check_branch
      %554 = sbr.rel (0) target = $region257
    $region256: #{transformer_forward.1} parent=1 // pred_region
      %555 = dma.done [#allocation36], 32
    $region257: #{transformer_forward.1} parent=1 // pred_fallthru
      _
    // Predicated region
    $region258: #{transformer_forward.1} parent=1 // pred_check
      _
    $region259: #{transformer_forward.1} parent=1 // pred_check_branch
      %557 = sbr.rel (0) target = $region261
    $region260: #{transformer_forward.1} parent=1 // pred_region
      %558 = dma.done [#allocation39], 32
    $region261: #{transformer_forward.1} parent=1 // pred_fallthru
      _
    // Predicated region
    $region262: #{transformer_forward.1} parent=1 // pred_check
      _
    $region263: #{transformer_forward.1} parent=1 // pred_check_branch
      %560 = sbr.rel (0) target = $region265
    $region264: #{transformer_forward.1} parent=1 // pred_region
      %561 = dma.done [#allocation39], 32
    $region265: #{transformer_forward.1} parent=1 // pred_fallthru
      _
    // Predicated region
    $region266: #{transformer_forward.1} parent=1 // pred_check
      _
    $region267: #{transformer_forward.1} parent=1 // pred_check_branch
      %563 = sbr.rel (0) target = $region269
    $region268: #{transformer_forward.1} parent=1 // pred_region
      %564 = dma.done [#allocation42], 1024
    $region269: #{transformer_forward.1} parent=1 // pred_fallthru
      _
    // Predicated region
    $region270: #{transformer_forward.1} parent=1 // pred_check
      _
    $region271: #{transformer_forward.1} parent=1 // pred_check_branch
      %566 = sbr.rel (0) target = $region273
    $region272: #{transformer_forward.1} parent=1 // pred_region
      %567 = dma.done [#allocation42], 32
    $region273: #{transformer_forward.1} parent=1 // pred_fallthru
      _
    // Predicated region
    $region274: #{transformer_forward.1} parent=1 // pred_check
      _
    $region275: #{transformer_forward.1} parent=1 // pred_check_branch
      %569 = sbr.rel (0) target = $region277
    $region276: #{transformer_forward.1} parent=1 // pred_region
      %570 = dma.done [#allocation45], 32
    $region277: #{transformer_forward.1} parent=1 // pred_fallthru
      _
    // Predicated region
    $region278: #{transformer_forward.1} parent=1 // pred_check
      _
    $region279: #{transformer_forward.1} parent=1 // pred_check_branch
      %572 = sbr.rel (0) target = $region281
    $region280: #{transformer_forward.1} parent=1 // pred_region
      %573 = dma.done [#allocation45], 32
    $region281: #{transformer_forward.1} parent=1 // pred_fallthru
      _
    // Predicated region
    $region282: #{transformer_forward.1} parent=1 // pred_check
      _
    $region283: #{transformer_forward.1} parent=1 // pred_check_branch
      %575 = sbr.rel (0) target = $region285
    $region284: #{transformer_forward.1} parent=1 // pred_region
      %576 = dma.done [#allocation48], 32
    $region285: #{transformer_forward.1} parent=1 // pred_fallthru
      _
    %v578 = vld [vmem:[%s5] sm:$0x1]
    %v579 = vld [vmem:[%s5 + $0x1] sm:$0x1]
    %vm580 = vcmp.eq.s32.totalorder %v578, 4294967295
    %vm581 = vcmp.eq.s32.totalorder %v579, 4294967295
    %v582 = vsel %vm580, -1e+09, 0.0
    %v583 = vsel %vm581, -1e+09, 0.0
    %v584 = vld [vmem:[%s7] sm:$0x1]
    %v585 = vld [vmem:[%s7 + $0x1] sm:$0x1]
    %vm586 = vcmp.eq.s32.totalorder %v584, 4294967295
    %vm587 = vcmp.eq.s32.totalorder %v585, 4294967295
    %v588 = vsel %vm586, -1e+09, 0.0
    %v589 = vsel %vm587, -1e+09, 0.0
    %v590 = vlaneseq
    %v591 = vshrl.u32 %v590, 7
    %v592 = vlaneseq
    %v593 = vand.u32 %v592, 127
    %vm594 = vcmp.gt.s32.totalorder %v593, %v591
    %v595 = vsel %vm594, -1e+09, 0.0
    %v598 = vlaneseq
    %v599 = vshrl.u32 %v598, 7
    %v600 = vsub.s32 0, %v599
    %v601 = vrot.slane %v582, %v600
    %v602 = vlaneseq
    %v603 = vshrl.u32 %v602, 7
    %v604 = vsub.s32 0, %v603
    %v605 = vrot.slane %v583, %v604
    %v610 = vlaneseq
    %v611 = vshrl.u32 %v610, 7
    %v612 = vsub.s32 0, %v611
    %v613 = vrot.slane %v588, %v612
    %v614 = vlaneseq
    %v615 = vshrl.u32 %v614, 7
    %v616 = vsub.s32 0, %v615
    %v617 = vrot.slane %v589, %v616
    %v620 = vadd.f32 %v613, %v595
    %v621 = vadd.f32 %v617, %v595
    %v622 = vld [vmem:[%s1] sm:$0xff]
    %v623 = vld [vmem:[%s1 + $0x8] sm:$0xff]
    %v624 = vld [vmem:[#allocation2] sm:$0xff]
    %v625 = vld [vmem:[#allocation2 + $0x8] sm:$0x1f]
    %v626 = vld [vmem:[%s13] sm:$0xff]
    %627 = vset.pattern.permute.xlu0 0
    %628 = vperm.xlu0 %627, %v622
    %v629 = vpop.permute.xlu0 %628
    %630 = vset.pattern.permute.xlu0 0
    %631 = vperm.xlu0 %630, %v623
    %v632 = vpop.permute.xlu0 %631
    %vm633 = vcmp.eq.s32.totalorder %v629, %v593
    %vm634 = vcmp.eq.s32.totalorder %v632, %v593
    %v635 = vsel %vm633, 1, 0
    %v636 = vsel %vm634, 1, 0
    %v637 = vcvt.s32.f32 %v635
    %v638 = vcvt.s32.f32 %v636
    %vm639 = vcmask 105472
    %v641 = vsel %vm639, %v637, 0
    %v644 = vsel %vm639, %v638, 0
    %vm646 = vcmask 1044480
    %v648 = vsel %vm646, %v625, 0
    %650 = vmatprep.subr.mxu0 0.0
    %651 = vmatpush1.msra.mxu0 0.0
    %652 = vmatprep.subr.mxu0 0.0
    %653 = vmatpush1.msra.mxu0 0.0
    %654 = vmatprep.subr.mxu0 0.0
    %655 = vmatpush1.msra.mxu0 0.0
    %656 = vmatprep.subr.mxu0 0.0
    %657 = vmatpush1.msra.mxu0 0.0
    %658 = vmatprep.subr.mxu0 0.0
    %659 = vmatpush1.msra.mxu0 0.0
    %660 = vmatprep.subr.mxu0 0.0
    %661 = vmatpush1.msra.mxu0 0.0
    %662 = vmatprep.subr.mxu0 0.0
    %663 = vmatpush1.msra.mxu0 0.0
    %664 = vmatprep.subr.mxu0 0.0
    %665 = vmatpush1.msra.mxu0 0.0
    %666 = vmatprep.subr.mxu0 0.0
    %667 = vmatpush1.msra.mxu0 0.0
    %668 = vmatprep.subr.mxu0 0.0
    %669 = vmatpush1.msra.mxu0 0.0
    %670 = vmatprep.subr.mxu0 0.0
    %671 = vmatpush1.msra.mxu0 0.0
    %672 = vmatprep.subr.mxu0 0.0
    %673 = vmatpush1.msra.mxu0 0.0
    %674 = vmatprep.subr.mxu0 0.0
    %675 = vmatpush1.msra.mxu0 0.0
    %676 = vmatprep.subr.mxu0 0.0
    %677 = vmatpush1.msra.mxu0 0.0
    %678 = vmatprep.subr.mxu0 0.0
    %679 = vmatpush1.msra.mxu0 %v648
    %680 = vmatprep.subr.mxu0 0.0
    %681 = vmatpush1.msra.mxu0 %v624
    %682 = vmatprep.subr.mxu0 0.0
    %683 = vmatpush2.msra.mxu0 0.0
    %684 = vmatprep.subr.mxu0 0.0
    %685 = vmatpush2.msra.mxu0 0.0
    %686 = vmatprep.subr.mxu0 0.0
    %687 = vmatpush2.msra.mxu0 0.0
    %688 = vmatprep.subr.mxu0 0.0
    %689 = vmatpush2.msra.mxu0 0.0
    %690 = vmatprep.subr.mxu0 0.0
    %691 = vmatpush2.msra.mxu0 0.0
    %692 = vmatprep.subr.mxu0 0.0
    %693 = vmatpush2.msra.mxu0 0.0
    %694 = vmatprep.subr.mxu0 0.0
    %695 = vmatpush2.msra.mxu0 0.0
    %696 = vmatprep.subr.mxu0 0.0
    %697 = vmatpush2.msra.mxu0 0.0
    %698 = vmatprep.subr.mxu0 0.0
    %699 = vmatpush2.msra.mxu0 0.0
    %700 = vmatprep.subr.mxu0 0.0
    %701 = vmatpush2.msra.mxu0 0.0
    %702 = vmatprep.subr.mxu0 0.0
    %703 = vmatpush2.msra.mxu0 0.0
    %704 = vmatprep.subr.mxu0 0.0
    %705 = vmatpush2.msra.mxu0 0.0
    %706 = vmatprep.subr.mxu0 0.0
    %707 = vmatpush2.msra.mxu0 0.0
    %708 = vmatprep.subr.mxu0 0.0
    %709 = vmatpush2.msra.mxu0 0.0
    %710 = vmatprep.subr.mxu0 0.0
    %711 = vmatpush2.msra.mxu0 0.0
    %712 = vmatprep.subr.mxu0 0.0
    %713 = vmatpush2.msra.mxu0 0.0
    %714 = vmatprep.mubr.f32.mxu0 0.0
    %715 = vmatmul.mubr.f32.gmra.mxu0 %v641
    %v716 = vpop.f32.mrf.mxu0
    %v717 = vadd.f32 0.0, %v716
    %v718 = vpop.f32.mrf.mxu0
    %719 = vmatprep.mubr.f32.mxu0 0.0
    %720 = vmatmul.mubr.f32.gmra.mxu0 %v644
    %v721 = vpop.f32.mrf.mxu0
    %v722 = vadd.f32 0.0, %v721
    %v723 = vpop.f32.mrf.mxu0
    %724 = vdwg.mxu0
    %v725 = vadd.f32 %v717, %v626
    %v726 = vadd.f32 %v722, %v626
    %v727 = vld [vmem:[%s3] sm:$0xff]
    %v728 = vld [vmem:[%s3 + $0x8] sm:$0xff]
    %v729 = vld [vmem:[#allocation5] sm:$0xff]
    %v730 = vld [vmem:[#allocation5 + $0x8] sm:$0x7]
    %731 = vset.pattern.permute.xlu0 0
    %732 = vperm.xlu0 %731, %v727
    %v733 = vpop.permute.xlu0 %732
    %734 = vset.pattern.permute.xlu0 0
    %735 = vperm.xlu0 %734, %v728
    %v736 = vpop.permute.xlu0 %735
    %vm737 = vcmp.eq.s32.totalorder %v733, %v593
    %vm738 = vcmp.eq.s32.totalorder %v736, %v593
    %v739 = vsel %vm737, 1, 0
    %v740 = vsel %vm738, 1, 0
    %v741 = vcvt.s32.f32 %v739
    %v742 = vcvt.s32.f32 %v740
    %vm743 = vcmask 89088
    %v745 = vsel %vm743, %v741, 0
    %v748 = vsel %vm743, %v742, 0
    %vm750 = vcmask 1042432
    %v752 = vsel %vm750, %v730, 0
    %754 = vmatprep.subr.mxu0 0.0
    %755 = vmatpush1.msra.mxu0 0.0
    %756 = vmatprep.subr.mxu0 0.0
    %757 = vmatpush1.msra.mxu0 0.0
    %758 = vmatprep.subr.mxu0 0.0
    %759 = vmatpush1.msra.mxu0 0.0
    %760 = vmatprep.subr.mxu0 0.0
    %761 = vmatpush1.msra.mxu0 0.0
    %762 = vmatprep.subr.mxu0 0.0
    %763 = vmatpush1.msra.mxu0 0.0
    %764 = vmatprep.subr.mxu0 0.0
    %765 = vmatpush1.msra.mxu0 0.0
    %766 = vmatprep.subr.mxu0 0.0
    %767 = vmatpush1.msra.mxu0 0.0
    %768 = vmatprep.subr.mxu0 0.0
    %769 = vmatpush1.msra.mxu0 0.0
    %770 = vmatprep.subr.mxu0 0.0
    %771 = vmatpush1.msra.mxu0 0.0
    %772 = vmatprep.subr.mxu0 0.0
    %773 = vmatpush1.msra.mxu0 0.0
    %774 = vmatprep.subr.mxu0 0.0
    %775 = vmatpush1.msra.mxu0 0.0
    %776 = vmatprep.subr.mxu0 0.0
    %777 = vmatpush1.msra.mxu0 0.0
    %778 = vmatprep.subr.mxu0 0.0
    %779 = vmatpush1.msra.mxu0 0.0
    %780 = vmatprep.subr.mxu0 0.0
    %781 = vmatpush1.msra.mxu0 0.0
    %782 = vmatprep.subr.mxu0 0.0
    %783 = vmatpush1.msra.mxu0 %v752
    %784 = vmatprep.subr.mxu0 0.0
    %785 = vmatpush1.msra.mxu0 %v729
    %786 = vmatprep.subr.mxu0 0.0
    %787 = vmatpush2.msra.mxu0 0.0
    %788 = vmatprep.subr.mxu0 0.0
    %789 = vmatpush2.msra.mxu0 0.0
    %790 = vmatprep.subr.mxu0 0.0
    %791 = vmatpush2.msra.mxu0 0.0
    %792 = vmatprep.subr.mxu0 0.0
    %793 = vmatpush2.msra.mxu0 0.0
    %794 = vmatprep.subr.mxu0 0.0
    %795 = vmatpush2.msra.mxu0 0.0
    %796 = vmatprep.subr.mxu0 0.0
    %797 = vmatpush2.msra.mxu0 0.0
    %798 = vmatprep.subr.mxu0 0.0
    %799 = vmatpush2.msra.mxu0 0.0
    %800 = vmatprep.subr.mxu0 0.0
    %801 = vmatpush2.msra.mxu0 0.0
    %802 = vmatprep.subr.mxu0 0.0
    %803 = vmatpush2.msra.mxu0 0.0
    %804 = vmatprep.subr.mxu0 0.0
    %805 = vmatpush2.msra.mxu0 0.0
    %806 = vmatprep.subr.mxu0 0.0
    %807 = vmatpush2.msra.mxu0 0.0
    %808 = vmatprep.subr.mxu0 0.0
    %809 = vmatpush2.msra.mxu0 0.0
    %810 = vmatprep.subr.mxu0 0.0
    %811 = vmatpush2.msra.mxu0 0.0
    %812 = vmatprep.subr.mxu0 0.0
    %813 = vmatpush2.msra.mxu0 0.0
    %814 = vmatprep.subr.mxu0 0.0
    %815 = vmatpush2.msra.mxu0 0.0
    %816 = vmatprep.subr.mxu0 0.0
    %817 = vmatpush2.msra.mxu0 0.0
    %818 = vmatprep.mubr.f32.mxu0 0.0
    %819 = vmatmul.mubr.f32.gmra.mxu0 %v745
    %v820 = vpop.f32.mrf.mxu0
    %v821 = vadd.f32 0.0, %v820
    %v822 = vpop.f32.mrf.mxu0
    %823 = vmatprep.mubr.f32.mxu0 0.0
    %824 = vmatmul.mubr.f32.gmra.mxu0 %v748
    %v825 = vpop.f32.mrf.mxu0
    %v826 = vadd.f32 0.0, %v825
    %v827 = vpop.f32.mrf.mxu0
    %828 = vdwg.mxu0
    %v829 = vadd.f32 %v821, %v626
    %v830 = vadd.f32 %v826, %v626
    %v831 = vld [vmem:[%s15] sm:$0xff]
    %v832 = vld [vmem:[%s15 + $0x8] sm:$0xff]
    %v833 = vld [vmem:[%s15 + $0x10] sm:$0xff]
    %v834 = vld [vmem:[%s15 + $0x18] sm:$0xff]
    %v835 = vld [vmem:[%s15 + $0x20] sm:$0xff]
    %v836 = vld [vmem:[%s15 + $0x28] sm:$0xff]
    %v837 = vld [vmem:[%s15 + $0x30] sm:$0xff]
    %v838 = vld [vmem:[%s15 + $0x38] sm:$0xff]
    %v839 = vld [vmem:[#allocation7] sm:$0x3]
    %v840 = vpack.c.bf16 %v726, %v725
    %v842 = vlaneseq
    %v843 = vshrl.u32 %v842, 7
    %v844 = vsub.s32 0, %v843
    %v845 = vrot.slane %v839, %v844
    %v846 = vlaneseq
    %v847 = vshrl.u32 %v846, 7
    %v848 = vsub.s32 1, %v847
    %v849 = vrot.slane %v839, %v848
    %v860 = vunpack.c.l.b16 %v831
    %v861 = vunpack.c.h.b16 %v831
    %v862 = vunpack.c.l.b16 %v832
    %v863 = vunpack.c.h.b16 %v832
    %v864 = vunpack.c.l.b16 %v833
    %v865 = vunpack.c.h.b16 %v833
    %v866 = vunpack.c.l.b16 %v834
    %v867 = vunpack.c.h.b16 %v834
    %v868 = vunpack.c.l.b16 %v835
    %v869 = vunpack.c.h.b16 %v835
    %v870 = vunpack.c.l.b16 %v836
    %v871 = vunpack.c.h.b16 %v836
    %v872 = vunpack.c.l.b16 %v837
    %v873 = vunpack.c.h.b16 %v837
    %v874 = vunpack.c.l.b16 %v838
    %v875 = vunpack.c.h.b16 %v838
    %v876 = vpack.c.b16 %v862, %v860
    %v877 = vpack.c.b16 %v863, %v861
    %v878 = vpack.c.b16 %v866, %v864
    %v879 = vpack.c.b16 %v867, %v865
    %v880 = vpack.c.b16 %v870, %v868
    %v881 = vpack.c.b16 %v871, %v869
    %v882 = vpack.c.b16 %v874, %v872
    %v883 = vpack.c.b16 %v875, %v873
    %vm892 = vcmask 523264
    %v894 = vsel %vm892, %v840, 0
    %896 = vmatprep.subr.bf16.mxu0 0
    %897 = vmatpush1.bf16.msra.mxu0 0
    %898 = vmatprep.subr.bf16.mxu0 0
    %899 = vmatpush1.bf16.msra.mxu0 0
    %900 = vmatprep.subr.bf16.mxu0 0
    %901 = vmatpush1.bf16.msra.mxu0 0
    %902 = vmatprep.subr.bf16.mxu0 0
    %903 = vmatpush1.bf16.msra.mxu0 0
    %904 = vmatprep.subr.bf16.mxu0 %v883
    %905 = vmatpush1.bf16.msra.mxu0 %v882
    %906 = vmatprep.subr.bf16.mxu0 %v881
    %907 = vmatpush1.bf16.msra.mxu0 %v880
    %908 = vmatprep.subr.bf16.mxu0 %v879
    %909 = vmatpush1.bf16.msra.mxu0 %v878
    %910 = vmatprep.subr.bf16.mxu0 %v877
    %911 = vmatpush1.bf16.msra.mxu0 %v876
    %912 = vmatprep.subr.bf16.mxu0 0
    %913 = vmatpush2.bf16.msra.mxu0 0
    %914 = vmatprep.subr.bf16.mxu0 0
    %915 = vmatpush2.bf16.msra.mxu0 0
    %916 = vmatprep.subr.bf16.mxu0 0
    %917 = vmatpush2.bf16.msra.mxu0 0
    %918 = vmatprep.subr.bf16.mxu0 0
    %919 = vmatpush2.bf16.msra.mxu0 0
    %920 = vmatprep.subr.bf16.mxu0 0
    %921 = vmatpush2.bf16.msra.mxu0 0
    %922 = vmatprep.subr.bf16.mxu0 0
    %923 = vmatpush2.bf16.msra.mxu0 0
    %924 = vmatprep.subr.bf16.mxu0 0
    %925 = vmatpush2.bf16.msra.mxu0 0
    %926 = vmatprep.subr.bf16.mxu0 0
    %927 = vmatpush2.bf16.msra.mxu0 0
    %928 = vmatprep.mubr.bf16.mxu0 0
    %929 = vmatmul.mubr.bf16.gmra.mxu0 %v894
    %v930 = vpop.f32.mrf.mxu0
    %v931 = vadd.f32 %v845, %v930
    %v932 = vpop.f32.mrf.mxu0
    %v933 = vadd.f32 %v849, %v932
    %v934 = vpop.f32.mrf.mxu0
    %v935 = vadd.f32 %v845, %v934
    %v936 = vpop.f32.mrf.mxu0
    %v937 = vadd.f32 %v849, %v936
    %938 = vdwg.mxu0
    %v939 = vld [vmem:[#allocation8] sm:$0xf]
    %v940 = vld [vmem:[#allocation8 + $0x4] sm:$0xf]
    %v941 = vld [vmem:[#allocation8 + $0x8] sm:$0xf]
    %v942 = vld [vmem:[#allocation8 + $0xc] sm:$0xf]
    %v943 = vld [vmem:[#allocation8 + $0x10] sm:$0xf]
    %v944 = vld [vmem:[#allocation8 + $0x14] sm:$0xf]
    %v945 = vld [vmem:[#allocation8 + $0x18] sm:$0xf]
    %v946 = vld [vmem:[#allocation8 + $0x1c] sm:$0xf]
    %v947 = vld [vmem:[#allocation10] sm:$0x1]
    %v948 = vpack.c.bf16 %v931, %v931
    %v949 = vpack.c.bf16 %v935, %v935
    %v950 = vpack.c.bf16 %v933, %v933
    %v951 = vpack.c.bf16 %v937, %v937
    %953 = vrot.lane.b32.xlu0 %v948, 64
    %v954 = vpop.permute.xlu0 %953
    %vm955 = vcmask 130048
    %v957 = vsel %vm955, %v948, 0
    %v960 = vsel %vm955, %v954, 0
    %962 = vmatprep.subr.bf16.mxu0 0
    %963 = vmatpush1.bf16.xpose.msra.mxu0 0
    %964 = vmatprep.subr.bf16.mxu0 0
    %965 = vmatpush1.bf16.xpose.msra.mxu0 0
    %966 = vmatprep.subr.bf16.mxu0 0
    %967 = vmatpush1.bf16.xpose.msra.mxu0 0
    %968 = vmatprep.subr.bf16.mxu0 0
    %969 = vmatpush1.bf16.xpose.msra.mxu0 0
    %970 = vmatprep.subr.bf16.mxu0 0
    %971 = vmatpush1.bf16.xpose.msra.mxu0 0
    %972 = vmatprep.subr.bf16.mxu0 0
    %973 = vmatpush1.bf16.xpose.msra.mxu0 0
    %974 = vmatprep.subr.bf16.mxu0 0
    %975 = vmatpush1.bf16.xpose.msra.mxu0 0
    %976 = vmatprep.subr.bf16.mxu0 0
    %977 = vmatpush1.bf16.xpose.msra.mxu0 %v960
    %978 = vmatprep.subr.bf16.mxu0 0
    %979 = vmatpush2.bf16.xpose.msra.mxu0 0
    %980 = vmatprep.subr.bf16.mxu0 0
    %981 = vmatpush2.bf16.xpose.msra.mxu0 0
    %982 = vmatprep.subr.bf16.mxu0 0
    %983 = vmatpush2.bf16.xpose.msra.mxu0 0
    %984 = vmatprep.subr.bf16.mxu0 0
    %985 = vmatpush2.bf16.xpose.msra.mxu0 0
    %986 = vmatprep.subr.bf16.mxu0 0
    %987 = vmatpush2.bf16.xpose.msra.mxu0 0
    %988 = vmatprep.subr.bf16.mxu0 0
    %989 = vmatpush2.bf16.xpose.msra.mxu0 0
    %990 = vmatprep.subr.bf16.mxu0 0
    %991 = vmatpush2.bf16.xpose.msra.mxu0 0
    %992 = vmatprep.subr.bf16.mxu0 0
    %993 = vmatpush2.bf16.xpose.msra.mxu0 0
    %994 = vmatprep.mubr.bf16.mxu0 0
    %995 = vmatmul.mubr.bf16.gmra.mxu0 %v957
    %v996 = vpop.f32.mrf.mxu0
    %v997 = vadd.f32 0.0, %v996
    %v998 = vpop.f32.mrf.mxu0
    %v999 = vpop.f32.mrf.mxu0
    %v1000 = vpop.f32.mrf.mxu0
    %1001 = vdwg.mxu0
    %1003 = vrot.lane.b32.xlu0 %v949, 64
    %v1004 = vpop.permute.xlu0 %1003
    %v1006 = vsel %vm955, %v949, 0
    %v1009 = vsel %vm955, %v1004, 0
    %1011 = vmatprep.subr.bf16.mxu0 0
    %1012 = vmatpush1.bf16.xpose.msra.mxu0 0
    %1013 = vmatprep.subr.bf16.mxu0 0
    %1014 = vmatpush1.bf16.xpose.msra.mxu0 0
    %1015 = vmatprep.subr.bf16.mxu0 0
    %1016 = vmatpush1.bf16.xpose.msra.mxu0 0
    %1017 = vmatprep.subr.bf16.mxu0 0
    %1018 = vmatpush1.bf16.xpose.msra.mxu0 0
    %1019 = vmatprep.subr.bf16.mxu0 0
    %1020 = vmatpush1.bf16.xpose.msra.mxu0 0
    %1021 = vmatprep.subr.bf16.mxu0 0
    %1022 = vmatpush1.bf16.xpose.msra.mxu0 0
    %1023 = vmatprep.subr.bf16.mxu0 0
    %1024 = vmatpush1.bf16.xpose.msra.mxu0 0
    %1025 = vmatprep.subr.bf16.mxu0 0
    %1026 = vmatpush1.bf16.xpose.msra.mxu0 %v1009
    %1027 = vmatprep.subr.bf16.mxu0 0
    %1028 = vmatpush2.bf16.xpose.msra.mxu0 0
    %1029 = vmatprep.subr.bf16.mxu0 0
    %1030 = vmatpush2.bf16.xpose.msra.mxu0 0
    %1031 = vmatprep.subr.bf16.mxu0 0
    %1032 = vmatpush2.bf16.xpose.msra.mxu0 0
    %1033 = vmatprep.subr.bf16.mxu0 0
    %1034 = vmatpush2.bf16.xpose.msra.mxu0 0
    %1035 = vmatprep.subr.bf16.mxu0 0
    %1036 = vmatpush2.bf16.xpose.msra.mxu0 0
    %1037 = vmatprep.subr.bf16.mxu0 0
    %1038 = vmatpush2.bf16.xpose.msra.mxu0 0
    %1039 = vmatprep.subr.bf16.mxu0 0
    %1040 = vmatpush2.bf16.xpose.msra.mxu0 0
    %1041 = vmatprep.subr.bf16.mxu0 0
    %1042 = vmatpush2.bf16.xpose.msra.mxu0 0
    %1043 = vmatprep.mubr.bf16.mxu0 0
    %1044 = vmatmul.mubr.bf16.gmra.mxu0 %v1006
    %v1045 = vpop.f32.mrf.mxu0
    %v1046 = vadd.f32 0.0, %v1045
    %v1047 = vpop.f32.mrf.mxu0
    %v1048 = vpop.f32.mrf.mxu0
    %v1049 = vpop.f32.mrf.mxu0
    %1050 = vdwg.mxu0
    %v1051 = vmul.f32 %v997, 0.25
    %v1052 = vmul.f32 %v1046, 0.25
    %v1053 = vadd.f32 %v1051, %v601
    %v1054 = vadd.f32 %v1052, %v605
    %vm1055 = vcmask 64512
    %v1056 = vsel %vm1055, %v1053, -inf
    %1057 = vmax.xlane.f32.xlu0 %v1056
    %v1058 = vpop.xlane.xlu0 %1057
    %v1059 = vsel %vm1055, %v1054, -inf
    %1060 = vmax.xlane.f32.xlu0 %v1059
    %v1061 = vpop.xlane.xlu0 %1060
    %v1062 = vsub.f32 %v1053, %v1058
    %v1063 = vsub.f32 %v1054, %v1061
    %v1064 = vmul.f32 %v1062, 1.442695
    %v1065 = vpow.pop %v1064
    %v1066 = vmul.f32 %v1063, 1.442695
    %v1067 = vpow.pop %v1066
    %v1068 = vsel %vm1055, %v1065, 0.0
    %1069 = vadd.xlane.f32.xlu0 %v1068
    %v1070 = vpop.xlane.xlu0 %1069
    %v1071 = vsel %vm1055, %v1067, 0.0
    %1072 = vadd.xlane.f32.xlu0 %v1071
    %v1073 = vpop.xlane.xlu0 %1072
    %v1074 = vrcp.pop %v1070
    %v1075 = vrcp.pop %v1073
    %v1076 = vmul.f32 %v1065, %v1074
    %v1077 = vmul.f32 %v1067, %v1075
    %v1078 = vpack.c.bf16 %v1076, %v1076
    %v1079 = vpack.c.bf16 %v1077, %v1077
    %v1081 = vsel %vm1055, %v1078, 0
    %vm1083 = vcmask 1043456
    %v1085 = vsel %vm1083, %v950, 0
    %1087 = vmatprep.subr.bf16.mxu0 0
    %1088 = vmatpush1.bf16.msra.mxu0 0
    %1089 = vmatprep.subr.bf16.mxu0 0
    %1090 = vmatpush1.bf16.msra.mxu0 0
    %1091 = vmatprep.subr.bf16.mxu0 0
    %1092 = vmatpush1.bf16.msra.mxu0 0
    %1093 = vmatprep.subr.bf16.mxu0 0
    %1094 = vmatpush1.bf16.msra.mxu0 0
    %1095 = vmatprep.subr.bf16.mxu0 0
    %1096 = vmatpush1.bf16.msra.mxu0 0
    %1097 = vmatprep.subr.bf16.mxu0 0
    %1098 = vmatpush1.bf16.msra.mxu0 0
    %1099 = vmatprep.subr.bf16.mxu0 0
    %1100 = vmatpush1.bf16.msra.mxu0 0
    %1101 = vmatprep.subr.bf16.mxu0 0
    %1102 = vmatpush1.bf16.msra.mxu0 %v1085
    %1103 = vmatprep.subr.bf16.mxu0 0
    %1104 = vmatpush2.bf16.msra.mxu0 0
    %1105 = vmatprep.subr.bf16.mxu0 0
    %1106 = vmatpush2.bf16.msra.mxu0 0
    %1107 = vmatprep.subr.bf16.mxu0 0
    %1108 = vmatpush2.bf16.msra.mxu0 0
    %1109 = vmatprep.subr.bf16.mxu0 0
    %1110 = vmatpush2.bf16.msra.mxu0 0
    %1111 = vmatprep.subr.bf16.mxu0 0
    %1112 = vmatpush2.bf16.msra.mxu0 0
    %1113 = vmatprep.subr.bf16.mxu0 0
    %1114 = vmatpush2.bf16.msra.mxu0 0
    %1115 = vmatprep.subr.bf16.mxu0 0
    %1116 = vmatpush2.bf16.msra.mxu0 0
    %1117 = vmatprep.subr.bf16.mxu0 0
    %1118 = vmatpush2.bf16.msra.mxu0 0
    %1119 = vmatprep.mubr.bf16.mxu0 0
    %1120 = vmatmul.mubr.bf16.gmra.mxu0 %v1081
    %v1121 = vpop.f32.mrf.mxu0
    %v1122 = vadd.f32 0.0, %v1121
    %v1123 = vpop.f32.mrf.mxu0
    %v1124 = vpop.f32.mrf.mxu0
    %v1125 = vpop.f32.mrf.mxu0
    %1126 = vdwg.mxu0
    %v1128 = vsel %vm1055, %v1079, 0
    %v1131 = vsel %vm1083, %v951, 0
    %1133 = vmatprep.subr.bf16.mxu0 0
    %1134 = vmatpush1.bf16.msra.mxu0 0
    %1135 = vmatprep.subr.bf16.mxu0 0
    %1136 = vmatpush1.bf16.msra.mxu0 0
    %1137 = vmatprep.subr.bf16.mxu0 0
    %1138 = vmatpush1.bf16.msra.mxu0 0
    %1139 = vmatprep.subr.bf16.mxu0 0
    %1140 = vmatpush1.bf16.msra.mxu0 0
    %1141 = vmatprep.subr.bf16.mxu0 0
    %1142 = vmatpush1.bf16.msra.mxu0 0
    %1143 = vmatprep.subr.bf16.mxu0 0
    %1144 = vmatpush1.bf16.msra.mxu0 0
    %1145 = vmatprep.subr.bf16.mxu0 0
    %1146 = vmatpush1.bf16.msra.mxu0 0
    %1147 = vmatprep.subr.bf16.mxu0 0
    %1148 = vmatpush1.bf16.msra.mxu0 %v1131
    %1149 = vmatprep.subr.bf16.mxu0 0
    %1150 = vmatpush2.bf16.msra.mxu0 0
    %1151 = vmatprep.subr.bf16.mxu0 0
    %1152 = vmatpush2.bf16.msra.mxu0 0
    %1153 = vmatprep.subr.bf16.mxu0 0
    %1154 = vmatpush2.bf16.msra.mxu0 0
    %1155 = vmatprep.subr.bf16.mxu0 0
    %1156 = vmatpush2.bf16.msra.mxu0 0
    %1157 = vmatprep.subr.bf16.mxu0 0
    %1158 = vmatpush2.bf16.msra.mxu0 0
    %1159 = vmatprep.subr.bf16.mxu0 0
    %1160 = vmatpush2.bf16.msra.mxu0 0
    %1161 = vmatprep.subr.bf16.mxu0 0
    %1162 = vmatpush2.bf16.msra.mxu0 0
    %1163 = vmatprep.subr.bf16.mxu0 0
    %1164 = vmatpush2.bf16.msra.mxu0 0
    %1165 = vmatprep.mubr.bf16.mxu0 0
    %1166 = vmatmul.mubr.bf16.gmra.mxu0 %v1128
    %v1167 = vpop.f32.mrf.mxu0
    %v1168 = vadd.f32 0.0, %v1167
    %v1169 = vpop.f32.mrf.mxu0
    %v1170 = vpop.f32.mrf.mxu0
    %v1171 = vpop.f32.mrf.mxu0
    %1172 = vdwg.mxu0
    %1173 = vrot.lane.b32.xlu0 %v948, 112
    %v1174 = vpop.permute.xlu0 %1173
    %1175 = vrot.lane.b32.xlu0 %v948, 48
    %v1176 = vpop.permute.xlu0 %1175
    %v1178 = vsel %vm955, %v1174, 0
    %v1181 = vsel %vm955, %v1176, 0
    %1183 = vmatprep.subr.bf16.mxu0 0
    %1184 = vmatpush1.bf16.xpose.msra.mxu0 0
    %1185 = vmatprep.subr.bf16.mxu0 0
    %1186 = vmatpush1.bf16.xpose.msra.mxu0 0
    %1187 = vmatprep.subr.bf16.mxu0 0
    %1188 = vmatpush1.bf16.xpose.msra.mxu0 0
    %1189 = vmatprep.subr.bf16.mxu0 0
    %1190 = vmatpush1.bf16.xpose.msra.mxu0 0
    %1191 = vmatprep.subr.bf16.mxu0 0
    %1192 = vmatpush1.bf16.xpose.msra.mxu0 0
    %1193 = vmatprep.subr.bf16.mxu0 0
    %1194 = vmatpush1.bf16.xpose.msra.mxu0 0
    %1195 = vmatprep.subr.bf16.mxu0 0
    %1196 = vmatpush1.bf16.xpose.msra.mxu0 0
    %1197 = vmatprep.subr.bf16.mxu0 0
    %1198 = vmatpush1.bf16.xpose.msra.mxu0 %v1181
    %1199 = vmatprep.subr.bf16.mxu0 0
    %1200 = vmatpush2.bf16.xpose.msra.mxu0 0
    %1201 = vmatprep.subr.bf16.mxu0 0
    %1202 = vmatpush2.bf16.xpose.msra.mxu0 0
    %1203 = vmatprep.subr.bf16.mxu0 0
    %1204 = vmatpush2.bf16.xpose.msra.mxu0 0
    %1205 = vmatprep.subr.bf16.mxu0 0
    %1206 = vmatpush2.bf16.xpose.msra.mxu0 0
    %1207 = vmatprep.subr.bf16.mxu0 0
    %1208 = vmatpush2.bf16.xpose.msra.mxu0 0
    %1209 = vmatprep.subr.bf16.mxu0 0
    %1210 = vmatpush2.bf16.xpose.msra.mxu0 0
    %1211 = vmatprep.subr.bf16.mxu0 0
    %1212 = vmatpush2.bf16.xpose.msra.mxu0 0
    %1213 = vmatprep.subr.bf16.mxu0 0
    %1214 = vmatpush2.bf16.xpose.msra.mxu0 0
    %1215 = vmatprep.mubr.bf16.mxu0 0
    %1216 = vmatmul.mubr.bf16.gmra.mxu0 %v1178
    %v1217 = vpop.f32.mrf.mxu0
    %v1218 = vadd.f32 0.0, %v1217
    %v1219 = vpop.f32.mrf.mxu0
    %v1220 = vpop.f32.mrf.mxu0
    %v1221 = vpop.f32.mrf.mxu0
    %1222 = vdwg.mxu0
    %1223 = vrot.lane.b32.xlu0 %v949, 112
    %v1224 = vpop.permute.xlu0 %1223
    %1225 = vrot.lane.b32.xlu0 %v949, 48
    %v1226 = vpop.permute.xlu0 %1225
    %v1228 = vsel %vm955, %v1224, 0
    %v1231 = vsel %vm955, %v1226, 0
    %1233 = vmatprep.subr.bf16.mxu0 0
    %1234 = vmatpush1.bf16.xpose.msra.mxu0 0
    %1235 = vmatprep.subr.bf16.mxu0 0
    %1236 = vmatpush1.bf16.xpose.msra.mxu0 0
    %1237 = vmatprep.subr.bf16.mxu0 0
    %1238 = vmatpush1.bf16.xpose.msra.mxu0 0
    %1239 = vmatprep.subr.bf16.mxu0 0
    %1240 = vmatpush1.bf16.xpose.msra.mxu0 0
    %1241 = vmatprep.subr.bf16.mxu0 0
    %1242 = vmatpush1.bf16.xpose.msra.mxu0 0
    %1243 = vmatprep.subr.bf16.mxu0 0
    %1244 = vmatpush1.bf16.xpose.msra.mxu0 0
    %1245 = vmatprep.subr.bf16.mxu0 0
    %1246 = vmatpush1.bf16.xpose.msra.mxu0 0
    %1247 = vmatprep.subr.bf16.mxu0 0
    %1248 = vmatpush1.bf16.xpose.msra.mxu0 %v1231
    %1249 = vmatprep.subr.bf16.mxu0 0
    %1250 = vmatpush2.bf16.xpose.msra.mxu0 0
    %1251 = vmatprep.subr.bf16.mxu0 0
    %1252 = vmatpush2.bf16.xpose.msra.mxu0 0
    %1253 = vmatprep.subr.bf16.mxu0 0
    %1254 = vmatpush2.bf16.xpose.msra.mxu0 0
    %1255 = vmatprep.subr.bf16.mxu0 0
    %1256 = vmatpush2.bf16.xpose.msra.mxu0 0
    %1257 = vmatprep.subr.bf16.mxu0 0
    %1258 = vmatpush2.bf16.xpose.msra.mxu0 0
    %1259 = vmatprep.subr.bf16.mxu0 0
    %1260 = vmatpush2.bf16.xpose.msra.mxu0 0
    %1261 = vmatprep.subr.bf16.mxu0 0
    %1262 = vmatpush2.bf16.xpose.msra.mxu0 0
    %1263 = vmatprep.subr.bf16.mxu0 0
    %1264 = vmatpush2.bf16.xpose.msra.mxu0 0
    %1265 = vmatprep.mubr.bf16.mxu0 0
    %1266 = vmatmul.mubr.bf16.gmra.mxu0 %v1228
    %v1267 = vpop.f32.mrf.mxu0
    %v1268 = vadd.f32 0.0, %v1267
    %v1269 = vpop.f32.mrf.mxu0
    %v1270 = vpop.f32.mrf.mxu0
    %v1271 = vpop.f32.mrf.mxu0
    %1272 = vdwg.mxu0
    %v1273 = vmul.f32 %v1218, 0.25
    %v1274 = vmul.f32 %v1268, 0.25
    %v1275 = vadd.f32 %v1273, %v601
    %v1276 = vadd.f32 %v1274, %v605
    %v1277 = vsel %vm1055, %v1275, -inf
    %1278 = vmax.xlane.f32.xlu0 %v1277
    %v1279 = vpop.xlane.xlu0 %1278
    %v1280 = vsel %vm1055, %v1276, -inf
    %1281 = vmax.xlane.f32.xlu0 %v1280
    %v1282 = vpop.xlane.xlu0 %1281
    %v1283 = vsub.f32 %v1275, %v1279
    %v1284 = vsub.f32 %v1276, %v1282
    %v1285 = vmul.f32 %v1283, 1.442695
    %v1286 = vpow.pop %v1285
    %v1287 = vmul.f32 %v1284, 1.442695
    %v1288 = vpow.pop %v1287
    %v1289 = vsel %vm1055, %v1286, 0.0
    %1290 = vadd.xlane.f32.xlu0 %v1289
    %v1291 = vpop.xlane.xlu0 %1290
    %v1292 = vsel %vm1055, %v1288, 0.0
    %1293 = vadd.xlane.f32.xlu0 %v1292
    %v1294 = vpop.xlane.xlu0 %1293
    %v1295 = vrcp.pop %v1291
    %v1296 = vrcp.pop %v1294
    %v1297 = vmul.f32 %v1286, %v1295
    %v1298 = vmul.f32 %v1288, %v1296
    %v1299 = vpack.c.bf16 %v1297, %v1297
    %v1300 = vpack.c.bf16 %v1298, %v1298
    %1302 = vrot.lane.b32.xlu0 %v950, 112
    %v1303 = vpop.permute.xlu0 %1302
    %v1305 = vsel %vm1055, %v1299, 0
    %v1308 = vsel %vm1083, %v1303, 0
    %1310 = vmatprep.subr.bf16.mxu0 0
    %1311 = vmatpush1.bf16.msra.mxu0 0
    %1312 = vmatprep.subr.bf16.mxu0 0
    %1313 = vmatpush1.bf16.msra.mxu0 0
    %1314 = vmatprep.subr.bf16.mxu0 0
    %1315 = vmatpush1.bf16.msra.mxu0 0
    %1316 = vmatprep.subr.bf16.mxu0 0
    %1317 = vmatpush1.bf16.msra.mxu0 0
    %1318 = vmatprep.subr.bf16.mxu0 0
    %1319 = vmatpush1.bf16.msra.mxu0 0
    %1320 = vmatprep.subr.bf16.mxu0 0
    %1321 = vmatpush1.bf16.msra.mxu0 0
    %1322 = vmatprep.subr.bf16.mxu0 0
    %1323 = vmatpush1.bf16.msra.mxu0 0
    %1324 = vmatprep.subr.bf16.mxu0 0
    %1325 = vmatpush1.bf16.msra.mxu0 %v1308
    %1326 = vmatprep.subr.bf16.mxu0 0
    %1327 = vmatpush2.bf16.msra.mxu0 0
    %1328 = vmatprep.subr.bf16.mxu0 0
    %1329 = vmatpush2.bf16.msra.mxu0 0
    %1330 = vmatprep.subr.bf16.mxu0 0
    %1331 = vmatpush2.bf16.msra.mxu0 0
    %1332 = vmatprep.subr.bf16.mxu0 0
    %1333 = vmatpush2.bf16.msra.mxu0 0
    %1334 = vmatprep.subr.bf16.mxu0 0
    %1335 = vmatpush2.bf16.msra.mxu0 0
    %1336 = vmatprep.subr.bf16.mxu0 0
    %1337 = vmatpush2.bf16.msra.mxu0 0
    %1338 = vmatprep.subr.bf16.mxu0 0
    %1339 = vmatpush2.bf16.msra.mxu0 0
    %1340 = vmatprep.subr.bf16.mxu0 0
    %1341 = vmatpush2.bf16.msra.mxu0 0
    %1342 = vmatprep.mubr.bf16.mxu0 0
    %1343 = vmatmul.mubr.bf16.gmra.mxu0 %v1305
    %v1344 = vpop.f32.mrf.mxu0
    %v1345 = vadd.f32 0.0, %v1344
    %v1346 = vpop.f32.mrf.mxu0
    %v1347 = vpop.f32.mrf.mxu0
    %v1348 = vpop.f32.mrf.mxu0
    %1349 = vdwg.mxu0
    %1351 = vrot.lane.b32.xlu0 %v951, 112
    %v1352 = vpop.permute.xlu0 %1351
    %v1354 = vsel %vm1055, %v1300, 0
    %v1357 = vsel %vm1083, %v1352, 0
    %1359 = vmatprep.subr.bf16.mxu0 0
    %1360 = vmatpush1.bf16.msra.mxu0 0
    %1361 = vmatprep.subr.bf16.mxu0 0
    %1362 = vmatpush1.bf16.msra.mxu0 0
    %1363 = vmatprep.subr.bf16.mxu0 0
    %1364 = vmatpush1.bf16.msra.mxu0 0
    %1365 = vmatprep.subr.bf16.mxu0 0
    %1366 = vmatpush1.bf16.msra.mxu0 0
    %1367 = vmatprep.subr.bf16.mxu0 0
    %1368 = vmatpush1.bf16.msra.mxu0 0
    %1369 = vmatprep.subr.bf16.mxu0 0
    %1370 = vmatpush1.bf16.msra.mxu0 0
    %1371 = vmatprep.subr.bf16.mxu0 0
    %1372 = vmatpush1.bf16.msra.mxu0 0
    %1373 = vmatprep.subr.bf16.mxu0 0
    %1374 = vmatpush1.bf16.msra.mxu0 %v1357
    %1375 = vmatprep.subr.bf16.mxu0 0
    %1376 = vmatpush2.bf16.msra.mxu0 0
    %1377 = vmatprep.subr.bf16.mxu0 0
    %1378 = vmatpush2.bf16.msra.mxu0 0
    %1379 = vmatprep.subr.bf16.mxu0 0
    %1380 = vmatpush2.bf16.msra.mxu0 0
    %1381 = vmatprep.subr.bf16.mxu0 0
    %1382 = vmatpush2.bf16.msra.mxu0 0
    %1383 = vmatprep.subr.bf16.mxu0 0
    %1384 = vmatpush2.bf16.msra.mxu0 0
    %1385 = vmatprep.subr.bf16.mxu0 0
    %1386 = vmatpush2.bf16.msra.mxu0 0
    %1387 = vmatprep.subr.bf16.mxu0 0
    %1388 = vmatpush2.bf16.msra.mxu0 0
    %1389 = vmatprep.subr.bf16.mxu0 0
    %1390 = vmatpush2.bf16.msra.mxu0 0
    %1391 = vmatprep.mubr.bf16.mxu0 0
    %1392 = vmatmul.mubr.bf16.gmra.mxu0 %v1354
    %v1393 = vpop.f32.mrf.mxu0
    %v1394 = vadd.f32 0.0, %v1393
    %v1395 = vpop.f32.mrf.mxu0
    %v1396 = vpop.f32.mrf.mxu0
    %v1397 = vpop.f32.mrf.mxu0
    %1398 = vdwg.mxu0
    %1399 = vrot.lane.b32.xlu0 %v948, 96
    %v1400 = vpop.permute.xlu0 %1399
    %1401 = vrot.lane.b32.xlu0 %v948, 32
    %v1402 = vpop.permute.xlu0 %1401
    %v1404 = vsel %vm955, %v1400, 0
    %v1407 = vsel %vm955, %v1402, 0
    %1409 = vmatprep.subr.bf16.mxu0 0
    %1410 = vmatpush1.bf16.xpose.msra.mxu0 0
    %1411 = vmatprep.subr.bf16.mxu0 0
    %1412 = vmatpush1.bf16.xpose.msra.mxu0 0
    %1413 = vmatprep.subr.bf16.mxu0 0
    %1414 = vmatpush1.bf16.xpose.msra.mxu0 0
    %1415 = vmatprep.subr.bf16.mxu0 0
    %1416 = vmatpush1.bf16.xpose.msra.mxu0 0
    %1417 = vmatprep.subr.bf16.mxu0 0
    %1418 = vmatpush1.bf16.xpose.msra.mxu0 0
    %1419 = vmatprep.subr.bf16.mxu0 0
    %1420 = vmatpush1.bf16.xpose.msra.mxu0 0
    %1421 = vmatprep.subr.bf16.mxu0 0
    %1422 = vmatpush1.bf16.xpose.msra.mxu0 0
    %1423 = vmatprep.subr.bf16.mxu0 0
    %1424 = vmatpush1.bf16.xpose.msra.mxu0 %v1407
    %1425 = vmatprep.subr.bf16.mxu0 0
    %1426 = vmatpush2.bf16.xpose.msra.mxu0 0
    %1427 = vmatprep.subr.bf16.mxu0 0
    %1428 = vmatpush2.bf16.xpose.msra.mxu0 0
    %1429 = vmatprep.subr.bf16.mxu0 0
    %1430 = vmatpush2.bf16.xpose.msra.mxu0 0
    %1431 = vmatprep.subr.bf16.mxu0 0
    %1432 = vmatpush2.bf16.xpose.msra.mxu0 0
    %1433 = vmatprep.subr.bf16.mxu0 0
    %1434 = vmatpush2.bf16.xpose.msra.mxu0 0
    %1435 = vmatprep.subr.bf16.mxu0 0
    %1436 = vmatpush2.bf16.xpose.msra.mxu0 0
    %1437 = vmatprep.subr.bf16.mxu0 0
    %1438 = vmatpush2.bf16.xpose.msra.mxu0 0
    %1439 = vmatprep.subr.bf16.mxu0 0
    %1440 = vmatpush2.bf16.xpose.msra.mxu0 0
    %1441 = vmatprep.mubr.bf16.mxu0 0
    %1442 = vmatmul.mubr.bf16.gmra.mxu0 %v1404
    %v1443 = vpop.f32.mrf.mxu0
    %v1444 = vadd.f32 0.0, %v1443
    %v1445 = vpop.f32.mrf.mxu0
    %v1446 = vpop.f32.mrf.mxu0
    %v1447 = vpop.f32.mrf.mxu0
    %1448 = vdwg.mxu0
    %1449 = vrot.lane.b32.xlu0 %v949, 96
    %v1450 = vpop.permute.xlu0 %1449
    %1451 = vrot.lane.b32.xlu0 %v949, 32
    %v1452 = vpop.permute.xlu0 %1451
    %v1454 = vsel %vm955, %v1450, 0
    %v1457 = vsel %vm955, %v1452, 0
    %1459 = vmatprep.subr.bf16.mxu0 0
    %1460 = vmatpush1.bf16.xpose.msra.mxu0 0
    %1461 = vmatprep.subr.bf16.mxu0 0
    %1462 = vmatpush1.bf16.xpose.msra.mxu0 0
    %1463 = vmatprep.subr.bf16.mxu0 0
    %1464 = vmatpush1.bf16.xpose.msra.mxu0 0
    %1465 = vmatprep.subr.bf16.mxu0 0
    %1466 = vmatpush1.bf16.xpose.msra.mxu0 0
    %1467 = vmatprep.subr.bf16.mxu0 0
    %1468 = vmatpush1.bf16.xpose.msra.mxu0 0
    %1469 = vmatprep.subr.bf16.mxu0 0
    %1470 = vmatpush1.bf16.xpose.msra.mxu0 0
    %1471 = vmatprep.subr.bf16.mxu0 0
    %1472 = vmatpush1.bf16.xpose.msra.mxu0 0
    %1473 = vmatprep.subr.bf16.mxu0 0
    %1474 = vmatpush1.bf16.xpose.msra.mxu0 %v1457
    %1475 = vmatprep.subr.bf16.mxu0 0
    %1476 = vmatpush2.bf16.xpose.msra.mxu0 0
    %1477 = vmatprep.subr.bf16.mxu0 0
    %1478 = vmatpush2.bf16.xpose.msra.mxu0 0
    %1479 = vmatprep.subr.bf16.mxu0 0
    %1480 = vmatpush2.bf16.xpose.msra.mxu0 0
    %1481 = vmatprep.subr.bf16.mxu0 0
    %1482 = vmatpush2.bf16.xpose.msra.mxu0 0
    %1483 = vmatprep.subr.bf16.mxu0 0
    %1484 = vmatpush2.bf16.xpose.msra.mxu0 0
    %1485 = vmatprep.subr.bf16.mxu0 0
    %1486 = vmatpush2.bf16.xpose.msra.mxu0 0
    %1487 = vmatprep.subr.bf16.mxu0 0
    %1488 = vmatpush2.bf16.xpose.msra.mxu0 0
    %1489 = vmatprep.subr.bf16.mxu0 0
    %1490 = vmatpush2.bf16.xpose.msra.mxu0 0
    %1491 = vmatprep.mubr.bf16.mxu0 0
    %1492 = vmatmul.mubr.bf16.gmra.mxu0 %v1454
    %v1493 = vpop.f32.mrf.mxu0
    %v1494 = vadd.f32 0.0, %v1493
    %v1495 = vpop.f32.mrf.mxu0
    %v1496 = vpop.f32.mrf.mxu0
    %v1497 = vpop.f32.mrf.mxu0
    %1498 = vdwg.mxu0
    %v1499 = vmul.f32 %v1444, 0.25
    %v1500 = vmul.f32 %v1494, 0.25
    %v1501 = vadd.f32 %v1499, %v601
    %v1502 = vadd.f32 %v1500, %v605
    %v1503 = vsel %vm1055, %v1501, -inf
    %1504 = vmax.xlane.f32.xlu0 %v1503
    %v1505 = vpop.xlane.xlu0 %1504
    %v1506 = vsel %vm1055, %v1502, -inf
    %1507 = vmax.xlane.f32.xlu0 %v1506
    %v1508 = vpop.xlane.xlu0 %1507
    %v1509 = vsub.f32 %v1501, %v1505
    %v1510 = vsub.f32 %v1502, %v1508
    %v1511 = vmul.f32 %v1509, 1.442695
    %v1512 = vpow.pop %v1511
    %v1513 = vmul.f32 %v1510, 1.442695
    %v1514 = vpow.pop %v1513
    %v1515 = vsel %vm1055, %v1512, 0.0
    %1516 = vadd.xlane.f32.xlu0 %v1515
    %v1517 = vpop.xlane.xlu0 %1516
    %v1518 = vsel %vm1055, %v1514, 0.0
    %1519 = vadd.xlane.f32.xlu0 %v1518
    %v1520 = vpop.xlane.xlu0 %1519
    %v1521 = vrcp.pop %v1517
    %v1522 = vrcp.pop %v1520
    %v1523 = vmul.f32 %v1512, %v1521
    %v1524 = vmul.f32 %v1514, %v1522
    %v1525 = vpack.c.bf16 %v1523, %v1523
    %v1526 = vpack.c.bf16 %v1524, %v1524
    %1527 = vrot.lane.b32.xlu0 %v950, 96
    %v1528 = vpop.permute.xlu0 %1527
    %v1530 = vsel %vm1055, %v1525, 0
    %v1533 = vsel %vm1083, %v1528, 0
    %1535 = vmatprep.subr.bf16.mxu0 0
    %1536 = vmatpush1.bf16.msra.mxu0 0
    %1537 = vmatprep.subr.bf16.mxu0 0
    %1538 = vmatpush1.bf16.msra.mxu0 0
    %1539 = vmatprep.subr.bf16.mxu0 0
    %1540 = vmatpush1.bf16.msra.mxu0 0
    %1541 = vmatprep.subr.bf16.mxu0 0
    %1542 = vmatpush1.bf16.msra.mxu0 0
    %1543 = vmatprep.subr.bf16.mxu0 0
    %1544 = vmatpush1.bf16.msra.mxu0 0
    %1545 = vmatprep.subr.bf16.mxu0 0
    %1546 = vmatpush1.bf16.msra.mxu0 0
    %1547 = vmatprep.subr.bf16.mxu0 0
    %1548 = vmatpush1.bf16.msra.mxu0 0
    %1549 = vmatprep.subr.bf16.mxu0 0
    %1550 = vmatpush1.bf16.msra.mxu0 %v1533
    %1551 = vmatprep.subr.bf16.mxu0 0
    %1552 = vmatpush2.bf16.msra.mxu0 0
    %1553 = vmatprep.subr.bf16.mxu0 0
    %1554 = vmatpush2.bf16.msra.mxu0 0
    %1555 = vmatprep.subr.bf16.mxu0 0
    %1556 = vmatpush2.bf16.msra.mxu0 0
    %1557 = vmatprep.subr.bf16.mxu0 0
    %1558 = vmatpush2.bf16.msra.mxu0 0
    %1559 = vmatprep.subr.bf16.mxu0 0
    %1560 = vmatpush2.bf16.msra.mxu0 0
    %1561 = vmatprep.subr.bf16.mxu0 0
    %1562 = vmatpush2.bf16.msra.mxu0 0
    %1563 = vmatprep.subr.bf16.mxu0 0
    %1564 = vmatpush2.bf16.msra.mxu0 0
    %1565 = vmatprep.subr.bf16.mxu0 0
    %1566 = vmatpush2.bf16.msra.mxu0 0
    %1567 = vmatprep.mubr.bf16.mxu0 0
    %1568 = vmatmul.mubr.bf16.gmra.mxu0 %v1530
    %v1569 = vpop.f32.mrf.mxu0
    %v1570 = vadd.f32 0.0, %v1569
    %v1571 = vpop.f32.mrf.mxu0
    %v1572 = vpop.f32.mrf.mxu0
    %v1573 = vpop.f32.mrf.mxu0
    %1574 = vdwg.mxu0
    %1575 = vrot.lane.b32.xlu0 %v951, 96
    %v1576 = vpop.permute.xlu0 %1575
    %v1578 = vsel %vm1055, %v1526, 0
    %v1581 = vsel %vm1083, %v1576, 0
    %1583 = vmatprep.subr.bf16.mxu0 0
    %1584 = vmatpush1.bf16.msra.mxu0 0
    %1585 = vmatprep.subr.bf16.mxu0 0
    %1586 = vmatpush1.bf16.msra.mxu0 0
    %1587 = vmatprep.subr.bf16.mxu0 0
    %1588 = vmatpush1.bf16.msra.mxu0 0
    %1589 = vmatprep.subr.bf16.mxu0 0
    %1590 = vmatpush1.bf16.msra.mxu0 0
    %1591 = vmatprep.subr.bf16.mxu0 0
    %1592 = vmatpush1.bf16.msra.mxu0 0
    %1593 = vmatprep.subr.bf16.mxu0 0
    %1594 = vmatpush1.bf16.msra.mxu0 0
    %1595 = vmatprep.subr.bf16.mxu0 0
    %1596 = vmatpush1.bf16.msra.mxu0 0
    %1597 = vmatprep.subr.bf16.mxu0 0
    %1598 = vmatpush1.bf16.msra.mxu0 %v1581
    %1599 = vmatprep.subr.bf16.mxu0 0
    %1600 = vmatpush2.bf16.msra.mxu0 0
    %1601 = vmatprep.subr.bf16.mxu0 0
    %1602 = vmatpush2.bf16.msra.mxu0 0
    %1603 = vmatprep.subr.bf16.mxu0 0
    %1604 = vmatpush2.bf16.msra.mxu0 0
    %1605 = vmatprep.subr.bf16.mxu0 0
    %1606 = vmatpush2.bf16.msra.mxu0 0
    %1607 = vmatprep.subr.bf16.mxu0 0
    %1608 = vmatpush2.bf16.msra.mxu0 0
    %1609 = vmatprep.subr.bf16.mxu0 0
    %1610 = vmatpush2.bf16.msra.mxu0 0
    %1611 = vmatprep.subr.bf16.mxu0 0
    %1612 = vmatpush2.bf16.msra.mxu0 0
    %1613 = vmatprep.subr.bf16.mxu0 0
    %1614 = vmatpush2.bf16.msra.mxu0 0
    %1615 = vmatprep.mubr.bf16.mxu0 0
    %1616 = vmatmul.mubr.bf16.gmra.mxu0 %v1578
    %v1617 = vpop.f32.mrf.mxu0
    %v1618 = vadd.f32 0.0, %v1617
    %v1619 = vpop.f32.mrf.mxu0
    %v1620 = vpop.f32.mrf.mxu0
    %v1621 = vpop.f32.mrf.mxu0
    %1622 = vdwg.mxu0
    %1623 = vrot.lane.b32.xlu0 %v948, 80
    %v1624 = vpop.permute.xlu0 %1623
    %1625 = vrot.lane.b32.xlu0 %v948, 16
    %v1626 = vpop.permute.xlu0 %1625
    %v1628 = vsel %vm955, %v1624, 0
    %v1631 = vsel %vm955, %v1626, 0
    %1633 = vmatprep.subr.bf16.mxu0 0
    %1634 = vmatpush1.bf16.xpose.msra.mxu0 0
    %1635 = vmatprep.subr.bf16.mxu0 0
    %1636 = vmatpush1.bf16.xpose.msra.mxu0 0
    %1637 = vmatprep.subr.bf16.mxu0 0
    %1638 = vmatpush1.bf16.xpose.msra.mxu0 0
    %1639 = vmatprep.subr.bf16.mxu0 0
    %1640 = vmatpush1.bf16.xpose.msra.mxu0 0
    %1641 = vmatprep.subr.bf16.mxu0 0
    %1642 = vmatpush1.bf16.xpose.msra.mxu0 0
    %1643 = vmatprep.subr.bf16.mxu0 0
    %1644 = vmatpush1.bf16.xpose.msra.mxu0 0
    %1645 = vmatprep.subr.bf16.mxu0 0
    %1646 = vmatpush1.bf16.xpose.msra.mxu0 0
    %1647 = vmatprep.subr.bf16.mxu0 0
    %1648 = vmatpush1.bf16.xpose.msra.mxu0 %v1631
    %1649 = vmatprep.subr.bf16.mxu0 0
    %1650 = vmatpush2.bf16.xpose.msra.mxu0 0
    %1651 = vmatprep.subr.bf16.mxu0 0
    %1652 = vmatpush2.bf16.xpose.msra.mxu0 0
    %1653 = vmatprep.subr.bf16.mxu0 0
    %1654 = vmatpush2.bf16.xpose.msra.mxu0 0
    %1655 = vmatprep.subr.bf16.mxu0 0
    %1656 = vmatpush2.bf16.xpose.msra.mxu0 0
    %1657 = vmatprep.subr.bf16.mxu0 0
    %1658 = vmatpush2.bf16.xpose.msra.mxu0 0
    %1659 = vmatprep.subr.bf16.mxu0 0
    %1660 = vmatpush2.bf16.xpose.msra.mxu0 0
    %1661 = vmatprep.subr.bf16.mxu0 0
    %1662 = vmatpush2.bf16.xpose.msra.mxu0 0
    %1663 = vmatprep.subr.bf16.mxu0 0
    %1664 = vmatpush2.bf16.xpose.msra.mxu0 0
    %1665 = vmatprep.mubr.bf16.mxu0 0
    %1666 = vmatmul.mubr.bf16.gmra.mxu0 %v1628
    %v1667 = vpop.f32.mrf.mxu0
    %v1668 = vadd.f32 0.0, %v1667
    %v1669 = vpop.f32.mrf.mxu0
    %v1670 = vpop.f32.mrf.mxu0
    %v1671 = vpop.f32.mrf.mxu0
    %1672 = vdwg.mxu0
    %1673 = vrot.lane.b32.xlu0 %v949, 80
    %v1674 = vpop.permute.xlu0 %1673
    %1675 = vrot.lane.b32.xlu0 %v949, 16
    %v1676 = vpop.permute.xlu0 %1675
    %v1678 = vsel %vm955, %v1674, 0
    %v1681 = vsel %vm955, %v1676, 0
    %1683 = vmatprep.subr.bf16.mxu0 0
    %1684 = vmatpush1.bf16.xpose.msra.mxu0 0
    %1685 = vmatprep.subr.bf16.mxu0 0
    %1686 = vmatpush1.bf16.xpose.msra.mxu0 0
    %1687 = vmatprep.subr.bf16.mxu0 0
    %1688 = vmatpush1.bf16.xpose.msra.mxu0 0
    %1689 = vmatprep.subr.bf16.mxu0 0
    %1690 = vmatpush1.bf16.xpose.msra.mxu0 0
    %1691 = vmatprep.subr.bf16.mxu0 0
    %1692 = vmatpush1.bf16.xpose.msra.mxu0 0
    %1693 = vmatprep.subr.bf16.mxu0 0
    %1694 = vmatpush1.bf16.xpose.msra.mxu0 0
    %1695 = vmatprep.subr.bf16.mxu0 0
    %1696 = vmatpush1.bf16.xpose.msra.mxu0 0
    %1697 = vmatprep.subr.bf16.mxu0 0
    %1698 = vmatpush1.bf16.xpose.msra.mxu0 %v1681
    %1699 = vmatprep.subr.bf16.mxu0 0
    %1700 = vmatpush2.bf16.xpose.msra.mxu0 0
    %1701 = vmatprep.subr.bf16.mxu0 0
    %1702 = vmatpush2.bf16.xpose.msra.mxu0 0
    %1703 = vmatprep.subr.bf16.mxu0 0
    %1704 = vmatpush2.bf16.xpose.msra.mxu0 0
    %1705 = vmatprep.subr.bf16.mxu0 0
    %1706 = vmatpush2.bf16.xpose.msra.mxu0 0
    %1707 = vmatprep.subr.bf16.mxu0 0
    %1708 = vmatpush2.bf16.xpose.msra.mxu0 0
    %1709 = vmatprep.subr.bf16.mxu0 0
    %1710 = vmatpush2.bf16.xpose.msra.mxu0 0
    %1711 = vmatprep.subr.bf16.mxu0 0
    %1712 = vmatpush2.bf16.xpose.msra.mxu0 0
    %1713 = vmatprep.subr.bf16.mxu0 0
    %1714 = vmatpush2.bf16.xpose.msra.mxu0 0
    %1715 = vmatprep.mubr.bf16.mxu0 0
    %1716 = vmatmul.mubr.bf16.gmra.mxu0 %v1678
    %v1717 = vpop.f32.mrf.mxu0
    %v1718 = vadd.f32 0.0, %v1717
    %v1719 = vpop.f32.mrf.mxu0
    %v1720 = vpop.f32.mrf.mxu0
    %v1721 = vpop.f32.mrf.mxu0
    %1722 = vdwg.mxu0
    %v1723 = vmul.f32 %v1668, 0.25
    %v1724 = vmul.f32 %v1718, 0.25
    %v1725 = vadd.f32 %v1723, %v601
    %v1726 = vadd.f32 %v1724, %v605
    %v1727 = vsel %vm1055, %v1725, -inf
    %1728 = vmax.xlane.f32.xlu0 %v1727
    %v1729 = vpop.xlane.xlu0 %1728
    %v1730 = vsel %vm1055, %v1726, -inf
    %1731 = vmax.xlane.f32.xlu0 %v1730
    %v1732 = vpop.xlane.xlu0 %1731
    %v1733 = vsub.f32 %v1725, %v1729
    %v1734 = vsub.f32 %v1726, %v1732
    %v1735 = vmul.f32 %v1733, 1.442695
    %v1736 = vpow.pop %v1735
    %v1737 = vmul.f32 %v1734, 1.442695
    %v1738 = vpow.pop %v1737
    %v1739 = vsel %vm1055, %v1736, 0.0
    %1740 = vadd.xlane.f32.xlu0 %v1739
    %v1741 = vpop.xlane.xlu0 %1740
    %v1742 = vsel %vm1055, %v1738, 0.0
    %1743 = vadd.xlane.f32.xlu0 %v1742
    %v1744 = vpop.xlane.xlu0 %1743
    %v1745 = vrcp.pop %v1741
    %v1746 = vrcp.pop %v1744
    %v1747 = vmul.f32 %v1736, %v1745
    %v1748 = vmul.f32 %v1738, %v1746
    %v1749 = vpack.c.bf16 %v1747, %v1747
    %v1750 = vpack.c.bf16 %v1748, %v1748
    %1751 = vrot.lane.b32.xlu0 %v950, 80
    %v1752 = vpop.permute.xlu0 %1751
    %v1754 = vsel %vm1055, %v1749, 0
    %v1757 = vsel %vm1083, %v1752, 0
    %1759 = vmatprep.subr.bf16.mxu0 0
    %1760 = vmatpush1.bf16.msra.mxu0 0
    %1761 = vmatprep.subr.bf16.mxu0 0
    %1762 = vmatpush1.bf16.msra.mxu0 0
    %1763 = vmatprep.subr.bf16.mxu0 0
    %1764 = vmatpush1.bf16.msra.mxu0 0
    %1765 = vmatprep.subr.bf16.mxu0 0
    %1766 = vmatpush1.bf16.msra.mxu0 0
    %1767 = vmatprep.subr.bf16.mxu0 0
    %1768 = vmatpush1.bf16.msra.mxu0 0
    %1769 = vmatprep.subr.bf16.mxu0 0
    %1770 = vmatpush1.bf16.msra.mxu0 0
    %1771 = vmatprep.subr.bf16.mxu0 0
    %1772 = vmatpush1.bf16.msra.mxu0 0
    %1773 = vmatprep.subr.bf16.mxu0 0
    %1774 = vmatpush1.bf16.msra.mxu0 %v1757
    %1775 = vmatprep.subr.bf16.mxu0 0
    %1776 = vmatpush2.bf16.msra.mxu0 0
    %1777 = vmatprep.subr.bf16.mxu0 0
    %1778 = vmatpush2.bf16.msra.mxu0 0
    %1779 = vmatprep.subr.bf16.mxu0 0
    %1780 = vmatpush2.bf16.msra.mxu0 0
    %1781 = vmatprep.subr.bf16.mxu0 0
    %1782 = vmatpush2.bf16.msra.mxu0 0
    %1783 = vmatprep.subr.bf16.mxu0 0
    %1784 = vmatpush2.bf16.msra.mxu0 0
    %1785 = vmatprep.subr.bf16.mxu0 0
    %1786 = vmatpush2.bf16.msra.mxu0 0
    %1787 = vmatprep.subr.bf16.mxu0 0
    %1788 = vmatpush2.bf16.msra.mxu0 0
    %1789 = vmatprep.subr.bf16.mxu0 0
    %1790 = vmatpush2.bf16.msra.mxu0 0
    %1791 = vmatprep.mubr.bf16.mxu0 0
    %1792 = vmatmul.mubr.bf16.gmra.mxu0 %v1754
    %v1793 = vpop.f32.mrf.mxu0
    %v1794 = vadd.f32 0.0, %v1793
    %v1795 = vpop.f32.mrf.mxu0
    %v1796 = vpop.f32.mrf.mxu0
    %v1797 = vpop.f32.mrf.mxu0
    %1798 = vdwg.mxu0
    %1799 = vrot.lane.b32.xlu0 %v951, 80
    %v1800 = vpop.permute.xlu0 %1799
    %v1802 = vsel %vm1055, %v1750, 0
    %v1805 = vsel %vm1083, %v1800, 0
    %1807 = vmatprep.subr.bf16.mxu0 0
    %1808 = vmatpush1.bf16.msra.mxu0 0
    %1809 = vmatprep.subr.bf16.mxu0 0
    %1810 = vmatpush1.bf16.msra.mxu0 0
    %1811 = vmatprep.subr.bf16.mxu0 0
    %1812 = vmatpush1.bf16.msra.mxu0 0
    %1813 = vmatprep.subr.bf16.mxu0 0
    %1814 = vmatpush1.bf16.msra.mxu0 0
    %1815 = vmatprep.subr.bf16.mxu0 0
    %1816 = vmatpush1.bf16.msra.mxu0 0
    %1817 = vmatprep.subr.bf16.mxu0 0
    %1818 = vmatpush1.bf16.msra.mxu0 0
    %1819 = vmatprep.subr.bf16.mxu0 0
    %1820 = vmatpush1.bf16.msra.mxu0 0
    %1821 = vmatprep.subr.bf16.mxu0 0
    %1822 = vmatpush1.bf16.msra.mxu0 %v1805
    %1823 = vmatprep.subr.bf16.mxu0 0
    %1824 = vmatpush2.bf16.msra.mxu0 0
    %1825 = vmatprep.subr.bf16.mxu0 0
    %1826 = vmatpush2.bf16.msra.mxu0 0
    %1827 = vmatprep.subr.bf16.mxu0 0
    %1828 = vmatpush2.bf16.msra.mxu0 0
    %1829 = vmatprep.subr.bf16.mxu0 0
    %1830 = vmatpush2.bf16.msra.mxu0 0
    %1831 = vmatprep.subr.bf16.mxu0 0
    %1832 = vmatpush2.bf16.msra.mxu0 0
    %1833 = vmatprep.subr.bf16.mxu0 0
    %1834 = vmatpush2.bf16.msra.mxu0 0
    %1835 = vmatprep.subr.bf16.mxu0 0
    %1836 = vmatpush2.bf16.msra.mxu0 0
    %1837 = vmatprep.subr.bf16.mxu0 0
    %1838 = vmatpush2.bf16.msra.mxu0 0
    %1839 = vmatprep.mubr.bf16.mxu0 0
    %1840 = vmatmul.mubr.bf16.gmra.mxu0 %v1802
    %v1841 = vpop.f32.mrf.mxu0
    %v1842 = vadd.f32 0.0, %v1841
    %v1843 = vpop.f32.mrf.mxu0
    %v1844 = vpop.f32.mrf.mxu0
    %v1845 = vpop.f32.mrf.mxu0
    %1846 = vdwg.mxu0
    %1849 = vrot.lane.b32.xlu0 %v1345, 16
    %v1850 = vpop.permute.xlu0 %1849
    %1851 = vrot.lane.b32.xlu0 %v1394, 16
    %v1852 = vpop.permute.xlu0 %1851
    %1857 = vrot.lane.b32.xlu0 %v1570, 32
    %v1858 = vpop.permute.xlu0 %1857
    %1859 = vrot.lane.b32.xlu0 %v1618, 32
    %v1860 = vpop.permute.xlu0 %1859
    %1865 = vrot.lane.b32.xlu0 %v1794, 48
    %v1866 = vpop.permute.xlu0 %1865
    %1867 = vrot.lane.b32.xlu0 %v1842, 48
    %v1868 = vpop.permute.xlu0 %1867
    %v1871 = vsel %vm955, %v1122, %v1850
    %v1872 = vsel %vm955, %v1168, %v1852
    %vm1873 = vcmask 261120
    %v1874 = vsel %vm1873, %v1871, %v1858
    %v1875 = vsel %vm1873, %v1872, %v1860
    %vm1876 = vcmask 392192
    %v1877 = vsel %vm1876, %v1874, %v1866
    %v1878 = vsel %vm1876, %v1875, %v1868
    %v1879 = vpack.c.bf16 %v1878, %v1877
    %v1881 = vlaneseq
    %v1882 = vshrl.u32 %v1881, 7
    %v1883 = vsub.s32 0, %v1882
    %v1884 = vrot.slane %v947, %v1883
    %v1894 = vunpack.c.l.b16 %v939
    %v1895 = vunpack.c.l.b16 %v940
    %v1896 = vunpack.c.l.b16 %v941
    %v1897 = vunpack.c.l.b16 %v942
    %v1898 = vunpack.c.l.b16 %v943
    %v1899 = vunpack.c.l.b16 %v944
    %v1900 = vunpack.c.l.b16 %v945
    %v1901 = vunpack.c.l.b16 %v946
    %v1902 = vpack.c.b16 %v1895, %v1894
    %v1903 = vpack.c.b16 %v1897, %v1896
    %v1904 = vpack.c.b16 %v1899, %v1898
    %v1905 = vpack.c.b16 %v1901, %v1900
    %v1911 = vsel %vm892, %v1879, 0
    %1913 = vmatprep.subr.bf16.mxu0 0
    %1914 = vmatpush1.bf16.msra.mxu0 0
    %1915 = vmatprep.subr.bf16.mxu0 0
    %1916 = vmatpush1.bf16.msra.mxu0 0
    %1917 = vmatprep.subr.bf16.mxu0 0
    %1918 = vmatpush1.bf16.msra.mxu0 0
    %1919 = vmatprep.subr.bf16.mxu0 0
    %1920 = vmatpush1.bf16.msra.mxu0 0
    %1921 = vmatprep.subr.bf16.mxu0 0
    %1922 = vmatpush1.bf16.msra.mxu0 %v1905
    %1923 = vmatprep.subr.bf16.mxu0 0
    %1924 = vmatpush1.bf16.msra.mxu0 %v1904
    %1925 = vmatprep.subr.bf16.mxu0 0
    %1926 = vmatpush1.bf16.msra.mxu0 %v1903
    %1927 = vmatprep.subr.bf16.mxu0 0
    %1928 = vmatpush1.bf16.msra.mxu0 %v1902
    %1929 = vmatprep.subr.bf16.mxu0 0
    %1930 = vmatpush2.bf16.msra.mxu0 0
    %1931 = vmatprep.subr.bf16.mxu0 0
    %1932 = vmatpush2.bf16.msra.mxu0 0
    %1933 = vmatprep.subr.bf16.mxu0 0
    %1934 = vmatpush2.bf16.msra.mxu0 0
    %1935 = vmatprep.subr.bf16.mxu0 0
    %1936 = vmatpush2.bf16.msra.mxu0 0
    %1937 = vmatprep.subr.bf16.mxu0 0
    %1938 = vmatpush2.bf16.msra.mxu0 0
    %1939 = vmatprep.subr.bf16.mxu0 0
    %1940 = vmatpush2.bf16.msra.mxu0 0
    %1941 = vmatprep.subr.bf16.mxu0 0
    %1942 = vmatpush2.bf16.msra.mxu0 0
    %1943 = vmatprep.subr.bf16.mxu0 0
    %1944 = vmatpush2.bf16.msra.mxu0 0
    %1945 = vmatprep.mubr.bf16.mxu0 0
    %1946 = vmatmul.mubr.bf16.gmra.mxu0 %v1911
    %v1947 = vpop.f32.mrf.mxu0
    %v1948 = vadd.f32 %v1884, %v1947
    %v1949 = vpop.f32.mrf.mxu0
    %v1950 = vpop.f32.mrf.mxu0
    %v1951 = vadd.f32 %v1884, %v1950
    %v1952 = vpop.f32.mrf.mxu0
    %1953 = vdwg.mxu0
    %v1954 = vadd.f32 %v725, %v1948
    %v1955 = vadd.f32 %v726, %v1951
    %v1956 = vld [vmem:[#allocation11] sm:$0x1]
    %v1957 = vld [vmem:[#allocation13] sm:$0x1]
    %v1958 = vsel %vm892, %v1954, 0.0
    %1959 = vadd.xlane.f32.xlu0 %v1958
    %v1960 = vpop.xlane.xlu0 %1959
    %v1961 = vsel %vm892, %v1955, 0.0
    %1962 = vadd.xlane.f32.xlu0 %v1961
    %v1963 = vpop.xlane.xlu0 %1962
    %v1964 = vrcp.pop 64.0
    %v1965 = vmul.f32 %v1960, %v1964
    %v1966 = vmul.f32 %v1963, %v1964
    %v1967 = vsub.f32 %v1954, %v1965
    %v1968 = vsub.f32 %v1955, %v1966
    %v1969 = vmul.f32 %v1967, %v1967
    %v1970 = vmul.f32 %v1968, %v1968
    %v1971 = vsel %vm892, %v1969, 0.0
    %1972 = vadd.xlane.f32.xlu0 %v1971
    %v1973 = vpop.xlane.xlu0 %1972
    %v1974 = vsel %vm892, %v1970, 0.0
    %1975 = vadd.xlane.f32.xlu0 %v1974
    %v1976 = vpop.xlane.xlu0 %1975
    %v1977 = vmul.f32 %v1973, %v1964
    %v1978 = vmul.f32 %v1976, %v1964
    %v1979 = vadd.f32 %v1977, 1e-05
    %v1980 = vadd.f32 %v1978, 1e-05
    %v1981 = vrsqrt.pop %v1979
    %v1982 = vrsqrt.pop %v1980
    %v1983 = vmul.f32 %v1967, %v1981
    %v1984 = vmul.f32 %v1968, %v1982
    %v1986 = vlaneseq
    %v1987 = vshrl.u32 %v1986, 7
    %v1988 = vsub.s32 0, %v1987
    %v1989 = vrot.slane %v1956, %v1988
    %v1991 = vmul.f32 %v1983, %v1989
    %v1992 = vmul.f32 %v1984, %v1989
    %v1994 = vlaneseq
    %v1995 = vshrl.u32 %v1994, 7
    %v1996 = vsub.s32 0, %v1995
    %v1997 = vrot.slane %v1957, %v1996
    %v1999 = vadd.f32 %v1991, %v1997
    %v2000 = vadd.f32 %v1992, %v1997
    %v2001 = vld [vmem:[#allocation14] sm:$0xf]
    %v2002 = vld [vmem:[#allocation14 + $0x4] sm:$0xf]
    %v2003 = vld [vmem:[#allocation14 + $0x8] sm:$0xf]
    %v2004 = vld [vmem:[#allocation14 + $0xc] sm:$0xf]
    %v2005 = vld [vmem:[#allocation14 + $0x10] sm:$0xf]
    %v2006 = vld [vmem:[#allocation14 + $0x14] sm:$0xf]
    %v2007 = vld [vmem:[#allocation14 + $0x18] sm:$0xf]
    %v2008 = vld [vmem:[#allocation14 + $0x1c] sm:$0xf]
    %v2009 = vld [vmem:[#allocation16] sm:$0x1]
    %v2010 = vpack.c.bf16 %v2000, %v1999
    %v2012 = vlaneseq
    %v2013 = vshrl.u32 %v2012, 7
    %v2014 = vsub.s32 0, %v2013
    %v2015 = vrot.slane %v2009, %v2014
    %v2025 = vunpack.c.l.b16 %v2001
    %v2026 = vunpack.c.l.b16 %v2002
    %v2027 = vunpack.c.l.b16 %v2003
    %v2028 = vunpack.c.l.b16 %v2004
    %v2029 = vunpack.c.l.b16 %v2005
    %v2030 = vunpack.c.l.b16 %v2006
    %v2031 = vunpack.c.l.b16 %v2007
    %v2032 = vunpack.c.l.b16 %v2008
    %v2033 = vpack.c.b16 %v2026, %v2025
    %v2034 = vpack.c.b16 %v2028, %v2027
    %v2035 = vpack.c.b16 %v2030, %v2029
    %v2036 = vpack.c.b16 %v2032, %v2031
    %v2042 = vsel %vm892, %v2010, 0
    %2044 = vmatprep.subr.bf16.mxu0 0
    %2045 = vmatpush1.bf16.msra.mxu0 0
    %2046 = vmatprep.subr.bf16.mxu0 0
    %2047 = vmatpush1.bf16.msra.mxu0 0
    %2048 = vmatprep.subr.bf16.mxu0 0
    %2049 = vmatpush1.bf16.msra.mxu0 0
    %2050 = vmatprep.subr.bf16.mxu0 0
    %2051 = vmatpush1.bf16.msra.mxu0 0
    %2052 = vmatprep.subr.bf16.mxu0 0
    %2053 = vmatpush1.bf16.msra.mxu0 %v2036
    %2054 = vmatprep.subr.bf16.mxu0 0
    %2055 = vmatpush1.bf16.msra.mxu0 %v2035
    %2056 = vmatprep.subr.bf16.mxu0 0
    %2057 = vmatpush1.bf16.msra.mxu0 %v2034
    %2058 = vmatprep.subr.bf16.mxu0 0
    %2059 = vmatpush1.bf16.msra.mxu0 %v2033
    %2060 = vmatprep.subr.bf16.mxu0 0
    %2061 = vmatpush2.bf16.msra.mxu0 0
    %2062 = vmatprep.subr.bf16.mxu0 0
    %2063 = vmatpush2.bf16.msra.mxu0 0
    %2064 = vmatprep.subr.bf16.mxu0 0
    %2065 = vmatpush2.bf16.msra.mxu0 0
    %2066 = vmatprep.subr.bf16.mxu0 0
    %2067 = vmatpush2.bf16.msra.mxu0 0
    %2068 = vmatprep.subr.bf16.mxu0 0
    %2069 = vmatpush2.bf16.msra.mxu0 0
    %2070 = vmatprep.subr.bf16.mxu0 0
    %2071 = vmatpush2.bf16.msra.mxu0 0
    %2072 = vmatprep.subr.bf16.mxu0 0
    %2073 = vmatpush2.bf16.msra.mxu0 0
    %2074 = vmatprep.subr.bf16.mxu0 0
    %2075 = vmatpush2.bf16.msra.mxu0 0
    %2076 = vmatprep.mubr.bf16.mxu0 0
    %2077 = vmatmul.mubr.bf16.gmra.mxu0 %v2042
    %v2078 = vpop.f32.mrf.mxu0
    %v2079 = vadd.f32 %v2015, %v2078
    %v2080 = vpop.f32.mrf.mxu0
    %v2081 = vpop.f32.mrf.mxu0
    %v2082 = vadd.f32 %v2015, %v2081
    %v2083 = vpop.f32.mrf.mxu0
    %2084 = vdwg.mxu0
    %v2085 = vmax.f32 %v2079, 0.0
    %v2086 = vmax.f32 %v2082, 0.0
    %v2087 = vld [vmem:[%s31] sm:$0xf]
    %v2088 = vld [vmem:[%s31 + $0x4] sm:$0xf]
    %v2089 = vld [vmem:[%s31 + $0x8] sm:$0xf]
    %v2090 = vld [vmem:[%s31 + $0xc] sm:$0xf]
    %v2091 = vld [vmem:[%s31 + $0x10] sm:$0xf]
    %v2092 = vld [vmem:[%s31 + $0x14] sm:$0xf]
    %v2093 = vld [vmem:[%s31 + $0x18] sm:$0xf]
    %v2094 = vld [vmem:[%s31 + $0x1c] sm:$0xf]
    %v2095 = vld [vmem:[%s31 + $0x20] sm:$0xf]
    %v2096 = vld [vmem:[%s31 + $0x24] sm:$0xf]
    %v2097 = vld [vmem:[%s31 + $0x28] sm:$0xf]
    %v2098 = vld [vmem:[%s31 + $0x2c] sm:$0xf]
    %v2099 = vld [vmem:[%s31 + $0x30] sm:$0xf]
    %v2100 = vld [vmem:[%s31 + $0x34] sm:$0xf]
    %v2101 = vld [vmem:[%s31 + $0x38] sm:$0xf]
    %v2102 = vld [vmem:[%s31 + $0x3c] sm:$0xf]
    %v2103 = vld [vmem:[#allocation17] sm:$0x1]
    %v2104 = vpack.c.bf16 %v2086, %v2085
    %v2106 = vlaneseq
    %v2107 = vshrl.u32 %v2106, 7
    %v2108 = vsub.s32 0, %v2107
    %v2109 = vrot.slane %v2103, %v2108
    %v2127 = vunpack.c.l.b16 %v2087
    %v2128 = vunpack.c.l.b16 %v2088
    %v2129 = vunpack.c.l.b16 %v2089
    %v2130 = vunpack.c.l.b16 %v2090
    %v2131 = vunpack.c.l.b16 %v2091
    %v2132 = vunpack.c.l.b16 %v2092
    %v2133 = vunpack.c.l.b16 %v2093
    %v2134 = vunpack.c.l.b16 %v2094
    %v2135 = vunpack.c.l.b16 %v2095
    %v2136 = vunpack.c.l.b16 %v2096
    %v2137 = vunpack.c.l.b16 %v2097
    %v2138 = vunpack.c.l.b16 %v2098
    %v2139 = vunpack.c.l.b16 %v2099
    %v2140 = vunpack.c.l.b16 %v2100
    %v2141 = vunpack.c.l.b16 %v2101
    %v2142 = vunpack.c.l.b16 %v2102
    %v2143 = vpack.c.b16 %v2128, %v2127
    %v2144 = vpack.c.b16 %v2130, %v2129
    %v2145 = vpack.c.b16 %v2132, %v2131
    %v2146 = vpack.c.b16 %v2134, %v2133
    %v2147 = vpack.c.b16 %v2136, %v2135
    %v2148 = vpack.c.b16 %v2138, %v2137
    %v2149 = vpack.c.b16 %v2140, %v2139
    %v2150 = vpack.c.b16 %v2142, %v2141
    %2159 = vmatprep.subr.bf16.mxu0 0
    %2160 = vmatpush1.bf16.msra.mxu0 %v2150
    %2161 = vmatprep.subr.bf16.mxu0 0
    %2162 = vmatpush1.bf16.msra.mxu0 %v2149
    %2163 = vmatprep.subr.bf16.mxu0 0
    %2164 = vmatpush1.bf16.msra.mxu0 %v2148
    %2165 = vmatprep.subr.bf16.mxu0 0
    %2166 = vmatpush1.bf16.msra.mxu0 %v2147
    %2167 = vmatprep.subr.bf16.mxu0 0
    %2168 = vmatpush1.bf16.msra.mxu0 %v2146
    %2169 = vmatprep.subr.bf16.mxu0 0
    %2170 = vmatpush1.bf16.msra.mxu0 %v2145
    %2171 = vmatprep.subr.bf16.mxu0 0
    %2172 = vmatpush1.bf16.msra.mxu0 %v2144
    %2173 = vmatprep.subr.bf16.mxu0 0
    %2174 = vmatpush1.bf16.msra.mxu0 %v2143
    %2175 = vmatprep.subr.bf16.mxu0 0
    %2176 = vmatpush2.bf16.msra.mxu0 0
    %2177 = vmatprep.subr.bf16.mxu0 0
    %2178 = vmatpush2.bf16.msra.mxu0 0
    %2179 = vmatprep.subr.bf16.mxu0 0
    %2180 = vmatpush2.bf16.msra.mxu0 0
    %2181 = vmatprep.subr.bf16.mxu0 0
    %2182 = vmatpush2.bf16.msra.mxu0 0
    %2183 = vmatprep.subr.bf16.mxu0 0
    %2184 = vmatpush2.bf16.msra.mxu0 0
    %2185 = vmatprep.subr.bf16.mxu0 0
    %2186 = vmatpush2.bf16.msra.mxu0 0
    %2187 = vmatprep.subr.bf16.mxu0 0
    %2188 = vmatpush2.bf16.msra.mxu0 0
    %2189 = vmatprep.subr.bf16.mxu0 0
    %2190 = vmatpush2.bf16.msra.mxu0 0
    %2191 = vmatprep.mubr.bf16.mxu0 0
    %2192 = vmatmul.mubr.bf16.gmra.mxu0 %v2104
    %v2193 = vpop.f32.mrf.mxu0
    %v2194 = vadd.f32 %v2109, %v2193
    %v2195 = vpop.f32.mrf.mxu0
    %v2196 = vpop.f32.mrf.mxu0
    %v2197 = vadd.f32 %v2109, %v2196
    %v2198 = vpop.f32.mrf.mxu0
    %2199 = vdwg.mxu0
    %v2200 = vadd.f32 %v1999, %v2194
    %v2201 = vadd.f32 %v2000, %v2197
    %v2202 = vld [vmem:[#allocation19] sm:$0x1]
    %v2203 = vld [vmem:[#allocation20] sm:$0x1]
    %v2204 = vsel %vm892, %v2200, 0.0
    %2205 = vadd.xlane.f32.xlu0 %v2204
    %v2206 = vpop.xlane.xlu0 %2205
    %v2207 = vsel %vm892, %v2201, 0.0
    %2208 = vadd.xlane.f32.xlu0 %v2207
    %v2209 = vpop.xlane.xlu0 %2208
    %v2210 = vmul.f32 %v2206, %v1964
    %v2211 = vmul.f32 %v2209, %v1964
    %v2212 = vsub.f32 %v2200, %v2210
    %v2213 = vsub.f32 %v2201, %v2211
    %v2214 = vmul.f32 %v2212, %v2212
    %v2215 = vmul.f32 %v2213, %v2213
    %v2216 = vsel %vm892, %v2214, 0.0
    %2217 = vadd.xlane.f32.xlu0 %v2216
    %v2218 = vpop.xlane.xlu0 %2217
    %v2219 = vsel %vm892, %v2215, 0.0
    %2220 = vadd.xlane.f32.xlu0 %v2219
    %v2221 = vpop.xlane.xlu0 %2220
    %v2222 = vmul.f32 %v2218, %v1964
    %v2223 = vmul.f32 %v2221, %v1964
    %v2224 = vadd.f32 %v2222, 1e-05
    %v2225 = vadd.f32 %v2223, 1e-05
    %v2226 = vrsqrt.pop %v2224
    %v2227 = vrsqrt.pop %v2225
    %v2228 = vmul.f32 %v2212, %v2226
    %v2229 = vmul.f32 %v2213, %v2227
    %v2231 = vlaneseq
    %v2232 = vshrl.u32 %v2231, 7
    %v2233 = vsub.s32 0, %v2232
    %v2234 = vrot.slane %v2202, %v2233
    %v2236 = vmul.f32 %v2228, %v2234
    %v2237 = vmul.f32 %v2229, %v2234
    %v2239 = vlaneseq
    %v2240 = vshrl.u32 %v2239, 7
    %v2241 = vsub.s32 0, %v2240
    %v2242 = vrot.slane %v2203, %v2241
    %v2244 = vadd.f32 %v2236, %v2242
    %v2245 = vadd.f32 %v2237, %v2242
    %s2246 = scalar_lea.vmem %s15, 64
    %v2247 = vld [vmem:[%s2246] sm:$0xff]
    %v2248 = vld [vmem:[%s2246 + $0x8] sm:$0xff]
    %v2249 = vld [vmem:[%s2246 + $0x10] sm:$0xff]
    %v2250 = vld [vmem:[%s2246 + $0x18] sm:$0xff]
    %v2251 = vld [vmem:[%s2246 + $0x20] sm:$0xff]
    %v2252 = vld [vmem:[%s2246 + $0x28] sm:$0xff]
    %v2253 = vld [vmem:[%s2246 + $0x30] sm:$0xff]
    %v2254 = vld [vmem:[%s2246 + $0x38] sm:$0xff]
    %s2255 = scalar_lea.vmem [#allocation7], 2
    %v2256 = vld [vmem:[%s2255] sm:$0x3]
    %v2257 = vpack.c.bf16 %v2245, %v2244
    %v2259 = vlaneseq
    %v2260 = vshrl.u32 %v2259, 7
    %v2261 = vsub.s32 0, %v2260
    %v2262 = vrot.slane %v2256, %v2261
    %v2263 = vlaneseq
    %v2264 = vshrl.u32 %v2263, 7
    %v2265 = vsub.s32 1, %v2264
    %v2266 = vrot.slane %v2256, %v2265
    %v2277 = vunpack.c.l.b16 %v2247
    %v2278 = vunpack.c.h.b16 %v2247
    %v2279 = vunpack.c.l.b16 %v2248
    %v2280 = vunpack.c.h.b16 %v2248
    %v2281 = vunpack.c.l.b16 %v2249
    %v2282 = vunpack.c.h.b16 %v2249
    %v2283 = vunpack.c.l.b16 %v2250
    %v2284 = vunpack.c.h.b16 %v2250
    %v2285 = vunpack.c.l.b16 %v2251
    %v2286 = vunpack.c.h.b16 %v2251
    %v2287 = vunpack.c.l.b16 %v2252
    %v2288 = vunpack.c.h.b16 %v2252
    %v2289 = vunpack.c.l.b16 %v2253
    %v2290 = vunpack.c.h.b16 %v2253
    %v2291 = vunpack.c.l.b16 %v2254
    %v2292 = vunpack.c.h.b16 %v2254
    %v2293 = vpack.c.b16 %v2279, %v2277
    %v2294 = vpack.c.b16 %v2280, %v2278
    %v2295 = vpack.c.b16 %v2283, %v2281
    %v2296 = vpack.c.b16 %v2284, %v2282
    %v2297 = vpack.c.b16 %v2287, %v2285
    %v2298 = vpack.c.b16 %v2288, %v2286
    %v2299 = vpack.c.b16 %v2291, %v2289
    %v2300 = vpack.c.b16 %v2292, %v2290
    %v2310 = vsel %vm892, %v2257, 0
    %2312 = vmatprep.subr.bf16.mxu0 0
    %2313 = vmatpush1.bf16.msra.mxu0 0
    %2314 = vmatprep.subr.bf16.mxu0 0
    %2315 = vmatpush1.bf16.msra.mxu0 0
    %2316 = vmatprep.subr.bf16.mxu0 0
    %2317 = vmatpush1.bf16.msra.mxu0 0
    %2318 = vmatprep.subr.bf16.mxu0 0
    %2319 = vmatpush1.bf16.msra.mxu0 0
    %2320 = vmatprep.subr.bf16.mxu0 %v2300
    %2321 = vmatpush1.bf16.msra.mxu0 %v2299
    %2322 = vmatprep.subr.bf16.mxu0 %v2298
    %2323 = vmatpush1.bf16.msra.mxu0 %v2297
    %2324 = vmatprep.subr.bf16.mxu0 %v2296
    %2325 = vmatpush1.bf16.msra.mxu0 %v2295
    %2326 = vmatprep.subr.bf16.mxu0 %v2294
    %2327 = vmatpush1.bf16.msra.mxu0 %v2293
    %2328 = vmatprep.subr.bf16.mxu0 0
    %2329 = vmatpush2.bf16.msra.mxu0 0
    %2330 = vmatprep.subr.bf16.mxu0 0
    %2331 = vmatpush2.bf16.msra.mxu0 0
    %2332 = vmatprep.subr.bf16.mxu0 0
    %2333 = vmatpush2.bf16.msra.mxu0 0
    %2334 = vmatprep.subr.bf16.mxu0 0
    %2335 = vmatpush2.bf16.msra.mxu0 0
    %2336 = vmatprep.subr.bf16.mxu0 0
    %2337 = vmatpush2.bf16.msra.mxu0 0
    %2338 = vmatprep.subr.bf16.mxu0 0
    %2339 = vmatpush2.bf16.msra.mxu0 0
    %2340 = vmatprep.subr.bf16.mxu0 0
    %2341 = vmatpush2.bf16.msra.mxu0 0
    %2342 = vmatprep.subr.bf16.mxu0 0
    %2343 = vmatpush2.bf16.msra.mxu0 0
    %2344 = vmatprep.mubr.bf16.mxu0 0
    %2345 = vmatmul.mubr.bf16.gmra.mxu0 %v2310
    %v2346 = vpop.f32.mrf.mxu0
    %v2347 = vadd.f32 %v2262, %v2346
    %v2348 = vpop.f32.mrf.mxu0
    %v2349 = vadd.f32 %v2266, %v2348
    %v2350 = vpop.f32.mrf.mxu0
    %v2351 = vadd.f32 %v2262, %v2350
    %v2352 = vpop.f32.mrf.mxu0
    %v2353 = vadd.f32 %v2266, %v2352
    %2354 = vdwg.mxu0
    %s2355 = scalar_lea.vmem [#allocation8], 32
    %v2356 = vld [vmem:[%s2355] sm:$0xf]
    %v2357 = vld [vmem:[%s2355 + $0x4] sm:$0xf]
    %v2358 = vld [vmem:[%s2355 + $0x8] sm:$0xf]
    %v2359 = vld [vmem:[%s2355 + $0xc] sm:$0xf]
    %v2360 = vld [vmem:[%s2355 + $0x10] sm:$0xf]
    %v2361 = vld [vmem:[%s2355 + $0x14] sm:$0xf]
    %v2362 = vld [vmem:[%s2355 + $0x18] sm:$0xf]
    %v2363 = vld [vmem:[%s2355 + $0x1c] sm:$0xf]
    %s2364 = scalar_lea.vmem [#allocation10], 1
    %v2365 = vld [vmem:[%s2364] sm:$0x1]
    %v2366 = vpack.c.bf16 %v2347, %v2347
    %v2367 = vpack.c.bf16 %v2351, %v2351
    %v2368 = vpack.c.bf16 %v2349, %v2349
    %v2369 = vpack.c.bf16 %v2353, %v2353
    %2371 = vrot.lane.b32.xlu0 %v2366, 64
    %v2372 = vpop.permute.xlu0 %2371
    %v2374 = vsel %vm955, %v2366, 0
    %v2377 = vsel %vm955, %v2372, 0
    %2379 = vmatprep.subr.bf16.mxu0 0
    %2380 = vmatpush1.bf16.xpose.msra.mxu0 0
    %2381 = vmatprep.subr.bf16.mxu0 0
    %2382 = vmatpush1.bf16.xpose.msra.mxu0 0
    %2383 = vmatprep.subr.bf16.mxu0 0
    %2384 = vmatpush1.bf16.xpose.msra.mxu0 0
    %2385 = vmatprep.subr.bf16.mxu0 0
    %2386 = vmatpush1.bf16.xpose.msra.mxu0 0
    %2387 = vmatprep.subr.bf16.mxu0 0
    %2388 = vmatpush1.bf16.xpose.msra.mxu0 0
    %2389 = vmatprep.subr.bf16.mxu0 0
    %2390 = vmatpush1.bf16.xpose.msra.mxu0 0
    %2391 = vmatprep.subr.bf16.mxu0 0
    %2392 = vmatpush1.bf16.xpose.msra.mxu0 0
    %2393 = vmatprep.subr.bf16.mxu0 0
    %2394 = vmatpush1.bf16.xpose.msra.mxu0 %v2377
    %2395 = vmatprep.subr.bf16.mxu0 0
    %2396 = vmatpush2.bf16.xpose.msra.mxu0 0
    %2397 = vmatprep.subr.bf16.mxu0 0
    %2398 = vmatpush2.bf16.xpose.msra.mxu0 0
    %2399 = vmatprep.subr.bf16.mxu0 0
    %2400 = vmatpush2.bf16.xpose.msra.mxu0 0
    %2401 = vmatprep.subr.bf16.mxu0 0
    %2402 = vmatpush2.bf16.xpose.msra.mxu0 0
    %2403 = vmatprep.subr.bf16.mxu0 0
    %2404 = vmatpush2.bf16.xpose.msra.mxu0 0
    %2405 = vmatprep.subr.bf16.mxu0 0
    %2406 = vmatpush2.bf16.xpose.msra.mxu0 0
    %2407 = vmatprep.subr.bf16.mxu0 0
    %2408 = vmatpush2.bf16.xpose.msra.mxu0 0
    %2409 = vmatprep.subr.bf16.mxu0 0
    %2410 = vmatpush2.bf16.xpose.msra.mxu0 0
    %2411 = vmatprep.mubr.bf16.mxu0 0
    %2412 = vmatmul.mubr.bf16.gmra.mxu0 %v2374
    %v2413 = vpop.f32.mrf.mxu0
    %v2414 = vadd.f32 0.0, %v2413
    %v2415 = vpop.f32.mrf.mxu0
    %v2416 = vpop.f32.mrf.mxu0
    %v2417 = vpop.f32.mrf.mxu0
    %2418 = vdwg.mxu0
    %2420 = vrot.lane.b32.xlu0 %v2367, 64
    %v2421 = vpop.permute.xlu0 %2420
    %v2423 = vsel %vm955, %v2367, 0
    %v2426 = vsel %vm955, %v2421, 0
    %2428 = vmatprep.subr.bf16.mxu0 0
    %2429 = vmatpush1.bf16.xpose.msra.mxu0 0
    %2430 = vmatprep.subr.bf16.mxu0 0
    %2431 = vmatpush1.bf16.xpose.msra.mxu0 0
    %2432 = vmatprep.subr.bf16.mxu0 0
    %2433 = vmatpush1.bf16.xpose.msra.mxu0 0
    %2434 = vmatprep.subr.bf16.mxu0 0
    %2435 = vmatpush1.bf16.xpose.msra.mxu0 0
    %2436 = vmatprep.subr.bf16.mxu0 0
    %2437 = vmatpush1.bf16.xpose.msra.mxu0 0
    %2438 = vmatprep.subr.bf16.mxu0 0
    %2439 = vmatpush1.bf16.xpose.msra.mxu0 0
    %2440 = vmatprep.subr.bf16.mxu0 0
    %2441 = vmatpush1.bf16.xpose.msra.mxu0 0
    %2442 = vmatprep.subr.bf16.mxu0 0
    %2443 = vmatpush1.bf16.xpose.msra.mxu0 %v2426
    %2444 = vmatprep.subr.bf16.mxu0 0
    %2445 = vmatpush2.bf16.xpose.msra.mxu0 0
    %2446 = vmatprep.subr.bf16.mxu0 0
    %2447 = vmatpush2.bf16.xpose.msra.mxu0 0
    %2448 = vmatprep.subr.bf16.mxu0 0
    %2449 = vmatpush2.bf16.xpose.msra.mxu0 0
    %2450 = vmatprep.subr.bf16.mxu0 0
    %2451 = vmatpush2.bf16.xpose.msra.mxu0 0
    %2452 = vmatprep.subr.bf16.mxu0 0
    %2453 = vmatpush2.bf16.xpose.msra.mxu0 0
    %2454 = vmatprep.subr.bf16.mxu0 0
    %2455 = vmatpush2.bf16.xpose.msra.mxu0 0
    %2456 = vmatprep.subr.bf16.mxu0 0
    %2457 = vmatpush2.bf16.xpose.msra.mxu0 0
    %2458 = vmatprep.subr.bf16.mxu0 0
    %2459 = vmatpush2.bf16.xpose.msra.mxu0 0
    %2460 = vmatprep.mubr.bf16.mxu0 0
    %2461 = vmatmul.mubr.bf16.gmra.mxu0 %v2423
    %v2462 = vpop.f32.mrf.mxu0
    %v2463 = vadd.f32 0.0, %v2462
    %v2464 = vpop.f32.mrf.mxu0
    %v2465 = vpop.f32.mrf.mxu0
    %v2466 = vpop.f32.mrf.mxu0
    %2467 = vdwg.mxu0
    %v2468 = vmul.f32 %v2414, 0.25
    %v2469 = vmul.f32 %v2463, 0.25
    %v2470 = vadd.f32 %v2468, %v601
    %v2471 = vadd.f32 %v2469, %v605
    %v2472 = vsel %vm1055, %v2470, -inf
    %2473 = vmax.xlane.f32.xlu0 %v2472
    %v2474 = vpop.xlane.xlu0 %2473
    %v2475 = vsel %vm1055, %v2471, -inf
    %2476 = vmax.xlane.f32.xlu0 %v2475
    %v2477 = vpop.xlane.xlu0 %2476
    %v2478 = vsub.f32 %v2470, %v2474
    %v2479 = vsub.f32 %v2471, %v2477
    %v2480 = vmul.f32 %v2478, 1.442695
    %v2481 = vpow.pop %v2480
    %v2482 = vmul.f32 %v2479, 1.442695
    %v2483 = vpow.pop %v2482
    %v2484 = vsel %vm1055, %v2481, 0.0
    %2485 = vadd.xlane.f32.xlu0 %v2484
    %v2486 = vpop.xlane.xlu0 %2485
    %v2487 = vsel %vm1055, %v2483, 0.0
    %2488 = vadd.xlane.f32.xlu0 %v2487
    %v2489 = vpop.xlane.xlu0 %2488
    %v2490 = vrcp.pop %v2486
    %v2491 = vrcp.pop %v2489
    %v2492 = vmul.f32 %v2481, %v2490
    %v2493 = vmul.f32 %v2483, %v2491
    %v2494 = vpack.c.bf16 %v2492, %v2492
    %v2495 = vpack.c.bf16 %v2493, %v2493
    %v2497 = vsel %vm1055, %v2494, 0
    %v2500 = vsel %vm1083, %v2368, 0
    %2502 = vmatprep.subr.bf16.mxu0 0
    %2503 = vmatpush1.bf16.msra.mxu0 0
    %2504 = vmatprep.subr.bf16.mxu0 0
    %2505 = vmatpush1.bf16.msra.mxu0 0
    %2506 = vmatprep.subr.bf16.mxu0 0
    %2507 = vmatpush1.bf16.msra.mxu0 0
    %2508 = vmatprep.subr.bf16.mxu0 0
    %2509 = vmatpush1.bf16.msra.mxu0 0
    %2510 = vmatprep.subr.bf16.mxu0 0
    %2511 = vmatpush1.bf16.msra.mxu0 0
    %2512 = vmatprep.subr.bf16.mxu0 0
    %2513 = vmatpush1.bf16.msra.mxu0 0
    %2514 = vmatprep.subr.bf16.mxu0 0
    %2515 = vmatpush1.bf16.msra.mxu0 0
    %2516 = vmatprep.subr.bf16.mxu0 0
    %2517 = vmatpush1.bf16.msra.mxu0 %v2500
    %2518 = vmatprep.subr.bf16.mxu0 0
    %2519 = vmatpush2.bf16.msra.mxu0 0
    %2520 = vmatprep.subr.bf16.mxu0 0
    %2521 = vmatpush2.bf16.msra.mxu0 0
    %2522 = vmatprep.subr.bf16.mxu0 0
    %2523 = vmatpush2.bf16.msra.mxu0 0
    %2524 = vmatprep.subr.bf16.mxu0 0
    %2525 = vmatpush2.bf16.msra.mxu0 0
    %2526 = vmatprep.subr.bf16.mxu0 0
    %2527 = vmatpush2.bf16.msra.mxu0 0
    %2528 = vmatprep.subr.bf16.mxu0 0
    %2529 = vmatpush2.bf16.msra.mxu0 0
    %2530 = vmatprep.subr.bf16.mxu0 0
    %2531 = vmatpush2.bf16.msra.mxu0 0
    %2532 = vmatprep.subr.bf16.mxu0 0
    %2533 = vmatpush2.bf16.msra.mxu0 0
    %2534 = vmatprep.mubr.bf16.mxu0 0
    %2535 = vmatmul.mubr.bf16.gmra.mxu0 %v2497
    %v2536 = vpop.f32.mrf.mxu0
    %v2537 = vadd.f32 0.0, %v2536
    %v2538 = vpop.f32.mrf.mxu0
    %v2539 = vpop.f32.mrf.mxu0
    %v2540 = vpop.f32.mrf.mxu0
    %2541 = vdwg.mxu0
    %v2543 = vsel %vm1055, %v2495, 0
    %v2546 = vsel %vm1083, %v2369, 0
    %2548 = vmatprep.subr.bf16.mxu0 0
    %2549 = vmatpush1.bf16.msra.mxu0 0
    %2550 = vmatprep.subr.bf16.mxu0 0
    %2551 = vmatpush1.bf16.msra.mxu0 0
    %2552 = vmatprep.subr.bf16.mxu0 0
    %2553 = vmatpush1.bf16.msra.mxu0 0
    %2554 = vmatprep.subr.bf16.mxu0 0
    %2555 = vmatpush1.bf16.msra.mxu0 0
    %2556 = vmatprep.subr.bf16.mxu0 0
    %2557 = vmatpush1.bf16.msra.mxu0 0
    %2558 = vmatprep.subr.bf16.mxu0 0
    %2559 = vmatpush1.bf16.msra.mxu0 0
    %2560 = vmatprep.subr.bf16.mxu0 0
    %2561 = vmatpush1.bf16.msra.mxu0 0
    %2562 = vmatprep.subr.bf16.mxu0 0
    %2563 = vmatpush1.bf16.msra.mxu0 %v2546
    %2564 = vmatprep.subr.bf16.mxu0 0
    %2565 = vmatpush2.bf16.msra.mxu0 0
    %2566 = vmatprep.subr.bf16.mxu0 0
    %2567 = vmatpush2.bf16.msra.mxu0 0
    %2568 = vmatprep.subr.bf16.mxu0 0
    %2569 = vmatpush2.bf16.msra.mxu0 0
    %2570 = vmatprep.subr.bf16.mxu0 0
    %2571 = vmatpush2.bf16.msra.mxu0 0
    %2572 = vmatprep.subr.bf16.mxu0 0
    %2573 = vmatpush2.bf16.msra.mxu0 0
    %2574 = vmatprep.subr.bf16.mxu0 0
    %2575 = vmatpush2.bf16.msra.mxu0 0
    %2576 = vmatprep.subr.bf16.mxu0 0
    %2577 = vmatpush2.bf16.msra.mxu0 0
    %2578 = vmatprep.subr.bf16.mxu0 0
    %2579 = vmatpush2.bf16.msra.mxu0 0
    %2580 = vmatprep.mubr.bf16.mxu0 0
    %2581 = vmatmul.mubr.bf16.gmra.mxu0 %v2543
    %v2582 = vpop.f32.mrf.mxu0
    %v2583 = vadd.f32 0.0, %v2582
    %v2584 = vpop.f32.mrf.mxu0
    %v2585 = vpop.f32.mrf.mxu0
    %v2586 = vpop.f32.mrf.mxu0
    %2587 = vdwg.mxu0
    %2588 = vrot.lane.b32.xlu0 %v2366, 112
    %v2589 = vpop.permute.xlu0 %2588
    %2590 = vrot.lane.b32.xlu0 %v2366, 48
    %v2591 = vpop.permute.xlu0 %2590
    %v2593 = vsel %vm955, %v2589, 0
    %v2596 = vsel %vm955, %v2591, 0
    %2598 = vmatprep.subr.bf16.mxu0 0
    %2599 = vmatpush1.bf16.xpose.msra.mxu0 0
    %2600 = vmatprep.subr.bf16.mxu0 0
    %2601 = vmatpush1.bf16.xpose.msra.mxu0 0
    %2602 = vmatprep.subr.bf16.mxu0 0
    %2603 = vmatpush1.bf16.xpose.msra.mxu0 0
    %2604 = vmatprep.subr.bf16.mxu0 0
    %2605 = vmatpush1.bf16.xpose.msra.mxu0 0
    %2606 = vmatprep.subr.bf16.mxu0 0
    %2607 = vmatpush1.bf16.xpose.msra.mxu0 0
    %2608 = vmatprep.subr.bf16.mxu0 0
    %2609 = vmatpush1.bf16.xpose.msra.mxu0 0
    %2610 = vmatprep.subr.bf16.mxu0 0
    %2611 = vmatpush1.bf16.xpose.msra.mxu0 0
    %2612 = vmatprep.subr.bf16.mxu0 0
    %2613 = vmatpush1.bf16.xpose.msra.mxu0 %v2596
    %2614 = vmatprep.subr.bf16.mxu0 0
    %2615 = vmatpush2.bf16.xpose.msra.mxu0 0
    %2616 = vmatprep.subr.bf16.mxu0 0
    %2617 = vmatpush2.bf16.xpose.msra.mxu0 0
    %2618 = vmatprep.subr.bf16.mxu0 0
    %2619 = vmatpush2.bf16.xpose.msra.mxu0 0
    %2620 = vmatprep.subr.bf16.mxu0 0
    %2621 = vmatpush2.bf16.xpose.msra.mxu0 0
    %2622 = vmatprep.subr.bf16.mxu0 0
    %2623 = vmatpush2.bf16.xpose.msra.mxu0 0
    %2624 = vmatprep.subr.bf16.mxu0 0
    %2625 = vmatpush2.bf16.xpose.msra.mxu0 0
    %2626 = vmatprep.subr.bf16.mxu0 0
    %2627 = vmatpush2.bf16.xpose.msra.mxu0 0
    %2628 = vmatprep.subr.bf16.mxu0 0
    %2629 = vmatpush2.bf16.xpose.msra.mxu0 0
    %2630 = vmatprep.mubr.bf16.mxu0 0
    %2631 = vmatmul.mubr.bf16.gmra.mxu0 %v2593
    %v2632 = vpop.f32.mrf.mxu0
    %v2633 = vadd.f32 0.0, %v2632
    %v2634 = vpop.f32.mrf.mxu0
    %v2635 = vpop.f32.mrf.mxu0
    %v2636 = vpop.f32.mrf.mxu0
    %2637 = vdwg.mxu0
    %2638 = vrot.lane.b32.xlu0 %v2367, 112
    %v2639 = vpop.permute.xlu0 %2638
    %2640 = vrot.lane.b32.xlu0 %v2367, 48
    %v2641 = vpop.permute.xlu0 %2640
    %v2643 = vsel %vm955, %v2639, 0
    %v2646 = vsel %vm955, %v2641, 0
    %2648 = vmatprep.subr.bf16.mxu0 0
    %2649 = vmatpush1.bf16.xpose.msra.mxu0 0
    %2650 = vmatprep.subr.bf16.mxu0 0
    %2651 = vmatpush1.bf16.xpose.msra.mxu0 0
    %2652 = vmatprep.subr.bf16.mxu0 0
    %2653 = vmatpush1.bf16.xpose.msra.mxu0 0
    %2654 = vmatprep.subr.bf16.mxu0 0
    %2655 = vmatpush1.bf16.xpose.msra.mxu0 0
    %2656 = vmatprep.subr.bf16.mxu0 0
    %2657 = vmatpush1.bf16.xpose.msra.mxu0 0
    %2658 = vmatprep.subr.bf16.mxu0 0
    %2659 = vmatpush1.bf16.xpose.msra.mxu0 0
    %2660 = vmatprep.subr.bf16.mxu0 0
    %2661 = vmatpush1.bf16.xpose.msra.mxu0 0
    %2662 = vmatprep.subr.bf16.mxu0 0
    %2663 = vmatpush1.bf16.xpose.msra.mxu0 %v2646
    %2664 = vmatprep.subr.bf16.mxu0 0
    %2665 = vmatpush2.bf16.xpose.msra.mxu0 0
    %2666 = vmatprep.subr.bf16.mxu0 0
    %2667 = vmatpush2.bf16.xpose.msra.mxu0 0
    %2668 = vmatprep.subr.bf16.mxu0 0
    %2669 = vmatpush2.bf16.xpose.msra.mxu0 0
    %2670 = vmatprep.subr.bf16.mxu0 0
    %2671 = vmatpush2.bf16.xpose.msra.mxu0 0
    %2672 = vmatprep.subr.bf16.mxu0 0
    %2673 = vmatpush2.bf16.xpose.msra.mxu0 0
    %2674 = vmatprep.subr.bf16.mxu0 0
    %2675 = vmatpush2.bf16.xpose.msra.mxu0 0
    %2676 = vmatprep.subr.bf16.mxu0 0
    %2677 = vmatpush2.bf16.xpose.msra.mxu0 0
    %2678 = vmatprep.subr.bf16.mxu0 0
    %2679 = vmatpush2.bf16.xpose.msra.mxu0 0
    %2680 = vmatprep.mubr.bf16.mxu0 0
    %2681 = vmatmul.mubr.bf16.gmra.mxu0 %v2643
    %v2682 = vpop.f32.mrf.mxu0
    %v2683 = vadd.f32 0.0, %v2682
    %v2684 = vpop.f32.mrf.mxu0
    %v2685 = vpop.f32.mrf.mxu0
    %v2686 = vpop.f32.mrf.mxu0
    %2687 = vdwg.mxu0
    %v2688 = vmul.f32 %v2633, 0.25
    %v2689 = vmul.f32 %v2683, 0.25
    %v2690 = vadd.f32 %v2688, %v601
    %v2691 = vadd.f32 %v2689, %v605
    %v2692 = vsel %vm1055, %v2690, -inf
    %2693 = vmax.xlane.f32.xlu0 %v2692
    %v2694 = vpop.xlane.xlu0 %2693
    %v2695 = vsel %vm1055, %v2691, -inf
    %2696 = vmax.xlane.f32.xlu0 %v2695
    %v2697 = vpop.xlane.xlu0 %2696
    %v2698 = vsub.f32 %v2690, %v2694
    %v2699 = vsub.f32 %v2691, %v2697
    %v2700 = vmul.f32 %v2698, 1.442695
    %v2701 = vpow.pop %v2700
    %v2702 = vmul.f32 %v2699, 1.442695
    %v2703 = vpow.pop %v2702
    %v2704 = vsel %vm1055, %v2701, 0.0
    %2705 = vadd.xlane.f32.xlu0 %v2704
    %v2706 = vpop.xlane.xlu0 %2705
    %v2707 = vsel %vm1055, %v2703, 0.0
    %2708 = vadd.xlane.f32.xlu0 %v2707
    %v2709 = vpop.xlane.xlu0 %2708
    %v2710 = vrcp.pop %v2706
    %v2711 = vrcp.pop %v2709
    %v2712 = vmul.f32 %v2701, %v2710
    %v2713 = vmul.f32 %v2703, %v2711
    %v2714 = vpack.c.bf16 %v2712, %v2712
    %v2715 = vpack.c.bf16 %v2713, %v2713
    %2717 = vrot.lane.b32.xlu0 %v2368, 112
    %v2718 = vpop.permute.xlu0 %2717
    %v2720 = vsel %vm1055, %v2714, 0
    %v2723 = vsel %vm1083, %v2718, 0
    %2725 = vmatprep.subr.bf16.mxu0 0
    %2726 = vmatpush1.bf16.msra.mxu0 0
    %2727 = vmatprep.subr.bf16.mxu0 0
    %2728 = vmatpush1.bf16.msra.mxu0 0
    %2729 = vmatprep.subr.bf16.mxu0 0
    %2730 = vmatpush1.bf16.msra.mxu0 0
    %2731 = vmatprep.subr.bf16.mxu0 0
    %2732 = vmatpush1.bf16.msra.mxu0 0
    %2733 = vmatprep.subr.bf16.mxu0 0
    %2734 = vmatpush1.bf16.msra.mxu0 0
    %2735 = vmatprep.subr.bf16.mxu0 0
    %2736 = vmatpush1.bf16.msra.mxu0 0
    %2737 = vmatprep.subr.bf16.mxu0 0
    %2738 = vmatpush1.bf16.msra.mxu0 0
    %2739 = vmatprep.subr.bf16.mxu0 0
    %2740 = vmatpush1.bf16.msra.mxu0 %v2723
    %2741 = vmatprep.subr.bf16.mxu0 0
    %2742 = vmatpush2.bf16.msra.mxu0 0
    %2743 = vmatprep.subr.bf16.mxu0 0
    %2744 = vmatpush2.bf16.msra.mxu0 0
    %2745 = vmatprep.subr.bf16.mxu0 0
    %2746 = vmatpush2.bf16.msra.mxu0 0
    %2747 = vmatprep.subr.bf16.mxu0 0
    %2748 = vmatpush2.bf16.msra.mxu0 0
    %2749 = vmatprep.subr.bf16.mxu0 0
    %2750 = vmatpush2.bf16.msra.mxu0 0
    %2751 = vmatprep.subr.bf16.mxu0 0
    %2752 = vmatpush2.bf16.msra.mxu0 0
    %2753 = vmatprep.subr.bf16.mxu0 0
    %2754 = vmatpush2.bf16.msra.mxu0 0
    %2755 = vmatprep.subr.bf16.mxu0 0
    %2756 = vmatpush2.bf16.msra.mxu0 0
    %2757 = vmatprep.mubr.bf16.mxu0 0
    %2758 = vmatmul.mubr.bf16.gmra.mxu0 %v2720
    %v2759 = vpop.f32.mrf.mxu0
    %v2760 = vadd.f32 0.0, %v2759
    %v2761 = vpop.f32.mrf.mxu0
    %v2762 = vpop.f32.mrf.mxu0
    %v2763 = vpop.f32.mrf.mxu0
    %2764 = vdwg.mxu0
    %2766 = vrot.lane.b32.xlu0 %v2369, 112
    %v2767 = vpop.permute.xlu0 %2766
    %v2769 = vsel %vm1055, %v2715, 0
    %v2772 = vsel %vm1083, %v2767, 0
    %2774 = vmatprep.subr.bf16.mxu0 0
    %2775 = vmatpush1.bf16.msra.mxu0 0
    %2776 = vmatprep.subr.bf16.mxu0 0
    %2777 = vmatpush1.bf16.msra.mxu0 0
    %2778 = vmatprep.subr.bf16.mxu0 0
    %2779 = vmatpush1.bf16.msra.mxu0 0
    %2780 = vmatprep.subr.bf16.mxu0 0
    %2781 = vmatpush1.bf16.msra.mxu0 0
    %2782 = vmatprep.subr.bf16.mxu0 0
    %2783 = vmatpush1.bf16.msra.mxu0 0
    %2784 = vmatprep.subr.bf16.mxu0 0
    %2785 = vmatpush1.bf16.msra.mxu0 0
    %2786 = vmatprep.subr.bf16.mxu0 0
    %2787 = vmatpush1.bf16.msra.mxu0 0
    %2788 = vmatprep.subr.bf16.mxu0 0
    %2789 = vmatpush1.bf16.msra.mxu0 %v2772
    %2790 = vmatprep.subr.bf16.mxu0 0
    %2791 = vmatpush2.bf16.msra.mxu0 0
    %2792 = vmatprep.subr.bf16.mxu0 0
    %2793 = vmatpush2.bf16.msra.mxu0 0
    %2794 = vmatprep.subr.bf16.mxu0 0
    %2795 = vmatpush2.bf16.msra.mxu0 0
    %2796 = vmatprep.subr.bf16.mxu0 0
    %2797 = vmatpush2.bf16.msra.mxu0 0
    %2798 = vmatprep.subr.bf16.mxu0 0
    %2799 = vmatpush2.bf16.msra.mxu0 0
    %2800 = vmatprep.subr.bf16.mxu0 0
    %2801 = vmatpush2.bf16.msra.mxu0 0
    %2802 = vmatprep.subr.bf16.mxu0 0
    %2803 = vmatpush2.bf16.msra.mxu0 0
    %2804 = vmatprep.subr.bf16.mxu0 0
    %2805 = vmatpush2.bf16.msra.mxu0 0
    %2806 = vmatprep.mubr.bf16.mxu0 0
    %2807 = vmatmul.mubr.bf16.gmra.mxu0 %v2769
    %v2808 = vpop.f32.mrf.mxu0
    %v2809 = vadd.f32 0.0, %v2808
    %v2810 = vpop.f32.mrf.mxu0
    %v2811 = vpop.f32.mrf.mxu0
    %v2812 = vpop.f32.mrf.mxu0
    %2813 = vdwg.mxu0
    %2814 = vrot.lane.b32.xlu0 %v2366, 96
    %v2815 = vpop.permute.xlu0 %2814
    %2816 = vrot.lane.b32.xlu0 %v2366, 32
    %v2817 = vpop.permute.xlu0 %2816
    %v2819 = vsel %vm955, %v2815, 0
    %v2822 = vsel %vm955, %v2817, 0
    %2824 = vmatprep.subr.bf16.mxu0 0
    %2825 = vmatpush1.bf16.xpose.msra.mxu0 0
    %2826 = vmatprep.subr.bf16.mxu0 0
    %2827 = vmatpush1.bf16.xpose.msra.mxu0 0
    %2828 = vmatprep.subr.bf16.mxu0 0
    %2829 = vmatpush1.bf16.xpose.msra.mxu0 0
    %2830 = vmatprep.subr.bf16.mxu0 0
    %2831 = vmatpush1.bf16.xpose.msra.mxu0 0
    %2832 = vmatprep.subr.bf16.mxu0 0
    %2833 = vmatpush1.bf16.xpose.msra.mxu0 0
    %2834 = vmatprep.subr.bf16.mxu0 0
    %2835 = vmatpush1.bf16.xpose.msra.mxu0 0
    %2836 = vmatprep.subr.bf16.mxu0 0
    %2837 = vmatpush1.bf16.xpose.msra.mxu0 0
    %2838 = vmatprep.subr.bf16.mxu0 0
    %2839 = vmatpush1.bf16.xpose.msra.mxu0 %v2822
    %2840 = vmatprep.subr.bf16.mxu0 0
    %2841 = vmatpush2.bf16.xpose.msra.mxu0 0
    %2842 = vmatprep.subr.bf16.mxu0 0
    %2843 = vmatpush2.bf16.xpose.msra.mxu0 0
    %2844 = vmatprep.subr.bf16.mxu0 0
    %2845 = vmatpush2.bf16.xpose.msra.mxu0 0
    %2846 = vmatprep.subr.bf16.mxu0 0
    %2847 = vmatpush2.bf16.xpose.msra.mxu0 0
    %2848 = vmatprep.subr.bf16.mxu0 0
    %2849 = vmatpush2.bf16.xpose.msra.mxu0 0
    %2850 = vmatprep.subr.bf16.mxu0 0
    %2851 = vmatpush2.bf16.xpose.msra.mxu0 0
    %2852 = vmatprep.subr.bf16.mxu0 0
    %2853 = vmatpush2.bf16.xpose.msra.mxu0 0
    %2854 = vmatprep.subr.bf16.mxu0 0
    %2855 = vmatpush2.bf16.xpose.msra.mxu0 0
    %2856 = vmatprep.mubr.bf16.mxu0 0
    %2857 = vmatmul.mubr.bf16.gmra.mxu0 %v2819
    %v2858 = vpop.f32.mrf.mxu0
    %v2859 = vadd.f32 0.0, %v2858
    %v2860 = vpop.f32.mrf.mxu0
    %v2861 = vpop.f32.mrf.mxu0
    %v2862 = vpop.f32.mrf.mxu0
    %2863 = vdwg.mxu0
    %2864 = vrot.lane.b32.xlu0 %v2367, 96
    %v2865 = vpop.permute.xlu0 %2864
    %2866 = vrot.lane.b32.xlu0 %v2367, 32
    %v2867 = vpop.permute.xlu0 %2866
    %v2869 = vsel %vm955, %v2865, 0
    %v2872 = vsel %vm955, %v2867, 0
    %2874 = vmatprep.subr.bf16.mxu0 0
    %2875 = vmatpush1.bf16.xpose.msra.mxu0 0
    %2876 = vmatprep.subr.bf16.mxu0 0
    %2877 = vmatpush1.bf16.xpose.msra.mxu0 0
    %2878 = vmatprep.subr.bf16.mxu0 0
    %2879 = vmatpush1.bf16.xpose.msra.mxu0 0
    %2880 = vmatprep.subr.bf16.mxu0 0
    %2881 = vmatpush1.bf16.xpose.msra.mxu0 0
    %2882 = vmatprep.subr.bf16.mxu0 0
    %2883 = vmatpush1.bf16.xpose.msra.mxu0 0
    %2884 = vmatprep.subr.bf16.mxu0 0
    %2885 = vmatpush1.bf16.xpose.msra.mxu0 0
    %2886 = vmatprep.subr.bf16.mxu0 0
    %2887 = vmatpush1.bf16.xpose.msra.mxu0 0
    %2888 = vmatprep.subr.bf16.mxu0 0
    %2889 = vmatpush1.bf16.xpose.msra.mxu0 %v2872
    %2890 = vmatprep.subr.bf16.mxu0 0
    %2891 = vmatpush2.bf16.xpose.msra.mxu0 0
    %2892 = vmatprep.subr.bf16.mxu0 0
    %2893 = vmatpush2.bf16.xpose.msra.mxu0 0
    %2894 = vmatprep.subr.bf16.mxu0 0
    %2895 = vmatpush2.bf16.xpose.msra.mxu0 0
    %2896 = vmatprep.subr.bf16.mxu0 0
    %2897 = vmatpush2.bf16.xpose.msra.mxu0 0
    %2898 = vmatprep.subr.bf16.mxu0 0
    %2899 = vmatpush2.bf16.xpose.msra.mxu0 0
    %2900 = vmatprep.subr.bf16.mxu0 0
    %2901 = vmatpush2.bf16.xpose.msra.mxu0 0
    %2902 = vmatprep.subr.bf16.mxu0 0
    %2903 = vmatpush2.bf16.xpose.msra.mxu0 0
    %2904 = vmatprep.subr.bf16.mxu0 0
    %2905 = vmatpush2.bf16.xpose.msra.mxu0 0
    %2906 = vmatprep.mubr.bf16.mxu0 0
    %2907 = vmatmul.mubr.bf16.gmra.mxu0 %v2869
    %v2908 = vpop.f32.mrf.mxu0
    %v2909 = vadd.f32 0.0, %v2908
    %v2910 = vpop.f32.mrf.mxu0
    %v2911 = vpop.f32.mrf.mxu0
    %v2912 = vpop.f32.mrf.mxu0
    %2913 = vdwg.mxu0
    %v2914 = vmul.f32 %v2859, 0.25
    %v2915 = vmul.f32 %v2909, 0.25
    %v2916 = vadd.f32 %v2914, %v601
    %v2917 = vadd.f32 %v2915, %v605
    %v2918 = vsel %vm1055, %v2916, -inf
    %2919 = vmax.xlane.f32.xlu0 %v2918
    %v2920 = vpop.xlane.xlu0 %2919
    %v2921 = vsel %vm1055, %v2917, -inf
    %2922 = vmax.xlane.f32.xlu0 %v2921
    %v2923 = vpop.xlane.xlu0 %2922
    %v2924 = vsub.f32 %v2916, %v2920
    %v2925 = vsub.f32 %v2917, %v2923
    %v2926 = vmul.f32 %v2924, 1.442695
    %v2927 = vpow.pop %v2926
    %v2928 = vmul.f32 %v2925, 1.442695
    %v2929 = vpow.pop %v2928
    %v2930 = vsel %vm1055, %v2927, 0.0
    %2931 = vadd.xlane.f32.xlu0 %v2930
    %v2932 = vpop.xlane.xlu0 %2931
    %v2933 = vsel %vm1055, %v2929, 0.0
    %2934 = vadd.xlane.f32.xlu0 %v2933
    %v2935 = vpop.xlane.xlu0 %2934
    %v2936 = vrcp.pop %v2932
    %v2937 = vrcp.pop %v2935
    %v2938 = vmul.f32 %v2927, %v2936
    %v2939 = vmul.f32 %v2929, %v2937
    %v2940 = vpack.c.bf16 %v2938, %v2938
    %v2941 = vpack.c.bf16 %v2939, %v2939
    %2942 = vrot.lane.b32.xlu0 %v2368, 96
    %v2943 = vpop.permute.xlu0 %2942
    %v2945 = vsel %vm1055, %v2940, 0
    %v2948 = vsel %vm1083, %v2943, 0
    %2950 = vmatprep.subr.bf16.mxu0 0
    %2951 = vmatpush1.bf16.msra.mxu0 0
    %2952 = vmatprep.subr.bf16.mxu0 0
    %2953 = vmatpush1.bf16.msra.mxu0 0
    %2954 = vmatprep.subr.bf16.mxu0 0
    %2955 = vmatpush1.bf16.msra.mxu0 0
    %2956 = vmatprep.subr.bf16.mxu0 0
    %2957 = vmatpush1.bf16.msra.mxu0 0
    %2958 = vmatprep.subr.bf16.mxu0 0
    %2959 = vmatpush1.bf16.msra.mxu0 0
    %2960 = vmatprep.subr.bf16.mxu0 0
    %2961 = vmatpush1.bf16.msra.mxu0 0
    %2962 = vmatprep.subr.bf16.mxu0 0
    %2963 = vmatpush1.bf16.msra.mxu0 0
    %2964 = vmatprep.subr.bf16.mxu0 0
    %2965 = vmatpush1.bf16.msra.mxu0 %v2948
    %2966 = vmatprep.subr.bf16.mxu0 0
    %2967 = vmatpush2.bf16.msra.mxu0 0
    %2968 = vmatprep.subr.bf16.mxu0 0
    %2969 = vmatpush2.bf16.msra.mxu0 0
    %2970 = vmatprep.subr.bf16.mxu0 0
    %2971 = vmatpush2.bf16.msra.mxu0 0
    %2972 = vmatprep.subr.bf16.mxu0 0
    %2973 = vmatpush2.bf16.msra.mxu0 0
    %2974 = vmatprep.subr.bf16.mxu0 0
    %2975 = vmatpush2.bf16.msra.mxu0 0
    %2976 = vmatprep.subr.bf16.mxu0 0
    %2977 = vmatpush2.bf16.msra.mxu0 0
    %2978 = vmatprep.subr.bf16.mxu0 0
    %2979 = vmatpush2.bf16.msra.mxu0 0
    %2980 = vmatprep.subr.bf16.mxu0 0
    %2981 = vmatpush2.bf16.msra.mxu0 0
    %2982 = vmatprep.mubr.bf16.mxu0 0
    %2983 = vmatmul.mubr.bf16.gmra.mxu0 %v2945
    %v2984 = vpop.f32.mrf.mxu0
    %v2985 = vadd.f32 0.0, %v2984
    %v2986 = vpop.f32.mrf.mxu0
    %v2987 = vpop.f32.mrf.mxu0
    %v2988 = vpop.f32.mrf.mxu0
    %2989 = vdwg.mxu0
    %2990 = vrot.lane.b32.xlu0 %v2369, 96
    %v2991 = vpop.permute.xlu0 %2990
    %v2993 = vsel %vm1055, %v2941, 0
    %v2996 = vsel %vm1083, %v2991, 0
    %2998 = vmatprep.subr.bf16.mxu0 0
    %2999 = vmatpush1.bf16.msra.mxu0 0
    %3000 = vmatprep.subr.bf16.mxu0 0
    %3001 = vmatpush1.bf16.msra.mxu0 0
    %3002 = vmatprep.subr.bf16.mxu0 0
    %3003 = vmatpush1.bf16.msra.mxu0 0
    %3004 = vmatprep.subr.bf16.mxu0 0
    %3005 = vmatpush1.bf16.msra.mxu0 0
    %3006 = vmatprep.subr.bf16.mxu0 0
    %3007 = vmatpush1.bf16.msra.mxu0 0
    %3008 = vmatprep.subr.bf16.mxu0 0
    %3009 = vmatpush1.bf16.msra.mxu0 0
    %3010 = vmatprep.subr.bf16.mxu0 0
    %3011 = vmatpush1.bf16.msra.mxu0 0
    %3012 = vmatprep.subr.bf16.mxu0 0
    %3013 = vmatpush1.bf16.msra.mxu0 %v2996
    %3014 = vmatprep.subr.bf16.mxu0 0
    %3015 = vmatpush2.bf16.msra.mxu0 0
    %3016 = vmatprep.subr.bf16.mxu0 0
    %3017 = vmatpush2.bf16.msra.mxu0 0
    %3018 = vmatprep.subr.bf16.mxu0 0
    %3019 = vmatpush2.bf16.msra.mxu0 0
    %3020 = vmatprep.subr.bf16.mxu0 0
    %3021 = vmatpush2.bf16.msra.mxu0 0
    %3022 = vmatprep.subr.bf16.mxu0 0
    %3023 = vmatpush2.bf16.msra.mxu0 0
    %3024 = vmatprep.subr.bf16.mxu0 0
    %3025 = vmatpush2.bf16.msra.mxu0 0
    %3026 = vmatprep.subr.bf16.mxu0 0
    %3027 = vmatpush2.bf16.msra.mxu0 0
    %3028 = vmatprep.subr.bf16.mxu0 0
    %3029 = vmatpush2.bf16.msra.mxu0 0
    %3030 = vmatprep.mubr.bf16.mxu0 0
    %3031 = vmatmul.mubr.bf16.gmra.mxu0 %v2993
    %v3032 = vpop.f32.mrf.mxu0
    %v3033 = vadd.f32 0.0, %v3032
    %v3034 = vpop.f32.mrf.mxu0
    %v3035 = vpop.f32.mrf.mxu0
    %v3036 = vpop.f32.mrf.mxu0
    %3037 = vdwg.mxu0
    %3038 = vrot.lane.b32.xlu0 %v2366, 80
    %v3039 = vpop.permute.xlu0 %3038
    %3040 = vrot.lane.b32.xlu0 %v2366, 16
    %v3041 = vpop.permute.xlu0 %3040
    %v3043 = vsel %vm955, %v3039, 0
    %v3046 = vsel %vm955, %v3041, 0
    %3048 = vmatprep.subr.bf16.mxu0 0
    %3049 = vmatpush1.bf16.xpose.msra.mxu0 0
    %3050 = vmatprep.subr.bf16.mxu0 0
    %3051 = vmatpush1.bf16.xpose.msra.mxu0 0
    %3052 = vmatprep.subr.bf16.mxu0 0
    %3053 = vmatpush1.bf16.xpose.msra.mxu0 0
    %3054 = vmatprep.subr.bf16.mxu0 0
    %3055 = vmatpush1.bf16.xpose.msra.mxu0 0
    %3056 = vmatprep.subr.bf16.mxu0 0
    %3057 = vmatpush1.bf16.xpose.msra.mxu0 0
    %3058 = vmatprep.subr.bf16.mxu0 0
    %3059 = vmatpush1.bf16.xpose.msra.mxu0 0
    %3060 = vmatprep.subr.bf16.mxu0 0
    %3061 = vmatpush1.bf16.xpose.msra.mxu0 0
    %3062 = vmatprep.subr.bf16.mxu0 0
    %3063 = vmatpush1.bf16.xpose.msra.mxu0 %v3046
    %3064 = vmatprep.subr.bf16.mxu0 0
    %3065 = vmatpush2.bf16.xpose.msra.mxu0 0
    %3066 = vmatprep.subr.bf16.mxu0 0
    %3067 = vmatpush2.bf16.xpose.msra.mxu0 0
    %3068 = vmatprep.subr.bf16.mxu0 0
    %3069 = vmatpush2.bf16.xpose.msra.mxu0 0
    %3070 = vmatprep.subr.bf16.mxu0 0
    %3071 = vmatpush2.bf16.xpose.msra.mxu0 0
    %3072 = vmatprep.subr.bf16.mxu0 0
    %3073 = vmatpush2.bf16.xpose.msra.mxu0 0
    %3074 = vmatprep.subr.bf16.mxu0 0
    %3075 = vmatpush2.bf16.xpose.msra.mxu0 0
    %3076 = vmatprep.subr.bf16.mxu0 0
    %3077 = vmatpush2.bf16.xpose.msra.mxu0 0
    %3078 = vmatprep.subr.bf16.mxu0 0
    %3079 = vmatpush2.bf16.xpose.msra.mxu0 0
    %3080 = vmatprep.mubr.bf16.mxu0 0
    %3081 = vmatmul.mubr.bf16.gmra.mxu0 %v3043
    %v3082 = vpop.f32.mrf.mxu0
    %v3083 = vadd.f32 0.0, %v3082
    %v3084 = vpop.f32.mrf.mxu0
    %v3085 = vpop.f32.mrf.mxu0
    %v3086 = vpop.f32.mrf.mxu0
    %3087 = vdwg.mxu0
    %3088 = vrot.lane.b32.xlu0 %v2367, 80
    %v3089 = vpop.permute.xlu0 %3088
    %3090 = vrot.lane.b32.xlu0 %v2367, 16
    %v3091 = vpop.permute.xlu0 %3090
    %v3093 = vsel %vm955, %v3089, 0
    %v3096 = vsel %vm955, %v3091, 0
    %3098 = vmatprep.subr.bf16.mxu0 0
    %3099 = vmatpush1.bf16.xpose.msra.mxu0 0
    %3100 = vmatprep.subr.bf16.mxu0 0
    %3101 = vmatpush1.bf16.xpose.msra.mxu0 0
    %3102 = vmatprep.subr.bf16.mxu0 0
    %3103 = vmatpush1.bf16.xpose.msra.mxu0 0
    %3104 = vmatprep.subr.bf16.mxu0 0
    %3105 = vmatpush1.bf16.xpose.msra.mxu0 0
    %3106 = vmatprep.subr.bf16.mxu0 0
    %3107 = vmatpush1.bf16.xpose.msra.mxu0 0
    %3108 = vmatprep.subr.bf16.mxu0 0
    %3109 = vmatpush1.bf16.xpose.msra.mxu0 0
    %3110 = vmatprep.subr.bf16.mxu0 0
    %3111 = vmatpush1.bf16.xpose.msra.mxu0 0
    %3112 = vmatprep.subr.bf16.mxu0 0
    %3113 = vmatpush1.bf16.xpose.msra.mxu0 %v3096
    %3114 = vmatprep.subr.bf16.mxu0 0
    %3115 = vmatpush2.bf16.xpose.msra.mxu0 0
    %3116 = vmatprep.subr.bf16.mxu0 0
    %3117 = vmatpush2.bf16.xpose.msra.mxu0 0
    %3118 = vmatprep.subr.bf16.mxu0 0
    %3119 = vmatpush2.bf16.xpose.msra.mxu0 0
    %3120 = vmatprep.subr.bf16.mxu0 0
    %3121 = vmatpush2.bf16.xpose.msra.mxu0 0
    %3122 = vmatprep.subr.bf16.mxu0 0
    %3123 = vmatpush2.bf16.xpose.msra.mxu0 0
    %3124 = vmatprep.subr.bf16.mxu0 0
    %3125 = vmatpush2.bf16.xpose.msra.mxu0 0
    %3126 = vmatprep.subr.bf16.mxu0 0
    %3127 = vmatpush2.bf16.xpose.msra.mxu0 0
    %3128 = vmatprep.subr.bf16.mxu0 0
    %3129 = vmatpush2.bf16.xpose.msra.mxu0 0
    %3130 = vmatprep.mubr.bf16.mxu0 0
    %3131 = vmatmul.mubr.bf16.gmra.mxu0 %v3093
    %v3132 = vpop.f32.mrf.mxu0
    %v3133 = vadd.f32 0.0, %v3132
    %v3134 = vpop.f32.mrf.mxu0
    %v3135 = vpop.f32.mrf.mxu0
    %v3136 = vpop.f32.mrf.mxu0
    %3137 = vdwg.mxu0
    %v3138 = vmul.f32 %v3083, 0.25
    %v3139 = vmul.f32 %v3133, 0.25
    %v3140 = vadd.f32 %v3138, %v601
    %v3141 = vadd.f32 %v3139, %v605
    %v3142 = vsel %vm1055, %v3140, -inf
    %3143 = vmax.xlane.f32.xlu0 %v3142
    %v3144 = vpop.xlane.xlu0 %3143
    %v3145 = vsel %vm1055, %v3141, -inf
    %3146 = vmax.xlane.f32.xlu0 %v3145
    %v3147 = vpop.xlane.xlu0 %3146
    %v3148 = vsub.f32 %v3140, %v3144
    %v3149 = vsub.f32 %v3141, %v3147
    %v3150 = vmul.f32 %v3148, 1.442695
    %v3151 = vpow.pop %v3150
    %v3152 = vmul.f32 %v3149, 1.442695
    %v3153 = vpow.pop %v3152
    %v3154 = vsel %vm1055, %v3151, 0.0
    %3155 = vadd.xlane.f32.xlu0 %v3154
    %v3156 = vpop.xlane.xlu0 %3155
    %v3157 = vsel %vm1055, %v3153, 0.0
    %3158 = vadd.xlane.f32.xlu0 %v3157
    %v3159 = vpop.xlane.xlu0 %3158
    %v3160 = vrcp.pop %v3156
    %v3161 = vrcp.pop %v3159
    %v3162 = vmul.f32 %v3151, %v3160
    %v3163 = vmul.f32 %v3153, %v3161
    %v3164 = vpack.c.bf16 %v3162, %v3162
    %v3165 = vpack.c.bf16 %v3163, %v3163
    %3166 = vrot.lane.b32.xlu0 %v2368, 80
    %v3167 = vpop.permute.xlu0 %3166
    %v3169 = vsel %vm1055, %v3164, 0
    %v3172 = vsel %vm1083, %v3167, 0
    %3174 = vmatprep.subr.bf16.mxu0 0
    %3175 = vmatpush1.bf16.msra.mxu0 0
    %3176 = vmatprep.subr.bf16.mxu0 0
    %3177 = vmatpush1.bf16.msra.mxu0 0
    %3178 = vmatprep.subr.bf16.mxu0 0
    %3179 = vmatpush1.bf16.msra.mxu0 0
    %3180 = vmatprep.subr.bf16.mxu0 0
    %3181 = vmatpush1.bf16.msra.mxu0 0
    %3182 = vmatprep.subr.bf16.mxu0 0
    %3183 = vmatpush1.bf16.msra.mxu0 0
    %3184 = vmatprep.subr.bf16.mxu0 0
    %3185 = vmatpush1.bf16.msra.mxu0 0
    %3186 = vmatprep.subr.bf16.mxu0 0
    %3187 = vmatpush1.bf16.msra.mxu0 0
    %3188 = vmatprep.subr.bf16.mxu0 0
    %3189 = vmatpush1.bf16.msra.mxu0 %v3172
    %3190 = vmatprep.subr.bf16.mxu0 0
    %3191 = vmatpush2.bf16.msra.mxu0 0
    %3192 = vmatprep.subr.bf16.mxu0 0
    %3193 = vmatpush2.bf16.msra.mxu0 0
    %3194 = vmatprep.subr.bf16.mxu0 0
    %3195 = vmatpush2.bf16.msra.mxu0 0
    %3196 = vmatprep.subr.bf16.mxu0 0
    %3197 = vmatpush2.bf16.msra.mxu0 0
    %3198 = vmatprep.subr.bf16.mxu0 0
    %3199 = vmatpush2.bf16.msra.mxu0 0
    %3200 = vmatprep.subr.bf16.mxu0 0
    %3201 = vmatpush2.bf16.msra.mxu0 0
    %3202 = vmatprep.subr.bf16.mxu0 0
    %3203 = vmatpush2.bf16.msra.mxu0 0
    %3204 = vmatprep.subr.bf16.mxu0 0
    %3205 = vmatpush2.bf16.msra.mxu0 0
    %3206 = vmatprep.mubr.bf16.mxu0 0
    %3207 = vmatmul.mubr.bf16.gmra.mxu0 %v3169
    %v3208 = vpop.f32.mrf.mxu0
    %v3209 = vadd.f32 0.0, %v3208
    %v3210 = vpop.f32.mrf.mxu0
    %v3211 = vpop.f32.mrf.mxu0
    %v3212 = vpop.f32.mrf.mxu0
    %3213 = vdwg.mxu0
    %3214 = vrot.lane.b32.xlu0 %v2369, 80
    %v3215 = vpop.permute.xlu0 %3214
    %v3217 = vsel %vm1055, %v3165, 0
    %v3220 = vsel %vm1083, %v3215, 0
    %3222 = vmatprep.subr.bf16.mxu0 0
    %3223 = vmatpush1.bf16.msra.mxu0 0
    %3224 = vmatprep.subr.bf16.mxu0 0
    %3225 = vmatpush1.bf16.msra.mxu0 0
    %3226 = vmatprep.subr.bf16.mxu0 0
    %3227 = vmatpush1.bf16.msra.mxu0 0
    %3228 = vmatprep.subr.bf16.mxu0 0
    %3229 = vmatpush1.bf16.msra.mxu0 0
    %3230 = vmatprep.subr.bf16.mxu0 0
    %3231 = vmatpush1.bf16.msra.mxu0 0
    %3232 = vmatprep.subr.bf16.mxu0 0
    %3233 = vmatpush1.bf16.msra.mxu0 0
    %3234 = vmatprep.subr.bf16.mxu0 0
    %3235 = vmatpush1.bf16.msra.mxu0 0
    %3236 = vmatprep.subr.bf16.mxu0 0
    %3237 = vmatpush1.bf16.msra.mxu0 %v3220
    %3238 = vmatprep.subr.bf16.mxu0 0
    %3239 = vmatpush2.bf16.msra.mxu0 0
    %3240 = vmatprep.subr.bf16.mxu0 0
    %3241 = vmatpush2.bf16.msra.mxu0 0
    %3242 = vmatprep.subr.bf16.mxu0 0
    %3243 = vmatpush2.bf16.msra.mxu0 0
    %3244 = vmatprep.subr.bf16.mxu0 0
    %3245 = vmatpush2.bf16.msra.mxu0 0
    %3246 = vmatprep.subr.bf16.mxu0 0
    %3247 = vmatpush2.bf16.msra.mxu0 0
    %3248 = vmatprep.subr.bf16.mxu0 0
    %3249 = vmatpush2.bf16.msra.mxu0 0
    %3250 = vmatprep.subr.bf16.mxu0 0
    %3251 = vmatpush2.bf16.msra.mxu0 0
    %3252 = vmatprep.subr.bf16.mxu0 0
    %3253 = vmatpush2.bf16.msra.mxu0 0
    %3254 = vmatprep.mubr.bf16.mxu0 0
    %3255 = vmatmul.mubr.bf16.gmra.mxu0 %v3217
    %v3256 = vpop.f32.mrf.mxu0
    %v3257 = vadd.f32 0.0, %v3256
    %v3258 = vpop.f32.mrf.mxu0
    %v3259 = vpop.f32.mrf.mxu0
    %v3260 = vpop.f32.mrf.mxu0
    %3261 = vdwg.mxu0
    %3264 = vrot.lane.b32.xlu0 %v2760, 16
    %v3265 = vpop.permute.xlu0 %3264
    %3266 = vrot.lane.b32.xlu0 %v2809, 16
    %v3267 = vpop.permute.xlu0 %3266
    %3272 = vrot.lane.b32.xlu0 %v2985, 32
    %v3273 = vpop.permute.xlu0 %3272
    %3274 = vrot.lane.b32.xlu0 %v3033, 32
    %v3275 = vpop.permute.xlu0 %3274
    %3280 = vrot.lane.b32.xlu0 %v3209, 48
    %v3281 = vpop.permute.xlu0 %3280
    %3282 = vrot.lane.b32.xlu0 %v3257, 48
    %v3283 = vpop.permute.xlu0 %3282
    %v3286 = vsel %vm955, %v2537, %v3265
    %v3287 = vsel %vm955, %v2583, %v3267
    %v3288 = vsel %vm1873, %v3286, %v3273
    %v3289 = vsel %vm1873, %v3287, %v3275
    %v3290 = vsel %vm1876, %v3288, %v3281
    %v3291 = vsel %vm1876, %v3289, %v3283
    %v3292 = vpack.c.bf16 %v3291, %v3290
    %v3294 = vlaneseq
    %v3295 = vshrl.u32 %v3294, 7
    %v3296 = vsub.s32 0, %v3295
    %v3297 = vrot.slane %v2365, %v3296
    %v3307 = vunpack.c.l.b16 %v2356
    %v3308 = vunpack.c.l.b16 %v2357
    %v3309 = vunpack.c.l.b16 %v2358
    %v3310 = vunpack.c.l.b16 %v2359
    %v3311 = vunpack.c.l.b16 %v2360
    %v3312 = vunpack.c.l.b16 %v2361
    %v3313 = vunpack.c.l.b16 %v2362
    %v3314 = vunpack.c.l.b16 %v2363
    %v3315 = vpack.c.b16 %v3308, %v3307
    %v3316 = vpack.c.b16 %v3310, %v3309
    %v3317 = vpack.c.b16 %v3312, %v3311
    %v3318 = vpack.c.b16 %v3314, %v3313
    %v3324 = vsel %vm892, %v3292, 0
    %3326 = vmatprep.subr.bf16.mxu0 0
    %3327 = vmatpush1.bf16.msra.mxu0 0
    %3328 = vmatprep.subr.bf16.mxu0 0
    %3329 = vmatpush1.bf16.msra.mxu0 0
    %3330 = vmatprep.subr.bf16.mxu0 0
    %3331 = vmatpush1.bf16.msra.mxu0 0
    %3332 = vmatprep.subr.bf16.mxu0 0
    %3333 = vmatpush1.bf16.msra.mxu0 0
    %3334 = vmatprep.subr.bf16.mxu0 0
    %3335 = vmatpush1.bf16.msra.mxu0 %v3318
    %3336 = vmatprep.subr.bf16.mxu0 0
    %3337 = vmatpush1.bf16.msra.mxu0 %v3317
    %3338 = vmatprep.subr.bf16.mxu0 0
    %3339 = vmatpush1.bf16.msra.mxu0 %v3316
    %3340 = vmatprep.subr.bf16.mxu0 0
    %3341 = vmatpush1.bf16.msra.mxu0 %v3315
    %3342 = vmatprep.subr.bf16.mxu0 0
    %3343 = vmatpush2.bf16.msra.mxu0 0
    %3344 = vmatprep.subr.bf16.mxu0 0
    %3345 = vmatpush2.bf16.msra.mxu0 0
    %3346 = vmatprep.subr.bf16.mxu0 0
    %3347 = vmatpush2.bf16.msra.mxu0 0
    %3348 = vmatprep.subr.bf16.mxu0 0
    %3349 = vmatpush2.bf16.msra.mxu0 0
    %3350 = vmatprep.subr.bf16.mxu0 0
    %3351 = vmatpush2.bf16.msra.mxu0 0
    %3352 = vmatprep.subr.bf16.mxu0 0
    %3353 = vmatpush2.bf16.msra.mxu0 0
    %3354 = vmatprep.subr.bf16.mxu0 0
    %3355 = vmatpush2.bf16.msra.mxu0 0
    %3356 = vmatprep.subr.bf16.mxu0 0
    %3357 = vmatpush2.bf16.msra.mxu0 0
    %3358 = vmatprep.mubr.bf16.mxu0 0
    %3359 = vmatmul.mubr.bf16.gmra.mxu0 %v3324
    %v3360 = vpop.f32.mrf.mxu0
    %v3361 = vadd.f32 %v3297, %v3360
    %v3362 = vpop.f32.mrf.mxu0
    %v3363 = vpop.f32.mrf.mxu0
    %v3364 = vadd.f32 %v3297, %v3363
    %v3365 = vpop.f32.mrf.mxu0
    %3366 = vdwg.mxu0
    %v3367 = vadd.f32 %v2244, %v3361
    %v3368 = vadd.f32 %v2245, %v3364
    %s3369 = scalar_lea.vmem [#allocation11], 1
    %v3370 = vld [vmem:[%s3369] sm:$0x1]
    %s3371 = scalar_lea.vmem [#allocation13], 1
    %v3372 = vld [vmem:[%s3371] sm:$0x1]
    %v3373 = vsel %vm892, %v3367, 0.0
    %3374 = vadd.xlane.f32.xlu0 %v3373
    %v3375 = vpop.xlane.xlu0 %3374
    %v3376 = vsel %vm892, %v3368, 0.0
    %3377 = vadd.xlane.f32.xlu0 %v3376
    %v3378 = vpop.xlane.xlu0 %3377
    %v3379 = vmul.f32 %v3375, %v1964
    %v3380 = vmul.f32 %v3378, %v1964
    %v3381 = vsub.f32 %v3367, %v3379
    %v3382 = vsub.f32 %v3368, %v3380
    %v3383 = vmul.f32 %v3381, %v3381
    %v3384 = vmul.f32 %v3382, %v3382
    %v3385 = vsel %vm892, %v3383, 0.0
    %3386 = vadd.xlane.f32.xlu0 %v3385
    %v3387 = vpop.xlane.xlu0 %3386
    %v3388 = vsel %vm892, %v3384, 0.0
    %3389 = vadd.xlane.f32.xlu0 %v3388
    %v3390 = vpop.xlane.xlu0 %3389
    %v3391 = vmul.f32 %v3387, %v1964
    %v3392 = vmul.f32 %v3390, %v1964
    %v3393 = vadd.f32 %v3391, 1e-05
    %v3394 = vadd.f32 %v3392, 1e-05
    %v3395 = vrsqrt.pop %v3393
    %v3396 = vrsqrt.pop %v3394
    %v3397 = vmul.f32 %v3381, %v3395
    %v3398 = vmul.f32 %v3382, %v3396
    %v3400 = vlaneseq
    %v3401 = vshrl.u32 %v3400, 7
    %v3402 = vsub.s32 0, %v3401
    %v3403 = vrot.slane %v3370, %v3402
    %v3405 = vmul.f32 %v3397, %v3403
    %v3406 = vmul.f32 %v3398, %v3403
    %v3408 = vlaneseq
    %v3409 = vshrl.u32 %v3408, 7
    %v3410 = vsub.s32 0, %v3409
    %v3411 = vrot.slane %v3372, %v3410
    %v3413 = vadd.f32 %v3405, %v3411
    %v3414 = vadd.f32 %v3406, %v3411
    %s3415 = scalar_lea.vmem [#allocation14], 32
    %v3416 = vld [vmem:[%s3415] sm:$0xf]
    %v3417 = vld [vmem:[%s3415 + $0x4] sm:$0xf]
    %v3418 = vld [vmem:[%s3415 + $0x8] sm:$0xf]
    %v3419 = vld [vmem:[%s3415 + $0xc] sm:$0xf]
    %v3420 = vld [vmem:[%s3415 + $0x10] sm:$0xf]
    %v3421 = vld [vmem:[%s3415 + $0x14] sm:$0xf]
    %v3422 = vld [vmem:[%s3415 + $0x18] sm:$0xf]
    %v3423 = vld [vmem:[%s3415 + $0x1c] sm:$0xf]
    %s3424 = scalar_lea.vmem [#allocation16], 1
    %v3425 = vld [vmem:[%s3424] sm:$0x1]
    %v3426 = vpack.c.bf16 %v3414, %v3413
    %v3428 = vlaneseq
    %v3429 = vshrl.u32 %v3428, 7
    %v3430 = vsub.s32 0, %v3429
    %v3431 = vrot.slane %v3425, %v3430
    %v3441 = vunpack.c.l.b16 %v3416
    %v3442 = vunpack.c.l.b16 %v3417
    %v3443 = vunpack.c.l.b16 %v3418
    %v3444 = vunpack.c.l.b16 %v3419
    %v3445 = vunpack.c.l.b16 %v3420
    %v3446 = vunpack.c.l.b16 %v3421
    %v3447 = vunpack.c.l.b16 %v3422
    %v3448 = vunpack.c.l.b16 %v3423
    %v3449 = vpack.c.b16 %v3442, %v3441
    %v3450 = vpack.c.b16 %v3444, %v3443
    %v3451 = vpack.c.b16 %v3446, %v3445
    %v3452 = vpack.c.b16 %v3448, %v3447
    %v3458 = vsel %vm892, %v3426, 0
    %3460 = vmatprep.subr.bf16.mxu0 0
    %3461 = vmatpush1.bf16.msra.mxu0 0
    %3462 = vmatprep.subr.bf16.mxu0 0
    %3463 = vmatpush1.bf16.msra.mxu0 0
    %3464 = vmatprep.subr.bf16.mxu0 0
    %3465 = vmatpush1.bf16.msra.mxu0 0
    %3466 = vmatprep.subr.bf16.mxu0 0
    %3467 = vmatpush1.bf16.msra.mxu0 0
    %3468 = vmatprep.subr.bf16.mxu0 0
    %3469 = vmatpush1.bf16.msra.mxu0 %v3452
    %3470 = vmatprep.subr.bf16.mxu0 0
    %3471 = vmatpush1.bf16.msra.mxu0 %v3451
    %3472 = vmatprep.subr.bf16.mxu0 0
    %3473 = vmatpush1.bf16.msra.mxu0 %v3450
    %3474 = vmatprep.subr.bf16.mxu0 0
    %3475 = vmatpush1.bf16.msra.mxu0 %v3449
    %3476 = vmatprep.subr.bf16.mxu0 0
    %3477 = vmatpush2.bf16.msra.mxu0 0
    %3478 = vmatprep.subr.bf16.mxu0 0
    %3479 = vmatpush2.bf16.msra.mxu0 0
    %3480 = vmatprep.subr.bf16.mxu0 0
    %3481 = vmatpush2.bf16.msra.mxu0 0
    %3482 = vmatprep.subr.bf16.mxu0 0
    %3483 = vmatpush2.bf16.msra.mxu0 0
    %3484 = vmatprep.subr.bf16.mxu0 0
    %3485 = vmatpush2.bf16.msra.mxu0 0
    %3486 = vmatprep.subr.bf16.mxu0 0
    %3487 = vmatpush2.bf16.msra.mxu0 0
    %3488 = vmatprep.subr.bf16.mxu0 0
    %3489 = vmatpush2.bf16.msra.mxu0 0
    %3490 = vmatprep.subr.bf16.mxu0 0
    %3491 = vmatpush2.bf16.msra.mxu0 0
    %3492 = vmatprep.mubr.bf16.mxu0 0
    %3493 = vmatmul.mubr.bf16.gmra.mxu0 %v3458
    %v3494 = vpop.f32.mrf.mxu0
    %v3495 = vadd.f32 %v3431, %v3494
    %v3496 = vpop.f32.mrf.mxu0
    %v3497 = vpop.f32.mrf.mxu0
    %v3498 = vadd.f32 %v3431, %v3497
    %v3499 = vpop.f32.mrf.mxu0
    %3500 = vdwg.mxu0
    %v3501 = vmax.f32 %v3495, 0.0
    %v3502 = vmax.f32 %v3498, 0.0
    %s3503 = scalar_lea.vmem %s31, 64
    %v3504 = vld [vmem:[%s3503] sm:$0xf]
    %v3505 = vld [vmem:[%s3503 + $0x4] sm:$0xf]
    %v3506 = vld [vmem:[%s3503 + $0x8] sm:$0xf]
    %v3507 = vld [vmem:[%s3503 + $0xc] sm:$0xf]
    %v3508 = vld [vmem:[%s3503 + $0x10] sm:$0xf]
    %v3509 = vld [vmem:[%s3503 + $0x14] sm:$0xf]
    %v3510 = vld [vmem:[%s3503 + $0x18] sm:$0xf]
    %v3511 = vld [vmem:[%s3503 + $0x1c] sm:$0xf]
    %v3512 = vld [vmem:[%s3503 + $0x20] sm:$0xf]
    %v3513 = vld [vmem:[%s3503 + $0x24] sm:$0xf]
    %v3514 = vld [vmem:[%s3503 + $0x28] sm:$0xf]
    %v3515 = vld [vmem:[%s3503 + $0x2c] sm:$0xf]
    %v3516 = vld [vmem:[%s3503 + $0x30] sm:$0xf]
    %v3517 = vld [vmem:[%s3503 + $0x34] sm:$0xf]
    %v3518 = vld [vmem:[%s3503 + $0x38] sm:$0xf]
    %v3519 = vld [vmem:[%s3503 + $0x3c] sm:$0xf]
    %s3520 = scalar_lea.vmem [#allocation17], 1
    %v3521 = vld [vmem:[%s3520] sm:$0x1]
    %v3522 = vpack.c.bf16 %v3502, %v3501
    %v3524 = vlaneseq
    %v3525 = vshrl.u32 %v3524, 7
    %v3526 = vsub.s32 0, %v3525
    %v3527 = vrot.slane %v3521, %v3526
    %v3545 = vunpack.c.l.b16 %v3504
    %v3546 = vunpack.c.l.b16 %v3505
    %v3547 = vunpack.c.l.b16 %v3506
    %v3548 = vunpack.c.l.b16 %v3507
    %v3549 = vunpack.c.l.b16 %v3508
    %v3550 = vunpack.c.l.b16 %v3509
    %v3551 = vunpack.c.l.b16 %v3510
    %v3552 = vunpack.c.l.b16 %v3511
    %v3553 = vunpack.c.l.b16 %v3512
    %v3554 = vunpack.c.l.b16 %v3513
    %v3555 = vunpack.c.l.b16 %v3514
    %v3556 = vunpack.c.l.b16 %v3515
    %v3557 = vunpack.c.l.b16 %v3516
    %v3558 = vunpack.c.l.b16 %v3517
    %v3559 = vunpack.c.l.b16 %v3518
    %v3560 = vunpack.c.l.b16 %v3519
    %v3561 = vpack.c.b16 %v3546, %v3545
    %v3562 = vpack.c.b16 %v3548, %v3547
    %v3563 = vpack.c.b16 %v3550, %v3549
    %v3564 = vpack.c.b16 %v3552, %v3551
    %v3565 = vpack.c.b16 %v3554, %v3553
    %v3566 = vpack.c.b16 %v3556, %v3555
    %v3567 = vpack.c.b16 %v3558, %v3557
    %v3568 = vpack.c.b16 %v3560, %v3559
    %3577 = vmatprep.subr.bf16.mxu0 0
    %3578 = vmatpush1.bf16.msra.mxu0 %v3568
    %3579 = vmatprep.subr.bf16.mxu0 0
    %3580 = vmatpush1.bf16.msra.mxu0 %v3567
    %3581 = vmatprep.subr.bf16.mxu0 0
    %3582 = vmatpush1.bf16.msra.mxu0 %v3566
    %3583 = vmatprep.subr.bf16.mxu0 0
    %3584 = vmatpush1.bf16.msra.mxu0 %v3565
    %3585 = vmatprep.subr.bf16.mxu0 0
    %3586 = vmatpush1.bf16.msra.mxu0 %v3564
    %3587 = vmatprep.subr.bf16.mxu0 0
    %3588 = vmatpush1.bf16.msra.mxu0 %v3563
    %3589 = vmatprep.subr.bf16.mxu0 0
    %3590 = vmatpush1.bf16.msra.mxu0 %v3562
    %3591 = vmatprep.subr.bf16.mxu0 0
    %3592 = vmatpush1.bf16.msra.mxu0 %v3561
    %3593 = vmatprep.subr.bf16.mxu0 0
    %3594 = vmatpush2.bf16.msra.mxu0 0
    %3595 = vmatprep.subr.bf16.mxu0 0
    %3596 = vmatpush2.bf16.msra.mxu0 0
    %3597 = vmatprep.subr.bf16.mxu0 0
    %3598 = vmatpush2.bf16.msra.mxu0 0
    %3599 = vmatprep.subr.bf16.mxu0 0
    %3600 = vmatpush2.bf16.msra.mxu0 0
    %3601 = vmatprep.subr.bf16.mxu0 0
    %3602 = vmatpush2.bf16.msra.mxu0 0
    %3603 = vmatprep.subr.bf16.mxu0 0
    %3604 = vmatpush2.bf16.msra.mxu0 0
    %3605 = vmatprep.subr.bf16.mxu0 0
    %3606 = vmatpush2.bf16.msra.mxu0 0
    %3607 = vmatprep.subr.bf16.mxu0 0
    %3608 = vmatpush2.bf16.msra.mxu0 0
    %3609 = vmatprep.mubr.bf16.mxu0 0
    %3610 = vmatmul.mubr.bf16.gmra.mxu0 %v3522
    %v3611 = vpop.f32.mrf.mxu0
    %v3612 = vadd.f32 %v3527, %v3611
    %v3613 = vpop.f32.mrf.mxu0
    %v3614 = vpop.f32.mrf.mxu0
    %v3615 = vadd.f32 %v3527, %v3614
    %v3616 = vpop.f32.mrf.mxu0
    %3617 = vdwg.mxu0
    %v3618 = vadd.f32 %v3413, %v3612
    %v3619 = vadd.f32 %v3414, %v3615
    %s3620 = scalar_lea.vmem [#allocation19], 1
    %v3621 = vld [vmem:[%s3620] sm:$0x1]
    %s3622 = scalar_lea.vmem [#allocation20], 1
    %v3623 = vld [vmem:[%s3622] sm:$0x1]
    %v3624 = vsel %vm892, %v3618, 0.0
    %3625 = vadd.xlane.f32.xlu0 %v3624
    %v3626 = vpop.xlane.xlu0 %3625
    %v3627 = vsel %vm892, %v3619, 0.0
    %3628 = vadd.xlane.f32.xlu0 %v3627
    %v3629 = vpop.xlane.xlu0 %3628
    %v3630 = vmul.f32 %v3626, %v1964
    %v3631 = vmul.f32 %v3629, %v1964
    %v3632 = vsub.f32 %v3618, %v3630
    %v3633 = vsub.f32 %v3619, %v3631
    %v3634 = vmul.f32 %v3632, %v3632
    %v3635 = vmul.f32 %v3633, %v3633
    %v3636 = vsel %vm892, %v3634, 0.0
    %3637 = vadd.xlane.f32.xlu0 %v3636
    %v3638 = vpop.xlane.xlu0 %3637
    %v3639 = vsel %vm892, %v3635, 0.0
    %3640 = vadd.xlane.f32.xlu0 %v3639
    %v3641 = vpop.xlane.xlu0 %3640
    %v3642 = vmul.f32 %v3638, %v1964
    %v3643 = vmul.f32 %v3641, %v1964
    %v3644 = vadd.f32 %v3642, 1e-05
    %v3645 = vadd.f32 %v3643, 1e-05
    %v3646 = vrsqrt.pop %v3644
    %v3647 = vrsqrt.pop %v3645
    %v3648 = vmul.f32 %v3632, %v3646
    %v3649 = vmul.f32 %v3633, %v3647
    %v3651 = vlaneseq
    %v3652 = vshrl.u32 %v3651, 7
    %v3653 = vsub.s32 0, %v3652
    %v3654 = vrot.slane %v3621, %v3653
    %v3656 = vmul.f32 %v3648, %v3654
    %v3657 = vmul.f32 %v3649, %v3654
    %v3659 = vlaneseq
    %v3660 = vshrl.u32 %v3659, 7
    %v3661 = vsub.s32 0, %v3660
    %v3662 = vrot.slane %v3623, %v3661
    %v3664 = vadd.f32 %v3656, %v3662
    %v3665 = vadd.f32 %v3657, %v3662
    %v3666 = vld [vmem:[%s39] sm:$0xff]
    %v3667 = vld [vmem:[%s39 + $0x8] sm:$0xff]
    %v3668 = vld [vmem:[%s39 + $0x10] sm:$0xff]
    %v3669 = vld [vmem:[%s39 + $0x18] sm:$0xff]
    %v3670 = vld [vmem:[%s39 + $0x20] sm:$0xff]
    %v3671 = vld [vmem:[%s39 + $0x28] sm:$0xff]
    %v3672 = vld [vmem:[%s39 + $0x30] sm:$0xff]
    %v3673 = vld [vmem:[%s39 + $0x38] sm:$0xff]
    %v3674 = vld [vmem:[#allocation22] sm:$0x3]
    %v3675 = vpack.c.bf16 %v830, %v829
    %v3677 = vlaneseq
    %v3678 = vshrl.u32 %v3677, 7
    %v3679 = vsub.s32 0, %v3678
    %v3680 = vrot.slane %v3674, %v3679
    %v3681 = vlaneseq
    %v3682 = vshrl.u32 %v3681, 7
    %v3683 = vsub.s32 1, %v3682
    %v3684 = vrot.slane %v3674, %v3683
    %v3695 = vunpack.c.l.b16 %v3666
    %v3696 = vunpack.c.h.b16 %v3666
    %v3697 = vunpack.c.l.b16 %v3667
    %v3698 = vunpack.c.h.b16 %v3667
    %v3699 = vunpack.c.l.b16 %v3668
    %v3700 = vunpack.c.h.b16 %v3668
    %v3701 = vunpack.c.l.b16 %v3669
    %v3702 = vunpack.c.h.b16 %v3669
    %v3703 = vunpack.c.l.b16 %v3670
    %v3704 = vunpack.c.h.b16 %v3670
    %v3705 = vunpack.c.l.b16 %v3671
    %v3706 = vunpack.c.h.b16 %v3671
    %v3707 = vunpack.c.l.b16 %v3672
    %v3708 = vunpack.c.h.b16 %v3672
    %v3709 = vunpack.c.l.b16 %v3673
    %v3710 = vunpack.c.h.b16 %v3673
    %v3711 = vpack.c.b16 %v3697, %v3695
    %v3712 = vpack.c.b16 %v3698, %v3696
    %v3713 = vpack.c.b16 %v3701, %v3699
    %v3714 = vpack.c.b16 %v3702, %v3700
    %v3715 = vpack.c.b16 %v3705, %v3703
    %v3716 = vpack.c.b16 %v3706, %v3704
    %v3717 = vpack.c.b16 %v3709, %v3707
    %v3718 = vpack.c.b16 %v3710, %v3708
    %v3728 = vsel %vm892, %v3675, 0
    %3730 = vmatprep.subr.bf16.mxu0 0
    %3731 = vmatpush1.bf16.msra.mxu0 0
    %3732 = vmatprep.subr.bf16.mxu0 0
    %3733 = vmatpush1.bf16.msra.mxu0 0
    %3734 = vmatprep.subr.bf16.mxu0 0
    %3735 = vmatpush1.bf16.msra.mxu0 0
    %3736 = vmatprep.subr.bf16.mxu0 0
    %3737 = vmatpush1.bf16.msra.mxu0 0
    %3738 = vmatprep.subr.bf16.mxu0 %v3718
    %3739 = vmatpush1.bf16.msra.mxu0 %v3717
    %3740 = vmatprep.subr.bf16.mxu0 %v3716
    %3741 = vmatpush1.bf16.msra.mxu0 %v3715
    %3742 = vmatprep.subr.bf16.mxu0 %v3714
    %3743 = vmatpush1.bf16.msra.mxu0 %v3713
    %3744 = vmatprep.subr.bf16.mxu0 %v3712
    %3745 = vmatpush1.bf16.msra.mxu0 %v3711
    %3746 = vmatprep.subr.bf16.mxu0 0
    %3747 = vmatpush2.bf16.msra.mxu0 0
    %3748 = vmatprep.subr.bf16.mxu0 0
    %3749 = vmatpush2.bf16.msra.mxu0 0
    %3750 = vmatprep.subr.bf16.mxu0 0
    %3751 = vmatpush2.bf16.msra.mxu0 0
    %3752 = vmatprep.subr.bf16.mxu0 0
    %3753 = vmatpush2.bf16.msra.mxu0 0
    %3754 = vmatprep.subr.bf16.mxu0 0
    %3755 = vmatpush2.bf16.msra.mxu0 0
    %3756 = vmatprep.subr.bf16.mxu0 0
    %3757 = vmatpush2.bf16.msra.mxu0 0
    %3758 = vmatprep.subr.bf16.mxu0 0
    %3759 = vmatpush2.bf16.msra.mxu0 0
    %3760 = vmatprep.subr.bf16.mxu0 0
    %3761 = vmatpush2.bf16.msra.mxu0 0
    %3762 = vmatprep.mubr.bf16.mxu0 0
    %3763 = vmatmul.mubr.bf16.gmra.mxu0 %v3728
    %v3764 = vpop.f32.mrf.mxu0
    %v3765 = vadd.f32 %v3680, %v3764
    %v3766 = vpop.f32.mrf.mxu0
    %v3767 = vadd.f32 %v3684, %v3766
    %v3768 = vpop.f32.mrf.mxu0
    %v3769 = vadd.f32 %v3680, %v3768
    %v3770 = vpop.f32.mrf.mxu0
    %v3771 = vadd.f32 %v3684, %v3770
    %3772 = vdwg.mxu0
    %v3773 = vld [vmem:[#allocation23] sm:$0xf]
    %v3774 = vld [vmem:[#allocation23 + $0x4] sm:$0xf]
    %v3775 = vld [vmem:[#allocation23 + $0x8] sm:$0xf]
    %v3776 = vld [vmem:[#allocation23 + $0xc] sm:$0xf]
    %v3777 = vld [vmem:[#allocation23 + $0x10] sm:$0xf]
    %v3778 = vld [vmem:[#allocation23 + $0x14] sm:$0xf]
    %v3779 = vld [vmem:[#allocation23 + $0x18] sm:$0xf]
    %v3780 = vld [vmem:[#allocation23 + $0x1c] sm:$0xf]
    %v3781 = vld [vmem:[#allocation25] sm:$0x1]
    %v3782 = vpack.c.bf16 %v3765, %v3765
    %v3783 = vpack.c.bf16 %v3769, %v3769
    %v3784 = vpack.c.bf16 %v3767, %v3767
    %v3785 = vpack.c.bf16 %v3771, %v3771
    %3787 = vrot.lane.b32.xlu0 %v3782, 64
    %v3788 = vpop.permute.xlu0 %3787
    %v3790 = vsel %vm955, %v3782, 0
    %v3793 = vsel %vm955, %v3788, 0
    %3795 = vmatprep.subr.bf16.mxu0 0
    %3796 = vmatpush1.bf16.xpose.msra.mxu0 0
    %3797 = vmatprep.subr.bf16.mxu0 0
    %3798 = vmatpush1.bf16.xpose.msra.mxu0 0
    %3799 = vmatprep.subr.bf16.mxu0 0
    %3800 = vmatpush1.bf16.xpose.msra.mxu0 0
    %3801 = vmatprep.subr.bf16.mxu0 0
    %3802 = vmatpush1.bf16.xpose.msra.mxu0 0
    %3803 = vmatprep.subr.bf16.mxu0 0
    %3804 = vmatpush1.bf16.xpose.msra.mxu0 0
    %3805 = vmatprep.subr.bf16.mxu0 0
    %3806 = vmatpush1.bf16.xpose.msra.mxu0 0
    %3807 = vmatprep.subr.bf16.mxu0 0
    %3808 = vmatpush1.bf16.xpose.msra.mxu0 0
    %3809 = vmatprep.subr.bf16.mxu0 0
    %3810 = vmatpush1.bf16.xpose.msra.mxu0 %v3793
    %3811 = vmatprep.subr.bf16.mxu0 0
    %3812 = vmatpush2.bf16.xpose.msra.mxu0 0
    %3813 = vmatprep.subr.bf16.mxu0 0
    %3814 = vmatpush2.bf16.xpose.msra.mxu0 0
    %3815 = vmatprep.subr.bf16.mxu0 0
    %3816 = vmatpush2.bf16.xpose.msra.mxu0 0
    %3817 = vmatprep.subr.bf16.mxu0 0
    %3818 = vmatpush2.bf16.xpose.msra.mxu0 0
    %3819 = vmatprep.subr.bf16.mxu0 0
    %3820 = vmatpush2.bf16.xpose.msra.mxu0 0
    %3821 = vmatprep.subr.bf16.mxu0 0
    %3822 = vmatpush2.bf16.xpose.msra.mxu0 0
    %3823 = vmatprep.subr.bf16.mxu0 0
    %3824 = vmatpush2.bf16.xpose.msra.mxu0 0
    %3825 = vmatprep.subr.bf16.mxu0 0
    %3826 = vmatpush2.bf16.xpose.msra.mxu0 0
    %3827 = vmatprep.mubr.bf16.mxu0 0
    %3828 = vmatmul.mubr.bf16.gmra.mxu0 %v3790
    %v3829 = vpop.f32.mrf.mxu0
    %v3830 = vadd.f32 0.0, %v3829
    %v3831 = vpop.f32.mrf.mxu0
    %v3832 = vpop.f32.mrf.mxu0
    %v3833 = vpop.f32.mrf.mxu0
    %3834 = vdwg.mxu0
    %3836 = vrot.lane.b32.xlu0 %v3783, 64
    %v3837 = vpop.permute.xlu0 %3836
    %v3839 = vsel %vm955, %v3783, 0
    %v3842 = vsel %vm955, %v3837, 0
    %3844 = vmatprep.subr.bf16.mxu0 0
    %3845 = vmatpush1.bf16.xpose.msra.mxu0 0
    %3846 = vmatprep.subr.bf16.mxu0 0
    %3847 = vmatpush1.bf16.xpose.msra.mxu0 0
    %3848 = vmatprep.subr.bf16.mxu0 0
    %3849 = vmatpush1.bf16.xpose.msra.mxu0 0
    %3850 = vmatprep.subr.bf16.mxu0 0
    %3851 = vmatpush1.bf16.xpose.msra.mxu0 0
    %3852 = vmatprep.subr.bf16.mxu0 0
    %3853 = vmatpush1.bf16.xpose.msra.mxu0 0
    %3854 = vmatprep.subr.bf16.mxu0 0
    %3855 = vmatpush1.bf16.xpose.msra.mxu0 0
    %3856 = vmatprep.subr.bf16.mxu0 0
    %3857 = vmatpush1.bf16.xpose.msra.mxu0 0
    %3858 = vmatprep.subr.bf16.mxu0 0
    %3859 = vmatpush1.bf16.xpose.msra.mxu0 %v3842
    %3860 = vmatprep.subr.bf16.mxu0 0
    %3861 = vmatpush2.bf16.xpose.msra.mxu0 0
    %3862 = vmatprep.subr.bf16.mxu0 0
    %3863 = vmatpush2.bf16.xpose.msra.mxu0 0
    %3864 = vmatprep.subr.bf16.mxu0 0
    %3865 = vmatpush2.bf16.xpose.msra.mxu0 0
    %3866 = vmatprep.subr.bf16.mxu0 0
    %3867 = vmatpush2.bf16.xpose.msra.mxu0 0
    %3868 = vmatprep.subr.bf16.mxu0 0
    %3869 = vmatpush2.bf16.xpose.msra.mxu0 0
    %3870 = vmatprep.subr.bf16.mxu0 0
    %3871 = vmatpush2.bf16.xpose.msra.mxu0 0
    %3872 = vmatprep.subr.bf16.mxu0 0
    %3873 = vmatpush2.bf16.xpose.msra.mxu0 0
    %3874 = vmatprep.subr.bf16.mxu0 0
    %3875 = vmatpush2.bf16.xpose.msra.mxu0 0
    %3876 = vmatprep.mubr.bf16.mxu0 0
    %3877 = vmatmul.mubr.bf16.gmra.mxu0 %v3839
    %v3878 = vpop.f32.mrf.mxu0
    %v3879 = vadd.f32 0.0, %v3878
    %v3880 = vpop.f32.mrf.mxu0
    %v3881 = vpop.f32.mrf.mxu0
    %v3882 = vpop.f32.mrf.mxu0
    %3883 = vdwg.mxu0
    %v3884 = vmul.f32 %v3830, 0.25
    %v3885 = vmul.f32 %v3879, 0.25
    %v3886 = vadd.f32 %v3884, %v620
    %v3887 = vadd.f32 %v3885, %v621
    %v3888 = vsel %vm1055, %v3886, -inf
    %3889 = vmax.xlane.f32.xlu0 %v3888
    %v3890 = vpop.xlane.xlu0 %3889
    %v3891 = vsel %vm1055, %v3887, -inf
    %3892 = vmax.xlane.f32.xlu0 %v3891
    %v3893 = vpop.xlane.xlu0 %3892
    %v3894 = vsub.f32 %v3886, %v3890
    %v3895 = vsub.f32 %v3887, %v3893
    %v3896 = vmul.f32 %v3894, 1.442695
    %v3897 = vpow.pop %v3896
    %v3898 = vmul.f32 %v3895, 1.442695
    %v3899 = vpow.pop %v3898
    %v3900 = vsel %vm1055, %v3897, 0.0
    %3901 = vadd.xlane.f32.xlu0 %v3900
    %v3902 = vpop.xlane.xlu0 %3901
    %v3903 = vsel %vm1055, %v3899, 0.0
    %3904 = vadd.xlane.f32.xlu0 %v3903
    %v3905 = vpop.xlane.xlu0 %3904
    %v3906 = vrcp.pop %v3902
    %v3907 = vrcp.pop %v3905
    %v3908 = vmul.f32 %v3897, %v3906
    %v3909 = vmul.f32 %v3899, %v3907
    %v3910 = vpack.c.bf16 %v3908, %v3908
    %v3911 = vpack.c.bf16 %v3909, %v3909
    %v3913 = vsel %vm1055, %v3910, 0
    %v3916 = vsel %vm1083, %v3784, 0
    %3918 = vmatprep.subr.bf16.mxu0 0
    %3919 = vmatpush1.bf16.msra.mxu0 0
    %3920 = vmatprep.subr.bf16.mxu0 0
    %3921 = vmatpush1.bf16.msra.mxu0 0
    %3922 = vmatprep.subr.bf16.mxu0 0
    %3923 = vmatpush1.bf16.msra.mxu0 0
    %3924 = vmatprep.subr.bf16.mxu0 0
    %3925 = vmatpush1.bf16.msra.mxu0 0
    %3926 = vmatprep.subr.bf16.mxu0 0
    %3927 = vmatpush1.bf16.msra.mxu0 0
    %3928 = vmatprep.subr.bf16.mxu0 0
    %3929 = vmatpush1.bf16.msra.mxu0 0
    %3930 = vmatprep.subr.bf16.mxu0 0
    %3931 = vmatpush1.bf16.msra.mxu0 0
    %3932 = vmatprep.subr.bf16.mxu0 0
    %3933 = vmatpush1.bf16.msra.mxu0 %v3916
    %3934 = vmatprep.subr.bf16.mxu0 0
    %3935 = vmatpush2.bf16.msra.mxu0 0
    %3936 = vmatprep.subr.bf16.mxu0 0
    %3937 = vmatpush2.bf16.msra.mxu0 0
    %3938 = vmatprep.subr.bf16.mxu0 0
    %3939 = vmatpush2.bf16.msra.mxu0 0
    %3940 = vmatprep.subr.bf16.mxu0 0
    %3941 = vmatpush2.bf16.msra.mxu0 0
    %3942 = vmatprep.subr.bf16.mxu0 0
    %3943 = vmatpush2.bf16.msra.mxu0 0
    %3944 = vmatprep.subr.bf16.mxu0 0
    %3945 = vmatpush2.bf16.msra.mxu0 0
    %3946 = vmatprep.subr.bf16.mxu0 0
    %3947 = vmatpush2.bf16.msra.mxu0 0
    %3948 = vmatprep.subr.bf16.mxu0 0
    %3949 = vmatpush2.bf16.msra.mxu0 0
    %3950 = vmatprep.mubr.bf16.mxu0 0
    %3951 = vmatmul.mubr.bf16.gmra.mxu0 %v3913
    %v3952 = vpop.f32.mrf.mxu0
    %v3953 = vadd.f32 0.0, %v3952
    %v3954 = vpop.f32.mrf.mxu0
    %v3955 = vpop.f32.mrf.mxu0
    %v3956 = vpop.f32.mrf.mxu0
    %3957 = vdwg.mxu0
    %v3959 = vsel %vm1055, %v3911, 0
    %v3962 = vsel %vm1083, %v3785, 0
    %3964 = vmatprep.subr.bf16.mxu0 0
    %3965 = vmatpush1.bf16.msra.mxu0 0
    %3966 = vmatprep.subr.bf16.mxu0 0
    %3967 = vmatpush1.bf16.msra.mxu0 0
    %3968 = vmatprep.subr.bf16.mxu0 0
    %3969 = vmatpush1.bf16.msra.mxu0 0
    %3970 = vmatprep.subr.bf16.mxu0 0
    %3971 = vmatpush1.bf16.msra.mxu0 0
    %3972 = vmatprep.subr.bf16.mxu0 0
    %3973 = vmatpush1.bf16.msra.mxu0 0
    %3974 = vmatprep.subr.bf16.mxu0 0
    %3975 = vmatpush1.bf16.msra.mxu0 0
    %3976 = vmatprep.subr.bf16.mxu0 0
    %3977 = vmatpush1.bf16.msra.mxu0 0
    %3978 = vmatprep.subr.bf16.mxu0 0
    %3979 = vmatpush1.bf16.msra.mxu0 %v3962
    %3980 = vmatprep.subr.bf16.mxu0 0
    %3981 = vmatpush2.bf16.msra.mxu0 0
    %3982 = vmatprep.subr.bf16.mxu0 0
    %3983 = vmatpush2.bf16.msra.mxu0 0
    %3984 = vmatprep.subr.bf16.mxu0 0
    %3985 = vmatpush2.bf16.msra.mxu0 0
    %3986 = vmatprep.subr.bf16.mxu0 0
    %3987 = vmatpush2.bf16.msra.mxu0 0
    %3988 = vmatprep.subr.bf16.mxu0 0
    %3989 = vmatpush2.bf16.msra.mxu0 0
    %3990 = vmatprep.subr.bf16.mxu0 0
    %3991 = vmatpush2.bf16.msra.mxu0 0
    %3992 = vmatprep.subr.bf16.mxu0 0
    %3993 = vmatpush2.bf16.msra.mxu0 0
    %3994 = vmatprep.subr.bf16.mxu0 0
    %3995 = vmatpush2.bf16.msra.mxu0 0
    %3996 = vmatprep.mubr.bf16.mxu0 0
    %3997 = vmatmul.mubr.bf16.gmra.mxu0 %v3959
    %v3998 = vpop.f32.mrf.mxu0
    %v3999 = vadd.f32 0.0, %v3998
    %v4000 = vpop.f32.mrf.mxu0
    %v4001 = vpop.f32.mrf.mxu0
    %v4002 = vpop.f32.mrf.mxu0
    %4003 = vdwg.mxu0
    %4004 = vrot.lane.b32.xlu0 %v3782, 112
    %v4005 = vpop.permute.xlu0 %4004
    %4006 = vrot.lane.b32.xlu0 %v3782, 48
    %v4007 = vpop.permute.xlu0 %4006
    %v4009 = vsel %vm955, %v4005, 0
    %v4012 = vsel %vm955, %v4007, 0
    %4014 = vmatprep.subr.bf16.mxu0 0
    %4015 = vmatpush1.bf16.xpose.msra.mxu0 0
    %4016 = vmatprep.subr.bf16.mxu0 0
    %4017 = vmatpush1.bf16.xpose.msra.mxu0 0
    %4018 = vmatprep.subr.bf16.mxu0 0
    %4019 = vmatpush1.bf16.xpose.msra.mxu0 0
    %4020 = vmatprep.subr.bf16.mxu0 0
    %4021 = vmatpush1.bf16.xpose.msra.mxu0 0
    %4022 = vmatprep.subr.bf16.mxu0 0
    %4023 = vmatpush1.bf16.xpose.msra.mxu0 0
    %4024 = vmatprep.subr.bf16.mxu0 0
    %4025 = vmatpush1.bf16.xpose.msra.mxu0 0
    %4026 = vmatprep.subr.bf16.mxu0 0
    %4027 = vmatpush1.bf16.xpose.msra.mxu0 0
    %4028 = vmatprep.subr.bf16.mxu0 0
    %4029 = vmatpush1.bf16.xpose.msra.mxu0 %v4012
    %4030 = vmatprep.subr.bf16.mxu0 0
    %4031 = vmatpush2.bf16.xpose.msra.mxu0 0
    %4032 = vmatprep.subr.bf16.mxu0 0
    %4033 = vmatpush2.bf16.xpose.msra.mxu0 0
    %4034 = vmatprep.subr.bf16.mxu0 0
    %4035 = vmatpush2.bf16.xpose.msra.mxu0 0
    %4036 = vmatprep.subr.bf16.mxu0 0
    %4037 = vmatpush2.bf16.xpose.msra.mxu0 0
    %4038 = vmatprep.subr.bf16.mxu0 0
    %4039 = vmatpush2.bf16.xpose.msra.mxu0 0
    %4040 = vmatprep.subr.bf16.mxu0 0
    %4041 = vmatpush2.bf16.xpose.msra.mxu0 0
    %4042 = vmatprep.subr.bf16.mxu0 0
    %4043 = vmatpush2.bf16.xpose.msra.mxu0 0
    %4044 = vmatprep.subr.bf16.mxu0 0
    %4045 = vmatpush2.bf16.xpose.msra.mxu0 0
    %4046 = vmatprep.mubr.bf16.mxu0 0
    %4047 = vmatmul.mubr.bf16.gmra.mxu0 %v4009
    %v4048 = vpop.f32.mrf.mxu0
    %v4049 = vadd.f32 0.0, %v4048
    %v4050 = vpop.f32.mrf.mxu0
    %v4051 = vpop.f32.mrf.mxu0
    %v4052 = vpop.f32.mrf.mxu0
    %4053 = vdwg.mxu0
    %4054 = vrot.lane.b32.xlu0 %v3783, 112
    %v4055 = vpop.permute.xlu0 %4054
    %4056 = vrot.lane.b32.xlu0 %v3783, 48
    %v4057 = vpop.permute.xlu0 %4056
    %v4059 = vsel %vm955, %v4055, 0
    %v4062 = vsel %vm955, %v4057, 0
    %4064 = vmatprep.subr.bf16.mxu0 0
    %4065 = vmatpush1.bf16.xpose.msra.mxu0 0
    %4066 = vmatprep.subr.bf16.mxu0 0
    %4067 = vmatpush1.bf16.xpose.msra.mxu0 0
    %4068 = vmatprep.subr.bf16.mxu0 0
    %4069 = vmatpush1.bf16.xpose.msra.mxu0 0
    %4070 = vmatprep.subr.bf16.mxu0 0
    %4071 = vmatpush1.bf16.xpose.msra.mxu0 0
    %4072 = vmatprep.subr.bf16.mxu0 0
    %4073 = vmatpush1.bf16.xpose.msra.mxu0 0
    %4074 = vmatprep.subr.bf16.mxu0 0
    %4075 = vmatpush1.bf16.xpose.msra.mxu0 0
    %4076 = vmatprep.subr.bf16.mxu0 0
    %4077 = vmatpush1.bf16.xpose.msra.mxu0 0
    %4078 = vmatprep.subr.bf16.mxu0 0
    %4079 = vmatpush1.bf16.xpose.msra.mxu0 %v4062
    %4080 = vmatprep.subr.bf16.mxu0 0
    %4081 = vmatpush2.bf16.xpose.msra.mxu0 0
    %4082 = vmatprep.subr.bf16.mxu0 0
    %4083 = vmatpush2.bf16.xpose.msra.mxu0 0
    %4084 = vmatprep.subr.bf16.mxu0 0
    %4085 = vmatpush2.bf16.xpose.msra.mxu0 0
    %4086 = vmatprep.subr.bf16.mxu0 0
    %4087 = vmatpush2.bf16.xpose.msra.mxu0 0
    %4088 = vmatprep.subr.bf16.mxu0 0
    %4089 = vmatpush2.bf16.xpose.msra.mxu0 0
    %4090 = vmatprep.subr.bf16.mxu0 0
    %4091 = vmatpush2.bf16.xpose.msra.mxu0 0
    %4092 = vmatprep.subr.bf16.mxu0 0
    %4093 = vmatpush2.bf16.xpose.msra.mxu0 0
    %4094 = vmatprep.subr.bf16.mxu0 0
    %4095 = vmatpush2.bf16.xpose.msra.mxu0 0
    %4096 = vmatprep.mubr.bf16.mxu0 0
    %4097 = vmatmul.mubr.bf16.gmra.mxu0 %v4059
    %v4098 = vpop.f32.mrf.mxu0
    %v4099 = vadd.f32 0.0, %v4098
    %v4100 = vpop.f32.mrf.mxu0
    %v4101 = vpop.f32.mrf.mxu0
    %v4102 = vpop.f32.mrf.mxu0
    %4103 = vdwg.mxu0
    %v4104 = vmul.f32 %v4049, 0.25
    %v4105 = vmul.f32 %v4099, 0.25
    %v4106 = vadd.f32 %v4104, %v620
    %v4107 = vadd.f32 %v4105, %v621
    %v4108 = vsel %vm1055, %v4106, -inf
    %4109 = vmax.xlane.f32.xlu0 %v4108
    %v4110 = vpop.xlane.xlu0 %4109
    %v4111 = vsel %vm1055, %v4107, -inf
    %4112 = vmax.xlane.f32.xlu0 %v4111
    %v4113 = vpop.xlane.xlu0 %4112
    %v4114 = vsub.f32 %v4106, %v4110
    %v4115 = vsub.f32 %v4107, %v4113
    %v4116 = vmul.f32 %v4114, 1.442695
    %v4117 = vpow.pop %v4116
    %v4118 = vmul.f32 %v4115, 1.442695
    %v4119 = vpow.pop %v4118
    %v4120 = vsel %vm1055, %v4117, 0.0
    %4121 = vadd.xlane.f32.xlu0 %v4120
    %v4122 = vpop.xlane.xlu0 %4121
    %v4123 = vsel %vm1055, %v4119, 0.0
    %4124 = vadd.xlane.f32.xlu0 %v4123
    %v4125 = vpop.xlane.xlu0 %4124
    %v4126 = vrcp.pop %v4122
    %v4127 = vrcp.pop %v4125
    %v4128 = vmul.f32 %v4117, %v4126
    %v4129 = vmul.f32 %v4119, %v4127
    %v4130 = vpack.c.bf16 %v4128, %v4128
    %v4131 = vpack.c.bf16 %v4129, %v4129
    %4133 = vrot.lane.b32.xlu0 %v3784, 112
    %v4134 = vpop.permute.xlu0 %4133
    %v4136 = vsel %vm1055, %v4130, 0
    %v4139 = vsel %vm1083, %v4134, 0
    %4141 = vmatprep.subr.bf16.mxu0 0
    %4142 = vmatpush1.bf16.msra.mxu0 0
    %4143 = vmatprep.subr.bf16.mxu0 0
    %4144 = vmatpush1.bf16.msra.mxu0 0
    %4145 = vmatprep.subr.bf16.mxu0 0
    %4146 = vmatpush1.bf16.msra.mxu0 0
    %4147 = vmatprep.subr.bf16.mxu0 0
    %4148 = vmatpush1.bf16.msra.mxu0 0
    %4149 = vmatprep.subr.bf16.mxu0 0
    %4150 = vmatpush1.bf16.msra.mxu0 0
    %4151 = vmatprep.subr.bf16.mxu0 0
    %4152 = vmatpush1.bf16.msra.mxu0 0
    %4153 = vmatprep.subr.bf16.mxu0 0
    %4154 = vmatpush1.bf16.msra.mxu0 0
    %4155 = vmatprep.subr.bf16.mxu0 0
    %4156 = vmatpush1.bf16.msra.mxu0 %v4139
    %4157 = vmatprep.subr.bf16.mxu0 0
    %4158 = vmatpush2.bf16.msra.mxu0 0
    %4159 = vmatprep.subr.bf16.mxu0 0
    %4160 = vmatpush2.bf16.msra.mxu0 0
    %4161 = vmatprep.subr.bf16.mxu0 0
    %4162 = vmatpush2.bf16.msra.mxu0 0
    %4163 = vmatprep.subr.bf16.mxu0 0
    %4164 = vmatpush2.bf16.msra.mxu0 0
    %4165 = vmatprep.subr.bf16.mxu0 0
    %4166 = vmatpush2.bf16.msra.mxu0 0
    %4167 = vmatprep.subr.bf16.mxu0 0
    %4168 = vmatpush2.bf16.msra.mxu0 0
    %4169 = vmatprep.subr.bf16.mxu0 0
    %4170 = vmatpush2.bf16.msra.mxu0 0
    %4171 = vmatprep.subr.bf16.mxu0 0
    %4172 = vmatpush2.bf16.msra.mxu0 0
    %4173 = vmatprep.mubr.bf16.mxu0 0
    %4174 = vmatmul.mubr.bf16.gmra.mxu0 %v4136
    %v4175 = vpop.f32.mrf.mxu0
    %v4176 = vadd.f32 0.0, %v4175
    %v4177 = vpop.f32.mrf.mxu0
    %v4178 = vpop.f32.mrf.mxu0
    %v4179 = vpop.f32.mrf.mxu0
    %4180 = vdwg.mxu0
    %4182 = vrot.lane.b32.xlu0 %v3785, 112
    %v4183 = vpop.permute.xlu0 %4182
    %v4185 = vsel %vm1055, %v4131, 0
    %v4188 = vsel %vm1083, %v4183, 0
    %4190 = vmatprep.subr.bf16.mxu0 0
    %4191 = vmatpush1.bf16.msra.mxu0 0
    %4192 = vmatprep.subr.bf16.mxu0 0
    %4193 = vmatpush1.bf16.msra.mxu0 0
    %4194 = vmatprep.subr.bf16.mxu0 0
    %4195 = vmatpush1.bf16.msra.mxu0 0
    %4196 = vmatprep.subr.bf16.mxu0 0
    %4197 = vmatpush1.bf16.msra.mxu0 0
    %4198 = vmatprep.subr.bf16.mxu0 0
    %4199 = vmatpush1.bf16.msra.mxu0 0
    %4200 = vmatprep.subr.bf16.mxu0 0
    %4201 = vmatpush1.bf16.msra.mxu0 0
    %4202 = vmatprep.subr.bf16.mxu0 0
    %4203 = vmatpush1.bf16.msra.mxu0 0
    %4204 = vmatprep.subr.bf16.mxu0 0
    %4205 = vmatpush1.bf16.msra.mxu0 %v4188
    %4206 = vmatprep.subr.bf16.mxu0 0
    %4207 = vmatpush2.bf16.msra.mxu0 0
    %4208 = vmatprep.subr.bf16.mxu0 0
    %4209 = vmatpush2.bf16.msra.mxu0 0
    %4210 = vmatprep.subr.bf16.mxu0 0
    %4211 = vmatpush2.bf16.msra.mxu0 0
    %4212 = vmatprep.subr.bf16.mxu0 0
    %4213 = vmatpush2.bf16.msra.mxu0 0
    %4214 = vmatprep.subr.bf16.mxu0 0
    %4215 = vmatpush2.bf16.msra.mxu0 0
    %4216 = vmatprep.subr.bf16.mxu0 0
    %4217 = vmatpush2.bf16.msra.mxu0 0
    %4218 = vmatprep.subr.bf16.mxu0 0
    %4219 = vmatpush2.bf16.msra.mxu0 0
    %4220 = vmatprep.subr.bf16.mxu0 0
    %4221 = vmatpush2.bf16.msra.mxu0 0
    %4222 = vmatprep.mubr.bf16.mxu0 0
    %4223 = vmatmul.mubr.bf16.gmra.mxu0 %v4185
    %v4224 = vpop.f32.mrf.mxu0
    %v4225 = vadd.f32 0.0, %v4224
    %v4226 = vpop.f32.mrf.mxu0
    %v4227 = vpop.f32.mrf.mxu0
    %v4228 = vpop.f32.mrf.mxu0
    %4229 = vdwg.mxu0
    %4230 = vrot.lane.b32.xlu0 %v3782, 96
    %v4231 = vpop.permute.xlu0 %4230
    %4232 = vrot.lane.b32.xlu0 %v3782, 32
    %v4233 = vpop.permute.xlu0 %4232
    %v4235 = vsel %vm955, %v4231, 0
    %v4238 = vsel %vm955, %v4233, 0
    %4240 = vmatprep.subr.bf16.mxu0 0
    %4241 = vmatpush1.bf16.xpose.msra.mxu0 0
    %4242 = vmatprep.subr.bf16.mxu0 0
    %4243 = vmatpush1.bf16.xpose.msra.mxu0 0
    %4244 = vmatprep.subr.bf16.mxu0 0
    %4245 = vmatpush1.bf16.xpose.msra.mxu0 0
    %4246 = vmatprep.subr.bf16.mxu0 0
    %4247 = vmatpush1.bf16.xpose.msra.mxu0 0
    %4248 = vmatprep.subr.bf16.mxu0 0
    %4249 = vmatpush1.bf16.xpose.msra.mxu0 0
    %4250 = vmatprep.subr.bf16.mxu0 0
    %4251 = vmatpush1.bf16.xpose.msra.mxu0 0
    %4252 = vmatprep.subr.bf16.mxu0 0
    %4253 = vmatpush1.bf16.xpose.msra.mxu0 0
    %4254 = vmatprep.subr.bf16.mxu0 0
    %4255 = vmatpush1.bf16.xpose.msra.mxu0 %v4238
    %4256 = vmatprep.subr.bf16.mxu0 0
    %4257 = vmatpush2.bf16.xpose.msra.mxu0 0
    %4258 = vmatprep.subr.bf16.mxu0 0
    %4259 = vmatpush2.bf16.xpose.msra.mxu0 0
    %4260 = vmatprep.subr.bf16.mxu0 0
    %4261 = vmatpush2.bf16.xpose.msra.mxu0 0
    %4262 = vmatprep.subr.bf16.mxu0 0
    %4263 = vmatpush2.bf16.xpose.msra.mxu0 0
    %4264 = vmatprep.subr.bf16.mxu0 0
    %4265 = vmatpush2.bf16.xpose.msra.mxu0 0
    %4266 = vmatprep.subr.bf16.mxu0 0
    %4267 = vmatpush2.bf16.xpose.msra.mxu0 0
    %4268 = vmatprep.subr.bf16.mxu0 0
    %4269 = vmatpush2.bf16.xpose.msra.mxu0 0
    %4270 = vmatprep.subr.bf16.mxu0 0
    %4271 = vmatpush2.bf16.xpose.msra.mxu0 0
    %4272 = vmatprep.mubr.bf16.mxu0 0
    %4273 = vmatmul.mubr.bf16.gmra.mxu0 %v4235
    %v4274 = vpop.f32.mrf.mxu0
    %v4275 = vadd.f32 0.0, %v4274
    %v4276 = vpop.f32.mrf.mxu0
    %v4277 = vpop.f32.mrf.mxu0
    %v4278 = vpop.f32.mrf.mxu0
    %4279 = vdwg.mxu0
    %4280 = vrot.lane.b32.xlu0 %v3783, 96
    %v4281 = vpop.permute.xlu0 %4280
    %4282 = vrot.lane.b32.xlu0 %v3783, 32
    %v4283 = vpop.permute.xlu0 %4282
    %v4285 = vsel %vm955, %v4281, 0
    %v4288 = vsel %vm955, %v4283, 0
    %4290 = vmatprep.subr.bf16.mxu0 0
    %4291 = vmatpush1.bf16.xpose.msra.mxu0 0
    %4292 = vmatprep.subr.bf16.mxu0 0
    %4293 = vmatpush1.bf16.xpose.msra.mxu0 0
    %4294 = vmatprep.subr.bf16.mxu0 0
    %4295 = vmatpush1.bf16.xpose.msra.mxu0 0
    %4296 = vmatprep.subr.bf16.mxu0 0
    %4297 = vmatpush1.bf16.xpose.msra.mxu0 0
    %4298 = vmatprep.subr.bf16.mxu0 0
    %4299 = vmatpush1.bf16.xpose.msra.mxu0 0
    %4300 = vmatprep.subr.bf16.mxu0 0
    %4301 = vmatpush1.bf16.xpose.msra.mxu0 0
    %4302 = vmatprep.subr.bf16.mxu0 0
    %4303 = vmatpush1.bf16.xpose.msra.mxu0 0
    %4304 = vmatprep.subr.bf16.mxu0 0
    %4305 = vmatpush1.bf16.xpose.msra.mxu0 %v4288
    %4306 = vmatprep.subr.bf16.mxu0 0
    %4307 = vmatpush2.bf16.xpose.msra.mxu0 0
    %4308 = vmatprep.subr.bf16.mxu0 0
    %4309 = vmatpush2.bf16.xpose.msra.mxu0 0
    %4310 = vmatprep.subr.bf16.mxu0 0
    %4311 = vmatpush2.bf16.xpose.msra.mxu0 0
    %4312 = vmatprep.subr.bf16.mxu0 0
    %4313 = vmatpush2.bf16.xpose.msra.mxu0 0
    %4314 = vmatprep.subr.bf16.mxu0 0
    %4315 = vmatpush2.bf16.xpose.msra.mxu0 0
    %4316 = vmatprep.subr.bf16.mxu0 0
    %4317 = vmatpush2.bf16.xpose.msra.mxu0 0
    %4318 = vmatprep.subr.bf16.mxu0 0
    %4319 = vmatpush2.bf16.xpose.msra.mxu0 0
    %4320 = vmatprep.subr.bf16.mxu0 0
    %4321 = vmatpush2.bf16.xpose.msra.mxu0 0
    %4322 = vmatprep.mubr.bf16.mxu0 0
    %4323 = vmatmul.mubr.bf16.gmra.mxu0 %v4285
    %v4324 = vpop.f32.mrf.mxu0
    %v4325 = vadd.f32 0.0, %v4324
    %v4326 = vpop.f32.mrf.mxu0
    %v4327 = vpop.f32.mrf.mxu0
    %v4328 = vpop.f32.mrf.mxu0
    %4329 = vdwg.mxu0
    %v4330 = vmul.f32 %v4275, 0.25
    %v4331 = vmul.f32 %v4325, 0.25
    %v4332 = vadd.f32 %v4330, %v620
    %v4333 = vadd.f32 %v4331, %v621
    %v4334 = vsel %vm1055, %v4332, -inf
    %4335 = vmax.xlane.f32.xlu0 %v4334
    %v4336 = vpop.xlane.xlu0 %4335
    %v4337 = vsel %vm1055, %v4333, -inf
    %4338 = vmax.xlane.f32.xlu0 %v4337
    %v4339 = vpop.xlane.xlu0 %4338
    %v4340 = vsub.f32 %v4332, %v4336
    %v4341 = vsub.f32 %v4333, %v4339
    %v4342 = vmul.f32 %v4340, 1.442695
    %v4343 = vpow.pop %v4342
    %v4344 = vmul.f32 %v4341, 1.442695
    %v4345 = vpow.pop %v4344
    %v4346 = vsel %vm1055, %v4343, 0.0
    %4347 = vadd.xlane.f32.xlu0 %v4346
    %v4348 = vpop.xlane.xlu0 %4347
    %v4349 = vsel %vm1055, %v4345, 0.0
    %4350 = vadd.xlane.f32.xlu0 %v4349
    %v4351 = vpop.xlane.xlu0 %4350
    %v4352 = vrcp.pop %v4348
    %v4353 = vrcp.pop %v4351
    %v4354 = vmul.f32 %v4343, %v4352
    %v4355 = vmul.f32 %v4345, %v4353
    %v4356 = vpack.c.bf16 %v4354, %v4354
    %v4357 = vpack.c.bf16 %v4355, %v4355
    %4358 = vrot.lane.b32.xlu0 %v3784, 96
    %v4359 = vpop.permute.xlu0 %4358
    %v4361 = vsel %vm1055, %v4356, 0
    %v4364 = vsel %vm1083, %v4359, 0
    %4366 = vmatprep.subr.bf16.mxu0 0
    %4367 = vmatpush1.bf16.msra.mxu0 0
    %4368 = vmatprep.subr.bf16.mxu0 0
    %4369 = vmatpush1.bf16.msra.mxu0 0
    %4370 = vmatprep.subr.bf16.mxu0 0
    %4371 = vmatpush1.bf16.msra.mxu0 0
    %4372 = vmatprep.subr.bf16.mxu0 0
    %4373 = vmatpush1.bf16.msra.mxu0 0
    %4374 = vmatprep.subr.bf16.mxu0 0
    %4375 = vmatpush1.bf16.msra.mxu0 0
    %4376 = vmatprep.subr.bf16.mxu0 0
    %4377 = vmatpush1.bf16.msra.mxu0 0
    %4378 = vmatprep.subr.bf16.mxu0 0
    %4379 = vmatpush1.bf16.msra.mxu0 0
    %4380 = vmatprep.subr.bf16.mxu0 0
    %4381 = vmatpush1.bf16.msra.mxu0 %v4364
    %4382 = vmatprep.subr.bf16.mxu0 0
    %4383 = vmatpush2.bf16.msra.mxu0 0
    %4384 = vmatprep.subr.bf16.mxu0 0
    %4385 = vmatpush2.bf16.msra.mxu0 0
    %4386 = vmatprep.subr.bf16.mxu0 0
    %4387 = vmatpush2.bf16.msra.mxu0 0
    %4388 = vmatprep.subr.bf16.mxu0 0
    %4389 = vmatpush2.bf16.msra.mxu0 0
    %4390 = vmatprep.subr.bf16.mxu0 0
    %4391 = vmatpush2.bf16.msra.mxu0 0
    %4392 = vmatprep.subr.bf16.mxu0 0
    %4393 = vmatpush2.bf16.msra.mxu0 0
    %4394 = vmatprep.subr.bf16.mxu0 0
    %4395 = vmatpush2.bf16.msra.mxu0 0
    %4396 = vmatprep.subr.bf16.mxu0 0
    %4397 = vmatpush2.bf16.msra.mxu0 0
    %4398 = vmatprep.mubr.bf16.mxu0 0
    %4399 = vmatmul.mubr.bf16.gmra.mxu0 %v4361
    %v4400 = vpop.f32.mrf.mxu0
    %v4401 = vadd.f32 0.0, %v4400
    %v4402 = vpop.f32.mrf.mxu0
    %v4403 = vpop.f32.mrf.mxu0
    %v4404 = vpop.f32.mrf.mxu0
    %4405 = vdwg.mxu0
    %4406 = vrot.lane.b32.xlu0 %v3785, 96
    %v4407 = vpop.permute.xlu0 %4406
    %v4409 = vsel %vm1055, %v4357, 0
    %v4412 = vsel %vm1083, %v4407, 0
    %4414 = vmatprep.subr.bf16.mxu0 0
    %4415 = vmatpush1.bf16.msra.mxu0 0
    %4416 = vmatprep.subr.bf16.mxu0 0
    %4417 = vmatpush1.bf16.msra.mxu0 0
    %4418 = vmatprep.subr.bf16.mxu0 0
    %4419 = vmatpush1.bf16.msra.mxu0 0
    %4420 = vmatprep.subr.bf16.mxu0 0
    %4421 = vmatpush1.bf16.msra.mxu0 0
    %4422 = vmatprep.subr.bf16.mxu0 0
    %4423 = vmatpush1.bf16.msra.mxu0 0
    %4424 = vmatprep.subr.bf16.mxu0 0
    %4425 = vmatpush1.bf16.msra.mxu0 0
    %4426 = vmatprep.subr.bf16.mxu0 0
    %4427 = vmatpush1.bf16.msra.mxu0 0
    %4428 = vmatprep.subr.bf16.mxu0 0
    %4429 = vmatpush1.bf16.msra.mxu0 %v4412
    %4430 = vmatprep.subr.bf16.mxu0 0
    %4431 = vmatpush2.bf16.msra.mxu0 0
    %4432 = vmatprep.subr.bf16.mxu0 0
    %4433 = vmatpush2.bf16.msra.mxu0 0
    %4434 = vmatprep.subr.bf16.mxu0 0
    %4435 = vmatpush2.bf16.msra.mxu0 0
    %4436 = vmatprep.subr.bf16.mxu0 0
    %4437 = vmatpush2.bf16.msra.mxu0 0
    %4438 = vmatprep.subr.bf16.mxu0 0
    %4439 = vmatpush2.bf16.msra.mxu0 0
    %4440 = vmatprep.subr.bf16.mxu0 0
    %4441 = vmatpush2.bf16.msra.mxu0 0
    %4442 = vmatprep.subr.bf16.mxu0 0
    %4443 = vmatpush2.bf16.msra.mxu0 0
    %4444 = vmatprep.subr.bf16.mxu0 0
    %4445 = vmatpush2.bf16.msra.mxu0 0
    %4446 = vmatprep.mubr.bf16.mxu0 0
    %4447 = vmatmul.mubr.bf16.gmra.mxu0 %v4409
    %v4448 = vpop.f32.mrf.mxu0
    %v4449 = vadd.f32 0.0, %v4448
    %v4450 = vpop.f32.mrf.mxu0
    %v4451 = vpop.f32.mrf.mxu0
    %v4452 = vpop.f32.mrf.mxu0
    %4453 = vdwg.mxu0
    %4454 = vrot.lane.b32.xlu0 %v3782, 80
    %v4455 = vpop.permute.xlu0 %4454
    %4456 = vrot.lane.b32.xlu0 %v3782, 16
    %v4457 = vpop.permute.xlu0 %4456
    %v4459 = vsel %vm955, %v4455, 0
    %v4462 = vsel %vm955, %v4457, 0
    %4464 = vmatprep.subr.bf16.mxu0 0
    %4465 = vmatpush1.bf16.xpose.msra.mxu0 0
    %4466 = vmatprep.subr.bf16.mxu0 0
    %4467 = vmatpush1.bf16.xpose.msra.mxu0 0
    %4468 = vmatprep.subr.bf16.mxu0 0
    %4469 = vmatpush1.bf16.xpose.msra.mxu0 0
    %4470 = vmatprep.subr.bf16.mxu0 0
    %4471 = vmatpush1.bf16.xpose.msra.mxu0 0
    %4472 = vmatprep.subr.bf16.mxu0 0
    %4473 = vmatpush1.bf16.xpose.msra.mxu0 0
    %4474 = vmatprep.subr.bf16.mxu0 0
    %4475 = vmatpush1.bf16.xpose.msra.mxu0 0
    %4476 = vmatprep.subr.bf16.mxu0 0
    %4477 = vmatpush1.bf16.xpose.msra.mxu0 0
    %4478 = vmatprep.subr.bf16.mxu0 0
    %4479 = vmatpush1.bf16.xpose.msra.mxu0 %v4462
    %4480 = vmatprep.subr.bf16.mxu0 0
    %4481 = vmatpush2.bf16.xpose.msra.mxu0 0
    %4482 = vmatprep.subr.bf16.mxu0 0
    %4483 = vmatpush2.bf16.xpose.msra.mxu0 0
    %4484 = vmatprep.subr.bf16.mxu0 0
    %4485 = vmatpush2.bf16.xpose.msra.mxu0 0
    %4486 = vmatprep.subr.bf16.mxu0 0
    %4487 = vmatpush2.bf16.xpose.msra.mxu0 0
    %4488 = vmatprep.subr.bf16.mxu0 0
    %4489 = vmatpush2.bf16.xpose.msra.mxu0 0
    %4490 = vmatprep.subr.bf16.mxu0 0
    %4491 = vmatpush2.bf16.xpose.msra.mxu0 0
    %4492 = vmatprep.subr.bf16.mxu0 0
    %4493 = vmatpush2.bf16.xpose.msra.mxu0 0
    %4494 = vmatprep.subr.bf16.mxu0 0
    %4495 = vmatpush2.bf16.xpose.msra.mxu0 0
    %4496 = vmatprep.mubr.bf16.mxu0 0
    %4497 = vmatmul.mubr.bf16.gmra.mxu0 %v4459
    %v4498 = vpop.f32.mrf.mxu0
    %v4499 = vadd.f32 0.0, %v4498
    %v4500 = vpop.f32.mrf.mxu0
    %v4501 = vpop.f32.mrf.mxu0
    %v4502 = vpop.f32.mrf.mxu0
    %4503 = vdwg.mxu0
    %4504 = vrot.lane.b32.xlu0 %v3783, 80
    %v4505 = vpop.permute.xlu0 %4504
    %4506 = vrot.lane.b32.xlu0 %v3783, 16
    %v4507 = vpop.permute.xlu0 %4506
    %v4509 = vsel %vm955, %v4505, 0
    %v4512 = vsel %vm955, %v4507, 0
    %4514 = vmatprep.subr.bf16.mxu0 0
    %4515 = vmatpush1.bf16.xpose.msra.mxu0 0
    %4516 = vmatprep.subr.bf16.mxu0 0
    %4517 = vmatpush1.bf16.xpose.msra.mxu0 0
    %4518 = vmatprep.subr.bf16.mxu0 0
    %4519 = vmatpush1.bf16.xpose.msra.mxu0 0
    %4520 = vmatprep.subr.bf16.mxu0 0
    %4521 = vmatpush1.bf16.xpose.msra.mxu0 0
    %4522 = vmatprep.subr.bf16.mxu0 0
    %4523 = vmatpush1.bf16.xpose.msra.mxu0 0
    %4524 = vmatprep.subr.bf16.mxu0 0
    %4525 = vmatpush1.bf16.xpose.msra.mxu0 0
    %4526 = vmatprep.subr.bf16.mxu0 0
    %4527 = vmatpush1.bf16.xpose.msra.mxu0 0
    %4528 = vmatprep.subr.bf16.mxu0 0
    %4529 = vmatpush1.bf16.xpose.msra.mxu0 %v4512
    %4530 = vmatprep.subr.bf16.mxu0 0
    %4531 = vmatpush2.bf16.xpose.msra.mxu0 0
    %4532 = vmatprep.subr.bf16.mxu0 0
    %4533 = vmatpush2.bf16.xpose.msra.mxu0 0
    %4534 = vmatprep.subr.bf16.mxu0 0
    %4535 = vmatpush2.bf16.xpose.msra.mxu0 0
    %4536 = vmatprep.subr.bf16.mxu0 0
    %4537 = vmatpush2.bf16.xpose.msra.mxu0 0
    %4538 = vmatprep.subr.bf16.mxu0 0
    %4539 = vmatpush2.bf16.xpose.msra.mxu0 0
    %4540 = vmatprep.subr.bf16.mxu0 0
    %4541 = vmatpush2.bf16.xpose.msra.mxu0 0
    %4542 = vmatprep.subr.bf16.mxu0 0
    %4543 = vmatpush2.bf16.xpose.msra.mxu0 0
    %4544 = vmatprep.subr.bf16.mxu0 0
    %4545 = vmatpush2.bf16.xpose.msra.mxu0 0
    %4546 = vmatprep.mubr.bf16.mxu0 0
    %4547 = vmatmul.mubr.bf16.gmra.mxu0 %v4509
    %v4548 = vpop.f32.mrf.mxu0
    %v4549 = vadd.f32 0.0, %v4548
    %v4550 = vpop.f32.mrf.mxu0
    %v4551 = vpop.f32.mrf.mxu0
    %v4552 = vpop.f32.mrf.mxu0
    %4553 = vdwg.mxu0
    %v4554 = vmul.f32 %v4499, 0.25
    %v4555 = vmul.f32 %v4549, 0.25
    %v4556 = vadd.f32 %v4554, %v620
    %v4557 = vadd.f32 %v4555, %v621
    %v4558 = vsel %vm1055, %v4556, -inf
    %4559 = vmax.xlane.f32.xlu0 %v4558
    %v4560 = vpop.xlane.xlu0 %4559
    %v4561 = vsel %vm1055, %v4557, -inf
    %4562 = vmax.xlane.f32.xlu0 %v4561
    %v4563 = vpop.xlane.xlu0 %4562
    %v4564 = vsub.f32 %v4556, %v4560
    %v4565 = vsub.f32 %v4557, %v4563
    %v4566 = vmul.f32 %v4564, 1.442695
    %v4567 = vpow.pop %v4566
    %v4568 = vmul.f32 %v4565, 1.442695
    %v4569 = vpow.pop %v4568
    %v4570 = vsel %vm1055, %v4567, 0.0
    %4571 = vadd.xlane.f32.xlu0 %v4570
    %v4572 = vpop.xlane.xlu0 %4571
    %v4573 = vsel %vm1055, %v4569, 0.0
    %4574 = vadd.xlane.f32.xlu0 %v4573
    %v4575 = vpop.xlane.xlu0 %4574
    %v4576 = vrcp.pop %v4572
    %v4577 = vrcp.pop %v4575
    %v4578 = vmul.f32 %v4567, %v4576
    %v4579 = vmul.f32 %v4569, %v4577
    %v4580 = vpack.c.bf16 %v4578, %v4578
    %v4581 = vpack.c.bf16 %v4579, %v4579
    %4582 = vrot.lane.b32.xlu0 %v3784, 80
    %v4583 = vpop.permute.xlu0 %4582
    %v4585 = vsel %vm1055, %v4580, 0
    %v4588 = vsel %vm1083, %v4583, 0
    %4590 = vmatprep.subr.bf16.mxu0 0
    %4591 = vmatpush1.bf16.msra.mxu0 0
    %4592 = vmatprep.subr.bf16.mxu0 0
    %4593 = vmatpush1.bf16.msra.mxu0 0
    %4594 = vmatprep.subr.bf16.mxu0 0
    %4595 = vmatpush1.bf16.msra.mxu0 0
    %4596 = vmatprep.subr.bf16.mxu0 0
    %4597 = vmatpush1.bf16.msra.mxu0 0
    %4598 = vmatprep.subr.bf16.mxu0 0
    %4599 = vmatpush1.bf16.msra.mxu0 0
    %4600 = vmatprep.subr.bf16.mxu0 0
    %4601 = vmatpush1.bf16.msra.mxu0 0
    %4602 = vmatprep.subr.bf16.mxu0 0
    %4603 = vmatpush1.bf16.msra.mxu0 0
    %4604 = vmatprep.subr.bf16.mxu0 0
    %4605 = vmatpush1.bf16.msra.mxu0 %v4588
    %4606 = vmatprep.subr.bf16.mxu0 0
    %4607 = vmatpush2.bf16.msra.mxu0 0
    %4608 = vmatprep.subr.bf16.mxu0 0
    %4609 = vmatpush2.bf16.msra.mxu0 0
    %4610 = vmatprep.subr.bf16.mxu0 0
    %4611 = vmatpush2.bf16.msra.mxu0 0
    %4612 = vmatprep.subr.bf16.mxu0 0
    %4613 = vmatpush2.bf16.msra.mxu0 0
    %4614 = vmatprep.subr.bf16.mxu0 0
    %4615 = vmatpush2.bf16.msra.mxu0 0
    %4616 = vmatprep.subr.bf16.mxu0 0
    %4617 = vmatpush2.bf16.msra.mxu0 0
    %4618 = vmatprep.subr.bf16.mxu0 0
    %4619 = vmatpush2.bf16.msra.mxu0 0
    %4620 = vmatprep.subr.bf16.mxu0 0
    %4621 = vmatpush2.bf16.msra.mxu0 0
    %4622 = vmatprep.mubr.bf16.mxu0 0
    %4623 = vmatmul.mubr.bf16.gmra.mxu0 %v4585
    %v4624 = vpop.f32.mrf.mxu0
    %v4625 = vadd.f32 0.0, %v4624
    %v4626 = vpop.f32.mrf.mxu0
    %v4627 = vpop.f32.mrf.mxu0
    %v4628 = vpop.f32.mrf.mxu0
    %4629 = vdwg.mxu0
    %4630 = vrot.lane.b32.xlu0 %v3785, 80
    %v4631 = vpop.permute.xlu0 %4630
    %v4633 = vsel %vm1055, %v4581, 0
    %v4636 = vsel %vm1083, %v4631, 0
    %4638 = vmatprep.subr.bf16.mxu0 0
    %4639 = vmatpush1.bf16.msra.mxu0 0
    %4640 = vmatprep.subr.bf16.mxu0 0
    %4641 = vmatpush1.bf16.msra.mxu0 0
    %4642 = vmatprep.subr.bf16.mxu0 0
    %4643 = vmatpush1.bf16.msra.mxu0 0
    %4644 = vmatprep.subr.bf16.mxu0 0
    %4645 = vmatpush1.bf16.msra.mxu0 0
    %4646 = vmatprep.subr.bf16.mxu0 0
    %4647 = vmatpush1.bf16.msra.mxu0 0
    %4648 = vmatprep.subr.bf16.mxu0 0
    %4649 = vmatpush1.bf16.msra.mxu0 0
    %4650 = vmatprep.subr.bf16.mxu0 0
    %4651 = vmatpush1.bf16.msra.mxu0 0
    %4652 = vmatprep.subr.bf16.mxu0 0
    %4653 = vmatpush1.bf16.msra.mxu0 %v4636
    %4654 = vmatprep.subr.bf16.mxu0 0
    %4655 = vmatpush2.bf16.msra.mxu0 0
    %4656 = vmatprep.subr.bf16.mxu0 0
    %4657 = vmatpush2.bf16.msra.mxu0 0
    %4658 = vmatprep.subr.bf16.mxu0 0
    %4659 = vmatpush2.bf16.msra.mxu0 0
    %4660 = vmatprep.subr.bf16.mxu0 0
    %4661 = vmatpush2.bf16.msra.mxu0 0
    %4662 = vmatprep.subr.bf16.mxu0 0
    %4663 = vmatpush2.bf16.msra.mxu0 0
    %4664 = vmatprep.subr.bf16.mxu0 0
    %4665 = vmatpush2.bf16.msra.mxu0 0
    %4666 = vmatprep.subr.bf16.mxu0 0
    %4667 = vmatpush2.bf16.msra.mxu0 0
    %4668 = vmatprep.subr.bf16.mxu0 0
    %4669 = vmatpush2.bf16.msra.mxu0 0
    %4670 = vmatprep.mubr.bf16.mxu0 0
    %4671 = vmatmul.mubr.bf16.gmra.mxu0 %v4633
    %v4672 = vpop.f32.mrf.mxu0
    %v4673 = vadd.f32 0.0, %v4672
    %v4674 = vpop.f32.mrf.mxu0
    %v4675 = vpop.f32.mrf.mxu0
    %v4676 = vpop.f32.mrf.mxu0
    %4677 = vdwg.mxu0
    %4680 = vrot.lane.b32.xlu0 %v4176, 16
    %v4681 = vpop.permute.xlu0 %4680
    %4682 = vrot.lane.b32.xlu0 %v4225, 16
    %v4683 = vpop.permute.xlu0 %4682
    %4688 = vrot.lane.b32.xlu0 %v4401, 32
    %v4689 = vpop.permute.xlu0 %4688
    %4690 = vrot.lane.b32.xlu0 %v4449, 32
    %v4691 = vpop.permute.xlu0 %4690
    %4696 = vrot.lane.b32.xlu0 %v4625, 48
    %v4697 = vpop.permute.xlu0 %4696
    %4698 = vrot.lane.b32.xlu0 %v4673, 48
    %v4699 = vpop.permute.xlu0 %4698
    %v4702 = vsel %vm955, %v3953, %v4681
    %v4703 = vsel %vm955, %v3999, %v4683
    %v4704 = vsel %vm1873, %v4702, %v4689
    %v4705 = vsel %vm1873, %v4703, %v4691
    %v4706 = vsel %vm1876, %v4704, %v4697
    %v4707 = vsel %vm1876, %v4705, %v4699
    %v4708 = vpack.c.bf16 %v4707, %v4706
    %v4710 = vlaneseq
    %v4711 = vshrl.u32 %v4710, 7
    %v4712 = vsub.s32 0, %v4711
    %v4713 = vrot.slane %v3781, %v4712
    %v4723 = vunpack.c.l.b16 %v3773
    %v4724 = vunpack.c.l.b16 %v3774
    %v4725 = vunpack.c.l.b16 %v3775
    %v4726 = vunpack.c.l.b16 %v3776
    %v4727 = vunpack.c.l.b16 %v3777
    %v4728 = vunpack.c.l.b16 %v3778
    %v4729 = vunpack.c.l.b16 %v3779
    %v4730 = vunpack.c.l.b16 %v3780
    %v4731 = vpack.c.b16 %v4724, %v4723
    %v4732 = vpack.c.b16 %v4726, %v4725
    %v4733 = vpack.c.b16 %v4728, %v4727
    %v4734 = vpack.c.b16 %v4730, %v4729
    %v4740 = vsel %vm892, %v4708, 0
    %4742 = vmatprep.subr.bf16.mxu0 0
    %4743 = vmatpush1.bf16.msra.mxu0 0
    %4744 = vmatprep.subr.bf16.mxu0 0
    %4745 = vmatpush1.bf16.msra.mxu0 0
    %4746 = vmatprep.subr.bf16.mxu0 0
    %4747 = vmatpush1.bf16.msra.mxu0 0
    %4748 = vmatprep.subr.bf16.mxu0 0
    %4749 = vmatpush1.bf16.msra.mxu0 0
    %4750 = vmatprep.subr.bf16.mxu0 0
    %4751 = vmatpush1.bf16.msra.mxu0 %v4734
    %4752 = vmatprep.subr.bf16.mxu0 0
    %4753 = vmatpush1.bf16.msra.mxu0 %v4733
    %4754 = vmatprep.subr.bf16.mxu0 0
    %4755 = vmatpush1.bf16.msra.mxu0 %v4732
    %4756 = vmatprep.subr.bf16.mxu0 0
    %4757 = vmatpush1.bf16.msra.mxu0 %v4731
    %4758 = vmatprep.subr.bf16.mxu0 0
    %4759 = vmatpush2.bf16.msra.mxu0 0
    %4760 = vmatprep.subr.bf16.mxu0 0
    %4761 = vmatpush2.bf16.msra.mxu0 0
    %4762 = vmatprep.subr.bf16.mxu0 0
    %4763 = vmatpush2.bf16.msra.mxu0 0
    %4764 = vmatprep.subr.bf16.mxu0 0
    %4765 = vmatpush2.bf16.msra.mxu0 0
    %4766 = vmatprep.subr.bf16.mxu0 0
    %4767 = vmatpush2.bf16.msra.mxu0 0
    %4768 = vmatprep.subr.bf16.mxu0 0
    %4769 = vmatpush2.bf16.msra.mxu0 0
    %4770 = vmatprep.subr.bf16.mxu0 0
    %4771 = vmatpush2.bf16.msra.mxu0 0
    %4772 = vmatprep.subr.bf16.mxu0 0
    %4773 = vmatpush2.bf16.msra.mxu0 0
    %4774 = vmatprep.mubr.bf16.mxu0 0
    %4775 = vmatmul.mubr.bf16.gmra.mxu0 %v4740
    %v4776 = vpop.f32.mrf.mxu0
    %v4777 = vadd.f32 %v4713, %v4776
    %v4778 = vpop.f32.mrf.mxu0
    %v4779 = vpop.f32.mrf.mxu0
    %v4780 = vadd.f32 %v4713, %v4779
    %v4781 = vpop.f32.mrf.mxu0
    %4782 = vdwg.mxu0
    %v4783 = vadd.f32 %v829, %v4777
    %v4784 = vadd.f32 %v830, %v4780
    %v4785 = vld [vmem:[#allocation26] sm:$0x1]
    %v4786 = vld [vmem:[#allocation28] sm:$0x1]
    %v4787 = vsel %vm892, %v4783, 0.0
    %4788 = vadd.xlane.f32.xlu0 %v4787
    %v4789 = vpop.xlane.xlu0 %4788
    %v4790 = vsel %vm892, %v4784, 0.0
    %4791 = vadd.xlane.f32.xlu0 %v4790
    %v4792 = vpop.xlane.xlu0 %4791
    %v4793 = vmul.f32 %v4789, %v1964
    %v4794 = vmul.f32 %v4792, %v1964
    %v4795 = vsub.f32 %v4783, %v4793
    %v4796 = vsub.f32 %v4784, %v4794
    %v4797 = vmul.f32 %v4795, %v4795
    %v4798 = vmul.f32 %v4796, %v4796
    %v4799 = vsel %vm892, %v4797, 0.0
    %4800 = vadd.xlane.f32.xlu0 %v4799
    %v4801 = vpop.xlane.xlu0 %4800
    %v4802 = vsel %vm892, %v4798, 0.0
    %4803 = vadd.xlane.f32.xlu0 %v4802
    %v4804 = vpop.xlane.xlu0 %4803
    %v4805 = vmul.f32 %v4801, %v1964
    %v4806 = vmul.f32 %v4804, %v1964
    %v4807 = vadd.f32 %v4805, 1e-05
    %v4808 = vadd.f32 %v4806, 1e-05
    %v4809 = vrsqrt.pop %v4807
    %v4810 = vrsqrt.pop %v4808
    %v4811 = vmul.f32 %v4795, %v4809
    %v4812 = vmul.f32 %v4796, %v4810
    %v4814 = vlaneseq
    %v4815 = vshrl.u32 %v4814, 7
    %v4816 = vsub.s32 0, %v4815
    %v4817 = vrot.slane %v4785, %v4816
    %v4819 = vmul.f32 %v4811, %v4817
    %v4820 = vmul.f32 %v4812, %v4817
    %v4822 = vlaneseq
    %v4823 = vshrl.u32 %v4822, 7
    %v4824 = vsub.s32 0, %v4823
    %v4825 = vrot.slane %v4786, %v4824
    %v4827 = vadd.f32 %v4819, %v4825
    %v4828 = vadd.f32 %v4820, %v4825
    %v4829 = vld [vmem:[#allocation29] sm:$0xf]
    %v4830 = vld [vmem:[#allocation29 + $0x4] sm:$0xf]
    %v4831 = vld [vmem:[#allocation29 + $0x8] sm:$0xf]
    %v4832 = vld [vmem:[#allocation29 + $0xc] sm:$0xf]
    %v4833 = vld [vmem:[#allocation29 + $0x10] sm:$0xf]
    %v4834 = vld [vmem:[#allocation29 + $0x14] sm:$0xf]
    %v4835 = vld [vmem:[#allocation29 + $0x18] sm:$0xf]
    %v4836 = vld [vmem:[#allocation29 + $0x1c] sm:$0xf]
    %v4837 = vld [vmem:[#allocation31] sm:$0x1]
    %v4838 = vpack.c.bf16 %v4828, %v4827
    %v4840 = vlaneseq
    %v4841 = vshrl.u32 %v4840, 7
    %v4842 = vsub.s32 0, %v4841
    %v4843 = vrot.slane %v4837, %v4842
    %v4853 = vunpack.c.l.b16 %v4829
    %v4854 = vunpack.c.l.b16 %v4830
    %v4855 = vunpack.c.l.b16 %v4831
    %v4856 = vunpack.c.l.b16 %v4832
    %v4857 = vunpack.c.l.b16 %v4833
    %v4858 = vunpack.c.l.b16 %v4834
    %v4859 = vunpack.c.l.b16 %v4835
    %v4860 = vunpack.c.l.b16 %v4836
    %v4861 = vpack.c.b16 %v4854, %v4853
    %v4862 = vpack.c.b16 %v4856, %v4855
    %v4863 = vpack.c.b16 %v4858, %v4857
    %v4864 = vpack.c.b16 %v4860, %v4859
    %v4870 = vsel %vm892, %v4838, 0
    %4872 = vmatprep.subr.bf16.mxu0 0
    %4873 = vmatpush1.bf16.msra.mxu0 0
    %4874 = vmatprep.subr.bf16.mxu0 0
    %4875 = vmatpush1.bf16.msra.mxu0 0
    %4876 = vmatprep.subr.bf16.mxu0 0
    %4877 = vmatpush1.bf16.msra.mxu0 0
    %4878 = vmatprep.subr.bf16.mxu0 0
    %4879 = vmatpush1.bf16.msra.mxu0 0
    %4880 = vmatprep.subr.bf16.mxu0 0
    %4881 = vmatpush1.bf16.msra.mxu0 %v4864
    %4882 = vmatprep.subr.bf16.mxu0 0
    %4883 = vmatpush1.bf16.msra.mxu0 %v4863
    %4884 = vmatprep.subr.bf16.mxu0 0
    %4885 = vmatpush1.bf16.msra.mxu0 %v4862
    %4886 = vmatprep.subr.bf16.mxu0 0
    %4887 = vmatpush1.bf16.msra.mxu0 %v4861
    %4888 = vmatprep.subr.bf16.mxu0 0
    %4889 = vmatpush2.bf16.msra.mxu0 0
    %4890 = vmatprep.subr.bf16.mxu0 0
    %4891 = vmatpush2.bf16.msra.mxu0 0
    %4892 = vmatprep.subr.bf16.mxu0 0
    %4893 = vmatpush2.bf16.msra.mxu0 0
    %4894 = vmatprep.subr.bf16.mxu0 0
    %4895 = vmatpush2.bf16.msra.mxu0 0
    %4896 = vmatprep.subr.bf16.mxu0 0
    %4897 = vmatpush2.bf16.msra.mxu0 0
    %4898 = vmatprep.subr.bf16.mxu0 0
    %4899 = vmatpush2.bf16.msra.mxu0 0
    %4900 = vmatprep.subr.bf16.mxu0 0
    %4901 = vmatpush2.bf16.msra.mxu0 0
    %4902 = vmatprep.subr.bf16.mxu0 0
    %4903 = vmatpush2.bf16.msra.mxu0 0
    %4904 = vmatprep.mubr.bf16.mxu0 0
    %4905 = vmatmul.mubr.bf16.gmra.mxu0 %v4870
    %v4906 = vpop.f32.mrf.mxu0
    %v4907 = vadd.f32 %v4843, %v4906
    %v4908 = vpop.f32.mrf.mxu0
    %v4909 = vpop.f32.mrf.mxu0
    %v4910 = vadd.f32 %v4843, %v4909
    %v4911 = vpop.f32.mrf.mxu0
    %4912 = vdwg.mxu0
    %v4913 = vld [vmem:[#allocation32] sm:$0xf]
    %v4914 = vld [vmem:[#allocation32 + $0x4] sm:$0xf]
    %v4915 = vld [vmem:[#allocation32 + $0x8] sm:$0xf]
    %v4916 = vld [vmem:[#allocation32 + $0xc] sm:$0xf]
    %v4917 = vld [vmem:[#allocation32 + $0x10] sm:$0xf]
    %v4918 = vld [vmem:[#allocation32 + $0x14] sm:$0xf]
    %v4919 = vld [vmem:[#allocation32 + $0x18] sm:$0xf]
    %v4920 = vld [vmem:[#allocation32 + $0x1c] sm:$0xf]
    %v4921 = vld [vmem:[#allocation34] sm:$0x1]
    %v4922 = vpack.c.bf16 %v3665, %v3664
    %v4924 = vlaneseq
    %v4925 = vshrl.u32 %v4924, 7
    %v4926 = vsub.s32 0, %v4925
    %v4927 = vrot.slane %v4921, %v4926
    %v4937 = vunpack.c.l.b16 %v4913
    %v4938 = vunpack.c.l.b16 %v4914
    %v4939 = vunpack.c.l.b16 %v4915
    %v4940 = vunpack.c.l.b16 %v4916
    %v4941 = vunpack.c.l.b16 %v4917
    %v4942 = vunpack.c.l.b16 %v4918
    %v4943 = vunpack.c.l.b16 %v4919
    %v4944 = vunpack.c.l.b16 %v4920
    %v4945 = vpack.c.b16 %v4938, %v4937
    %v4946 = vpack.c.b16 %v4940, %v4939
    %v4947 = vpack.c.b16 %v4942, %v4941
    %v4948 = vpack.c.b16 %v4944, %v4943
    %v4954 = vsel %vm892, %v4922, 0
    %4956 = vmatprep.subr.bf16.mxu0 0
    %4957 = vmatpush1.bf16.msra.mxu0 0
    %4958 = vmatprep.subr.bf16.mxu0 0
    %4959 = vmatpush1.bf16.msra.mxu0 0
    %4960 = vmatprep.subr.bf16.mxu0 0
    %4961 = vmatpush1.bf16.msra.mxu0 0
    %4962 = vmatprep.subr.bf16.mxu0 0
    %4963 = vmatpush1.bf16.msra.mxu0 0
    %4964 = vmatprep.subr.bf16.mxu0 0
    %4965 = vmatpush1.bf16.msra.mxu0 %v4948
    %4966 = vmatprep.subr.bf16.mxu0 0
    %4967 = vmatpush1.bf16.msra.mxu0 %v4947
    %4968 = vmatprep.subr.bf16.mxu0 0
    %4969 = vmatpush1.bf16.msra.mxu0 %v4946
    %4970 = vmatprep.subr.bf16.mxu0 0
    %4971 = vmatpush1.bf16.msra.mxu0 %v4945
    %4972 = vmatprep.subr.bf16.mxu0 0
    %4973 = vmatpush2.bf16.msra.mxu0 0
    %4974 = vmatprep.subr.bf16.mxu0 0
    %4975 = vmatpush2.bf16.msra.mxu0 0
    %4976 = vmatprep.subr.bf16.mxu0 0
    %4977 = vmatpush2.bf16.msra.mxu0 0
    %4978 = vmatprep.subr.bf16.mxu0 0
    %4979 = vmatpush2.bf16.msra.mxu0 0
    %4980 = vmatprep.subr.bf16.mxu0 0
    %4981 = vmatpush2.bf16.msra.mxu0 0
    %4982 = vmatprep.subr.bf16.mxu0 0
    %4983 = vmatpush2.bf16.msra.mxu0 0
    %4984 = vmatprep.subr.bf16.mxu0 0
    %4985 = vmatpush2.bf16.msra.mxu0 0
    %4986 = vmatprep.subr.bf16.mxu0 0
    %4987 = vmatpush2.bf16.msra.mxu0 0
    %4988 = vmatprep.mubr.bf16.mxu0 0
    %4989 = vmatmul.mubr.bf16.gmra.mxu0 %v4954
    %v4990 = vpop.f32.mrf.mxu0
    %v4991 = vadd.f32 %v4927, %v4990
    %v4992 = vpop.f32.mrf.mxu0
    %v4993 = vpop.f32.mrf.mxu0
    %v4994 = vadd.f32 %v4927, %v4993
    %v4995 = vpop.f32.mrf.mxu0
    %4996 = vdwg.mxu0
    %v4997 = vld [vmem:[#allocation35] sm:$0xf]
    %v4998 = vld [vmem:[#allocation35 + $0x4] sm:$0xf]
    %v4999 = vld [vmem:[#allocation35 + $0x8] sm:$0xf]
    %v5000 = vld [vmem:[#allocation35 + $0xc] sm:$0xf]
    %v5001 = vld [vmem:[#allocation35 + $0x10] sm:$0xf]
    %v5002 = vld [vmem:[#allocation35 + $0x14] sm:$0xf]
    %v5003 = vld [vmem:[#allocation35 + $0x18] sm:$0xf]
    %v5004 = vld [vmem:[#allocation35 + $0x1c] sm:$0xf]
    %v5005 = vld [vmem:[#allocation37] sm:$0x1]
    %v5006 = vpack.c.bf16 %v4907, %v4907
    %v5007 = vpack.c.bf16 %v4910, %v4910
    %v5008 = vpack.c.bf16 %v4991, %v4991
    %v5009 = vpack.c.bf16 %v4994, %v4994
    %v5011 = vsel %vm955, %v5006, 0
    %v5014 = vsel %vm955, %v5008, 0
    %5016 = vmatprep.subr.bf16.mxu0 0
    %5017 = vmatpush1.bf16.xpose.msra.mxu0 0
    %5018 = vmatprep.subr.bf16.mxu0 0
    %5019 = vmatpush1.bf16.xpose.msra.mxu0 0
    %5020 = vmatprep.subr.bf16.mxu0 0
    %5021 = vmatpush1.bf16.xpose.msra.mxu0 0
    %5022 = vmatprep.subr.bf16.mxu0 0
    %5023 = vmatpush1.bf16.xpose.msra.mxu0 0
    %5024 = vmatprep.subr.bf16.mxu0 0
    %5025 = vmatpush1.bf16.xpose.msra.mxu0 0
    %5026 = vmatprep.subr.bf16.mxu0 0
    %5027 = vmatpush1.bf16.xpose.msra.mxu0 0
    %5028 = vmatprep.subr.bf16.mxu0 0
    %5029 = vmatpush1.bf16.xpose.msra.mxu0 0
    %5030 = vmatprep.subr.bf16.mxu0 0
    %5031 = vmatpush1.bf16.xpose.msra.mxu0 %v5014
    %5032 = vmatprep.subr.bf16.mxu0 0
    %5033 = vmatpush2.bf16.xpose.msra.mxu0 0
    %5034 = vmatprep.subr.bf16.mxu0 0
    %5035 = vmatpush2.bf16.xpose.msra.mxu0 0
    %5036 = vmatprep.subr.bf16.mxu0 0
    %5037 = vmatpush2.bf16.xpose.msra.mxu0 0
    %5038 = vmatprep.subr.bf16.mxu0 0
    %5039 = vmatpush2.bf16.xpose.msra.mxu0 0
    %5040 = vmatprep.subr.bf16.mxu0 0
    %5041 = vmatpush2.bf16.xpose.msra.mxu0 0
    %5042 = vmatprep.subr.bf16.mxu0 0
    %5043 = vmatpush2.bf16.xpose.msra.mxu0 0
    %5044 = vmatprep.subr.bf16.mxu0 0
    %5045 = vmatpush2.bf16.xpose.msra.mxu0 0
    %5046 = vmatprep.subr.bf16.mxu0 0
    %5047 = vmatpush2.bf16.xpose.msra.mxu0 0
    %5048 = vmatprep.mubr.bf16.mxu0 0
    %5049 = vmatmul.mubr.bf16.gmra.mxu0 %v5011
    %v5050 = vpop.f32.mrf.mxu0
    %v5051 = vadd.f32 0.0, %v5050
    %v5052 = vpop.f32.mrf.mxu0
    %v5053 = vpop.f32.mrf.mxu0
    %v5054 = vpop.f32.mrf.mxu0
    %5055 = vdwg.mxu0
    %v5057 = vsel %vm955, %v5007, 0
    %v5060 = vsel %vm955, %v5009, 0
    %5062 = vmatprep.subr.bf16.mxu0 0
    %5063 = vmatpush1.bf16.xpose.msra.mxu0 0
    %5064 = vmatprep.subr.bf16.mxu0 0
    %5065 = vmatpush1.bf16.xpose.msra.mxu0 0
    %5066 = vmatprep.subr.bf16.mxu0 0
    %5067 = vmatpush1.bf16.xpose.msra.mxu0 0
    %5068 = vmatprep.subr.bf16.mxu0 0
    %5069 = vmatpush1.bf16.xpose.msra.mxu0 0
    %5070 = vmatprep.subr.bf16.mxu0 0
    %5071 = vmatpush1.bf16.xpose.msra.mxu0 0
    %5072 = vmatprep.subr.bf16.mxu0 0
    %5073 = vmatpush1.bf16.xpose.msra.mxu0 0
    %5074 = vmatprep.subr.bf16.mxu0 0
    %5075 = vmatpush1.bf16.xpose.msra.mxu0 0
    %5076 = vmatprep.subr.bf16.mxu0 0
    %5077 = vmatpush1.bf16.xpose.msra.mxu0 %v5060
    %5078 = vmatprep.subr.bf16.mxu0 0
    %5079 = vmatpush2.bf16.xpose.msra.mxu0 0
    %5080 = vmatprep.subr.bf16.mxu0 0
    %5081 = vmatpush2.bf16.xpose.msra.mxu0 0
    %5082 = vmatprep.subr.bf16.mxu0 0
    %5083 = vmatpush2.bf16.xpose.msra.mxu0 0
    %5084 = vmatprep.subr.bf16.mxu0 0
    %5085 = vmatpush2.bf16.xpose.msra.mxu0 0
    %5086 = vmatprep.subr.bf16.mxu0 0
    %5087 = vmatpush2.bf16.xpose.msra.mxu0 0
    %5088 = vmatprep.subr.bf16.mxu0 0
    %5089 = vmatpush2.bf16.xpose.msra.mxu0 0
    %5090 = vmatprep.subr.bf16.mxu0 0
    %5091 = vmatpush2.bf16.xpose.msra.mxu0 0
    %5092 = vmatprep.subr.bf16.mxu0 0
    %5093 = vmatpush2.bf16.xpose.msra.mxu0 0
    %5094 = vmatprep.mubr.bf16.mxu0 0
    %5095 = vmatmul.mubr.bf16.gmra.mxu0 %v5057
    %v5096 = vpop.f32.mrf.mxu0
    %v5097 = vadd.f32 0.0, %v5096
    %v5098 = vpop.f32.mrf.mxu0
    %v5099 = vpop.f32.mrf.mxu0
    %v5100 = vpop.f32.mrf.mxu0
    %5101 = vdwg.mxu0
    %v5102 = vmul.f32 %v5051, 0.25
    %v5103 = vmul.f32 %v5097, 0.25
    %v5104 = vadd.f32 %v5102, %v601
    %v5105 = vadd.f32 %v5103, %v605
    %v5106 = vsel %vm1055, %v5104, -inf
    %5107 = vmax.xlane.f32.xlu0 %v5106
    %v5108 = vpop.xlane.xlu0 %5107
    %v5109 = vsel %vm1055, %v5105, -inf
    %5110 = vmax.xlane.f32.xlu0 %v5109
    %v5111 = vpop.xlane.xlu0 %5110
    %v5112 = vsub.f32 %v5104, %v5108
    %v5113 = vsub.f32 %v5105, %v5111
    %v5114 = vmul.f32 %v5112, 1.442695
    %v5115 = vpow.pop %v5114
    %v5116 = vmul.f32 %v5113, 1.442695
    %v5117 = vpow.pop %v5116
    %v5118 = vsel %vm1055, %v5115, 0.0
    %5119 = vadd.xlane.f32.xlu0 %v5118
    %v5120 = vpop.xlane.xlu0 %5119
    %v5121 = vsel %vm1055, %v5117, 0.0
    %5122 = vadd.xlane.f32.xlu0 %v5121
    %v5123 = vpop.xlane.xlu0 %5122
    %v5124 = vrcp.pop %v5120
    %v5125 = vrcp.pop %v5123
    %v5126 = vmul.f32 %v5115, %v5124
    %v5127 = vmul.f32 %v5117, %v5125
    %v5128 = vpack.c.bf16 %v5126, %v5126
    %v5129 = vpack.c.bf16 %v5127, %v5127
    %5131 = vrot.lane.b32.xlu0 %v5008, 64
    %v5132 = vpop.permute.xlu0 %5131
    %v5134 = vsel %vm1055, %v5128, 0
    %v5137 = vsel %vm1083, %v5132, 0
    %5139 = vmatprep.subr.bf16.mxu0 0
    %5140 = vmatpush1.bf16.msra.mxu0 0
    %5141 = vmatprep.subr.bf16.mxu0 0
    %5142 = vmatpush1.bf16.msra.mxu0 0
    %5143 = vmatprep.subr.bf16.mxu0 0
    %5144 = vmatpush1.bf16.msra.mxu0 0
    %5145 = vmatprep.subr.bf16.mxu0 0
    %5146 = vmatpush1.bf16.msra.mxu0 0
    %5147 = vmatprep.subr.bf16.mxu0 0
    %5148 = vmatpush1.bf16.msra.mxu0 0
    %5149 = vmatprep.subr.bf16.mxu0 0
    %5150 = vmatpush1.bf16.msra.mxu0 0
    %5151 = vmatprep.subr.bf16.mxu0 0
    %5152 = vmatpush1.bf16.msra.mxu0 0
    %5153 = vmatprep.subr.bf16.mxu0 0
    %5154 = vmatpush1.bf16.msra.mxu0 %v5137
    %5155 = vmatprep.subr.bf16.mxu0 0
    %5156 = vmatpush2.bf16.msra.mxu0 0
    %5157 = vmatprep.subr.bf16.mxu0 0
    %5158 = vmatpush2.bf16.msra.mxu0 0
    %5159 = vmatprep.subr.bf16.mxu0 0
    %5160 = vmatpush2.bf16.msra.mxu0 0
    %5161 = vmatprep.subr.bf16.mxu0 0
    %5162 = vmatpush2.bf16.msra.mxu0 0
    %5163 = vmatprep.subr.bf16.mxu0 0
    %5164 = vmatpush2.bf16.msra.mxu0 0
    %5165 = vmatprep.subr.bf16.mxu0 0
    %5166 = vmatpush2.bf16.msra.mxu0 0
    %5167 = vmatprep.subr.bf16.mxu0 0
    %5168 = vmatpush2.bf16.msra.mxu0 0
    %5169 = vmatprep.subr.bf16.mxu0 0
    %5170 = vmatpush2.bf16.msra.mxu0 0
    %5171 = vmatprep.mubr.bf16.mxu0 0
    %5172 = vmatmul.mubr.bf16.gmra.mxu0 %v5134
    %v5173 = vpop.f32.mrf.mxu0
    %v5174 = vadd.f32 0.0, %v5173
    %v5175 = vpop.f32.mrf.mxu0
    %v5176 = vpop.f32.mrf.mxu0
    %v5177 = vpop.f32.mrf.mxu0
    %5178 = vdwg.mxu0
    %5180 = vrot.lane.b32.xlu0 %v5009, 64
    %v5181 = vpop.permute.xlu0 %5180
    %v5183 = vsel %vm1055, %v5129, 0
    %v5186 = vsel %vm1083, %v5181, 0
    %5188 = vmatprep.subr.bf16.mxu0 0
    %5189 = vmatpush1.bf16.msra.mxu0 0
    %5190 = vmatprep.subr.bf16.mxu0 0
    %5191 = vmatpush1.bf16.msra.mxu0 0
    %5192 = vmatprep.subr.bf16.mxu0 0
    %5193 = vmatpush1.bf16.msra.mxu0 0
    %5194 = vmatprep.subr.bf16.mxu0 0
    %5195 = vmatpush1.bf16.msra.mxu0 0
    %5196 = vmatprep.subr.bf16.mxu0 0
    %5197 = vmatpush1.bf16.msra.mxu0 0
    %5198 = vmatprep.subr.bf16.mxu0 0
    %5199 = vmatpush1.bf16.msra.mxu0 0
    %5200 = vmatprep.subr.bf16.mxu0 0
    %5201 = vmatpush1.bf16.msra.mxu0 0
    %5202 = vmatprep.subr.bf16.mxu0 0
    %5203 = vmatpush1.bf16.msra.mxu0 %v5186
    %5204 = vmatprep.subr.bf16.mxu0 0
    %5205 = vmatpush2.bf16.msra.mxu0 0
    %5206 = vmatprep.subr.bf16.mxu0 0
    %5207 = vmatpush2.bf16.msra.mxu0 0
    %5208 = vmatprep.subr.bf16.mxu0 0
    %5209 = vmatpush2.bf16.msra.mxu0 0
    %5210 = vmatprep.subr.bf16.mxu0 0
    %5211 = vmatpush2.bf16.msra.mxu0 0
    %5212 = vmatprep.subr.bf16.mxu0 0
    %5213 = vmatpush2.bf16.msra.mxu0 0
    %5214 = vmatprep.subr.bf16.mxu0 0
    %5215 = vmatpush2.bf16.msra.mxu0 0
    %5216 = vmatprep.subr.bf16.mxu0 0
    %5217 = vmatpush2.bf16.msra.mxu0 0
    %5218 = vmatprep.subr.bf16.mxu0 0
    %5219 = vmatpush2.bf16.msra.mxu0 0
    %5220 = vmatprep.mubr.bf16.mxu0 0
    %5221 = vmatmul.mubr.bf16.gmra.mxu0 %v5183
    %v5222 = vpop.f32.mrf.mxu0
    %v5223 = vadd.f32 0.0, %v5222
    %v5224 = vpop.f32.mrf.mxu0
    %v5225 = vpop.f32.mrf.mxu0
    %v5226 = vpop.f32.mrf.mxu0
    %5227 = vdwg.mxu0
    %5229 = vrot.lane.b32.xlu0 %v5006, 112
    %v5230 = vpop.permute.xlu0 %5229
    %5231 = vrot.lane.b32.xlu0 %v5008, 112
    %v5232 = vpop.permute.xlu0 %5231
    %v5234 = vsel %vm955, %v5230, 0
    %v5237 = vsel %vm955, %v5232, 0
    %5239 = vmatprep.subr.bf16.mxu0 0
    %5240 = vmatpush1.bf16.xpose.msra.mxu0 0
    %5241 = vmatprep.subr.bf16.mxu0 0
    %5242 = vmatpush1.bf16.xpose.msra.mxu0 0
    %5243 = vmatprep.subr.bf16.mxu0 0
    %5244 = vmatpush1.bf16.xpose.msra.mxu0 0
    %5245 = vmatprep.subr.bf16.mxu0 0
    %5246 = vmatpush1.bf16.xpose.msra.mxu0 0
    %5247 = vmatprep.subr.bf16.mxu0 0
    %5248 = vmatpush1.bf16.xpose.msra.mxu0 0
    %5249 = vmatprep.subr.bf16.mxu0 0
    %5250 = vmatpush1.bf16.xpose.msra.mxu0 0
    %5251 = vmatprep.subr.bf16.mxu0 0
    %5252 = vmatpush1.bf16.xpose.msra.mxu0 0
    %5253 = vmatprep.subr.bf16.mxu0 0
    %5254 = vmatpush1.bf16.xpose.msra.mxu0 %v5237
    %5255 = vmatprep.subr.bf16.mxu0 0
    %5256 = vmatpush2.bf16.xpose.msra.mxu0 0
    %5257 = vmatprep.subr.bf16.mxu0 0
    %5258 = vmatpush2.bf16.xpose.msra.mxu0 0
    %5259 = vmatprep.subr.bf16.mxu0 0
    %5260 = vmatpush2.bf16.xpose.msra.mxu0 0
    %5261 = vmatprep.subr.bf16.mxu0 0
    %5262 = vmatpush2.bf16.xpose.msra.mxu0 0
    %5263 = vmatprep.subr.bf16.mxu0 0
    %5264 = vmatpush2.bf16.xpose.msra.mxu0 0
    %5265 = vmatprep.subr.bf16.mxu0 0
    %5266 = vmatpush2.bf16.xpose.msra.mxu0 0
    %5267 = vmatprep.subr.bf16.mxu0 0
    %5268 = vmatpush2.bf16.xpose.msra.mxu0 0
    %5269 = vmatprep.subr.bf16.mxu0 0
    %5270 = vmatpush2.bf16.xpose.msra.mxu0 0
    %5271 = vmatprep.mubr.bf16.mxu0 0
    %5272 = vmatmul.mubr.bf16.gmra.mxu0 %v5234
    %v5273 = vpop.f32.mrf.mxu0
    %v5274 = vadd.f32 0.0, %v5273
    %v5275 = vpop.f32.mrf.mxu0
    %v5276 = vpop.f32.mrf.mxu0
    %v5277 = vpop.f32.mrf.mxu0
    %5278 = vdwg.mxu0
    %5280 = vrot.lane.b32.xlu0 %v5007, 112
    %v5281 = vpop.permute.xlu0 %5280
    %5282 = vrot.lane.b32.xlu0 %v5009, 112
    %v5283 = vpop.permute.xlu0 %5282
    %v5285 = vsel %vm955, %v5281, 0
    %v5288 = vsel %vm955, %v5283, 0
    %5290 = vmatprep.subr.bf16.mxu0 0
    %5291 = vmatpush1.bf16.xpose.msra.mxu0 0
    %5292 = vmatprep.subr.bf16.mxu0 0
    %5293 = vmatpush1.bf16.xpose.msra.mxu0 0
    %5294 = vmatprep.subr.bf16.mxu0 0
    %5295 = vmatpush1.bf16.xpose.msra.mxu0 0
    %5296 = vmatprep.subr.bf16.mxu0 0
    %5297 = vmatpush1.bf16.xpose.msra.mxu0 0
    %5298 = vmatprep.subr.bf16.mxu0 0
    %5299 = vmatpush1.bf16.xpose.msra.mxu0 0
    %5300 = vmatprep.subr.bf16.mxu0 0
    %5301 = vmatpush1.bf16.xpose.msra.mxu0 0
    %5302 = vmatprep.subr.bf16.mxu0 0
    %5303 = vmatpush1.bf16.xpose.msra.mxu0 0
    %5304 = vmatprep.subr.bf16.mxu0 0
    %5305 = vmatpush1.bf16.xpose.msra.mxu0 %v5288
    %5306 = vmatprep.subr.bf16.mxu0 0
    %5307 = vmatpush2.bf16.xpose.msra.mxu0 0
    %5308 = vmatprep.subr.bf16.mxu0 0
    %5309 = vmatpush2.bf16.xpose.msra.mxu0 0
    %5310 = vmatprep.subr.bf16.mxu0 0
    %5311 = vmatpush2.bf16.xpose.msra.mxu0 0
    %5312 = vmatprep.subr.bf16.mxu0 0
    %5313 = vmatpush2.bf16.xpose.msra.mxu0 0
    %5314 = vmatprep.subr.bf16.mxu0 0
    %5315 = vmatpush2.bf16.xpose.msra.mxu0 0
    %5316 = vmatprep.subr.bf16.mxu0 0
    %5317 = vmatpush2.bf16.xpose.msra.mxu0 0
    %5318 = vmatprep.subr.bf16.mxu0 0
    %5319 = vmatpush2.bf16.xpose.msra.mxu0 0
    %5320 = vmatprep.subr.bf16.mxu0 0
    %5321 = vmatpush2.bf16.xpose.msra.mxu0 0
    %5322 = vmatprep.mubr.bf16.mxu0 0
    %5323 = vmatmul.mubr.bf16.gmra.mxu0 %v5285
    %v5324 = vpop.f32.mrf.mxu0
    %v5325 = vadd.f32 0.0, %v5324
    %v5326 = vpop.f32.mrf.mxu0
    %v5327 = vpop.f32.mrf.mxu0
    %v5328 = vpop.f32.mrf.mxu0
    %5329 = vdwg.mxu0
    %v5330 = vmul.f32 %v5274, 0.25
    %v5331 = vmul.f32 %v5325, 0.25
    %v5332 = vadd.f32 %v5330, %v601
    %v5333 = vadd.f32 %v5331, %v605
    %v5334 = vsel %vm1055, %v5332, -inf
    %5335 = vmax.xlane.f32.xlu0 %v5334
    %v5336 = vpop.xlane.xlu0 %5335
    %v5337 = vsel %vm1055, %v5333, -inf
    %5338 = vmax.xlane.f32.xlu0 %v5337
    %v5339 = vpop.xlane.xlu0 %5338
    %v5340 = vsub.f32 %v5332, %v5336
    %v5341 = vsub.f32 %v5333, %v5339
    %v5342 = vmul.f32 %v5340, 1.442695
    %v5343 = vpow.pop %v5342
    %v5344 = vmul.f32 %v5341, 1.442695
    %v5345 = vpow.pop %v5344
    %v5346 = vsel %vm1055, %v5343, 0.0
    %5347 = vadd.xlane.f32.xlu0 %v5346
    %v5348 = vpop.xlane.xlu0 %5347
    %v5349 = vsel %vm1055, %v5345, 0.0
    %5350 = vadd.xlane.f32.xlu0 %v5349
    %v5351 = vpop.xlane.xlu0 %5350
    %v5352 = vrcp.pop %v5348
    %v5353 = vrcp.pop %v5351
    %v5354 = vmul.f32 %v5343, %v5352
    %v5355 = vmul.f32 %v5345, %v5353
    %v5356 = vpack.c.bf16 %v5354, %v5354
    %v5357 = vpack.c.bf16 %v5355, %v5355
    %5358 = vrot.lane.b32.xlu0 %v5008, 48
    %v5359 = vpop.permute.xlu0 %5358
    %v5361 = vsel %vm1055, %v5356, 0
    %v5364 = vsel %vm1083, %v5359, 0
    %5366 = vmatprep.subr.bf16.mxu0 0
    %5367 = vmatpush1.bf16.msra.mxu0 0
    %5368 = vmatprep.subr.bf16.mxu0 0
    %5369 = vmatpush1.bf16.msra.mxu0 0
    %5370 = vmatprep.subr.bf16.mxu0 0
    %5371 = vmatpush1.bf16.msra.mxu0 0
    %5372 = vmatprep.subr.bf16.mxu0 0
    %5373 = vmatpush1.bf16.msra.mxu0 0
    %5374 = vmatprep.subr.bf16.mxu0 0
    %5375 = vmatpush1.bf16.msra.mxu0 0
    %5376 = vmatprep.subr.bf16.mxu0 0
    %5377 = vmatpush1.bf16.msra.mxu0 0
    %5378 = vmatprep.subr.bf16.mxu0 0
    %5379 = vmatpush1.bf16.msra.mxu0 0
    %5380 = vmatprep.subr.bf16.mxu0 0
    %5381 = vmatpush1.bf16.msra.mxu0 %v5364
    %5382 = vmatprep.subr.bf16.mxu0 0
    %5383 = vmatpush2.bf16.msra.mxu0 0
    %5384 = vmatprep.subr.bf16.mxu0 0
    %5385 = vmatpush2.bf16.msra.mxu0 0
    %5386 = vmatprep.subr.bf16.mxu0 0
    %5387 = vmatpush2.bf16.msra.mxu0 0
    %5388 = vmatprep.subr.bf16.mxu0 0
    %5389 = vmatpush2.bf16.msra.mxu0 0
    %5390 = vmatprep.subr.bf16.mxu0 0
    %5391 = vmatpush2.bf16.msra.mxu0 0
    %5392 = vmatprep.subr.bf16.mxu0 0
    %5393 = vmatpush2.bf16.msra.mxu0 0
    %5394 = vmatprep.subr.bf16.mxu0 0
    %5395 = vmatpush2.bf16.msra.mxu0 0
    %5396 = vmatprep.subr.bf16.mxu0 0
    %5397 = vmatpush2.bf16.msra.mxu0 0
    %5398 = vmatprep.mubr.bf16.mxu0 0
    %5399 = vmatmul.mubr.bf16.gmra.mxu0 %v5361
    %v5400 = vpop.f32.mrf.mxu0
    %v5401 = vadd.f32 0.0, %v5400
    %v5402 = vpop.f32.mrf.mxu0
    %v5403 = vpop.f32.mrf.mxu0
    %v5404 = vpop.f32.mrf.mxu0
    %5405 = vdwg.mxu0
    %5406 = vrot.lane.b32.xlu0 %v5009, 48
    %v5407 = vpop.permute.xlu0 %5406
    %v5409 = vsel %vm1055, %v5357, 0
    %v5412 = vsel %vm1083, %v5407, 0
    %5414 = vmatprep.subr.bf16.mxu0 0
    %5415 = vmatpush1.bf16.msra.mxu0 0
    %5416 = vmatprep.subr.bf16.mxu0 0
    %5417 = vmatpush1.bf16.msra.mxu0 0
    %5418 = vmatprep.subr.bf16.mxu0 0
    %5419 = vmatpush1.bf16.msra.mxu0 0
    %5420 = vmatprep.subr.bf16.mxu0 0
    %5421 = vmatpush1.bf16.msra.mxu0 0
    %5422 = vmatprep.subr.bf16.mxu0 0
    %5423 = vmatpush1.bf16.msra.mxu0 0
    %5424 = vmatprep.subr.bf16.mxu0 0
    %5425 = vmatpush1.bf16.msra.mxu0 0
    %5426 = vmatprep.subr.bf16.mxu0 0
    %5427 = vmatpush1.bf16.msra.mxu0 0
    %5428 = vmatprep.subr.bf16.mxu0 0
    %5429 = vmatpush1.bf16.msra.mxu0 %v5412
    %5430 = vmatprep.subr.bf16.mxu0 0
    %5431 = vmatpush2.bf16.msra.mxu0 0
    %5432 = vmatprep.subr.bf16.mxu0 0
    %5433 = vmatpush2.bf16.msra.mxu0 0
    %5434 = vmatprep.subr.bf16.mxu0 0
    %5435 = vmatpush2.bf16.msra.mxu0 0
    %5436 = vmatprep.subr.bf16.mxu0 0
    %5437 = vmatpush2.bf16.msra.mxu0 0
    %5438 = vmatprep.subr.bf16.mxu0 0
    %5439 = vmatpush2.bf16.msra.mxu0 0
    %5440 = vmatprep.subr.bf16.mxu0 0
    %5441 = vmatpush2.bf16.msra.mxu0 0
    %5442 = vmatprep.subr.bf16.mxu0 0
    %5443 = vmatpush2.bf16.msra.mxu0 0
    %5444 = vmatprep.subr.bf16.mxu0 0
    %5445 = vmatpush2.bf16.msra.mxu0 0
    %5446 = vmatprep.mubr.bf16.mxu0 0
    %5447 = vmatmul.mubr.bf16.gmra.mxu0 %v5409
    %v5448 = vpop.f32.mrf.mxu0
    %v5449 = vadd.f32 0.0, %v5448
    %v5450 = vpop.f32.mrf.mxu0
    %v5451 = vpop.f32.mrf.mxu0
    %v5452 = vpop.f32.mrf.mxu0
    %5453 = vdwg.mxu0
    %5454 = vrot.lane.b32.xlu0 %v5006, 96
    %v5455 = vpop.permute.xlu0 %5454
    %5456 = vrot.lane.b32.xlu0 %v5008, 96
    %v5457 = vpop.permute.xlu0 %5456
    %v5459 = vsel %vm955, %v5455, 0
    %v5462 = vsel %vm955, %v5457, 0
    %5464 = vmatprep.subr.bf16.mxu0 0
    %5465 = vmatpush1.bf16.xpose.msra.mxu0 0
    %5466 = vmatprep.subr.bf16.mxu0 0
    %5467 = vmatpush1.bf16.xpose.msra.mxu0 0
    %5468 = vmatprep.subr.bf16.mxu0 0
    %5469 = vmatpush1.bf16.xpose.msra.mxu0 0
    %5470 = vmatprep.subr.bf16.mxu0 0
    %5471 = vmatpush1.bf16.xpose.msra.mxu0 0
    %5472 = vmatprep.subr.bf16.mxu0 0
    %5473 = vmatpush1.bf16.xpose.msra.mxu0 0
    %5474 = vmatprep.subr.bf16.mxu0 0
    %5475 = vmatpush1.bf16.xpose.msra.mxu0 0
    %5476 = vmatprep.subr.bf16.mxu0 0
    %5477 = vmatpush1.bf16.xpose.msra.mxu0 0
    %5478 = vmatprep.subr.bf16.mxu0 0
    %5479 = vmatpush1.bf16.xpose.msra.mxu0 %v5462
    %5480 = vmatprep.subr.bf16.mxu0 0
    %5481 = vmatpush2.bf16.xpose.msra.mxu0 0
    %5482 = vmatprep.subr.bf16.mxu0 0
    %5483 = vmatpush2.bf16.xpose.msra.mxu0 0
    %5484 = vmatprep.subr.bf16.mxu0 0
    %5485 = vmatpush2.bf16.xpose.msra.mxu0 0
    %5486 = vmatprep.subr.bf16.mxu0 0
    %5487 = vmatpush2.bf16.xpose.msra.mxu0 0
    %5488 = vmatprep.subr.bf16.mxu0 0
    %5489 = vmatpush2.bf16.xpose.msra.mxu0 0
    %5490 = vmatprep.subr.bf16.mxu0 0
    %5491 = vmatpush2.bf16.xpose.msra.mxu0 0
    %5492 = vmatprep.subr.bf16.mxu0 0
    %5493 = vmatpush2.bf16.xpose.msra.mxu0 0
    %5494 = vmatprep.subr.bf16.mxu0 0
    %5495 = vmatpush2.bf16.xpose.msra.mxu0 0
    %5496 = vmatprep.mubr.bf16.mxu0 0
    %5497 = vmatmul.mubr.bf16.gmra.mxu0 %v5459
    %v5498 = vpop.f32.mrf.mxu0
    %v5499 = vadd.f32 0.0, %v5498
    %v5500 = vpop.f32.mrf.mxu0
    %v5501 = vpop.f32.mrf.mxu0
    %v5502 = vpop.f32.mrf.mxu0
    %5503 = vdwg.mxu0
    %5504 = vrot.lane.b32.xlu0 %v5007, 96
    %v5505 = vpop.permute.xlu0 %5504
    %5506 = vrot.lane.b32.xlu0 %v5009, 96
    %v5507 = vpop.permute.xlu0 %5506
    %v5509 = vsel %vm955, %v5505, 0
    %v5512 = vsel %vm955, %v5507, 0
    %5514 = vmatprep.subr.bf16.mxu0 0
    %5515 = vmatpush1.bf16.xpose.msra.mxu0 0
    %5516 = vmatprep.subr.bf16.mxu0 0
    %5517 = vmatpush1.bf16.xpose.msra.mxu0 0
    %5518 = vmatprep.subr.bf16.mxu0 0
    %5519 = vmatpush1.bf16.xpose.msra.mxu0 0
    %5520 = vmatprep.subr.bf16.mxu0 0
    %5521 = vmatpush1.bf16.xpose.msra.mxu0 0
    %5522 = vmatprep.subr.bf16.mxu0 0
    %5523 = vmatpush1.bf16.xpose.msra.mxu0 0
    %5524 = vmatprep.subr.bf16.mxu0 0
    %5525 = vmatpush1.bf16.xpose.msra.mxu0 0
    %5526 = vmatprep.subr.bf16.mxu0 0
    %5527 = vmatpush1.bf16.xpose.msra.mxu0 0
    %5528 = vmatprep.subr.bf16.mxu0 0
    %5529 = vmatpush1.bf16.xpose.msra.mxu0 %v5512
    %5530 = vmatprep.subr.bf16.mxu0 0
    %5531 = vmatpush2.bf16.xpose.msra.mxu0 0
    %5532 = vmatprep.subr.bf16.mxu0 0
    %5533 = vmatpush2.bf16.xpose.msra.mxu0 0
    %5534 = vmatprep.subr.bf16.mxu0 0
    %5535 = vmatpush2.bf16.xpose.msra.mxu0 0
    %5536 = vmatprep.subr.bf16.mxu0 0
    %5537 = vmatpush2.bf16.xpose.msra.mxu0 0
    %5538 = vmatprep.subr.bf16.mxu0 0
    %5539 = vmatpush2.bf16.xpose.msra.mxu0 0
    %5540 = vmatprep.subr.bf16.mxu0 0
    %5541 = vmatpush2.bf16.xpose.msra.mxu0 0
    %5542 = vmatprep.subr.bf16.mxu0 0
    %5543 = vmatpush2.bf16.xpose.msra.mxu0 0
    %5544 = vmatprep.subr.bf16.mxu0 0
    %5545 = vmatpush2.bf16.xpose.msra.mxu0 0
    %5546 = vmatprep.mubr.bf16.mxu0 0
    %5547 = vmatmul.mubr.bf16.gmra.mxu0 %v5509
    %v5548 = vpop.f32.mrf.mxu0
    %v5549 = vadd.f32 0.0, %v5548
    %v5550 = vpop.f32.mrf.mxu0
    %v5551 = vpop.f32.mrf.mxu0
    %v5552 = vpop.f32.mrf.mxu0
    %5553 = vdwg.mxu0
    %v5554 = vmul.f32 %v5499, 0.25
    %v5555 = vmul.f32 %v5549, 0.25
    %v5556 = vadd.f32 %v5554, %v601
    %v5557 = vadd.f32 %v5555, %v605
    %v5558 = vsel %vm1055, %v5556, -inf
    %5559 = vmax.xlane.f32.xlu0 %v5558
    %v5560 = vpop.xlane.xlu0 %5559
    %v5561 = vsel %vm1055, %v5557, -inf
    %5562 = vmax.xlane.f32.xlu0 %v5561
    %v5563 = vpop.xlane.xlu0 %5562
    %v5564 = vsub.f32 %v5556, %v5560
    %v5565 = vsub.f32 %v5557, %v5563
    %v5566 = vmul.f32 %v5564, 1.442695
    %v5567 = vpow.pop %v5566
    %v5568 = vmul.f32 %v5565, 1.442695
    %v5569 = vpow.pop %v5568
    %v5570 = vsel %vm1055, %v5567, 0.0
    %5571 = vadd.xlane.f32.xlu0 %v5570
    %v5572 = vpop.xlane.xlu0 %5571
    %v5573 = vsel %vm1055, %v5569, 0.0
    %5574 = vadd.xlane.f32.xlu0 %v5573
    %v5575 = vpop.xlane.xlu0 %5574
    %v5576 = vrcp.pop %v5572
    %v5577 = vrcp.pop %v5575
    %v5578 = vmul.f32 %v5567, %v5576
    %v5579 = vmul.f32 %v5569, %v5577
    %v5580 = vpack.c.bf16 %v5578, %v5578
    %v5581 = vpack.c.bf16 %v5579, %v5579
    %5582 = vrot.lane.b32.xlu0 %v5008, 32
    %v5583 = vpop.permute.xlu0 %5582
    %v5585 = vsel %vm1055, %v5580, 0
    %v5588 = vsel %vm1083, %v5583, 0
    %5590 = vmatprep.subr.bf16.mxu0 0
    %5591 = vmatpush1.bf16.msra.mxu0 0
    %5592 = vmatprep.subr.bf16.mxu0 0
    %5593 = vmatpush1.bf16.msra.mxu0 0
    %5594 = vmatprep.subr.bf16.mxu0 0
    %5595 = vmatpush1.bf16.msra.mxu0 0
    %5596 = vmatprep.subr.bf16.mxu0 0
    %5597 = vmatpush1.bf16.msra.mxu0 0
    %5598 = vmatprep.subr.bf16.mxu0 0
    %5599 = vmatpush1.bf16.msra.mxu0 0
    %5600 = vmatprep.subr.bf16.mxu0 0
    %5601 = vmatpush1.bf16.msra.mxu0 0
    %5602 = vmatprep.subr.bf16.mxu0 0
    %5603 = vmatpush1.bf16.msra.mxu0 0
    %5604 = vmatprep.subr.bf16.mxu0 0
    %5605 = vmatpush1.bf16.msra.mxu0 %v5588
    %5606 = vmatprep.subr.bf16.mxu0 0
    %5607 = vmatpush2.bf16.msra.mxu0 0
    %5608 = vmatprep.subr.bf16.mxu0 0
    %5609 = vmatpush2.bf16.msra.mxu0 0
    %5610 = vmatprep.subr.bf16.mxu0 0
    %5611 = vmatpush2.bf16.msra.mxu0 0
    %5612 = vmatprep.subr.bf16.mxu0 0
    %5613 = vmatpush2.bf16.msra.mxu0 0
    %5614 = vmatprep.subr.bf16.mxu0 0
    %5615 = vmatpush2.bf16.msra.mxu0 0
    %5616 = vmatprep.subr.bf16.mxu0 0
    %5617 = vmatpush2.bf16.msra.mxu0 0
    %5618 = vmatprep.subr.bf16.mxu0 0
    %5619 = vmatpush2.bf16.msra.mxu0 0
    %5620 = vmatprep.subr.bf16.mxu0 0
    %5621 = vmatpush2.bf16.msra.mxu0 0
    %5622 = vmatprep.mubr.bf16.mxu0 0
    %5623 = vmatmul.mubr.bf16.gmra.mxu0 %v5585
    %v5624 = vpop.f32.mrf.mxu0
    %v5625 = vadd.f32 0.0, %v5624
    %v5626 = vpop.f32.mrf.mxu0
    %v5627 = vpop.f32.mrf.mxu0
    %v5628 = vpop.f32.mrf.mxu0
    %5629 = vdwg.mxu0
    %5630 = vrot.lane.b32.xlu0 %v5009, 32
    %v5631 = vpop.permute.xlu0 %5630
    %v5633 = vsel %vm1055, %v5581, 0
    %v5636 = vsel %vm1083, %v5631, 0
    %5638 = vmatprep.subr.bf16.mxu0 0
    %5639 = vmatpush1.bf16.msra.mxu0 0
    %5640 = vmatprep.subr.bf16.mxu0 0
    %5641 = vmatpush1.bf16.msra.mxu0 0
    %5642 = vmatprep.subr.bf16.mxu0 0
    %5643 = vmatpush1.bf16.msra.mxu0 0
    %5644 = vmatprep.subr.bf16.mxu0 0
    %5645 = vmatpush1.bf16.msra.mxu0 0
    %5646 = vmatprep.subr.bf16.mxu0 0
    %5647 = vmatpush1.bf16.msra.mxu0 0
    %5648 = vmatprep.subr.bf16.mxu0 0
    %5649 = vmatpush1.bf16.msra.mxu0 0
    %5650 = vmatprep.subr.bf16.mxu0 0
    %5651 = vmatpush1.bf16.msra.mxu0 0
    %5652 = vmatprep.subr.bf16.mxu0 0
    %5653 = vmatpush1.bf16.msra.mxu0 %v5636
    %5654 = vmatprep.subr.bf16.mxu0 0
    %5655 = vmatpush2.bf16.msra.mxu0 0
    %5656 = vmatprep.subr.bf16.mxu0 0
    %5657 = vmatpush2.bf16.msra.mxu0 0
    %5658 = vmatprep.subr.bf16.mxu0 0
    %5659 = vmatpush2.bf16.msra.mxu0 0
    %5660 = vmatprep.subr.bf16.mxu0 0
    %5661 = vmatpush2.bf16.msra.mxu0 0
    %5662 = vmatprep.subr.bf16.mxu0 0
    %5663 = vmatpush2.bf16.msra.mxu0 0
    %5664 = vmatprep.subr.bf16.mxu0 0
    %5665 = vmatpush2.bf16.msra.mxu0 0
    %5666 = vmatprep.subr.bf16.mxu0 0
    %5667 = vmatpush2.bf16.msra.mxu0 0
    %5668 = vmatprep.subr.bf16.mxu0 0
    %5669 = vmatpush2.bf16.msra.mxu0 0
    %5670 = vmatprep.mubr.bf16.mxu0 0
    %5671 = vmatmul.mubr.bf16.gmra.mxu0 %v5633
    %v5672 = vpop.f32.mrf.mxu0
    %v5673 = vadd.f32 0.0, %v5672
    %v5674 = vpop.f32.mrf.mxu0
    %v5675 = vpop.f32.mrf.mxu0
    %v5676 = vpop.f32.mrf.mxu0
    %5677 = vdwg.mxu0
    %5678 = vrot.lane.b32.xlu0 %v5006, 80
    %v5679 = vpop.permute.xlu0 %5678
    %5680 = vrot.lane.b32.xlu0 %v5008, 80
    %v5681 = vpop.permute.xlu0 %5680
    %v5683 = vsel %vm955, %v5679, 0
    %v5686 = vsel %vm955, %v5681, 0
    %5688 = vmatprep.subr.bf16.mxu0 0
    %5689 = vmatpush1.bf16.xpose.msra.mxu0 0
    %5690 = vmatprep.subr.bf16.mxu0 0
    %5691 = vmatpush1.bf16.xpose.msra.mxu0 0
    %5692 = vmatprep.subr.bf16.mxu0 0
    %5693 = vmatpush1.bf16.xpose.msra.mxu0 0
    %5694 = vmatprep.subr.bf16.mxu0 0
    %5695 = vmatpush1.bf16.xpose.msra.mxu0 0
    %5696 = vmatprep.subr.bf16.mxu0 0
    %5697 = vmatpush1.bf16.xpose.msra.mxu0 0
    %5698 = vmatprep.subr.bf16.mxu0 0
    %5699 = vmatpush1.bf16.xpose.msra.mxu0 0
    %5700 = vmatprep.subr.bf16.mxu0 0
    %5701 = vmatpush1.bf16.xpose.msra.mxu0 0
    %5702 = vmatprep.subr.bf16.mxu0 0
    %5703 = vmatpush1.bf16.xpose.msra.mxu0 %v5686
    %5704 = vmatprep.subr.bf16.mxu0 0
    %5705 = vmatpush2.bf16.xpose.msra.mxu0 0
    %5706 = vmatprep.subr.bf16.mxu0 0
    %5707 = vmatpush2.bf16.xpose.msra.mxu0 0
    %5708 = vmatprep.subr.bf16.mxu0 0
    %5709 = vmatpush2.bf16.xpose.msra.mxu0 0
    %5710 = vmatprep.subr.bf16.mxu0 0
    %5711 = vmatpush2.bf16.xpose.msra.mxu0 0
    %5712 = vmatprep.subr.bf16.mxu0 0
    %5713 = vmatpush2.bf16.xpose.msra.mxu0 0
    %5714 = vmatprep.subr.bf16.mxu0 0
    %5715 = vmatpush2.bf16.xpose.msra.mxu0 0
    %5716 = vmatprep.subr.bf16.mxu0 0
    %5717 = vmatpush2.bf16.xpose.msra.mxu0 0
    %5718 = vmatprep.subr.bf16.mxu0 0
    %5719 = vmatpush2.bf16.xpose.msra.mxu0 0
    %5720 = vmatprep.mubr.bf16.mxu0 0
    %5721 = vmatmul.mubr.bf16.gmra.mxu0 %v5683
    %v5722 = vpop.f32.mrf.mxu0
    %v5723 = vadd.f32 0.0, %v5722
    %v5724 = vpop.f32.mrf.mxu0
    %v5725 = vpop.f32.mrf.mxu0
    %v5726 = vpop.f32.mrf.mxu0
    %5727 = vdwg.mxu0
    %5728 = vrot.lane.b32.xlu0 %v5007, 80
    %v5729 = vpop.permute.xlu0 %5728
    %5730 = vrot.lane.b32.xlu0 %v5009, 80
    %v5731 = vpop.permute.xlu0 %5730
    %v5733 = vsel %vm955, %v5729, 0
    %v5736 = vsel %vm955, %v5731, 0
    %5738 = vmatprep.subr.bf16.mxu0 0
    %5739 = vmatpush1.bf16.xpose.msra.mxu0 0
    %5740 = vmatprep.subr.bf16.mxu0 0
    %5741 = vmatpush1.bf16.xpose.msra.mxu0 0
    %5742 = vmatprep.subr.bf16.mxu0 0
    %5743 = vmatpush1.bf16.xpose.msra.mxu0 0
    %5744 = vmatprep.subr.bf16.mxu0 0
    %5745 = vmatpush1.bf16.xpose.msra.mxu0 0
    %5746 = vmatprep.subr.bf16.mxu0 0
    %5747 = vmatpush1.bf16.xpose.msra.mxu0 0
    %5748 = vmatprep.subr.bf16.mxu0 0
    %5749 = vmatpush1.bf16.xpose.msra.mxu0 0
    %5750 = vmatprep.subr.bf16.mxu0 0
    %5751 = vmatpush1.bf16.xpose.msra.mxu0 0
    %5752 = vmatprep.subr.bf16.mxu0 0
    %5753 = vmatpush1.bf16.xpose.msra.mxu0 %v5736
    %5754 = vmatprep.subr.bf16.mxu0 0
    %5755 = vmatpush2.bf16.xpose.msra.mxu0 0
    %5756 = vmatprep.subr.bf16.mxu0 0
    %5757 = vmatpush2.bf16.xpose.msra.mxu0 0
    %5758 = vmatprep.subr.bf16.mxu0 0
    %5759 = vmatpush2.bf16.xpose.msra.mxu0 0
    %5760 = vmatprep.subr.bf16.mxu0 0
    %5761 = vmatpush2.bf16.xpose.msra.mxu0 0
    %5762 = vmatprep.subr.bf16.mxu0 0
    %5763 = vmatpush2.bf16.xpose.msra.mxu0 0
    %5764 = vmatprep.subr.bf16.mxu0 0
    %5765 = vmatpush2.bf16.xpose.msra.mxu0 0
    %5766 = vmatprep.subr.bf16.mxu0 0
    %5767 = vmatpush2.bf16.xpose.msra.mxu0 0
    %5768 = vmatprep.subr.bf16.mxu0 0
    %5769 = vmatpush2.bf16.xpose.msra.mxu0 0
    %5770 = vmatprep.mubr.bf16.mxu0 0
    %5771 = vmatmul.mubr.bf16.gmra.mxu0 %v5733
    %v5772 = vpop.f32.mrf.mxu0
    %v5773 = vadd.f32 0.0, %v5772
    %v5774 = vpop.f32.mrf.mxu0
    %v5775 = vpop.f32.mrf.mxu0
    %v5776 = vpop.f32.mrf.mxu0
    %5777 = vdwg.mxu0
    %v5778 = vmul.f32 %v5723, 0.25
    %v5779 = vmul.f32 %v5773, 0.25
    %v5780 = vadd.f32 %v5778, %v601
    %v5781 = vadd.f32 %v5779, %v605
    %v5782 = vsel %vm1055, %v5780, -inf
    %5783 = vmax.xlane.f32.xlu0 %v5782
    %v5784 = vpop.xlane.xlu0 %5783
    %v5785 = vsel %vm1055, %v5781, -inf
    %5786 = vmax.xlane.f32.xlu0 %v5785
    %v5787 = vpop.xlane.xlu0 %5786
    %v5788 = vsub.f32 %v5780, %v5784
    %v5789 = vsub.f32 %v5781, %v5787
    %v5790 = vmul.f32 %v5788, 1.442695
    %v5791 = vpow.pop %v5790
    %v5792 = vmul.f32 %v5789, 1.442695
    %v5793 = vpow.pop %v5792
    %v5794 = vsel %vm1055, %v5791, 0.0
    %5795 = vadd.xlane.f32.xlu0 %v5794
    %v5796 = vpop.xlane.xlu0 %5795
    %v5797 = vsel %vm1055, %v5793, 0.0
    %5798 = vadd.xlane.f32.xlu0 %v5797
    %v5799 = vpop.xlane.xlu0 %5798
    %v5800 = vrcp.pop %v5796
    %v5801 = vrcp.pop %v5799
    %v5802 = vmul.f32 %v5791, %v5800
    %v5803 = vmul.f32 %v5793, %v5801
    %v5804 = vpack.c.bf16 %v5802, %v5802
    %v5805 = vpack.c.bf16 %v5803, %v5803
    %5806 = vrot.lane.b32.xlu0 %v5008, 16
    %v5807 = vpop.permute.xlu0 %5806
    %v5809 = vsel %vm1055, %v5804, 0
    %v5812 = vsel %vm1083, %v5807, 0
    %5814 = vmatprep.subr.bf16.mxu0 0
    %5815 = vmatpush1.bf16.msra.mxu0 0
    %5816 = vmatprep.subr.bf16.mxu0 0
    %5817 = vmatpush1.bf16.msra.mxu0 0
    %5818 = vmatprep.subr.bf16.mxu0 0
    %5819 = vmatpush1.bf16.msra.mxu0 0
    %5820 = vmatprep.subr.bf16.mxu0 0
    %5821 = vmatpush1.bf16.msra.mxu0 0
    %5822 = vmatprep.subr.bf16.mxu0 0
    %5823 = vmatpush1.bf16.msra.mxu0 0
    %5824 = vmatprep.subr.bf16.mxu0 0
    %5825 = vmatpush1.bf16.msra.mxu0 0
    %5826 = vmatprep.subr.bf16.mxu0 0
    %5827 = vmatpush1.bf16.msra.mxu0 0
    %5828 = vmatprep.subr.bf16.mxu0 0
    %5829 = vmatpush1.bf16.msra.mxu0 %v5812
    %5830 = vmatprep.subr.bf16.mxu0 0
    %5831 = vmatpush2.bf16.msra.mxu0 0
    %5832 = vmatprep.subr.bf16.mxu0 0
    %5833 = vmatpush2.bf16.msra.mxu0 0
    %5834 = vmatprep.subr.bf16.mxu0 0
    %5835 = vmatpush2.bf16.msra.mxu0 0
    %5836 = vmatprep.subr.bf16.mxu0 0
    %5837 = vmatpush2.bf16.msra.mxu0 0
    %5838 = vmatprep.subr.bf16.mxu0 0
    %5839 = vmatpush2.bf16.msra.mxu0 0
    %5840 = vmatprep.subr.bf16.mxu0 0
    %5841 = vmatpush2.bf16.msra.mxu0 0
    %5842 = vmatprep.subr.bf16.mxu0 0
    %5843 = vmatpush2.bf16.msra.mxu0 0
    %5844 = vmatprep.subr.bf16.mxu0 0
    %5845 = vmatpush2.bf16.msra.mxu0 0
    %5846 = vmatprep.mubr.bf16.mxu0 0
    %5847 = vmatmul.mubr.bf16.gmra.mxu0 %v5809
    %v5848 = vpop.f32.mrf.mxu0
    %v5849 = vadd.f32 0.0, %v5848
    %v5850 = vpop.f32.mrf.mxu0
    %v5851 = vpop.f32.mrf.mxu0
    %v5852 = vpop.f32.mrf.mxu0
    %5853 = vdwg.mxu0
    %5854 = vrot.lane.b32.xlu0 %v5009, 16
    %v5855 = vpop.permute.xlu0 %5854
    %v5857 = vsel %vm1055, %v5805, 0
    %v5860 = vsel %vm1083, %v5855, 0
    %5862 = vmatprep.subr.bf16.mxu0 0
    %5863 = vmatpush1.bf16.msra.mxu0 0
    %5864 = vmatprep.subr.bf16.mxu0 0
    %5865 = vmatpush1.bf16.msra.mxu0 0
    %5866 = vmatprep.subr.bf16.mxu0 0
    %5867 = vmatpush1.bf16.msra.mxu0 0
    %5868 = vmatprep.subr.bf16.mxu0 0
    %5869 = vmatpush1.bf16.msra.mxu0 0
    %5870 = vmatprep.subr.bf16.mxu0 0
    %5871 = vmatpush1.bf16.msra.mxu0 0
    %5872 = vmatprep.subr.bf16.mxu0 0
    %5873 = vmatpush1.bf16.msra.mxu0 0
    %5874 = vmatprep.subr.bf16.mxu0 0
    %5875 = vmatpush1.bf16.msra.mxu0 0
    %5876 = vmatprep.subr.bf16.mxu0 0
    %5877 = vmatpush1.bf16.msra.mxu0 %v5860
    %5878 = vmatprep.subr.bf16.mxu0 0
    %5879 = vmatpush2.bf16.msra.mxu0 0
    %5880 = vmatprep.subr.bf16.mxu0 0
    %5881 = vmatpush2.bf16.msra.mxu0 0
    %5882 = vmatprep.subr.bf16.mxu0 0
    %5883 = vmatpush2.bf16.msra.mxu0 0
    %5884 = vmatprep.subr.bf16.mxu0 0
    %5885 = vmatpush2.bf16.msra.mxu0 0
    %5886 = vmatprep.subr.bf16.mxu0 0
    %5887 = vmatpush2.bf16.msra.mxu0 0
    %5888 = vmatprep.subr.bf16.mxu0 0
    %5889 = vmatpush2.bf16.msra.mxu0 0
    %5890 = vmatprep.subr.bf16.mxu0 0
    %5891 = vmatpush2.bf16.msra.mxu0 0
    %5892 = vmatprep.subr.bf16.mxu0 0
    %5893 = vmatpush2.bf16.msra.mxu0 0
    %5894 = vmatprep.mubr.bf16.mxu0 0
    %5895 = vmatmul.mubr.bf16.gmra.mxu0 %v5857
    %v5896 = vpop.f32.mrf.mxu0
    %v5897 = vadd.f32 0.0, %v5896
    %v5898 = vpop.f32.mrf.mxu0
    %v5899 = vpop.f32.mrf.mxu0
    %v5900 = vpop.f32.mrf.mxu0
    %5901 = vdwg.mxu0
    %5904 = vrot.lane.b32.xlu0 %v5401, 16
    %v5905 = vpop.permute.xlu0 %5904
    %5906 = vrot.lane.b32.xlu0 %v5449, 16
    %v5907 = vpop.permute.xlu0 %5906
    %5912 = vrot.lane.b32.xlu0 %v5625, 32
    %v5913 = vpop.permute.xlu0 %5912
    %5914 = vrot.lane.b32.xlu0 %v5673, 32
    %v5915 = vpop.permute.xlu0 %5914
    %5920 = vrot.lane.b32.xlu0 %v5849, 48
    %v5921 = vpop.permute.xlu0 %5920
    %5922 = vrot.lane.b32.xlu0 %v5897, 48
    %v5923 = vpop.permute.xlu0 %5922
    %v5926 = vsel %vm955, %v5174, %v5905
    %v5927 = vsel %vm955, %v5223, %v5907
    %v5928 = vsel %vm1873, %v5926, %v5913
    %v5929 = vsel %vm1873, %v5927, %v5915
    %v5930 = vsel %vm1876, %v5928, %v5921
    %v5931 = vsel %vm1876, %v5929, %v5923
    %v5932 = vpack.c.bf16 %v5931, %v5930
    %v5934 = vlaneseq
    %v5935 = vshrl.u32 %v5934, 7
    %v5936 = vsub.s32 0, %v5935
    %v5937 = vrot.slane %v5005, %v5936
    %v5947 = vunpack.c.l.b16 %v4997
    %v5948 = vunpack.c.l.b16 %v4998
    %v5949 = vunpack.c.l.b16 %v4999
    %v5950 = vunpack.c.l.b16 %v5000
    %v5951 = vunpack.c.l.b16 %v5001
    %v5952 = vunpack.c.l.b16 %v5002
    %v5953 = vunpack.c.l.b16 %v5003
    %v5954 = vunpack.c.l.b16 %v5004
    %v5955 = vpack.c.b16 %v5948, %v5947
    %v5956 = vpack.c.b16 %v5950, %v5949
    %v5957 = vpack.c.b16 %v5952, %v5951
    %v5958 = vpack.c.b16 %v5954, %v5953
    %v5964 = vsel %vm892, %v5932, 0
    %5966 = vmatprep.subr.bf16.mxu0 0
    %5967 = vmatpush1.bf16.msra.mxu0 0
    %5968 = vmatprep.subr.bf16.mxu0 0
    %5969 = vmatpush1.bf16.msra.mxu0 0
    %5970 = vmatprep.subr.bf16.mxu0 0
    %5971 = vmatpush1.bf16.msra.mxu0 0
    %5972 = vmatprep.subr.bf16.mxu0 0
    %5973 = vmatpush1.bf16.msra.mxu0 0
    %5974 = vmatprep.subr.bf16.mxu0 0
    %5975 = vmatpush1.bf16.msra.mxu0 %v5958
    %5976 = vmatprep.subr.bf16.mxu0 0
    %5977 = vmatpush1.bf16.msra.mxu0 %v5957
    %5978 = vmatprep.subr.bf16.mxu0 0
    %5979 = vmatpush1.bf16.msra.mxu0 %v5956
    %5980 = vmatprep.subr.bf16.mxu0 0
    %5981 = vmatpush1.bf16.msra.mxu0 %v5955
    %5982 = vmatprep.subr.bf16.mxu0 0
    %5983 = vmatpush2.bf16.msra.mxu0 0
    %5984 = vmatprep.subr.bf16.mxu0 0
    %5985 = vmatpush2.bf16.msra.mxu0 0
    %5986 = vmatprep.subr.bf16.mxu0 0
    %5987 = vmatpush2.bf16.msra.mxu0 0
    %5988 = vmatprep.subr.bf16.mxu0 0
    %5989 = vmatpush2.bf16.msra.mxu0 0
    %5990 = vmatprep.subr.bf16.mxu0 0
    %5991 = vmatpush2.bf16.msra.mxu0 0
    %5992 = vmatprep.subr.bf16.mxu0 0
    %5993 = vmatpush2.bf16.msra.mxu0 0
    %5994 = vmatprep.subr.bf16.mxu0 0
    %5995 = vmatpush2.bf16.msra.mxu0 0
    %5996 = vmatprep.subr.bf16.mxu0 0
    %5997 = vmatpush2.bf16.msra.mxu0 0
    %5998 = vmatprep.mubr.bf16.mxu0 0
    %5999 = vmatmul.mubr.bf16.gmra.mxu0 %v5964
    %v6000 = vpop.f32.mrf.mxu0
    %v6001 = vadd.f32 %v5937, %v6000
    %v6002 = vpop.f32.mrf.mxu0
    %v6003 = vpop.f32.mrf.mxu0
    %v6004 = vadd.f32 %v5937, %v6003
    %v6005 = vpop.f32.mrf.mxu0
    %6006 = vdwg.mxu0
    %v6007 = vadd.f32 %v4827, %v6001
    %v6008 = vadd.f32 %v4828, %v6004
    %v6009 = vld [vmem:[#allocation38] sm:$0x1]
    %v6010 = vld [vmem:[#allocation40] sm:$0x1]
    %v6011 = vsel %vm892, %v6007, 0.0
    %6012 = vadd.xlane.f32.xlu0 %v6011
    %v6013 = vpop.xlane.xlu0 %6012
    %v6014 = vsel %vm892, %v6008, 0.0
    %6015 = vadd.xlane.f32.xlu0 %v6014
    %v6016 = vpop.xlane.xlu0 %6015
    %v6017 = vmul.f32 %v6013, %v1964
    %v6018 = vmul.f32 %v6016, %v1964
    %v6019 = vsub.f32 %v6007, %v6017
    %v6020 = vsub.f32 %v6008, %v6018
    %v6021 = vmul.f32 %v6019, %v6019
    %v6022 = vmul.f32 %v6020, %v6020
    %v6023 = vsel %vm892, %v6021, 0.0
    %6024 = vadd.xlane.f32.xlu0 %v6023
    %v6025 = vpop.xlane.xlu0 %6024
    %v6026 = vsel %vm892, %v6022, 0.0
    %6027 = vadd.xlane.f32.xlu0 %v6026
    %v6028 = vpop.xlane.xlu0 %6027
    %v6029 = vmul.f32 %v6025, %v1964
    %v6030 = vmul.f32 %v6028, %v1964
    %v6031 = vadd.f32 %v6029, 1e-05
    %v6032 = vadd.f32 %v6030, 1e-05
    %v6033 = vrsqrt.pop %v6031
    %v6034 = vrsqrt.pop %v6032
    %v6035 = vmul.f32 %v6019, %v6033
    %v6036 = vmul.f32 %v6020, %v6034
    %v6038 = vlaneseq
    %v6039 = vshrl.u32 %v6038, 7
    %v6040 = vsub.s32 0, %v6039
    %v6041 = vrot.slane %v6009, %v6040
    %v6043 = vmul.f32 %v6035, %v6041
    %v6044 = vmul.f32 %v6036, %v6041
    %v6046 = vlaneseq
    %v6047 = vshrl.u32 %v6046, 7
    %v6048 = vsub.s32 0, %v6047
    %v6049 = vrot.slane %v6010, %v6048
    %v6051 = vadd.f32 %v6043, %v6049
    %v6052 = vadd.f32 %v6044, %v6049
    %v6053 = vld [vmem:[#allocation41] sm:$0xf]
    %v6054 = vld [vmem:[#allocation41 + $0x4] sm:$0xf]
    %v6055 = vld [vmem:[#allocation41 + $0x8] sm:$0xf]
    %v6056 = vld [vmem:[#allocation41 + $0xc] sm:$0xf]
    %v6057 = vld [vmem:[#allocation41 + $0x10] sm:$0xf]
    %v6058 = vld [vmem:[#allocation41 + $0x14] sm:$0xf]
    %v6059 = vld [vmem:[#allocation41 + $0x18] sm:$0xf]
    %v6060 = vld [vmem:[#allocation41 + $0x1c] sm:$0xf]
    %v6061 = vld [vmem:[#allocation43] sm:$0x1]
    %v6062 = vpack.c.bf16 %v6052, %v6051
    %v6064 = vlaneseq
    %v6065 = vshrl.u32 %v6064, 7
    %v6066 = vsub.s32 0, %v6065
    %v6067 = vrot.slane %v6061, %v6066
    %v6077 = vunpack.c.l.b16 %v6053
    %v6078 = vunpack.c.l.b16 %v6054
    %v6079 = vunpack.c.l.b16 %v6055
    %v6080 = vunpack.c.l.b16 %v6056
    %v6081 = vunpack.c.l.b16 %v6057
    %v6082 = vunpack.c.l.b16 %v6058
    %v6083 = vunpack.c.l.b16 %v6059
    %v6084 = vunpack.c.l.b16 %v6060
    %v6085 = vpack.c.b16 %v6078, %v6077
    %v6086 = vpack.c.b16 %v6080, %v6079
    %v6087 = vpack.c.b16 %v6082, %v6081
    %v6088 = vpack.c.b16 %v6084, %v6083
    %v6094 = vsel %vm892, %v6062, 0
    %6096 = vmatprep.subr.bf16.mxu0 0
    %6097 = vmatpush1.bf16.msra.mxu0 0
    %6098 = vmatprep.subr.bf16.mxu0 0
    %6099 = vmatpush1.bf16.msra.mxu0 0
    %6100 = vmatprep.subr.bf16.mxu0 0
    %6101 = vmatpush1.bf16.msra.mxu0 0
    %6102 = vmatprep.subr.bf16.mxu0 0
    %6103 = vmatpush1.bf16.msra.mxu0 0
    %6104 = vmatprep.subr.bf16.mxu0 0
    %6105 = vmatpush1.bf16.msra.mxu0 %v6088
    %6106 = vmatprep.subr.bf16.mxu0 0
    %6107 = vmatpush1.bf16.msra.mxu0 %v6087
    %6108 = vmatprep.subr.bf16.mxu0 0
    %6109 = vmatpush1.bf16.msra.mxu0 %v6086
    %6110 = vmatprep.subr.bf16.mxu0 0
    %6111 = vmatpush1.bf16.msra.mxu0 %v6085
    %6112 = vmatprep.subr.bf16.mxu0 0
    %6113 = vmatpush2.bf16.msra.mxu0 0
    %6114 = vmatprep.subr.bf16.mxu0 0
    %6115 = vmatpush2.bf16.msra.mxu0 0
    %6116 = vmatprep.subr.bf16.mxu0 0
    %6117 = vmatpush2.bf16.msra.mxu0 0
    %6118 = vmatprep.subr.bf16.mxu0 0
    %6119 = vmatpush2.bf16.msra.mxu0 0
    %6120 = vmatprep.subr.bf16.mxu0 0
    %6121 = vmatpush2.bf16.msra.mxu0 0
    %6122 = vmatprep.subr.bf16.mxu0 0
    %6123 = vmatpush2.bf16.msra.mxu0 0
    %6124 = vmatprep.subr.bf16.mxu0 0
    %6125 = vmatpush2.bf16.msra.mxu0 0
    %6126 = vmatprep.subr.bf16.mxu0 0
    %6127 = vmatpush2.bf16.msra.mxu0 0
    %6128 = vmatprep.mubr.bf16.mxu0 0
    %6129 = vmatmul.mubr.bf16.gmra.mxu0 %v6094
    %v6130 = vpop.f32.mrf.mxu0
    %v6131 = vadd.f32 %v6067, %v6130
    %v6132 = vpop.f32.mrf.mxu0
    %v6133 = vpop.f32.mrf.mxu0
    %v6134 = vadd.f32 %v6067, %v6133
    %v6135 = vpop.f32.mrf.mxu0
    %6136 = vdwg.mxu0
    %v6137 = vmax.f32 %v6131, 0.0
    %v6138 = vmax.f32 %v6134, 0.0
    %v6139 = vld [vmem:[%s71] sm:$0xf]
    %v6140 = vld [vmem:[%s71 + $0x4] sm:$0xf]
    %v6141 = vld [vmem:[%s71 + $0x8] sm:$0xf]
    %v6142 = vld [vmem:[%s71 + $0xc] sm:$0xf]
    %v6143 = vld [vmem:[%s71 + $0x10] sm:$0xf]
    %v6144 = vld [vmem:[%s71 + $0x14] sm:$0xf]
    %v6145 = vld [vmem:[%s71 + $0x18] sm:$0xf]
    %v6146 = vld [vmem:[%s71 + $0x1c] sm:$0xf]
    %v6147 = vld [vmem:[%s71 + $0x20] sm:$0xf]
    %v6148 = vld [vmem:[%s71 + $0x24] sm:$0xf]
    %v6149 = vld [vmem:[%s71 + $0x28] sm:$0xf]
    %v6150 = vld [vmem:[%s71 + $0x2c] sm:$0xf]
    %v6151 = vld [vmem:[%s71 + $0x30] sm:$0xf]
    %v6152 = vld [vmem:[%s71 + $0x34] sm:$0xf]
    %v6153 = vld [vmem:[%s71 + $0x38] sm:$0xf]
    %v6154 = vld [vmem:[%s71 + $0x3c] sm:$0xf]
    %v6155 = vld [vmem:[#allocation44] sm:$0x1]
    %v6156 = vpack.c.bf16 %v6138, %v6137
    %v6158 = vlaneseq
    %v6159 = vshrl.u32 %v6158, 7
    %v6160 = vsub.s32 0, %v6159
    %v6161 = vrot.slane %v6155, %v6160
    %v6179 = vunpack.c.l.b16 %v6139
    %v6180 = vunpack.c.l.b16 %v6140
    %v6181 = vunpack.c.l.b16 %v6141
    %v6182 = vunpack.c.l.b16 %v6142
    %v6183 = vunpack.c.l.b16 %v6143
    %v6184 = vunpack.c.l.b16 %v6144
    %v6185 = vunpack.c.l.b16 %v6145
    %v6186 = vunpack.c.l.b16 %v6146
    %v6187 = vunpack.c.l.b16 %v6147
    %v6188 = vunpack.c.l.b16 %v6148
    %v6189 = vunpack.c.l.b16 %v6149
    %v6190 = vunpack.c.l.b16 %v6150
    %v6191 = vunpack.c.l.b16 %v6151
    %v6192 = vunpack.c.l.b16 %v6152
    %v6193 = vunpack.c.l.b16 %v6153
    %v6194 = vunpack.c.l.b16 %v6154
    %v6195 = vpack.c.b16 %v6180, %v6179
    %v6196 = vpack.c.b16 %v6182, %v6181
    %v6197 = vpack.c.b16 %v6184, %v6183
    %v6198 = vpack.c.b16 %v6186, %v6185
    %v6199 = vpack.c.b16 %v6188, %v6187
    %v6200 = vpack.c.b16 %v6190, %v6189
    %v6201 = vpack.c.b16 %v6192, %v6191
    %v6202 = vpack.c.b16 %v6194, %v6193
    %6211 = vmatprep.subr.bf16.mxu0 0
    %6212 = vmatpush1.bf16.msra.mxu0 %v6202
    %6213 = vmatprep.subr.bf16.mxu0 0
    %6214 = vmatpush1.bf16.msra.mxu0 %v6201
    %6215 = vmatprep.subr.bf16.mxu0 0
    %6216 = vmatpush1.bf16.msra.mxu0 %v6200
    %6217 = vmatprep.subr.bf16.mxu0 0
    %6218 = vmatpush1.bf16.msra.mxu0 %v6199
    %6219 = vmatprep.subr.bf16.mxu0 0
    %6220 = vmatpush1.bf16.msra.mxu0 %v6198
    %6221 = vmatprep.subr.bf16.mxu0 0
    %6222 = vmatpush1.bf16.msra.mxu0 %v6197
    %6223 = vmatprep.subr.bf16.mxu0 0
    %6224 = vmatpush1.bf16.msra.mxu0 %v6196
    %6225 = vmatprep.subr.bf16.mxu0 0
    %6226 = vmatpush1.bf16.msra.mxu0 %v6195
    %6227 = vmatprep.subr.bf16.mxu0 0
    %6228 = vmatpush2.bf16.msra.mxu0 0
    %6229 = vmatprep.subr.bf16.mxu0 0
    %6230 = vmatpush2.bf16.msra.mxu0 0
    %6231 = vmatprep.subr.bf16.mxu0 0
    %6232 = vmatpush2.bf16.msra.mxu0 0
    %6233 = vmatprep.subr.bf16.mxu0 0
    %6234 = vmatpush2.bf16.msra.mxu0 0
    %6235 = vmatprep.subr.bf16.mxu0 0
    %6236 = vmatpush2.bf16.msra.mxu0 0
    %6237 = vmatprep.subr.bf16.mxu0 0
    %6238 = vmatpush2.bf16.msra.mxu0 0
    %6239 = vmatprep.subr.bf16.mxu0 0
    %6240 = vmatpush2.bf16.msra.mxu0 0
    %6241 = vmatprep.subr.bf16.mxu0 0
    %6242 = vmatpush2.bf16.msra.mxu0 0
    %6243 = vmatprep.mubr.bf16.mxu0 0
    %6244 = vmatmul.mubr.bf16.gmra.mxu0 %v6156
    %v6245 = vpop.f32.mrf.mxu0
    %v6246 = vadd.f32 %v6161, %v6245
    %v6247 = vpop.f32.mrf.mxu0
    %v6248 = vpop.f32.mrf.mxu0
    %v6249 = vadd.f32 %v6161, %v6248
    %v6250 = vpop.f32.mrf.mxu0
    %6251 = vdwg.mxu0
    %v6252 = vadd.f32 %v6051, %v6246
    %v6253 = vadd.f32 %v6052, %v6249
    %v6254 = vld [vmem:[#allocation46] sm:$0x1]
    %v6255 = vld [vmem:[#allocation47] sm:$0x1]
    %v6256 = vsel %vm892, %v6252, 0.0
    %6257 = vadd.xlane.f32.xlu0 %v6256
    %v6258 = vpop.xlane.xlu0 %6257
    %v6259 = vsel %vm892, %v6253, 0.0
    %6260 = vadd.xlane.f32.xlu0 %v6259
    %v6261 = vpop.xlane.xlu0 %6260
    %v6262 = vmul.f32 %v6258, %v1964
    %v6263 = vmul.f32 %v6261, %v1964
    %v6264 = vsub.f32 %v6252, %v6262
    %v6265 = vsub.f32 %v6253, %v6263
    %v6266 = vmul.f32 %v6264, %v6264
    %v6267 = vmul.f32 %v6265, %v6265
    %v6268 = vsel %vm892, %v6266, 0.0
    %6269 = vadd.xlane.f32.xlu0 %v6268
    %v6270 = vpop.xlane.xlu0 %6269
    %v6271 = vsel %vm892, %v6267, 0.0
    %6272 = vadd.xlane.f32.xlu0 %v6271
    %v6273 = vpop.xlane.xlu0 %6272
    %v6274 = vmul.f32 %v6270, %v1964
    %v6275 = vmul.f32 %v6273, %v1964
    %v6276 = vadd.f32 %v6274, 1e-05
    %v6277 = vadd.f32 %v6275, 1e-05
    %v6278 = vrsqrt.pop %v6276
    %v6279 = vrsqrt.pop %v6277
    %v6280 = vmul.f32 %v6264, %v6278
    %v6281 = vmul.f32 %v6265, %v6279
    %v6283 = vlaneseq
    %v6284 = vshrl.u32 %v6283, 7
    %v6285 = vsub.s32 0, %v6284
    %v6286 = vrot.slane %v6254, %v6285
    %v6288 = vmul.f32 %v6280, %v6286
    %v6289 = vmul.f32 %v6281, %v6286
    %v6291 = vlaneseq
    %v6292 = vshrl.u32 %v6291, 7
    %v6293 = vsub.s32 0, %v6292
    %v6294 = vrot.slane %v6255, %v6293
    %v6296 = vadd.f32 %v6288, %v6294
    %v6297 = vadd.f32 %v6289, %v6294
    %s6298 = scalar_lea.vmem %s39, 64
    %v6299 = vld [vmem:[%s6298] sm:$0xff]
    %v6300 = vld [vmem:[%s6298 + $0x8] sm:$0xff]
    %v6301 = vld [vmem:[%s6298 + $0x10] sm:$0xff]
    %v6302 = vld [vmem:[%s6298 + $0x18] sm:$0xff]
    %v6303 = vld [vmem:[%s6298 + $0x20] sm:$0xff]
    %v6304 = vld [vmem:[%s6298 + $0x28] sm:$0xff]
    %v6305 = vld [vmem:[%s6298 + $0x30] sm:$0xff]
    %v6306 = vld [vmem:[%s6298 + $0x38] sm:$0xff]
    %s6307 = scalar_lea.vmem [#allocation22], 2
    %v6308 = vld [vmem:[%s6307] sm:$0x3]
    %v6309 = vpack.c.bf16 %v6297, %v6296
    %v6311 = vlaneseq
    %v6312 = vshrl.u32 %v6311, 7
    %v6313 = vsub.s32 0, %v6312
    %v6314 = vrot.slane %v6308, %v6313
    %v6315 = vlaneseq
    %v6316 = vshrl.u32 %v6315, 7
    %v6317 = vsub.s32 1, %v6316
    %v6318 = vrot.slane %v6308, %v6317
    %v6329 = vunpack.c.l.b16 %v6299
    %v6330 = vunpack.c.h.b16 %v6299
    %v6331 = vunpack.c.l.b16 %v6300
    %v6332 = vunpack.c.h.b16 %v6300
    %v6333 = vunpack.c.l.b16 %v6301
    %v6334 = vunpack.c.h.b16 %v6301
    %v6335 = vunpack.c.l.b16 %v6302
    %v6336 = vunpack.c.h.b16 %v6302
    %v6337 = vunpack.c.l.b16 %v6303
    %v6338 = vunpack.c.h.b16 %v6303
    %v6339 = vunpack.c.l.b16 %v6304
    %v6340 = vunpack.c.h.b16 %v6304
    %v6341 = vunpack.c.l.b16 %v6305
    %v6342 = vunpack.c.h.b16 %v6305
    %v6343 = vunpack.c.l.b16 %v6306
    %v6344 = vunpack.c.h.b16 %v6306
    %v6345 = vpack.c.b16 %v6331, %v6329
    %v6346 = vpack.c.b16 %v6332, %v6330
    %v6347 = vpack.c.b16 %v6335, %v6333
    %v6348 = vpack.c.b16 %v6336, %v6334
    %v6349 = vpack.c.b16 %v6339, %v6337
    %v6350 = vpack.c.b16 %v6340, %v6338
    %v6351 = vpack.c.b16 %v6343, %v6341
    %v6352 = vpack.c.b16 %v6344, %v6342
    %v6362 = vsel %vm892, %v6309, 0
    %6364 = vmatprep.subr.bf16.mxu0 0
    %6365 = vmatpush1.bf16.msra.mxu0 0
    %6366 = vmatprep.subr.bf16.mxu0 0
    %6367 = vmatpush1.bf16.msra.mxu0 0
    %6368 = vmatprep.subr.bf16.mxu0 0
    %6369 = vmatpush1.bf16.msra.mxu0 0
    %6370 = vmatprep.subr.bf16.mxu0 0
    %6371 = vmatpush1.bf16.msra.mxu0 0
    %6372 = vmatprep.subr.bf16.mxu0 %v6352
    %6373 = vmatpush1.bf16.msra.mxu0 %v6351
    %6374 = vmatprep.subr.bf16.mxu0 %v6350
    %6375 = vmatpush1.bf16.msra.mxu0 %v6349
    %6376 = vmatprep.subr.bf16.mxu0 %v6348
    %6377 = vmatpush1.bf16.msra.mxu0 %v6347
    %6378 = vmatprep.subr.bf16.mxu0 %v6346
    %6379 = vmatpush1.bf16.msra.mxu0 %v6345
    %6380 = vmatprep.subr.bf16.mxu0 0
    %6381 = vmatpush2.bf16.msra.mxu0 0
    %6382 = vmatprep.subr.bf16.mxu0 0
    %6383 = vmatpush2.bf16.msra.mxu0 0
    %6384 = vmatprep.subr.bf16.mxu0 0
    %6385 = vmatpush2.bf16.msra.mxu0 0
    %6386 = vmatprep.subr.bf16.mxu0 0
    %6387 = vmatpush2.bf16.msra.mxu0 0
    %6388 = vmatprep.subr.bf16.mxu0 0
    %6389 = vmatpush2.bf16.msra.mxu0 0
    %6390 = vmatprep.subr.bf16.mxu0 0
    %6391 = vmatpush2.bf16.msra.mxu0 0
    %6392 = vmatprep.subr.bf16.mxu0 0
    %6393 = vmatpush2.bf16.msra.mxu0 0
    %6394 = vmatprep.subr.bf16.mxu0 0
    %6395 = vmatpush2.bf16.msra.mxu0 0
    %6396 = vmatprep.mubr.bf16.mxu0 0
    %6397 = vmatmul.mubr.bf16.gmra.mxu0 %v6362
    %v6398 = vpop.f32.mrf.mxu0
    %v6399 = vadd.f32 %v6314, %v6398
    %v6400 = vpop.f32.mrf.mxu0
    %v6401 = vadd.f32 %v6318, %v6400
    %v6402 = vpop.f32.mrf.mxu0
    %v6403 = vadd.f32 %v6314, %v6402
    %v6404 = vpop.f32.mrf.mxu0
    %v6405 = vadd.f32 %v6318, %v6404
    %6406 = vdwg.mxu0
    %s6407 = scalar_lea.vmem [#allocation23], 32
    %v6408 = vld [vmem:[%s6407] sm:$0xf]
    %v6409 = vld [vmem:[%s6407 + $0x4] sm:$0xf]
    %v6410 = vld [vmem:[%s6407 + $0x8] sm:$0xf]
    %v6411 = vld [vmem:[%s6407 + $0xc] sm:$0xf]
    %v6412 = vld [vmem:[%s6407 + $0x10] sm:$0xf]
    %v6413 = vld [vmem:[%s6407 + $0x14] sm:$0xf]
    %v6414 = vld [vmem:[%s6407 + $0x18] sm:$0xf]
    %v6415 = vld [vmem:[%s6407 + $0x1c] sm:$0xf]
    %s6416 = scalar_lea.vmem [#allocation25], 1
    %v6417 = vld [vmem:[%s6416] sm:$0x1]
    %v6418 = vpack.c.bf16 %v6399, %v6399
    %v6419 = vpack.c.bf16 %v6403, %v6403
    %v6420 = vpack.c.bf16 %v6401, %v6401
    %v6421 = vpack.c.bf16 %v6405, %v6405
    %6423 = vrot.lane.b32.xlu0 %v6418, 64
    %v6424 = vpop.permute.xlu0 %6423
    %v6426 = vsel %vm955, %v6418, 0
    %v6429 = vsel %vm955, %v6424, 0
    %6431 = vmatprep.subr.bf16.mxu0 0
    %6432 = vmatpush1.bf16.xpose.msra.mxu0 0
    %6433 = vmatprep.subr.bf16.mxu0 0
    %6434 = vmatpush1.bf16.xpose.msra.mxu0 0
    %6435 = vmatprep.subr.bf16.mxu0 0
    %6436 = vmatpush1.bf16.xpose.msra.mxu0 0
    %6437 = vmatprep.subr.bf16.mxu0 0
    %6438 = vmatpush1.bf16.xpose.msra.mxu0 0
    %6439 = vmatprep.subr.bf16.mxu0 0
    %6440 = vmatpush1.bf16.xpose.msra.mxu0 0
    %6441 = vmatprep.subr.bf16.mxu0 0
    %6442 = vmatpush1.bf16.xpose.msra.mxu0 0
    %6443 = vmatprep.subr.bf16.mxu0 0
    %6444 = vmatpush1.bf16.xpose.msra.mxu0 0
    %6445 = vmatprep.subr.bf16.mxu0 0
    %6446 = vmatpush1.bf16.xpose.msra.mxu0 %v6429
    %6447 = vmatprep.subr.bf16.mxu0 0
    %6448 = vmatpush2.bf16.xpose.msra.mxu0 0
    %6449 = vmatprep.subr.bf16.mxu0 0
    %6450 = vmatpush2.bf16.xpose.msra.mxu0 0
    %6451 = vmatprep.subr.bf16.mxu0 0
    %6452 = vmatpush2.bf16.xpose.msra.mxu0 0
    %6453 = vmatprep.subr.bf16.mxu0 0
    %6454 = vmatpush2.bf16.xpose.msra.mxu0 0
    %6455 = vmatprep.subr.bf16.mxu0 0
    %6456 = vmatpush2.bf16.xpose.msra.mxu0 0
    %6457 = vmatprep.subr.bf16.mxu0 0
    %6458 = vmatpush2.bf16.xpose.msra.mxu0 0
    %6459 = vmatprep.subr.bf16.mxu0 0
    %6460 = vmatpush2.bf16.xpose.msra.mxu0 0
    %6461 = vmatprep.subr.bf16.mxu0 0
    %6462 = vmatpush2.bf16.xpose.msra.mxu0 0
    %6463 = vmatprep.mubr.bf16.mxu0 0
    %6464 = vmatmul.mubr.bf16.gmra.mxu0 %v6426
    %v6465 = vpop.f32.mrf.mxu0
    %v6466 = vadd.f32 0.0, %v6465
    %v6467 = vpop.f32.mrf.mxu0
    %v6468 = vpop.f32.mrf.mxu0
    %v6469 = vpop.f32.mrf.mxu0
    %6470 = vdwg.mxu0
    %6472 = vrot.lane.b32.xlu0 %v6419, 64
    %v6473 = vpop.permute.xlu0 %6472
    %v6475 = vsel %vm955, %v6419, 0
    %v6478 = vsel %vm955, %v6473, 0
    %6480 = vmatprep.subr.bf16.mxu0 0
    %6481 = vmatpush1.bf16.xpose.msra.mxu0 0
    %6482 = vmatprep.subr.bf16.mxu0 0
    %6483 = vmatpush1.bf16.xpose.msra.mxu0 0
    %6484 = vmatprep.subr.bf16.mxu0 0
    %6485 = vmatpush1.bf16.xpose.msra.mxu0 0
    %6486 = vmatprep.subr.bf16.mxu0 0
    %6487 = vmatpush1.bf16.xpose.msra.mxu0 0
    %6488 = vmatprep.subr.bf16.mxu0 0
    %6489 = vmatpush1.bf16.xpose.msra.mxu0 0
    %6490 = vmatprep.subr.bf16.mxu0 0
    %6491 = vmatpush1.bf16.xpose.msra.mxu0 0
    %6492 = vmatprep.subr.bf16.mxu0 0
    %6493 = vmatpush1.bf16.xpose.msra.mxu0 0
    %6494 = vmatprep.subr.bf16.mxu0 0
    %6495 = vmatpush1.bf16.xpose.msra.mxu0 %v6478
    %6496 = vmatprep.subr.bf16.mxu0 0
    %6497 = vmatpush2.bf16.xpose.msra.mxu0 0
    %6498 = vmatprep.subr.bf16.mxu0 0
    %6499 = vmatpush2.bf16.xpose.msra.mxu0 0
    %6500 = vmatprep.subr.bf16.mxu0 0
    %6501 = vmatpush2.bf16.xpose.msra.mxu0 0
    %6502 = vmatprep.subr.bf16.mxu0 0
    %6503 = vmatpush2.bf16.xpose.msra.mxu0 0
    %6504 = vmatprep.subr.bf16.mxu0 0
    %6505 = vmatpush2.bf16.xpose.msra.mxu0 0
    %6506 = vmatprep.subr.bf16.mxu0 0
    %6507 = vmatpush2.bf16.xpose.msra.mxu0 0
    %6508 = vmatprep.subr.bf16.mxu0 0
    %6509 = vmatpush2.bf16.xpose.msra.mxu0 0
    %6510 = vmatprep.subr.bf16.mxu0 0
    %6511 = vmatpush2.bf16.xpose.msra.mxu0 0
    %6512 = vmatprep.mubr.bf16.mxu0 0
    %6513 = vmatmul.mubr.bf16.gmra.mxu0 %v6475
    %v6514 = vpop.f32.mrf.mxu0
    %v6515 = vadd.f32 0.0, %v6514
    %v6516 = vpop.f32.mrf.mxu0
    %v6517 = vpop.f32.mrf.mxu0
    %v6518 = vpop.f32.mrf.mxu0
    %6519 = vdwg.mxu0
    %v6520 = vmul.f32 %v6466, 0.25
    %v6521 = vmul.f32 %v6515, 0.25
    %v6522 = vadd.f32 %v6520, %v620
    %v6523 = vadd.f32 %v6521, %v621
    %v6524 = vsel %vm1055, %v6522, -inf
    %6525 = vmax.xlane.f32.xlu0 %v6524
    %v6526 = vpop.xlane.xlu0 %6525
    %v6527 = vsel %vm1055, %v6523, -inf
    %6528 = vmax.xlane.f32.xlu0 %v6527
    %v6529 = vpop.xlane.xlu0 %6528
    %v6530 = vsub.f32 %v6522, %v6526
    %v6531 = vsub.f32 %v6523, %v6529
    %v6532 = vmul.f32 %v6530, 1.442695
    %v6533 = vpow.pop %v6532
    %v6534 = vmul.f32 %v6531, 1.442695
    %v6535 = vpow.pop %v6534
    %v6536 = vsel %vm1055, %v6533, 0.0
    %6537 = vadd.xlane.f32.xlu0 %v6536
    %v6538 = vpop.xlane.xlu0 %6537
    %v6539 = vsel %vm1055, %v6535, 0.0
    %6540 = vadd.xlane.f32.xlu0 %v6539
    %v6541 = vpop.xlane.xlu0 %6540
    %v6542 = vrcp.pop %v6538
    %v6543 = vrcp.pop %v6541
    %v6544 = vmul.f32 %v6533, %v6542
    %v6545 = vmul.f32 %v6535, %v6543
    %v6546 = vpack.c.bf16 %v6544, %v6544
    %v6547 = vpack.c.bf16 %v6545, %v6545
    %v6549 = vsel %vm1055, %v6546, 0
    %v6552 = vsel %vm1083, %v6420, 0
    %6554 = vmatprep.subr.bf16.mxu0 0
    %6555 = vmatpush1.bf16.msra.mxu0 0
    %6556 = vmatprep.subr.bf16.mxu0 0
    %6557 = vmatpush1.bf16.msra.mxu0 0
    %6558 = vmatprep.subr.bf16.mxu0 0
    %6559 = vmatpush1.bf16.msra.mxu0 0
    %6560 = vmatprep.subr.bf16.mxu0 0
    %6561 = vmatpush1.bf16.msra.mxu0 0
    %6562 = vmatprep.subr.bf16.mxu0 0
    %6563 = vmatpush1.bf16.msra.mxu0 0
    %6564 = vmatprep.subr.bf16.mxu0 0
    %6565 = vmatpush1.bf16.msra.mxu0 0
    %6566 = vmatprep.subr.bf16.mxu0 0
    %6567 = vmatpush1.bf16.msra.mxu0 0
    %6568 = vmatprep.subr.bf16.mxu0 0
    %6569 = vmatpush1.bf16.msra.mxu0 %v6552
    %6570 = vmatprep.subr.bf16.mxu0 0
    %6571 = vmatpush2.bf16.msra.mxu0 0
    %6572 = vmatprep.subr.bf16.mxu0 0
    %6573 = vmatpush2.bf16.msra.mxu0 0
    %6574 = vmatprep.subr.bf16.mxu0 0
    %6575 = vmatpush2.bf16.msra.mxu0 0
    %6576 = vmatprep.subr.bf16.mxu0 0
    %6577 = vmatpush2.bf16.msra.mxu0 0
    %6578 = vmatprep.subr.bf16.mxu0 0
    %6579 = vmatpush2.bf16.msra.mxu0 0
    %6580 = vmatprep.subr.bf16.mxu0 0
    %6581 = vmatpush2.bf16.msra.mxu0 0
    %6582 = vmatprep.subr.bf16.mxu0 0
    %6583 = vmatpush2.bf16.msra.mxu0 0
    %6584 = vmatprep.subr.bf16.mxu0 0
    %6585 = vmatpush2.bf16.msra.mxu0 0
    %6586 = vmatprep.mubr.bf16.mxu0 0
    %6587 = vmatmul.mubr.bf16.gmra.mxu0 %v6549
    %v6588 = vpop.f32.mrf.mxu0
    %v6589 = vadd.f32 0.0, %v6588
    %v6590 = vpop.f32.mrf.mxu0
    %v6591 = vpop.f32.mrf.mxu0
    %v6592 = vpop.f32.mrf.mxu0
    %6593 = vdwg.mxu0
    %v6595 = vsel %vm1055, %v6547, 0
    %v6598 = vsel %vm1083, %v6421, 0
    %6600 = vmatprep.subr.bf16.mxu0 0
    %6601 = vmatpush1.bf16.msra.mxu0 0
    %6602 = vmatprep.subr.bf16.mxu0 0
    %6603 = vmatpush1.bf16.msra.mxu0 0
    %6604 = vmatprep.subr.bf16.mxu0 0
    %6605 = vmatpush1.bf16.msra.mxu0 0
    %6606 = vmatprep.subr.bf16.mxu0 0
    %6607 = vmatpush1.bf16.msra.mxu0 0
    %6608 = vmatprep.subr.bf16.mxu0 0
    %6609 = vmatpush1.bf16.msra.mxu0 0
    %6610 = vmatprep.subr.bf16.mxu0 0
    %6611 = vmatpush1.bf16.msra.mxu0 0
    %6612 = vmatprep.subr.bf16.mxu0 0
    %6613 = vmatpush1.bf16.msra.mxu0 0
    %6614 = vmatprep.subr.bf16.mxu0 0
    %6615 = vmatpush1.bf16.msra.mxu0 %v6598
    %6616 = vmatprep.subr.bf16.mxu0 0
    %6617 = vmatpush2.bf16.msra.mxu0 0
    %6618 = vmatprep.subr.bf16.mxu0 0
    %6619 = vmatpush2.bf16.msra.mxu0 0
    %6620 = vmatprep.subr.bf16.mxu0 0
    %6621 = vmatpush2.bf16.msra.mxu0 0
    %6622 = vmatprep.subr.bf16.mxu0 0
    %6623 = vmatpush2.bf16.msra.mxu0 0
    %6624 = vmatprep.subr.bf16.mxu0 0
    %6625 = vmatpush2.bf16.msra.mxu0 0
    %6626 = vmatprep.subr.bf16.mxu0 0
    %6627 = vmatpush2.bf16.msra.mxu0 0
    %6628 = vmatprep.subr.bf16.mxu0 0
    %6629 = vmatpush2.bf16.msra.mxu0 0
    %6630 = vmatprep.subr.bf16.mxu0 0
    %6631 = vmatpush2.bf16.msra.mxu0 0
    %6632 = vmatprep.mubr.bf16.mxu0 0
    %6633 = vmatmul.mubr.bf16.gmra.mxu0 %v6595
    %v6634 = vpop.f32.mrf.mxu0
    %v6635 = vadd.f32 0.0, %v6634
    %v6636 = vpop.f32.mrf.mxu0
    %v6637 = vpop.f32.mrf.mxu0
    %v6638 = vpop.f32.mrf.mxu0
    %6639 = vdwg.mxu0
    %6640 = vrot.lane.b32.xlu0 %v6418, 112
    %v6641 = vpop.permute.xlu0 %6640
    %6642 = vrot.lane.b32.xlu0 %v6418, 48
    %v6643 = vpop.permute.xlu0 %6642
    %v6645 = vsel %vm955, %v6641, 0
    %v6648 = vsel %vm955, %v6643, 0
    %6650 = vmatprep.subr.bf16.mxu0 0
    %6651 = vmatpush1.bf16.xpose.msra.mxu0 0
    %6652 = vmatprep.subr.bf16.mxu0 0
    %6653 = vmatpush1.bf16.xpose.msra.mxu0 0
    %6654 = vmatprep.subr.bf16.mxu0 0
    %6655 = vmatpush1.bf16.xpose.msra.mxu0 0
    %6656 = vmatprep.subr.bf16.mxu0 0
    %6657 = vmatpush1.bf16.xpose.msra.mxu0 0
    %6658 = vmatprep.subr.bf16.mxu0 0
    %6659 = vmatpush1.bf16.xpose.msra.mxu0 0
    %6660 = vmatprep.subr.bf16.mxu0 0
    %6661 = vmatpush1.bf16.xpose.msra.mxu0 0
    %6662 = vmatprep.subr.bf16.mxu0 0
    %6663 = vmatpush1.bf16.xpose.msra.mxu0 0
    %6664 = vmatprep.subr.bf16.mxu0 0
    %6665 = vmatpush1.bf16.xpose.msra.mxu0 %v6648
    %6666 = vmatprep.subr.bf16.mxu0 0
    %6667 = vmatpush2.bf16.xpose.msra.mxu0 0
    %6668 = vmatprep.subr.bf16.mxu0 0
    %6669 = vmatpush2.bf16.xpose.msra.mxu0 0
    %6670 = vmatprep.subr.bf16.mxu0 0
    %6671 = vmatpush2.bf16.xpose.msra.mxu0 0
    %6672 = vmatprep.subr.bf16.mxu0 0
    %6673 = vmatpush2.bf16.xpose.msra.mxu0 0
    %6674 = vmatprep.subr.bf16.mxu0 0
    %6675 = vmatpush2.bf16.xpose.msra.mxu0 0
    %6676 = vmatprep.subr.bf16.mxu0 0
    %6677 = vmatpush2.bf16.xpose.msra.mxu0 0
    %6678 = vmatprep.subr.bf16.mxu0 0
    %6679 = vmatpush2.bf16.xpose.msra.mxu0 0
    %6680 = vmatprep.subr.bf16.mxu0 0
    %6681 = vmatpush2.bf16.xpose.msra.mxu0 0
    %6682 = vmatprep.mubr.bf16.mxu0 0
    %6683 = vmatmul.mubr.bf16.gmra.mxu0 %v6645
    %v6684 = vpop.f32.mrf.mxu0
    %v6685 = vadd.f32 0.0, %v6684
    %v6686 = vpop.f32.mrf.mxu0
    %v6687 = vpop.f32.mrf.mxu0
    %v6688 = vpop.f32.mrf.mxu0
    %6689 = vdwg.mxu0
    %6690 = vrot.lane.b32.xlu0 %v6419, 112
    %v6691 = vpop.permute.xlu0 %6690
    %6692 = vrot.lane.b32.xlu0 %v6419, 48
    %v6693 = vpop.permute.xlu0 %6692
    %v6695 = vsel %vm955, %v6691, 0
    %v6698 = vsel %vm955, %v6693, 0
    %6700 = vmatprep.subr.bf16.mxu0 0
    %6701 = vmatpush1.bf16.xpose.msra.mxu0 0
    %6702 = vmatprep.subr.bf16.mxu0 0
    %6703 = vmatpush1.bf16.xpose.msra.mxu0 0
    %6704 = vmatprep.subr.bf16.mxu0 0
    %6705 = vmatpush1.bf16.xpose.msra.mxu0 0
    %6706 = vmatprep.subr.bf16.mxu0 0
    %6707 = vmatpush1.bf16.xpose.msra.mxu0 0
    %6708 = vmatprep.subr.bf16.mxu0 0
    %6709 = vmatpush1.bf16.xpose.msra.mxu0 0
    %6710 = vmatprep.subr.bf16.mxu0 0
    %6711 = vmatpush1.bf16.xpose.msra.mxu0 0
    %6712 = vmatprep.subr.bf16.mxu0 0
    %6713 = vmatpush1.bf16.xpose.msra.mxu0 0
    %6714 = vmatprep.subr.bf16.mxu0 0
    %6715 = vmatpush1.bf16.xpose.msra.mxu0 %v6698
    %6716 = vmatprep.subr.bf16.mxu0 0
    %6717 = vmatpush2.bf16.xpose.msra.mxu0 0
    %6718 = vmatprep.subr.bf16.mxu0 0
    %6719 = vmatpush2.bf16.xpose.msra.mxu0 0
    %6720 = vmatprep.subr.bf16.mxu0 0
    %6721 = vmatpush2.bf16.xpose.msra.mxu0 0
    %6722 = vmatprep.subr.bf16.mxu0 0
    %6723 = vmatpush2.bf16.xpose.msra.mxu0 0
    %6724 = vmatprep.subr.bf16.mxu0 0
    %6725 = vmatpush2.bf16.xpose.msra.mxu0 0
    %6726 = vmatprep.subr.bf16.mxu0 0
    %6727 = vmatpush2.bf16.xpose.msra.mxu0 0
    %6728 = vmatprep.subr.bf16.mxu0 0
    %6729 = vmatpush2.bf16.xpose.msra.mxu0 0
    %6730 = vmatprep.subr.bf16.mxu0 0
    %6731 = vmatpush2.bf16.xpose.msra.mxu0 0
    %6732 = vmatprep.mubr.bf16.mxu0 0
    %6733 = vmatmul.mubr.bf16.gmra.mxu0 %v6695
    %v6734 = vpop.f32.mrf.mxu0
    %v6735 = vadd.f32 0.0, %v6734
    %v6736 = vpop.f32.mrf.mxu0
    %v6737 = vpop.f32.mrf.mxu0
    %v6738 = vpop.f32.mrf.mxu0
    %6739 = vdwg.mxu0
    %v6740 = vmul.f32 %v6685, 0.25
    %v6741 = vmul.f32 %v6735, 0.25
    %v6742 = vadd.f32 %v6740, %v620
    %v6743 = vadd.f32 %v6741, %v621
    %v6744 = vsel %vm1055, %v6742, -inf
    %6745 = vmax.xlane.f32.xlu0 %v6744
    %v6746 = vpop.xlane.xlu0 %6745
    %v6747 = vsel %vm1055, %v6743, -inf
    %6748 = vmax.xlane.f32.xlu0 %v6747
    %v6749 = vpop.xlane.xlu0 %6748
    %v6750 = vsub.f32 %v6742, %v6746
    %v6751 = vsub.f32 %v6743, %v6749
    %v6752 = vmul.f32 %v6750, 1.442695
    %v6753 = vpow.pop %v6752
    %v6754 = vmul.f32 %v6751, 1.442695
    %v6755 = vpow.pop %v6754
    %v6756 = vsel %vm1055, %v6753, 0.0
    %6757 = vadd.xlane.f32.xlu0 %v6756
    %v6758 = vpop.xlane.xlu0 %6757
    %v6759 = vsel %vm1055, %v6755, 0.0
    %6760 = vadd.xlane.f32.xlu0 %v6759
    %v6761 = vpop.xlane.xlu0 %6760
    %v6762 = vrcp.pop %v6758
    %v6763 = vrcp.pop %v6761
    %v6764 = vmul.f32 %v6753, %v6762
    %v6765 = vmul.f32 %v6755, %v6763
    %v6766 = vpack.c.bf16 %v6764, %v6764
    %v6767 = vpack.c.bf16 %v6765, %v6765
    %6769 = vrot.lane.b32.xlu0 %v6420, 112
    %v6770 = vpop.permute.xlu0 %6769
    %v6772 = vsel %vm1055, %v6766, 0
    %v6775 = vsel %vm1083, %v6770, 0
    %6777 = vmatprep.subr.bf16.mxu0 0
    %6778 = vmatpush1.bf16.msra.mxu0 0
    %6779 = vmatprep.subr.bf16.mxu0 0
    %6780 = vmatpush1.bf16.msra.mxu0 0
    %6781 = vmatprep.subr.bf16.mxu0 0
    %6782 = vmatpush1.bf16.msra.mxu0 0
    %6783 = vmatprep.subr.bf16.mxu0 0
    %6784 = vmatpush1.bf16.msra.mxu0 0
    %6785 = vmatprep.subr.bf16.mxu0 0
    %6786 = vmatpush1.bf16.msra.mxu0 0
    %6787 = vmatprep.subr.bf16.mxu0 0
    %6788 = vmatpush1.bf16.msra.mxu0 0
    %6789 = vmatprep.subr.bf16.mxu0 0
    %6790 = vmatpush1.bf16.msra.mxu0 0
    %6791 = vmatprep.subr.bf16.mxu0 0
    %6792 = vmatpush1.bf16.msra.mxu0 %v6775
    %6793 = vmatprep.subr.bf16.mxu0 0
    %6794 = vmatpush2.bf16.msra.mxu0 0
    %6795 = vmatprep.subr.bf16.mxu0 0
    %6796 = vmatpush2.bf16.msra.mxu0 0
    %6797 = vmatprep.subr.bf16.mxu0 0
    %6798 = vmatpush2.bf16.msra.mxu0 0
    %6799 = vmatprep.subr.bf16.mxu0 0
    %6800 = vmatpush2.bf16.msra.mxu0 0
    %6801 = vmatprep.subr.bf16.mxu0 0
    %6802 = vmatpush2.bf16.msra.mxu0 0
    %6803 = vmatprep.subr.bf16.mxu0 0
    %6804 = vmatpush2.bf16.msra.mxu0 0
    %6805 = vmatprep.subr.bf16.mxu0 0
    %6806 = vmatpush2.bf16.msra.mxu0 0
    %6807 = vmatprep.subr.bf16.mxu0 0
    %6808 = vmatpush2.bf16.msra.mxu0 0
    %6809 = vmatprep.mubr.bf16.mxu0 0
    %6810 = vmatmul.mubr.bf16.gmra.mxu0 %v6772
    %v6811 = vpop.f32.mrf.mxu0
    %v6812 = vadd.f32 0.0, %v6811
    %v6813 = vpop.f32.mrf.mxu0
    %v6814 = vpop.f32.mrf.mxu0
    %v6815 = vpop.f32.mrf.mxu0
    %6816 = vdwg.mxu0
    %6818 = vrot.lane.b32.xlu0 %v6421, 112
    %v6819 = vpop.permute.xlu0 %6818
    %v6821 = vsel %vm1055, %v6767, 0
    %v6824 = vsel %vm1083, %v6819, 0
    %6826 = vmatprep.subr.bf16.mxu0 0
    %6827 = vmatpush1.bf16.msra.mxu0 0
    %6828 = vmatprep.subr.bf16.mxu0 0
    %6829 = vmatpush1.bf16.msra.mxu0 0
    %6830 = vmatprep.subr.bf16.mxu0 0
    %6831 = vmatpush1.bf16.msra.mxu0 0
    %6832 = vmatprep.subr.bf16.mxu0 0
    %6833 = vmatpush1.bf16.msra.mxu0 0
    %6834 = vmatprep.subr.bf16.mxu0 0
    %6835 = vmatpush1.bf16.msra.mxu0 0
    %6836 = vmatprep.subr.bf16.mxu0 0
    %6837 = vmatpush1.bf16.msra.mxu0 0
    %6838 = vmatprep.subr.bf16.mxu0 0
    %6839 = vmatpush1.bf16.msra.mxu0 0
    %6840 = vmatprep.subr.bf16.mxu0 0
    %6841 = vmatpush1.bf16.msra.mxu0 %v6824
    %6842 = vmatprep.subr.bf16.mxu0 0
    %6843 = vmatpush2.bf16.msra.mxu0 0
    %6844 = vmatprep.subr.bf16.mxu0 0
    %6845 = vmatpush2.bf16.msra.mxu0 0
    %6846 = vmatprep.subr.bf16.mxu0 0
    %6847 = vmatpush2.bf16.msra.mxu0 0
    %6848 = vmatprep.subr.bf16.mxu0 0
    %6849 = vmatpush2.bf16.msra.mxu0 0
    %6850 = vmatprep.subr.bf16.mxu0 0
    %6851 = vmatpush2.bf16.msra.mxu0 0
    %6852 = vmatprep.subr.bf16.mxu0 0
    %6853 = vmatpush2.bf16.msra.mxu0 0
    %6854 = vmatprep.subr.bf16.mxu0 0
    %6855 = vmatpush2.bf16.msra.mxu0 0
    %6856 = vmatprep.subr.bf16.mxu0 0
    %6857 = vmatpush2.bf16.msra.mxu0 0
    %6858 = vmatprep.mubr.bf16.mxu0 0
    %6859 = vmatmul.mubr.bf16.gmra.mxu0 %v6821
    %v6860 = vpop.f32.mrf.mxu0
    %v6861 = vadd.f32 0.0, %v6860
    %v6862 = vpop.f32.mrf.mxu0
    %v6863 = vpop.f32.mrf.mxu0
    %v6864 = vpop.f32.mrf.mxu0
    %6865 = vdwg.mxu0
    %6866 = vrot.lane.b32.xlu0 %v6418, 96
    %v6867 = vpop.permute.xlu0 %6866
    %6868 = vrot.lane.b32.xlu0 %v6418, 32
    %v6869 = vpop.permute.xlu0 %6868
    %v6871 = vsel %vm955, %v6867, 0
    %v6874 = vsel %vm955, %v6869, 0
    %6876 = vmatprep.subr.bf16.mxu0 0
    %6877 = vmatpush1.bf16.xpose.msra.mxu0 0
    %6878 = vmatprep.subr.bf16.mxu0 0
    %6879 = vmatpush1.bf16.xpose.msra.mxu0 0
    %6880 = vmatprep.subr.bf16.mxu0 0
    %6881 = vmatpush1.bf16.xpose.msra.mxu0 0
    %6882 = vmatprep.subr.bf16.mxu0 0
    %6883 = vmatpush1.bf16.xpose.msra.mxu0 0
    %6884 = vmatprep.subr.bf16.mxu0 0
    %6885 = vmatpush1.bf16.xpose.msra.mxu0 0
    %6886 = vmatprep.subr.bf16.mxu0 0
    %6887 = vmatpush1.bf16.xpose.msra.mxu0 0
    %6888 = vmatprep.subr.bf16.mxu0 0
    %6889 = vmatpush1.bf16.xpose.msra.mxu0 0
    %6890 = vmatprep.subr.bf16.mxu0 0
    %6891 = vmatpush1.bf16.xpose.msra.mxu0 %v6874
    %6892 = vmatprep.subr.bf16.mxu0 0
    %6893 = vmatpush2.bf16.xpose.msra.mxu0 0
    %6894 = vmatprep.subr.bf16.mxu0 0
    %6895 = vmatpush2.bf16.xpose.msra.mxu0 0
    %6896 = vmatprep.subr.bf16.mxu0 0
    %6897 = vmatpush2.bf16.xpose.msra.mxu0 0
    %6898 = vmatprep.subr.bf16.mxu0 0
    %6899 = vmatpush2.bf16.xpose.msra.mxu0 0
    %6900 = vmatprep.subr.bf16.mxu0 0
    %6901 = vmatpush2.bf16.xpose.msra.mxu0 0
    %6902 = vmatprep.subr.bf16.mxu0 0
    %6903 = vmatpush2.bf16.xpose.msra.mxu0 0
    %6904 = vmatprep.subr.bf16.mxu0 0
    %6905 = vmatpush2.bf16.xpose.msra.mxu0 0
    %6906 = vmatprep.subr.bf16.mxu0 0
    %6907 = vmatpush2.bf16.xpose.msra.mxu0 0
    %6908 = vmatprep.mubr.bf16.mxu0 0
    %6909 = vmatmul.mubr.bf16.gmra.mxu0 %v6871
    %v6910 = vpop.f32.mrf.mxu0
    %v6911 = vadd.f32 0.0, %v6910
    %v6912 = vpop.f32.mrf.mxu0
    %v6913 = vpop.f32.mrf.mxu0
    %v6914 = vpop.f32.mrf.mxu0
    %6915 = vdwg.mxu0
    %6916 = vrot.lane.b32.xlu0 %v6419, 96
    %v6917 = vpop.permute.xlu0 %6916
    %6918 = vrot.lane.b32.xlu0 %v6419, 32
    %v6919 = vpop.permute.xlu0 %6918
    %v6921 = vsel %vm955, %v6917, 0
    %v6924 = vsel %vm955, %v6919, 0
    %6926 = vmatprep.subr.bf16.mxu0 0
    %6927 = vmatpush1.bf16.xpose.msra.mxu0 0
    %6928 = vmatprep.subr.bf16.mxu0 0
    %6929 = vmatpush1.bf16.xpose.msra.mxu0 0
    %6930 = vmatprep.subr.bf16.mxu0 0
    %6931 = vmatpush1.bf16.xpose.msra.mxu0 0
    %6932 = vmatprep.subr.bf16.mxu0 0
    %6933 = vmatpush1.bf16.xpose.msra.mxu0 0
    %6934 = vmatprep.subr.bf16.mxu0 0
    %6935 = vmatpush1.bf16.xpose.msra.mxu0 0
    %6936 = vmatprep.subr.bf16.mxu0 0
    %6937 = vmatpush1.bf16.xpose.msra.mxu0 0
    %6938 = vmatprep.subr.bf16.mxu0 0
    %6939 = vmatpush1.bf16.xpose.msra.mxu0 0
    %6940 = vmatprep.subr.bf16.mxu0 0
    %6941 = vmatpush1.bf16.xpose.msra.mxu0 %v6924
    %6942 = vmatprep.subr.bf16.mxu0 0
    %6943 = vmatpush2.bf16.xpose.msra.mxu0 0
    %6944 = vmatprep.subr.bf16.mxu0 0
    %6945 = vmatpush2.bf16.xpose.msra.mxu0 0
    %6946 = vmatprep.subr.bf16.mxu0 0
    %6947 = vmatpush2.bf16.xpose.msra.mxu0 0
    %6948 = vmatprep.subr.bf16.mxu0 0
    %6949 = vmatpush2.bf16.xpose.msra.mxu0 0
    %6950 = vmatprep.subr.bf16.mxu0 0
    %6951 = vmatpush2.bf16.xpose.msra.mxu0 0
    %6952 = vmatprep.subr.bf16.mxu0 0
    %6953 = vmatpush2.bf16.xpose.msra.mxu0 0
    %6954 = vmatprep.subr.bf16.mxu0 0
    %6955 = vmatpush2.bf16.xpose.msra.mxu0 0
    %6956 = vmatprep.subr.bf16.mxu0 0
    %6957 = vmatpush2.bf16.xpose.msra.mxu0 0
    %6958 = vmatprep.mubr.bf16.mxu0 0
    %6959 = vmatmul.mubr.bf16.gmra.mxu0 %v6921
    %v6960 = vpop.f32.mrf.mxu0
    %v6961 = vadd.f32 0.0, %v6960
    %v6962 = vpop.f32.mrf.mxu0
    %v6963 = vpop.f32.mrf.mxu0
    %v6964 = vpop.f32.mrf.mxu0
    %6965 = vdwg.mxu0
    %v6966 = vmul.f32 %v6911, 0.25
    %v6967 = vmul.f32 %v6961, 0.25
    %v6968 = vadd.f32 %v6966, %v620
    %v6969 = vadd.f32 %v6967, %v621
    %v6970 = vsel %vm1055, %v6968, -inf
    %6971 = vmax.xlane.f32.xlu0 %v6970
    %v6972 = vpop.xlane.xlu0 %6971
    %v6973 = vsel %vm1055, %v6969, -inf
    %6974 = vmax.xlane.f32.xlu0 %v6973
    %v6975 = vpop.xlane.xlu0 %6974
    %v6976 = vsub.f32 %v6968, %v6972
    %v6977 = vsub.f32 %v6969, %v6975
    %v6978 = vmul.f32 %v6976, 1.442695
    %v6979 = vpow.pop %v6978
    %v6980 = vmul.f32 %v6977, 1.442695
    %v6981 = vpow.pop %v6980
    %v6982 = vsel %vm1055, %v6979, 0.0
    %6983 = vadd.xlane.f32.xlu0 %v6982
    %v6984 = vpop.xlane.xlu0 %6983
    %v6985 = vsel %vm1055, %v6981, 0.0
    %6986 = vadd.xlane.f32.xlu0 %v6985
    %v6987 = vpop.xlane.xlu0 %6986
    %v6988 = vrcp.pop %v6984
    %v6989 = vrcp.pop %v6987
    %v6990 = vmul.f32 %v6979, %v6988
    %v6991 = vmul.f32 %v6981, %v6989
    %v6992 = vpack.c.bf16 %v6990, %v6990
    %v6993 = vpack.c.bf16 %v6991, %v6991
    %6994 = vrot.lane.b32.xlu0 %v6420, 96
    %v6995 = vpop.permute.xlu0 %6994
    %v6997 = vsel %vm1055, %v6992, 0
    %v7000 = vsel %vm1083, %v6995, 0
    %7002 = vmatprep.subr.bf16.mxu0 0
    %7003 = vmatpush1.bf16.msra.mxu0 0
    %7004 = vmatprep.subr.bf16.mxu0 0
    %7005 = vmatpush1.bf16.msra.mxu0 0
    %7006 = vmatprep.subr.bf16.mxu0 0
    %7007 = vmatpush1.bf16.msra.mxu0 0
    %7008 = vmatprep.subr.bf16.mxu0 0
    %7009 = vmatpush1.bf16.msra.mxu0 0
    %7010 = vmatprep.subr.bf16.mxu0 0
    %7011 = vmatpush1.bf16.msra.mxu0 0
    %7012 = vmatprep.subr.bf16.mxu0 0
    %7013 = vmatpush1.bf16.msra.mxu0 0
    %7014 = vmatprep.subr.bf16.mxu0 0
    %7015 = vmatpush1.bf16.msra.mxu0 0
    %7016 = vmatprep.subr.bf16.mxu0 0
    %7017 = vmatpush1.bf16.msra.mxu0 %v7000
    %7018 = vmatprep.subr.bf16.mxu0 0
    %7019 = vmatpush2.bf16.msra.mxu0 0
    %7020 = vmatprep.subr.bf16.mxu0 0
    %7021 = vmatpush2.bf16.msra.mxu0 0
    %7022 = vmatprep.subr.bf16.mxu0 0
    %7023 = vmatpush2.bf16.msra.mxu0 0
    %7024 = vmatprep.subr.bf16.mxu0 0
    %7025 = vmatpush2.bf16.msra.mxu0 0
    %7026 = vmatprep.subr.bf16.mxu0 0
    %7027 = vmatpush2.bf16.msra.mxu0 0
    %7028 = vmatprep.subr.bf16.mxu0 0
    %7029 = vmatpush2.bf16.msra.mxu0 0
    %7030 = vmatprep.subr.bf16.mxu0 0
    %7031 = vmatpush2.bf16.msra.mxu0 0
    %7032 = vmatprep.subr.bf16.mxu0 0
    %7033 = vmatpush2.bf16.msra.mxu0 0
    %7034 = vmatprep.mubr.bf16.mxu0 0
    %7035 = vmatmul.mubr.bf16.gmra.mxu0 %v6997
    %v7036 = vpop.f32.mrf.mxu0
    %v7037 = vadd.f32 0.0, %v7036
    %v7038 = vpop.f32.mrf.mxu0
    %v7039 = vpop.f32.mrf.mxu0
    %v7040 = vpop.f32.mrf.mxu0
    %7041 = vdwg.mxu0
    %7042 = vrot.lane.b32.xlu0 %v6421, 96
    %v7043 = vpop.permute.xlu0 %7042
    %v7045 = vsel %vm1055, %v6993, 0
    %v7048 = vsel %vm1083, %v7043, 0
    %7050 = vmatprep.subr.bf16.mxu0 0
    %7051 = vmatpush1.bf16.msra.mxu0 0
    %7052 = vmatprep.subr.bf16.mxu0 0
    %7053 = vmatpush1.bf16.msra.mxu0 0
    %7054 = vmatprep.subr.bf16.mxu0 0
    %7055 = vmatpush1.bf16.msra.mxu0 0
    %7056 = vmatprep.subr.bf16.mxu0 0
    %7057 = vmatpush1.bf16.msra.mxu0 0
    %7058 = vmatprep.subr.bf16.mxu0 0
    %7059 = vmatpush1.bf16.msra.mxu0 0
    %7060 = vmatprep.subr.bf16.mxu0 0
    %7061 = vmatpush1.bf16.msra.mxu0 0
    %7062 = vmatprep.subr.bf16.mxu0 0
    %7063 = vmatpush1.bf16.msra.mxu0 0
    %7064 = vmatprep.subr.bf16.mxu0 0
    %7065 = vmatpush1.bf16.msra.mxu0 %v7048
    %7066 = vmatprep.subr.bf16.mxu0 0
    %7067 = vmatpush2.bf16.msra.mxu0 0
    %7068 = vmatprep.subr.bf16.mxu0 0
    %7069 = vmatpush2.bf16.msra.mxu0 0
    %7070 = vmatprep.subr.bf16.mxu0 0
    %7071 = vmatpush2.bf16.msra.mxu0 0
    %7072 = vmatprep.subr.bf16.mxu0 0
    %7073 = vmatpush2.bf16.msra.mxu0 0
    %7074 = vmatprep.subr.bf16.mxu0 0
    %7075 = vmatpush2.bf16.msra.mxu0 0
    %7076 = vmatprep.subr.bf16.mxu0 0
    %7077 = vmatpush2.bf16.msra.mxu0 0
    %7078 = vmatprep.subr.bf16.mxu0 0
    %7079 = vmatpush2.bf16.msra.mxu0 0
    %7080 = vmatprep.subr.bf16.mxu0 0
    %7081 = vmatpush2.bf16.msra.mxu0 0
    %7082 = vmatprep.mubr.bf16.mxu0 0
    %7083 = vmatmul.mubr.bf16.gmra.mxu0 %v7045
    %v7084 = vpop.f32.mrf.mxu0
    %v7085 = vadd.f32 0.0, %v7084
    %v7086 = vpop.f32.mrf.mxu0
    %v7087 = vpop.f32.mrf.mxu0
    %v7088 = vpop.f32.mrf.mxu0
    %7089 = vdwg.mxu0
    %7090 = vrot.lane.b32.xlu0 %v6418, 80
    %v7091 = vpop.permute.xlu0 %7090
    %7092 = vrot.lane.b32.xlu0 %v6418, 16
    %v7093 = vpop.permute.xlu0 %7092
    %v7095 = vsel %vm955, %v7091, 0
    %v7098 = vsel %vm955, %v7093, 0
    %7100 = vmatprep.subr.bf16.mxu0 0
    %7101 = vmatpush1.bf16.xpose.msra.mxu0 0
    %7102 = vmatprep.subr.bf16.mxu0 0
    %7103 = vmatpush1.bf16.xpose.msra.mxu0 0
    %7104 = vmatprep.subr.bf16.mxu0 0
    %7105 = vmatpush1.bf16.xpose.msra.mxu0 0
    %7106 = vmatprep.subr.bf16.mxu0 0
    %7107 = vmatpush1.bf16.xpose.msra.mxu0 0
    %7108 = vmatprep.subr.bf16.mxu0 0
    %7109 = vmatpush1.bf16.xpose.msra.mxu0 0
    %7110 = vmatprep.subr.bf16.mxu0 0
    %7111 = vmatpush1.bf16.xpose.msra.mxu0 0
    %7112 = vmatprep.subr.bf16.mxu0 0
    %7113 = vmatpush1.bf16.xpose.msra.mxu0 0
    %7114 = vmatprep.subr.bf16.mxu0 0
    %7115 = vmatpush1.bf16.xpose.msra.mxu0 %v7098
    %7116 = vmatprep.subr.bf16.mxu0 0
    %7117 = vmatpush2.bf16.xpose.msra.mxu0 0
    %7118 = vmatprep.subr.bf16.mxu0 0
    %7119 = vmatpush2.bf16.xpose.msra.mxu0 0
    %7120 = vmatprep.subr.bf16.mxu0 0
    %7121 = vmatpush2.bf16.xpose.msra.mxu0 0
    %7122 = vmatprep.subr.bf16.mxu0 0
    %7123 = vmatpush2.bf16.xpose.msra.mxu0 0
    %7124 = vmatprep.subr.bf16.mxu0 0
    %7125 = vmatpush2.bf16.xpose.msra.mxu0 0
    %7126 = vmatprep.subr.bf16.mxu0 0
    %7127 = vmatpush2.bf16.xpose.msra.mxu0 0
    %7128 = vmatprep.subr.bf16.mxu0 0
    %7129 = vmatpush2.bf16.xpose.msra.mxu0 0
    %7130 = vmatprep.subr.bf16.mxu0 0
    %7131 = vmatpush2.bf16.xpose.msra.mxu0 0
    %7132 = vmatprep.mubr.bf16.mxu0 0
    %7133 = vmatmul.mubr.bf16.gmra.mxu0 %v7095
    %v7134 = vpop.f32.mrf.mxu0
    %v7135 = vadd.f32 0.0, %v7134
    %v7136 = vpop.f32.mrf.mxu0
    %v7137 = vpop.f32.mrf.mxu0
    %v7138 = vpop.f32.mrf.mxu0
    %7139 = vdwg.mxu0
    %7140 = vrot.lane.b32.xlu0 %v6419, 80
    %v7141 = vpop.permute.xlu0 %7140
    %7142 = vrot.lane.b32.xlu0 %v6419, 16
    %v7143 = vpop.permute.xlu0 %7142
    %v7145 = vsel %vm955, %v7141, 0
    %v7148 = vsel %vm955, %v7143, 0
    %7150 = vmatprep.subr.bf16.mxu0 0
    %7151 = vmatpush1.bf16.xpose.msra.mxu0 0
    %7152 = vmatprep.subr.bf16.mxu0 0
    %7153 = vmatpush1.bf16.xpose.msra.mxu0 0
    %7154 = vmatprep.subr.bf16.mxu0 0
    %7155 = vmatpush1.bf16.xpose.msra.mxu0 0
    %7156 = vmatprep.subr.bf16.mxu0 0
    %7157 = vmatpush1.bf16.xpose.msra.mxu0 0
    %7158 = vmatprep.subr.bf16.mxu0 0
    %7159 = vmatpush1.bf16.xpose.msra.mxu0 0
    %7160 = vmatprep.subr.bf16.mxu0 0
    %7161 = vmatpush1.bf16.xpose.msra.mxu0 0
    %7162 = vmatprep.subr.bf16.mxu0 0
    %7163 = vmatpush1.bf16.xpose.msra.mxu0 0
    %7164 = vmatprep.subr.bf16.mxu0 0
    %7165 = vmatpush1.bf16.xpose.msra.mxu0 %v7148
    %7166 = vmatprep.subr.bf16.mxu0 0
    %7167 = vmatpush2.bf16.xpose.msra.mxu0 0
    %7168 = vmatprep.subr.bf16.mxu0 0
    %7169 = vmatpush2.bf16.xpose.msra.mxu0 0
    %7170 = vmatprep.subr.bf16.mxu0 0
    %7171 = vmatpush2.bf16.xpose.msra.mxu0 0
    %7172 = vmatprep.subr.bf16.mxu0 0
    %7173 = vmatpush2.bf16.xpose.msra.mxu0 0
    %7174 = vmatprep.subr.bf16.mxu0 0
    %7175 = vmatpush2.bf16.xpose.msra.mxu0 0
    %7176 = vmatprep.subr.bf16.mxu0 0
    %7177 = vmatpush2.bf16.xpose.msra.mxu0 0
    %7178 = vmatprep.subr.bf16.mxu0 0
    %7179 = vmatpush2.bf16.xpose.msra.mxu0 0
    %7180 = vmatprep.subr.bf16.mxu0 0
    %7181 = vmatpush2.bf16.xpose.msra.mxu0 0
    %7182 = vmatprep.mubr.bf16.mxu0 0
    %7183 = vmatmul.mubr.bf16.gmra.mxu0 %v7145
    %v7184 = vpop.f32.mrf.mxu0
    %v7185 = vadd.f32 0.0, %v7184
    %v7186 = vpop.f32.mrf.mxu0
    %v7187 = vpop.f32.mrf.mxu0
    %v7188 = vpop.f32.mrf.mxu0
    %7189 = vdwg.mxu0
    %v7190 = vmul.f32 %v7135, 0.25
    %v7191 = vmul.f32 %v7185, 0.25
    %v7192 = vadd.f32 %v7190, %v620
    %v7193 = vadd.f32 %v7191, %v621
    %v7194 = vsel %vm1055, %v7192, -inf
    %7195 = vmax.xlane.f32.xlu0 %v7194
    %v7196 = vpop.xlane.xlu0 %7195
    %v7197 = vsel %vm1055, %v7193, -inf
    %7198 = vmax.xlane.f32.xlu0 %v7197
    %v7199 = vpop.xlane.xlu0 %7198
    %v7200 = vsub.f32 %v7192, %v7196
    %v7201 = vsub.f32 %v7193, %v7199
    %v7202 = vmul.f32 %v7200, 1.442695
    %v7203 = vpow.pop %v7202
    %v7204 = vmul.f32 %v7201, 1.442695
    %v7205 = vpow.pop %v7204
    %v7206 = vsel %vm1055, %v7203, 0.0
    %7207 = vadd.xlane.f32.xlu0 %v7206
    %v7208 = vpop.xlane.xlu0 %7207
    %v7209 = vsel %vm1055, %v7205, 0.0
    %7210 = vadd.xlane.f32.xlu0 %v7209
    %v7211 = vpop.xlane.xlu0 %7210
    %v7212 = vrcp.pop %v7208
    %v7213 = vrcp.pop %v7211
    %v7214 = vmul.f32 %v7203, %v7212
    %v7215 = vmul.f32 %v7205, %v7213
    %v7216 = vpack.c.bf16 %v7214, %v7214
    %v7217 = vpack.c.bf16 %v7215, %v7215
    %7218 = vrot.lane.b32.xlu0 %v6420, 80
    %v7219 = vpop.permute.xlu0 %7218
    %v7221 = vsel %vm1055, %v7216, 0
    %v7224 = vsel %vm1083, %v7219, 0
    %7226 = vmatprep.subr.bf16.mxu0 0
    %7227 = vmatpush1.bf16.msra.mxu0 0
    %7228 = vmatprep.subr.bf16.mxu0 0
    %7229 = vmatpush1.bf16.msra.mxu0 0
    %7230 = vmatprep.subr.bf16.mxu0 0
    %7231 = vmatpush1.bf16.msra.mxu0 0
    %7232 = vmatprep.subr.bf16.mxu0 0
    %7233 = vmatpush1.bf16.msra.mxu0 0
    %7234 = vmatprep.subr.bf16.mxu0 0
    %7235 = vmatpush1.bf16.msra.mxu0 0
    %7236 = vmatprep.subr.bf16.mxu0 0
    %7237 = vmatpush1.bf16.msra.mxu0 0
    %7238 = vmatprep.subr.bf16.mxu0 0
    %7239 = vmatpush1.bf16.msra.mxu0 0
    %7240 = vmatprep.subr.bf16.mxu0 0
    %7241 = vmatpush1.bf16.msra.mxu0 %v7224
    %7242 = vmatprep.subr.bf16.mxu0 0
    %7243 = vmatpush2.bf16.msra.mxu0 0
    %7244 = vmatprep.subr.bf16.mxu0 0
    %7245 = vmatpush2.bf16.msra.mxu0 0
    %7246 = vmatprep.subr.bf16.mxu0 0
    %7247 = vmatpush2.bf16.msra.mxu0 0
    %7248 = vmatprep.subr.bf16.mxu0 0
    %7249 = vmatpush2.bf16.msra.mxu0 0
    %7250 = vmatprep.subr.bf16.mxu0 0
    %7251 = vmatpush2.bf16.msra.mxu0 0
    %7252 = vmatprep.subr.bf16.mxu0 0
    %7253 = vmatpush2.bf16.msra.mxu0 0
    %7254 = vmatprep.subr.bf16.mxu0 0
    %7255 = vmatpush2.bf16.msra.mxu0 0
    %7256 = vmatprep.subr.bf16.mxu0 0
    %7257 = vmatpush2.bf16.msra.mxu0 0
    %7258 = vmatprep.mubr.bf16.mxu0 0
    %7259 = vmatmul.mubr.bf16.gmra.mxu0 %v7221
    %v7260 = vpop.f32.mrf.mxu0
    %v7261 = vadd.f32 0.0, %v7260
    %v7262 = vpop.f32.mrf.mxu0
    %v7263 = vpop.f32.mrf.mxu0
    %v7264 = vpop.f32.mrf.mxu0
    %7265 = vdwg.mxu0
    %7266 = vrot.lane.b32.xlu0 %v6421, 80
    %v7267 = vpop.permute.xlu0 %7266
    %v7269 = vsel %vm1055, %v7217, 0
    %v7272 = vsel %vm1083, %v7267, 0
    %7274 = vmatprep.subr.bf16.mxu0 0
    %7275 = vmatpush1.bf16.msra.mxu0 0
    %7276 = vmatprep.subr.bf16.mxu0 0
    %7277 = vmatpush1.bf16.msra.mxu0 0
    %7278 = vmatprep.subr.bf16.mxu0 0
    %7279 = vmatpush1.bf16.msra.mxu0 0
    %7280 = vmatprep.subr.bf16.mxu0 0
    %7281 = vmatpush1.bf16.msra.mxu0 0
    %7282 = vmatprep.subr.bf16.mxu0 0
    %7283 = vmatpush1.bf16.msra.mxu0 0
    %7284 = vmatprep.subr.bf16.mxu0 0
    %7285 = vmatpush1.bf16.msra.mxu0 0
    %7286 = vmatprep.subr.bf16.mxu0 0
    %7287 = vmatpush1.bf16.msra.mxu0 0
    %7288 = vmatprep.subr.bf16.mxu0 0
    %7289 = vmatpush1.bf16.msra.mxu0 %v7272
    %7290 = vmatprep.subr.bf16.mxu0 0
    %7291 = vmatpush2.bf16.msra.mxu0 0
    %7292 = vmatprep.subr.bf16.mxu0 0
    %7293 = vmatpush2.bf16.msra.mxu0 0
    %7294 = vmatprep.subr.bf16.mxu0 0
    %7295 = vmatpush2.bf16.msra.mxu0 0
    %7296 = vmatprep.subr.bf16.mxu0 0
    %7297 = vmatpush2.bf16.msra.mxu0 0
    %7298 = vmatprep.subr.bf16.mxu0 0
    %7299 = vmatpush2.bf16.msra.mxu0 0
    %7300 = vmatprep.subr.bf16.mxu0 0
    %7301 = vmatpush2.bf16.msra.mxu0 0
    %7302 = vmatprep.subr.bf16.mxu0 0
    %7303 = vmatpush2.bf16.msra.mxu0 0
    %7304 = vmatprep.subr.bf16.mxu0 0
    %7305 = vmatpush2.bf16.msra.mxu0 0
    %7306 = vmatprep.mubr.bf16.mxu0 0
    %7307 = vmatmul.mubr.bf16.gmra.mxu0 %v7269
    %v7308 = vpop.f32.mrf.mxu0
    %v7309 = vadd.f32 0.0, %v7308
    %v7310 = vpop.f32.mrf.mxu0
    %v7311 = vpop.f32.mrf.mxu0
    %v7312 = vpop.f32.mrf.mxu0
    %7313 = vdwg.mxu0
    %7316 = vrot.lane.b32.xlu0 %v6812, 16
    %v7317 = vpop.permute.xlu0 %7316
    %7318 = vrot.lane.b32.xlu0 %v6861, 16
    %v7319 = vpop.permute.xlu0 %7318
    %7324 = vrot.lane.b32.xlu0 %v7037, 32
    %v7325 = vpop.permute.xlu0 %7324
    %7326 = vrot.lane.b32.xlu0 %v7085, 32
    %v7327 = vpop.permute.xlu0 %7326
    %7332 = vrot.lane.b32.xlu0 %v7261, 48
    %v7333 = vpop.permute.xlu0 %7332
    %7334 = vrot.lane.b32.xlu0 %v7309, 48
    %v7335 = vpop.permute.xlu0 %7334
    %v7338 = vsel %vm955, %v6589, %v7317
    %v7339 = vsel %vm955, %v6635, %v7319
    %v7340 = vsel %vm1873, %v7338, %v7325
    %v7341 = vsel %vm1873, %v7339, %v7327
    %v7342 = vsel %vm1876, %v7340, %v7333
    %v7343 = vsel %vm1876, %v7341, %v7335
    %v7344 = vpack.c.bf16 %v7343, %v7342
    %v7346 = vlaneseq
    %v7347 = vshrl.u32 %v7346, 7
    %v7348 = vsub.s32 0, %v7347
    %v7349 = vrot.slane %v6417, %v7348
    %v7359 = vunpack.c.l.b16 %v6408
    %v7360 = vunpack.c.l.b16 %v6409
    %v7361 = vunpack.c.l.b16 %v6410
    %v7362 = vunpack.c.l.b16 %v6411
    %v7363 = vunpack.c.l.b16 %v6412
    %v7364 = vunpack.c.l.b16 %v6413
    %v7365 = vunpack.c.l.b16 %v6414
    %v7366 = vunpack.c.l.b16 %v6415
    %v7367 = vpack.c.b16 %v7360, %v7359
    %v7368 = vpack.c.b16 %v7362, %v7361
    %v7369 = vpack.c.b16 %v7364, %v7363
    %v7370 = vpack.c.b16 %v7366, %v7365
    %v7376 = vsel %vm892, %v7344, 0
    %7378 = vmatprep.subr.bf16.mxu0 0
    %7379 = vmatpush1.bf16.msra.mxu0 0
    %7380 = vmatprep.subr.bf16.mxu0 0
    %7381 = vmatpush1.bf16.msra.mxu0 0
    %7382 = vmatprep.subr.bf16.mxu0 0
    %7383 = vmatpush1.bf16.msra.mxu0 0
    %7384 = vmatprep.subr.bf16.mxu0 0
    %7385 = vmatpush1.bf16.msra.mxu0 0
    %7386 = vmatprep.subr.bf16.mxu0 0
    %7387 = vmatpush1.bf16.msra.mxu0 %v7370
    %7388 = vmatprep.subr.bf16.mxu0 0
    %7389 = vmatpush1.bf16.msra.mxu0 %v7369
    %7390 = vmatprep.subr.bf16.mxu0 0
    %7391 = vmatpush1.bf16.msra.mxu0 %v7368
    %7392 = vmatprep.subr.bf16.mxu0 0
    %7393 = vmatpush1.bf16.msra.mxu0 %v7367
    %7394 = vmatprep.subr.bf16.mxu0 0
    %7395 = vmatpush2.bf16.msra.mxu0 0
    %7396 = vmatprep.subr.bf16.mxu0 0
    %7397 = vmatpush2.bf16.msra.mxu0 0
    %7398 = vmatprep.subr.bf16.mxu0 0
    %7399 = vmatpush2.bf16.msra.mxu0 0
    %7400 = vmatprep.subr.bf16.mxu0 0
    %7401 = vmatpush2.bf16.msra.mxu0 0
    %7402 = vmatprep.subr.bf16.mxu0 0
    %7403 = vmatpush2.bf16.msra.mxu0 0
    %7404 = vmatprep.subr.bf16.mxu0 0
    %7405 = vmatpush2.bf16.msra.mxu0 0
    %7406 = vmatprep.subr.bf16.mxu0 0
    %7407 = vmatpush2.bf16.msra.mxu0 0
    %7408 = vmatprep.subr.bf16.mxu0 0
    %7409 = vmatpush2.bf16.msra.mxu0 0
    %7410 = vmatprep.mubr.bf16.mxu0 0
    %7411 = vmatmul.mubr.bf16.gmra.mxu0 %v7376
    %v7412 = vpop.f32.mrf.mxu0
    %v7413 = vadd.f32 %v7349, %v7412
    %v7414 = vpop.f32.mrf.mxu0
    %v7415 = vpop.f32.mrf.mxu0
    %v7416 = vadd.f32 %v7349, %v7415
    %v7417 = vpop.f32.mrf.mxu0
    %7418 = vdwg.mxu0
    %v7419 = vadd.f32 %v6296, %v7413
    %v7420 = vadd.f32 %v6297, %v7416
    %s7421 = scalar_lea.vmem [#allocation26], 1
    %v7422 = vld [vmem:[%s7421] sm:$0x1]
    %s7423 = scalar_lea.vmem [#allocation28], 1
    %v7424 = vld [vmem:[%s7423] sm:$0x1]
    %v7425 = vsel %vm892, %v7419, 0.0
    %7426 = vadd.xlane.f32.xlu0 %v7425
    %v7427 = vpop.xlane.xlu0 %7426
    %v7428 = vsel %vm892, %v7420, 0.0
    %7429 = vadd.xlane.f32.xlu0 %v7428
    %v7430 = vpop.xlane.xlu0 %7429
    %v7431 = vmul.f32 %v7427, %v1964
    %v7432 = vmul.f32 %v7430, %v1964
    %v7433 = vsub.f32 %v7419, %v7431
    %v7434 = vsub.f32 %v7420, %v7432
    %v7435 = vmul.f32 %v7433, %v7433
    %v7436 = vmul.f32 %v7434, %v7434
    %v7437 = vsel %vm892, %v7435, 0.0
    %7438 = vadd.xlane.f32.xlu0 %v7437
    %v7439 = vpop.xlane.xlu0 %7438
    %v7440 = vsel %vm892, %v7436, 0.0
    %7441 = vadd.xlane.f32.xlu0 %v7440
    %v7442 = vpop.xlane.xlu0 %7441
    %v7443 = vmul.f32 %v7439, %v1964
    %v7444 = vmul.f32 %v7442, %v1964
    %v7445 = vadd.f32 %v7443, 1e-05
    %v7446 = vadd.f32 %v7444, 1e-05
    %v7447 = vrsqrt.pop %v7445
    %v7448 = vrsqrt.pop %v7446
    %v7449 = vmul.f32 %v7433, %v7447
    %v7450 = vmul.f32 %v7434, %v7448
    %v7452 = vlaneseq
    %v7453 = vshrl.u32 %v7452, 7
    %v7454 = vsub.s32 0, %v7453
    %v7455 = vrot.slane %v7422, %v7454
    %v7457 = vmul.f32 %v7449, %v7455
    %v7458 = vmul.f32 %v7450, %v7455
    %v7460 = vlaneseq
    %v7461 = vshrl.u32 %v7460, 7
    %v7462 = vsub.s32 0, %v7461
    %v7463 = vrot.slane %v7424, %v7462
    %v7465 = vadd.f32 %v7457, %v7463
    %v7466 = vadd.f32 %v7458, %v7463
    %s7467 = scalar_lea.vmem [#allocation29], 32
    %v7468 = vld [vmem:[%s7467] sm:$0xf]
    %v7469 = vld [vmem:[%s7467 + $0x4] sm:$0xf]
    %v7470 = vld [vmem:[%s7467 + $0x8] sm:$0xf]
    %v7471 = vld [vmem:[%s7467 + $0xc] sm:$0xf]
    %v7472 = vld [vmem:[%s7467 + $0x10] sm:$0xf]
    %v7473 = vld [vmem:[%s7467 + $0x14] sm:$0xf]
    %v7474 = vld [vmem:[%s7467 + $0x18] sm:$0xf]
    %v7475 = vld [vmem:[%s7467 + $0x1c] sm:$0xf]
    %s7476 = scalar_lea.vmem [#allocation31], 1
    %v7477 = vld [vmem:[%s7476] sm:$0x1]
    %v7478 = vpack.c.bf16 %v7466, %v7465
    %v7480 = vlaneseq
    %v7481 = vshrl.u32 %v7480, 7
    %v7482 = vsub.s32 0, %v7481
    %v7483 = vrot.slane %v7477, %v7482
    %v7493 = vunpack.c.l.b16 %v7468
    %v7494 = vunpack.c.l.b16 %v7469
    %v7495 = vunpack.c.l.b16 %v7470
    %v7496 = vunpack.c.l.b16 %v7471
    %v7497 = vunpack.c.l.b16 %v7472
    %v7498 = vunpack.c.l.b16 %v7473
    %v7499 = vunpack.c.l.b16 %v7474
    %v7500 = vunpack.c.l.b16 %v7475
    %v7501 = vpack.c.b16 %v7494, %v7493
    %v7502 = vpack.c.b16 %v7496, %v7495
    %v7503 = vpack.c.b16 %v7498, %v7497
    %v7504 = vpack.c.b16 %v7500, %v7499
    %v7510 = vsel %vm892, %v7478, 0
    %7512 = vmatprep.subr.bf16.mxu0 0
    %7513 = vmatpush1.bf16.msra.mxu0 0
    %7514 = vmatprep.subr.bf16.mxu0 0
    %7515 = vmatpush1.bf16.msra.mxu0 0
    %7516 = vmatprep.subr.bf16.mxu0 0
    %7517 = vmatpush1.bf16.msra.mxu0 0
    %7518 = vmatprep.subr.bf16.mxu0 0
    %7519 = vmatpush1.bf16.msra.mxu0 0
    %7520 = vmatprep.subr.bf16.mxu0 0
    %7521 = vmatpush1.bf16.msra.mxu0 %v7504
    %7522 = vmatprep.subr.bf16.mxu0 0
    %7523 = vmatpush1.bf16.msra.mxu0 %v7503
    %7524 = vmatprep.subr.bf16.mxu0 0
    %7525 = vmatpush1.bf16.msra.mxu0 %v7502
    %7526 = vmatprep.subr.bf16.mxu0 0
    %7527 = vmatpush1.bf16.msra.mxu0 %v7501
    %7528 = vmatprep.subr.bf16.mxu0 0
    %7529 = vmatpush2.bf16.msra.mxu0 0
    %7530 = vmatprep.subr.bf16.mxu0 0
    %7531 = vmatpush2.bf16.msra.mxu0 0
    %7532 = vmatprep.subr.bf16.mxu0 0
    %7533 = vmatpush2.bf16.msra.mxu0 0
    %7534 = vmatprep.subr.bf16.mxu0 0
    %7535 = vmatpush2.bf16.msra.mxu0 0
    %7536 = vmatprep.subr.bf16.mxu0 0
    %7537 = vmatpush2.bf16.msra.mxu0 0
    %7538 = vmatprep.subr.bf16.mxu0 0
    %7539 = vmatpush2.bf16.msra.mxu0 0
    %7540 = vmatprep.subr.bf16.mxu0 0
    %7541 = vmatpush2.bf16.msra.mxu0 0
    %7542 = vmatprep.subr.bf16.mxu0 0
    %7543 = vmatpush2.bf16.msra.mxu0 0
    %7544 = vmatprep.mubr.bf16.mxu0 0
    %7545 = vmatmul.mubr.bf16.gmra.mxu0 %v7510
    %v7546 = vpop.f32.mrf.mxu0
    %v7547 = vadd.f32 %v7483, %v7546
    %v7548 = vpop.f32.mrf.mxu0
    %v7549 = vpop.f32.mrf.mxu0
    %v7550 = vadd.f32 %v7483, %v7549
    %v7551 = vpop.f32.mrf.mxu0
    %7552 = vdwg.mxu0
    %s7553 = scalar_lea.vmem [#allocation32], 32
    %v7554 = vld [vmem:[%s7553] sm:$0xf]
    %v7555 = vld [vmem:[%s7553 + $0x4] sm:$0xf]
    %v7556 = vld [vmem:[%s7553 + $0x8] sm:$0xf]
    %v7557 = vld [vmem:[%s7553 + $0xc] sm:$0xf]
    %v7558 = vld [vmem:[%s7553 + $0x10] sm:$0xf]
    %v7559 = vld [vmem:[%s7553 + $0x14] sm:$0xf]
    %v7560 = vld [vmem:[%s7553 + $0x18] sm:$0xf]
    %v7561 = vld [vmem:[%s7553 + $0x1c] sm:$0xf]
    %s7562 = scalar_lea.vmem [#allocation34], 1
    %v7563 = vld [vmem:[%s7562] sm:$0x1]
    %v7565 = vlaneseq
    %v7566 = vshrl.u32 %v7565, 7
    %v7567 = vsub.s32 0, %v7566
    %v7568 = vrot.slane %v7563, %v7567
    %v7578 = vunpack.c.l.b16 %v7554
    %v7579 = vunpack.c.l.b16 %v7555
    %v7580 = vunpack.c.l.b16 %v7556
    %v7581 = vunpack.c.l.b16 %v7557
    %v7582 = vunpack.c.l.b16 %v7558
    %v7583 = vunpack.c.l.b16 %v7559
    %v7584 = vunpack.c.l.b16 %v7560
    %v7585 = vunpack.c.l.b16 %v7561
    %v7586 = vpack.c.b16 %v7579, %v7578
    %v7587 = vpack.c.b16 %v7581, %v7580
    %v7588 = vpack.c.b16 %v7583, %v7582
    %v7589 = vpack.c.b16 %v7585, %v7584
    %7594 = vmatprep.subr.bf16.mxu0 0
    %7595 = vmatpush1.bf16.msra.mxu0 0
    %7596 = vmatprep.subr.bf16.mxu0 0
    %7597 = vmatpush1.bf16.msra.mxu0 0
    %7598 = vmatprep.subr.bf16.mxu0 0
    %7599 = vmatpush1.bf16.msra.mxu0 0
    %7600 = vmatprep.subr.bf16.mxu0 0
    %7601 = vmatpush1.bf16.msra.mxu0 0
    %7602 = vmatprep.subr.bf16.mxu0 0
    %7603 = vmatpush1.bf16.msra.mxu0 %v7589
    %7604 = vmatprep.subr.bf16.mxu0 0
    %7605 = vmatpush1.bf16.msra.mxu0 %v7588
    %7606 = vmatprep.subr.bf16.mxu0 0
    %7607 = vmatpush1.bf16.msra.mxu0 %v7587
    %7608 = vmatprep.subr.bf16.mxu0 0
    %7609 = vmatpush1.bf16.msra.mxu0 %v7586
    %7610 = vmatprep.subr.bf16.mxu0 0
    %7611 = vmatpush2.bf16.msra.mxu0 0
    %7612 = vmatprep.subr.bf16.mxu0 0
    %7613 = vmatpush2.bf16.msra.mxu0 0
    %7614 = vmatprep.subr.bf16.mxu0 0
    %7615 = vmatpush2.bf16.msra.mxu0 0
    %7616 = vmatprep.subr.bf16.mxu0 0
    %7617 = vmatpush2.bf16.msra.mxu0 0
    %7618 = vmatprep.subr.bf16.mxu0 0
    %7619 = vmatpush2.bf16.msra.mxu0 0
    %7620 = vmatprep.subr.bf16.mxu0 0
    %7621 = vmatpush2.bf16.msra.mxu0 0
    %7622 = vmatprep.subr.bf16.mxu0 0
    %7623 = vmatpush2.bf16.msra.mxu0 0
    %7624 = vmatprep.subr.bf16.mxu0 0
    %7625 = vmatpush2.bf16.msra.mxu0 0
    %7626 = vmatprep.mubr.bf16.mxu0 0
    %7627 = vmatmul.mubr.bf16.gmra.mxu0 %v4954
    %v7628 = vpop.f32.mrf.mxu0
    %v7629 = vadd.f32 %v7568, %v7628
    %v7630 = vpop.f32.mrf.mxu0
    %v7631 = vpop.f32.mrf.mxu0
    %v7632 = vadd.f32 %v7568, %v7631
    %v7633 = vpop.f32.mrf.mxu0
    %7634 = vdwg.mxu0
    %s7635 = scalar_lea.vmem [#allocation35], 32
    %v7636 = vld [vmem:[%s7635] sm:$0xf]
    %v7637 = vld [vmem:[%s7635 + $0x4] sm:$0xf]
    %v7638 = vld [vmem:[%s7635 + $0x8] sm:$0xf]
    %v7639 = vld [vmem:[%s7635 + $0xc] sm:$0xf]
    %v7640 = vld [vmem:[%s7635 + $0x10] sm:$0xf]
    %v7641 = vld [vmem:[%s7635 + $0x14] sm:$0xf]
    %v7642 = vld [vmem:[%s7635 + $0x18] sm:$0xf]
    %v7643 = vld [vmem:[%s7635 + $0x1c] sm:$0xf]
    %s7644 = scalar_lea.vmem [#allocation37], 1
    %v7645 = vld [vmem:[%s7644] sm:$0x1]
    %v7646 = vpack.c.bf16 %v7547, %v7547
    %v7647 = vpack.c.bf16 %v7550, %v7550
    %v7648 = vpack.c.bf16 %v7629, %v7629
    %v7649 = vpack.c.bf16 %v7632, %v7632
    %v7651 = vsel %vm955, %v7646, 0
    %v7654 = vsel %vm955, %v7648, 0
    %7656 = vmatprep.subr.bf16.mxu0 0
    %7657 = vmatpush1.bf16.xpose.msra.mxu0 0
    %7658 = vmatprep.subr.bf16.mxu0 0
    %7659 = vmatpush1.bf16.xpose.msra.mxu0 0
    %7660 = vmatprep.subr.bf16.mxu0 0
    %7661 = vmatpush1.bf16.xpose.msra.mxu0 0
    %7662 = vmatprep.subr.bf16.mxu0 0
    %7663 = vmatpush1.bf16.xpose.msra.mxu0 0
    %7664 = vmatprep.subr.bf16.mxu0 0
    %7665 = vmatpush1.bf16.xpose.msra.mxu0 0
    %7666 = vmatprep.subr.bf16.mxu0 0
    %7667 = vmatpush1.bf16.xpose.msra.mxu0 0
    %7668 = vmatprep.subr.bf16.mxu0 0
    %7669 = vmatpush1.bf16.xpose.msra.mxu0 0
    %7670 = vmatprep.subr.bf16.mxu0 0
    %7671 = vmatpush1.bf16.xpose.msra.mxu0 %v7654
    %7672 = vmatprep.subr.bf16.mxu0 0
    %7673 = vmatpush2.bf16.xpose.msra.mxu0 0
    %7674 = vmatprep.subr.bf16.mxu0 0
    %7675 = vmatpush2.bf16.xpose.msra.mxu0 0
    %7676 = vmatprep.subr.bf16.mxu0 0
    %7677 = vmatpush2.bf16.xpose.msra.mxu0 0
    %7678 = vmatprep.subr.bf16.mxu0 0
    %7679 = vmatpush2.bf16.xpose.msra.mxu0 0
    %7680 = vmatprep.subr.bf16.mxu0 0
    %7681 = vmatpush2.bf16.xpose.msra.mxu0 0
    %7682 = vmatprep.subr.bf16.mxu0 0
    %7683 = vmatpush2.bf16.xpose.msra.mxu0 0
    %7684 = vmatprep.subr.bf16.mxu0 0
    %7685 = vmatpush2.bf16.xpose.msra.mxu0 0
    %7686 = vmatprep.subr.bf16.mxu0 0
    %7687 = vmatpush2.bf16.xpose.msra.mxu0 0
    %7688 = vmatprep.mubr.bf16.mxu0 0
    %7689 = vmatmul.mubr.bf16.gmra.mxu0 %v7651
    %v7690 = vpop.f32.mrf.mxu0
    %v7691 = vadd.f32 0.0, %v7690
    %v7692 = vpop.f32.mrf.mxu0
    %v7693 = vpop.f32.mrf.mxu0
    %v7694 = vpop.f32.mrf.mxu0
    %7695 = vdwg.mxu0
    %v7697 = vsel %vm955, %v7647, 0
    %v7700 = vsel %vm955, %v7649, 0
    %7702 = vmatprep.subr.bf16.mxu0 0
    %7703 = vmatpush1.bf16.xpose.msra.mxu0 0
    %7704 = vmatprep.subr.bf16.mxu0 0
    %7705 = vmatpush1.bf16.xpose.msra.mxu0 0
    %7706 = vmatprep.subr.bf16.mxu0 0
    %7707 = vmatpush1.bf16.xpose.msra.mxu0 0
    %7708 = vmatprep.subr.bf16.mxu0 0
    %7709 = vmatpush1.bf16.xpose.msra.mxu0 0
    %7710 = vmatprep.subr.bf16.mxu0 0
    %7711 = vmatpush1.bf16.xpose.msra.mxu0 0
    %7712 = vmatprep.subr.bf16.mxu0 0
    %7713 = vmatpush1.bf16.xpose.msra.mxu0 0
    %7714 = vmatprep.subr.bf16.mxu0 0
    %7715 = vmatpush1.bf16.xpose.msra.mxu0 0
    %7716 = vmatprep.subr.bf16.mxu0 0
    %7717 = vmatpush1.bf16.xpose.msra.mxu0 %v7700
    %7718 = vmatprep.subr.bf16.mxu0 0
    %7719 = vmatpush2.bf16.xpose.msra.mxu0 0
    %7720 = vmatprep.subr.bf16.mxu0 0
    %7721 = vmatpush2.bf16.xpose.msra.mxu0 0
    %7722 = vmatprep.subr.bf16.mxu0 0
    %7723 = vmatpush2.bf16.xpose.msra.mxu0 0
    %7724 = vmatprep.subr.bf16.mxu0 0
    %7725 = vmatpush2.bf16.xpose.msra.mxu0 0
    %7726 = vmatprep.subr.bf16.mxu0 0
    %7727 = vmatpush2.bf16.xpose.msra.mxu0 0
    %7728 = vmatprep.subr.bf16.mxu0 0
    %7729 = vmatpush2.bf16.xpose.msra.mxu0 0
    %7730 = vmatprep.subr.bf16.mxu0 0
    %7731 = vmatpush2.bf16.xpose.msra.mxu0 0
    %7732 = vmatprep.subr.bf16.mxu0 0
    %7733 = vmatpush2.bf16.xpose.msra.mxu0 0
    %7734 = vmatprep.mubr.bf16.mxu0 0
    %7735 = vmatmul.mubr.bf16.gmra.mxu0 %v7697
    %v7736 = vpop.f32.mrf.mxu0
    %v7737 = vadd.f32 0.0, %v7736
    %v7738 = vpop.f32.mrf.mxu0
    %v7739 = vpop.f32.mrf.mxu0
    %v7740 = vpop.f32.mrf.mxu0
    %7741 = vdwg.mxu0
    %v7742 = vmul.f32 %v7691, 0.25
    %v7743 = vmul.f32 %v7737, 0.25
    %v7744 = vadd.f32 %v7742, %v601
    %v7745 = vadd.f32 %v7743, %v605
    %v7746 = vsel %vm1055, %v7744, -inf
    %7747 = vmax.xlane.f32.xlu0 %v7746
    %v7748 = vpop.xlane.xlu0 %7747
    %v7749 = vsel %vm1055, %v7745, -inf
    %7750 = vmax.xlane.f32.xlu0 %v7749
    %v7751 = vpop.xlane.xlu0 %7750
    %v7752 = vsub.f32 %v7744, %v7748
    %v7753 = vsub.f32 %v7745, %v7751
    %v7754 = vmul.f32 %v7752, 1.442695
    %v7755 = vpow.pop %v7754
    %v7756 = vmul.f32 %v7753, 1.442695
    %v7757 = vpow.pop %v7756
    %v7758 = vsel %vm1055, %v7755, 0.0
    %7759 = vadd.xlane.f32.xlu0 %v7758
    %v7760 = vpop.xlane.xlu0 %7759
    %v7761 = vsel %vm1055, %v7757, 0.0
    %7762 = vadd.xlane.f32.xlu0 %v7761
    %v7763 = vpop.xlane.xlu0 %7762
    %v7764 = vrcp.pop %v7760
    %v7765 = vrcp.pop %v7763
    %v7766 = vmul.f32 %v7755, %v7764
    %v7767 = vmul.f32 %v7757, %v7765
    %v7768 = vpack.c.bf16 %v7766, %v7766
    %v7769 = vpack.c.bf16 %v7767, %v7767
    %7771 = vrot.lane.b32.xlu0 %v7648, 64
    %v7772 = vpop.permute.xlu0 %7771
    %v7774 = vsel %vm1055, %v7768, 0
    %v7777 = vsel %vm1083, %v7772, 0
    %7779 = vmatprep.subr.bf16.mxu0 0
    %7780 = vmatpush1.bf16.msra.mxu0 0
    %7781 = vmatprep.subr.bf16.mxu0 0
    %7782 = vmatpush1.bf16.msra.mxu0 0
    %7783 = vmatprep.subr.bf16.mxu0 0
    %7784 = vmatpush1.bf16.msra.mxu0 0
    %7785 = vmatprep.subr.bf16.mxu0 0
    %7786 = vmatpush1.bf16.msra.mxu0 0
    %7787 = vmatprep.subr.bf16.mxu0 0
    %7788 = vmatpush1.bf16.msra.mxu0 0
    %7789 = vmatprep.subr.bf16.mxu0 0
    %7790 = vmatpush1.bf16.msra.mxu0 0
    %7791 = vmatprep.subr.bf16.mxu0 0
    %7792 = vmatpush1.bf16.msra.mxu0 0
    %7793 = vmatprep.subr.bf16.mxu0 0
    %7794 = vmatpush1.bf16.msra.mxu0 %v7777
    %7795 = vmatprep.subr.bf16.mxu0 0
    %7796 = vmatpush2.bf16.msra.mxu0 0
    %7797 = vmatprep.subr.bf16.mxu0 0
    %7798 = vmatpush2.bf16.msra.mxu0 0
    %7799 = vmatprep.subr.bf16.mxu0 0
    %7800 = vmatpush2.bf16.msra.mxu0 0
    %7801 = vmatprep.subr.bf16.mxu0 0
    %7802 = vmatpush2.bf16.msra.mxu0 0
    %7803 = vmatprep.subr.bf16.mxu0 0
    %7804 = vmatpush2.bf16.msra.mxu0 0
    %7805 = vmatprep.subr.bf16.mxu0 0
    %7806 = vmatpush2.bf16.msra.mxu0 0
    %7807 = vmatprep.subr.bf16.mxu0 0
    %7808 = vmatpush2.bf16.msra.mxu0 0
    %7809 = vmatprep.subr.bf16.mxu0 0
    %7810 = vmatpush2.bf16.msra.mxu0 0
    %7811 = vmatprep.mubr.bf16.mxu0 0
    %7812 = vmatmul.mubr.bf16.gmra.mxu0 %v7774
    %v7813 = vpop.f32.mrf.mxu0
    %v7814 = vadd.f32 0.0, %v7813
    %v7815 = vpop.f32.mrf.mxu0
    %v7816 = vpop.f32.mrf.mxu0
    %v7817 = vpop.f32.mrf.mxu0
    %7818 = vdwg.mxu0
    %7820 = vrot.lane.b32.xlu0 %v7649, 64
    %v7821 = vpop.permute.xlu0 %7820
    %v7823 = vsel %vm1055, %v7769, 0
    %v7826 = vsel %vm1083, %v7821, 0
    %7828 = vmatprep.subr.bf16.mxu0 0
    %7829 = vmatpush1.bf16.msra.mxu0 0
    %7830 = vmatprep.subr.bf16.mxu0 0
    %7831 = vmatpush1.bf16.msra.mxu0 0
    %7832 = vmatprep.subr.bf16.mxu0 0
    %7833 = vmatpush1.bf16.msra.mxu0 0
    %7834 = vmatprep.subr.bf16.mxu0 0
    %7835 = vmatpush1.bf16.msra.mxu0 0
    %7836 = vmatprep.subr.bf16.mxu0 0
    %7837 = vmatpush1.bf16.msra.mxu0 0
    %7838 = vmatprep.subr.bf16.mxu0 0
    %7839 = vmatpush1.bf16.msra.mxu0 0
    %7840 = vmatprep.subr.bf16.mxu0 0
    %7841 = vmatpush1.bf16.msra.mxu0 0
    %7842 = vmatprep.subr.bf16.mxu0 0
    %7843 = vmatpush1.bf16.msra.mxu0 %v7826
    %7844 = vmatprep.subr.bf16.mxu0 0
    %7845 = vmatpush2.bf16.msra.mxu0 0
    %7846 = vmatprep.subr.bf16.mxu0 0
    %7847 = vmatpush2.bf16.msra.mxu0 0
    %7848 = vmatprep.subr.bf16.mxu0 0
    %7849 = vmatpush2.bf16.msra.mxu0 0
    %7850 = vmatprep.subr.bf16.mxu0 0
    %7851 = vmatpush2.bf16.msra.mxu0 0
    %7852 = vmatprep.subr.bf16.mxu0 0
    %7853 = vmatpush2.bf16.msra.mxu0 0
    %7854 = vmatprep.subr.bf16.mxu0 0
    %7855 = vmatpush2.bf16.msra.mxu0 0
    %7856 = vmatprep.subr.bf16.mxu0 0
    %7857 = vmatpush2.bf16.msra.mxu0 0
    %7858 = vmatprep.subr.bf16.mxu0 0
    %7859 = vmatpush2.bf16.msra.mxu0 0
    %7860 = vmatprep.mubr.bf16.mxu0 0
    %7861 = vmatmul.mubr.bf16.gmra.mxu0 %v7823
    %v7862 = vpop.f32.mrf.mxu0
    %v7863 = vadd.f32 0.0, %v7862
    %v7864 = vpop.f32.mrf.mxu0
    %v7865 = vpop.f32.mrf.mxu0
    %v7866 = vpop.f32.mrf.mxu0
    %7867 = vdwg.mxu0
    %7869 = vrot.lane.b32.xlu0 %v7646, 112
    %v7870 = vpop.permute.xlu0 %7869
    %7871 = vrot.lane.b32.xlu0 %v7648, 112
    %v7872 = vpop.permute.xlu0 %7871
    %v7874 = vsel %vm955, %v7870, 0
    %v7877 = vsel %vm955, %v7872, 0
    %7879 = vmatprep.subr.bf16.mxu0 0
    %7880 = vmatpush1.bf16.xpose.msra.mxu0 0
    %7881 = vmatprep.subr.bf16.mxu0 0
    %7882 = vmatpush1.bf16.xpose.msra.mxu0 0
    %7883 = vmatprep.subr.bf16.mxu0 0
    %7884 = vmatpush1.bf16.xpose.msra.mxu0 0
    %7885 = vmatprep.subr.bf16.mxu0 0
    %7886 = vmatpush1.bf16.xpose.msra.mxu0 0
    %7887 = vmatprep.subr.bf16.mxu0 0
    %7888 = vmatpush1.bf16.xpose.msra.mxu0 0
    %7889 = vmatprep.subr.bf16.mxu0 0
    %7890 = vmatpush1.bf16.xpose.msra.mxu0 0
    %7891 = vmatprep.subr.bf16.mxu0 0
    %7892 = vmatpush1.bf16.xpose.msra.mxu0 0
    %7893 = vmatprep.subr.bf16.mxu0 0
    %7894 = vmatpush1.bf16.xpose.msra.mxu0 %v7877
    %7895 = vmatprep.subr.bf16.mxu0 0
    %7896 = vmatpush2.bf16.xpose.msra.mxu0 0
    %7897 = vmatprep.subr.bf16.mxu0 0
    %7898 = vmatpush2.bf16.xpose.msra.mxu0 0
    %7899 = vmatprep.subr.bf16.mxu0 0
    %7900 = vmatpush2.bf16.xpose.msra.mxu0 0
    %7901 = vmatprep.subr.bf16.mxu0 0
    %7902 = vmatpush2.bf16.xpose.msra.mxu0 0
    %7903 = vmatprep.subr.bf16.mxu0 0
    %7904 = vmatpush2.bf16.xpose.msra.mxu0 0
    %7905 = vmatprep.subr.bf16.mxu0 0
    %7906 = vmatpush2.bf16.xpose.msra.mxu0 0
    %7907 = vmatprep.subr.bf16.mxu0 0
    %7908 = vmatpush2.bf16.xpose.msra.mxu0 0
    %7909 = vmatprep.subr.bf16.mxu0 0
    %7910 = vmatpush2.bf16.xpose.msra.mxu0 0
    %7911 = vmatprep.mubr.bf16.mxu0 0
    %7912 = vmatmul.mubr.bf16.gmra.mxu0 %v7874
    %v7913 = vpop.f32.mrf.mxu0
    %v7914 = vadd.f32 0.0, %v7913
    %v7915 = vpop.f32.mrf.mxu0
    %v7916 = vpop.f32.mrf.mxu0
    %v7917 = vpop.f32.mrf.mxu0
    %7918 = vdwg.mxu0
    %7920 = vrot.lane.b32.xlu0 %v7647, 112
    %v7921 = vpop.permute.xlu0 %7920
    %7922 = vrot.lane.b32.xlu0 %v7649, 112
    %v7923 = vpop.permute.xlu0 %7922
    %v7925 = vsel %vm955, %v7921, 0
    %v7928 = vsel %vm955, %v7923, 0
    %7930 = vmatprep.subr.bf16.mxu0 0
    %7931 = vmatpush1.bf16.xpose.msra.mxu0 0
    %7932 = vmatprep.subr.bf16.mxu0 0
    %7933 = vmatpush1.bf16.xpose.msra.mxu0 0
    %7934 = vmatprep.subr.bf16.mxu0 0
    %7935 = vmatpush1.bf16.xpose.msra.mxu0 0
    %7936 = vmatprep.subr.bf16.mxu0 0
    %7937 = vmatpush1.bf16.xpose.msra.mxu0 0
    %7938 = vmatprep.subr.bf16.mxu0 0
    %7939 = vmatpush1.bf16.xpose.msra.mxu0 0
    %7940 = vmatprep.subr.bf16.mxu0 0
    %7941 = vmatpush1.bf16.xpose.msra.mxu0 0
    %7942 = vmatprep.subr.bf16.mxu0 0
    %7943 = vmatpush1.bf16.xpose.msra.mxu0 0
    %7944 = vmatprep.subr.bf16.mxu0 0
    %7945 = vmatpush1.bf16.xpose.msra.mxu0 %v7928
    %7946 = vmatprep.subr.bf16.mxu0 0
    %7947 = vmatpush2.bf16.xpose.msra.mxu0 0
    %7948 = vmatprep.subr.bf16.mxu0 0
    %7949 = vmatpush2.bf16.xpose.msra.mxu0 0
    %7950 = vmatprep.subr.bf16.mxu0 0
    %7951 = vmatpush2.bf16.xpose.msra.mxu0 0
    %7952 = vmatprep.subr.bf16.mxu0 0
    %7953 = vmatpush2.bf16.xpose.msra.mxu0 0
    %7954 = vmatprep.subr.bf16.mxu0 0
    %7955 = vmatpush2.bf16.xpose.msra.mxu0 0
    %7956 = vmatprep.subr.bf16.mxu0 0
    %7957 = vmatpush2.bf16.xpose.msra.mxu0 0
    %7958 = vmatprep.subr.bf16.mxu0 0
    %7959 = vmatpush2.bf16.xpose.msra.mxu0 0
    %7960 = vmatprep.subr.bf16.mxu0 0
    %7961 = vmatpush2.bf16.xpose.msra.mxu0 0
    %7962 = vmatprep.mubr.bf16.mxu0 0
    %7963 = vmatmul.mubr.bf16.gmra.mxu0 %v7925
    %v7964 = vpop.f32.mrf.mxu0
    %v7965 = vadd.f32 0.0, %v7964
    %v7966 = vpop.f32.mrf.mxu0
    %v7967 = vpop.f32.mrf.mxu0
    %v7968 = vpop.f32.mrf.mxu0
    %7969 = vdwg.mxu0
    %v7970 = vmul.f32 %v7914, 0.25
    %v7971 = vmul.f32 %v7965, 0.25
    %v7972 = vadd.f32 %v7970, %v601
    %v7973 = vadd.f32 %v7971, %v605
    %v7974 = vsel %vm1055, %v7972, -inf
    %7975 = vmax.xlane.f32.xlu0 %v7974
    %v7976 = vpop.xlane.xlu0 %7975
    %v7977 = vsel %vm1055, %v7973, -inf
    %7978 = vmax.xlane.f32.xlu0 %v7977
    %v7979 = vpop.xlane.xlu0 %7978
    %v7980 = vsub.f32 %v7972, %v7976
    %v7981 = vsub.f32 %v7973, %v7979
    %v7982 = vmul.f32 %v7980, 1.442695
    %v7983 = vpow.pop %v7982
    %v7984 = vmul.f32 %v7981, 1.442695
    %v7985 = vpow.pop %v7984
    %v7986 = vsel %vm1055, %v7983, 0.0
    %7987 = vadd.xlane.f32.xlu0 %v7986
    %v7988 = vpop.xlane.xlu0 %7987
    %v7989 = vsel %vm1055, %v7985, 0.0
    %7990 = vadd.xlane.f32.xlu0 %v7989
    %v7991 = vpop.xlane.xlu0 %7990
    %v7992 = vrcp.pop %v7988
    %v7993 = vrcp.pop %v7991
    %v7994 = vmul.f32 %v7983, %v7992
    %v7995 = vmul.f32 %v7985, %v7993
    %v7996 = vpack.c.bf16 %v7994, %v7994
    %v7997 = vpack.c.bf16 %v7995, %v7995
    %7998 = vrot.lane.b32.xlu0 %v7648, 48
    %v7999 = vpop.permute.xlu0 %7998
    %v8001 = vsel %vm1055, %v7996, 0
    %v8004 = vsel %vm1083, %v7999, 0
    %8006 = vmatprep.subr.bf16.mxu0 0
    %8007 = vmatpush1.bf16.msra.mxu0 0
    %8008 = vmatprep.subr.bf16.mxu0 0
    %8009 = vmatpush1.bf16.msra.mxu0 0
    %8010 = vmatprep.subr.bf16.mxu0 0
    %8011 = vmatpush1.bf16.msra.mxu0 0
    %8012 = vmatprep.subr.bf16.mxu0 0
    %8013 = vmatpush1.bf16.msra.mxu0 0
    %8014 = vmatprep.subr.bf16.mxu0 0
    %8015 = vmatpush1.bf16.msra.mxu0 0
    %8016 = vmatprep.subr.bf16.mxu0 0
    %8017 = vmatpush1.bf16.msra.mxu0 0
    %8018 = vmatprep.subr.bf16.mxu0 0
    %8019 = vmatpush1.bf16.msra.mxu0 0
    %8020 = vmatprep.subr.bf16.mxu0 0
    %8021 = vmatpush1.bf16.msra.mxu0 %v8004
    %8022 = vmatprep.subr.bf16.mxu0 0
    %8023 = vmatpush2.bf16.msra.mxu0 0
    %8024 = vmatprep.subr.bf16.mxu0 0
    %8025 = vmatpush2.bf16.msra.mxu0 0
    %8026 = vmatprep.subr.bf16.mxu0 0
    %8027 = vmatpush2.bf16.msra.mxu0 0
    %8028 = vmatprep.subr.bf16.mxu0 0
    %8029 = vmatpush2.bf16.msra.mxu0 0
    %8030 = vmatprep.subr.bf16.mxu0 0
    %8031 = vmatpush2.bf16.msra.mxu0 0
    %8032 = vmatprep.subr.bf16.mxu0 0
    %8033 = vmatpush2.bf16.msra.mxu0 0
    %8034 = vmatprep.subr.bf16.mxu0 0
    %8035 = vmatpush2.bf16.msra.mxu0 0
    %8036 = vmatprep.subr.bf16.mxu0 0
    %8037 = vmatpush2.bf16.msra.mxu0 0
    %8038 = vmatprep.mubr.bf16.mxu0 0
    %8039 = vmatmul.mubr.bf16.gmra.mxu0 %v8001
    %v8040 = vpop.f32.mrf.mxu0
    %v8041 = vadd.f32 0.0, %v8040
    %v8042 = vpop.f32.mrf.mxu0
    %v8043 = vpop.f32.mrf.mxu0
    %v8044 = vpop.f32.mrf.mxu0
    %8045 = vdwg.mxu0
    %8046 = vrot.lane.b32.xlu0 %v7649, 48
    %v8047 = vpop.permute.xlu0 %8046
    %v8049 = vsel %vm1055, %v7997, 0
    %v8052 = vsel %vm1083, %v8047, 0
    %8054 = vmatprep.subr.bf16.mxu0 0
    %8055 = vmatpush1.bf16.msra.mxu0 0
    %8056 = vmatprep.subr.bf16.mxu0 0
    %8057 = vmatpush1.bf16.msra.mxu0 0
    %8058 = vmatprep.subr.bf16.mxu0 0
    %8059 = vmatpush1.bf16.msra.mxu0 0
    %8060 = vmatprep.subr.bf16.mxu0 0
    %8061 = vmatpush1.bf16.msra.mxu0 0
    %8062 = vmatprep.subr.bf16.mxu0 0
    %8063 = vmatpush1.bf16.msra.mxu0 0
    %8064 = vmatprep.subr.bf16.mxu0 0
    %8065 = vmatpush1.bf16.msra.mxu0 0
    %8066 = vmatprep.subr.bf16.mxu0 0
    %8067 = vmatpush1.bf16.msra.mxu0 0
    %8068 = vmatprep.subr.bf16.mxu0 0
    %8069 = vmatpush1.bf16.msra.mxu0 %v8052
    %8070 = vmatprep.subr.bf16.mxu0 0
    %8071 = vmatpush2.bf16.msra.mxu0 0
    %8072 = vmatprep.subr.bf16.mxu0 0
    %8073 = vmatpush2.bf16.msra.mxu0 0
    %8074 = vmatprep.subr.bf16.mxu0 0
    %8075 = vmatpush2.bf16.msra.mxu0 0
    %8076 = vmatprep.subr.bf16.mxu0 0
    %8077 = vmatpush2.bf16.msra.mxu0 0
    %8078 = vmatprep.subr.bf16.mxu0 0
    %8079 = vmatpush2.bf16.msra.mxu0 0
    %8080 = vmatprep.subr.bf16.mxu0 0
    %8081 = vmatpush2.bf16.msra.mxu0 0
    %8082 = vmatprep.subr.bf16.mxu0 0
    %8083 = vmatpush2.bf16.msra.mxu0 0
    %8084 = vmatprep.subr.bf16.mxu0 0
    %8085 = vmatpush2.bf16.msra.mxu0 0
    %8086 = vmatprep.mubr.bf16.mxu0 0
    %8087 = vmatmul.mubr.bf16.gmra.mxu0 %v8049
    %v8088 = vpop.f32.mrf.mxu0
    %v8089 = vadd.f32 0.0, %v8088
    %v8090 = vpop.f32.mrf.mxu0
    %v8091 = vpop.f32.mrf.mxu0
    %v8092 = vpop.f32.mrf.mxu0
    %8093 = vdwg.mxu0
    %8094 = vrot.lane.b32.xlu0 %v7646, 96
    %v8095 = vpop.permute.xlu0 %8094
    %8096 = vrot.lane.b32.xlu0 %v7648, 96
    %v8097 = vpop.permute.xlu0 %8096
    %v8099 = vsel %vm955, %v8095, 0
    %v8102 = vsel %vm955, %v8097, 0
    %8104 = vmatprep.subr.bf16.mxu0 0
    %8105 = vmatpush1.bf16.xpose.msra.mxu0 0
    %8106 = vmatprep.subr.bf16.mxu0 0
    %8107 = vmatpush1.bf16.xpose.msra.mxu0 0
    %8108 = vmatprep.subr.bf16.mxu0 0
    %8109 = vmatpush1.bf16.xpose.msra.mxu0 0
    %8110 = vmatprep.subr.bf16.mxu0 0
    %8111 = vmatpush1.bf16.xpose.msra.mxu0 0
    %8112 = vmatprep.subr.bf16.mxu0 0
    %8113 = vmatpush1.bf16.xpose.msra.mxu0 0
    %8114 = vmatprep.subr.bf16.mxu0 0
    %8115 = vmatpush1.bf16.xpose.msra.mxu0 0
    %8116 = vmatprep.subr.bf16.mxu0 0
    %8117 = vmatpush1.bf16.xpose.msra.mxu0 0
    %8118 = vmatprep.subr.bf16.mxu0 0
    %8119 = vmatpush1.bf16.xpose.msra.mxu0 %v8102
    %8120 = vmatprep.subr.bf16.mxu0 0
    %8121 = vmatpush2.bf16.xpose.msra.mxu0 0
    %8122 = vmatprep.subr.bf16.mxu0 0
    %8123 = vmatpush2.bf16.xpose.msra.mxu0 0
    %8124 = vmatprep.subr.bf16.mxu0 0
    %8125 = vmatpush2.bf16.xpose.msra.mxu0 0
    %8126 = vmatprep.subr.bf16.mxu0 0
    %8127 = vmatpush2.bf16.xpose.msra.mxu0 0
    %8128 = vmatprep.subr.bf16.mxu0 0
    %8129 = vmatpush2.bf16.xpose.msra.mxu0 0
    %8130 = vmatprep.subr.bf16.mxu0 0
    %8131 = vmatpush2.bf16.xpose.msra.mxu0 0
    %8132 = vmatprep.subr.bf16.mxu0 0
    %8133 = vmatpush2.bf16.xpose.msra.mxu0 0
    %8134 = vmatprep.subr.bf16.mxu0 0
    %8135 = vmatpush2.bf16.xpose.msra.mxu0 0
    %8136 = vmatprep.mubr.bf16.mxu0 0
    %8137 = vmatmul.mubr.bf16.gmra.mxu0 %v8099
    %v8138 = vpop.f32.mrf.mxu0
    %v8139 = vadd.f32 0.0, %v8138
    %v8140 = vpop.f32.mrf.mxu0
    %v8141 = vpop.f32.mrf.mxu0
    %v8142 = vpop.f32.mrf.mxu0
    %8143 = vdwg.mxu0
    %8144 = vrot.lane.b32.xlu0 %v7647, 96
    %v8145 = vpop.permute.xlu0 %8144
    %8146 = vrot.lane.b32.xlu0 %v7649, 96
    %v8147 = vpop.permute.xlu0 %8146
    %v8149 = vsel %vm955, %v8145, 0
    %v8152 = vsel %vm955, %v8147, 0
    %8154 = vmatprep.subr.bf16.mxu0 0
    %8155 = vmatpush1.bf16.xpose.msra.mxu0 0
    %8156 = vmatprep.subr.bf16.mxu0 0
    %8157 = vmatpush1.bf16.xpose.msra.mxu0 0
    %8158 = vmatprep.subr.bf16.mxu0 0
    %8159 = vmatpush1.bf16.xpose.msra.mxu0 0
    %8160 = vmatprep.subr.bf16.mxu0 0
    %8161 = vmatpush1.bf16.xpose.msra.mxu0 0
    %8162 = vmatprep.subr.bf16.mxu0 0
    %8163 = vmatpush1.bf16.xpose.msra.mxu0 0
    %8164 = vmatprep.subr.bf16.mxu0 0
    %8165 = vmatpush1.bf16.xpose.msra.mxu0 0
    %8166 = vmatprep.subr.bf16.mxu0 0
    %8167 = vmatpush1.bf16.xpose.msra.mxu0 0
    %8168 = vmatprep.subr.bf16.mxu0 0
    %8169 = vmatpush1.bf16.xpose.msra.mxu0 %v8152
    %8170 = vmatprep.subr.bf16.mxu0 0
    %8171 = vmatpush2.bf16.xpose.msra.mxu0 0
    %8172 = vmatprep.subr.bf16.mxu0 0
    %8173 = vmatpush2.bf16.xpose.msra.mxu0 0
    %8174 = vmatprep.subr.bf16.mxu0 0
    %8175 = vmatpush2.bf16.xpose.msra.mxu0 0
    %8176 = vmatprep.subr.bf16.mxu0 0
    %8177 = vmatpush2.bf16.xpose.msra.mxu0 0
    %8178 = vmatprep.subr.bf16.mxu0 0
    %8179 = vmatpush2.bf16.xpose.msra.mxu0 0
    %8180 = vmatprep.subr.bf16.mxu0 0
    %8181 = vmatpush2.bf16.xpose.msra.mxu0 0
    %8182 = vmatprep.subr.bf16.mxu0 0
    %8183 = vmatpush2.bf16.xpose.msra.mxu0 0
    %8184 = vmatprep.subr.bf16.mxu0 0
    %8185 = vmatpush2.bf16.xpose.msra.mxu0 0
    %8186 = vmatprep.mubr.bf16.mxu0 0
    %8187 = vmatmul.mubr.bf16.gmra.mxu0 %v8149
    %v8188 = vpop.f32.mrf.mxu0
    %v8189 = vadd.f32 0.0, %v8188
    %v8190 = vpop.f32.mrf.mxu0
    %v8191 = vpop.f32.mrf.mxu0
    %v8192 = vpop.f32.mrf.mxu0
    %8193 = vdwg.mxu0
    %v8194 = vmul.f32 %v8139, 0.25
    %v8195 = vmul.f32 %v8189, 0.25
    %v8196 = vadd.f32 %v8194, %v601
    %v8197 = vadd.f32 %v8195, %v605
    %v8198 = vsel %vm1055, %v8196, -inf
    %8199 = vmax.xlane.f32.xlu0 %v8198
    %v8200 = vpop.xlane.xlu0 %8199
    %v8201 = vsel %vm1055, %v8197, -inf
    %8202 = vmax.xlane.f32.xlu0 %v8201
    %v8203 = vpop.xlane.xlu0 %8202
    %v8204 = vsub.f32 %v8196, %v8200
    %v8205 = vsub.f32 %v8197, %v8203
    %v8206 = vmul.f32 %v8204, 1.442695
    %v8207 = vpow.pop %v8206
    %v8208 = vmul.f32 %v8205, 1.442695
    %v8209 = vpow.pop %v8208
    %v8210 = vsel %vm1055, %v8207, 0.0
    %8211 = vadd.xlane.f32.xlu0 %v8210
    %v8212 = vpop.xlane.xlu0 %8211
    %v8213 = vsel %vm1055, %v8209, 0.0
    %8214 = vadd.xlane.f32.xlu0 %v8213
    %v8215 = vpop.xlane.xlu0 %8214
    %v8216 = vrcp.pop %v8212
    %v8217 = vrcp.pop %v8215
    %v8218 = vmul.f32 %v8207, %v8216
    %v8219 = vmul.f32 %v8209, %v8217
    %v8220 = vpack.c.bf16 %v8218, %v8218
    %v8221 = vpack.c.bf16 %v8219, %v8219
    %8222 = vrot.lane.b32.xlu0 %v7648, 32
    %v8223 = vpop.permute.xlu0 %8222
    %v8225 = vsel %vm1055, %v8220, 0
    %v8228 = vsel %vm1083, %v8223, 0
    %8230 = vmatprep.subr.bf16.mxu0 0
    %8231 = vmatpush1.bf16.msra.mxu0 0
    %8232 = vmatprep.subr.bf16.mxu0 0
    %8233 = vmatpush1.bf16.msra.mxu0 0
    %8234 = vmatprep.subr.bf16.mxu0 0
    %8235 = vmatpush1.bf16.msra.mxu0 0
    %8236 = vmatprep.subr.bf16.mxu0 0
    %8237 = vmatpush1.bf16.msra.mxu0 0
    %8238 = vmatprep.subr.bf16.mxu0 0
    %8239 = vmatpush1.bf16.msra.mxu0 0
    %8240 = vmatprep.subr.bf16.mxu0 0
    %8241 = vmatpush1.bf16.msra.mxu0 0
    %8242 = vmatprep.subr.bf16.mxu0 0
    %8243 = vmatpush1.bf16.msra.mxu0 0
    %8244 = vmatprep.subr.bf16.mxu0 0
    %8245 = vmatpush1.bf16.msra.mxu0 %v8228
    %8246 = vmatprep.subr.bf16.mxu0 0
    %8247 = vmatpush2.bf16.msra.mxu0 0
    %8248 = vmatprep.subr.bf16.mxu0 0
    %8249 = vmatpush2.bf16.msra.mxu0 0
    %8250 = vmatprep.subr.bf16.mxu0 0
    %8251 = vmatpush2.bf16.msra.mxu0 0
    %8252 = vmatprep.subr.bf16.mxu0 0
    %8253 = vmatpush2.bf16.msra.mxu0 0
    %8254 = vmatprep.subr.bf16.mxu0 0
    %8255 = vmatpush2.bf16.msra.mxu0 0
    %8256 = vmatprep.subr.bf16.mxu0 0
    %8257 = vmatpush2.bf16.msra.mxu0 0
    %8258 = vmatprep.subr.bf16.mxu0 0
    %8259 = vmatpush2.bf16.msra.mxu0 0
    %8260 = vmatprep.subr.bf16.mxu0 0
    %8261 = vmatpush2.bf16.msra.mxu0 0
    %8262 = vmatprep.mubr.bf16.mxu0 0
    %8263 = vmatmul.mubr.bf16.gmra.mxu0 %v8225
    %v8264 = vpop.f32.mrf.mxu0
    %v8265 = vadd.f32 0.0, %v8264
    %v8266 = vpop.f32.mrf.mxu0
    %v8267 = vpop.f32.mrf.mxu0
    %v8268 = vpop.f32.mrf.mxu0
    %8269 = vdwg.mxu0
    %8270 = vrot.lane.b32.xlu0 %v7649, 32
    %v8271 = vpop.permute.xlu0 %8270
    %v8273 = vsel %vm1055, %v8221, 0
    %v8276 = vsel %vm1083, %v8271, 0
    %8278 = vmatprep.subr.bf16.mxu0 0
    %8279 = vmatpush1.bf16.msra.mxu0 0
    %8280 = vmatprep.subr.bf16.mxu0 0
    %8281 = vmatpush1.bf16.msra.mxu0 0
    %8282 = vmatprep.subr.bf16.mxu0 0
    %8283 = vmatpush1.bf16.msra.mxu0 0
    %8284 = vmatprep.subr.bf16.mxu0 0
    %8285 = vmatpush1.bf16.msra.mxu0 0
    %8286 = vmatprep.subr.bf16.mxu0 0
    %8287 = vmatpush1.bf16.msra.mxu0 0
    %8288 = vmatprep.subr.bf16.mxu0 0
    %8289 = vmatpush1.bf16.msra.mxu0 0
    %8290 = vmatprep.subr.bf16.mxu0 0
    %8291 = vmatpush1.bf16.msra.mxu0 0
    %8292 = vmatprep.subr.bf16.mxu0 0
    %8293 = vmatpush1.bf16.msra.mxu0 %v8276
    %8294 = vmatprep.subr.bf16.mxu0 0
    %8295 = vmatpush2.bf16.msra.mxu0 0
    %8296 = vmatprep.subr.bf16.mxu0 0
    %8297 = vmatpush2.bf16.msra.mxu0 0
    %8298 = vmatprep.subr.bf16.mxu0 0
    %8299 = vmatpush2.bf16.msra.mxu0 0
    %8300 = vmatprep.subr.bf16.mxu0 0
    %8301 = vmatpush2.bf16.msra.mxu0 0
    %8302 = vmatprep.subr.bf16.mxu0 0
    %8303 = vmatpush2.bf16.msra.mxu0 0
    %8304 = vmatprep.subr.bf16.mxu0 0
    %8305 = vmatpush2.bf16.msra.mxu0 0
    %8306 = vmatprep.subr.bf16.mxu0 0
    %8307 = vmatpush2.bf16.msra.mxu0 0
    %8308 = vmatprep.subr.bf16.mxu0 0
    %8309 = vmatpush2.bf16.msra.mxu0 0
    %8310 = vmatprep.mubr.bf16.mxu0 0
    %8311 = vmatmul.mubr.bf16.gmra.mxu0 %v8273
    %v8312 = vpop.f32.mrf.mxu0
    %v8313 = vadd.f32 0.0, %v8312
    %v8314 = vpop.f32.mrf.mxu0
    %v8315 = vpop.f32.mrf.mxu0
    %v8316 = vpop.f32.mrf.mxu0
    %8317 = vdwg.mxu0
    %8318 = vrot.lane.b32.xlu0 %v7646, 80
    %v8319 = vpop.permute.xlu0 %8318
    %8320 = vrot.lane.b32.xlu0 %v7648, 80
    %v8321 = vpop.permute.xlu0 %8320
    %v8323 = vsel %vm955, %v8319, 0
    %v8326 = vsel %vm955, %v8321, 0
    %8328 = vmatprep.subr.bf16.mxu0 0
    %8329 = vmatpush1.bf16.xpose.msra.mxu0 0
    %8330 = vmatprep.subr.bf16.mxu0 0
    %8331 = vmatpush1.bf16.xpose.msra.mxu0 0
    %8332 = vmatprep.subr.bf16.mxu0 0
    %8333 = vmatpush1.bf16.xpose.msra.mxu0 0
    %8334 = vmatprep.subr.bf16.mxu0 0
    %8335 = vmatpush1.bf16.xpose.msra.mxu0 0
    %8336 = vmatprep.subr.bf16.mxu0 0
    %8337 = vmatpush1.bf16.xpose.msra.mxu0 0
    %8338 = vmatprep.subr.bf16.mxu0 0
    %8339 = vmatpush1.bf16.xpose.msra.mxu0 0
    %8340 = vmatprep.subr.bf16.mxu0 0
    %8341 = vmatpush1.bf16.xpose.msra.mxu0 0
    %8342 = vmatprep.subr.bf16.mxu0 0
    %8343 = vmatpush1.bf16.xpose.msra.mxu0 %v8326
    %8344 = vmatprep.subr.bf16.mxu0 0
    %8345 = vmatpush2.bf16.xpose.msra.mxu0 0
    %8346 = vmatprep.subr.bf16.mxu0 0
    %8347 = vmatpush2.bf16.xpose.msra.mxu0 0
    %8348 = vmatprep.subr.bf16.mxu0 0
    %8349 = vmatpush2.bf16.xpose.msra.mxu0 0
    %8350 = vmatprep.subr.bf16.mxu0 0
    %8351 = vmatpush2.bf16.xpose.msra.mxu0 0
    %8352 = vmatprep.subr.bf16.mxu0 0
    %8353 = vmatpush2.bf16.xpose.msra.mxu0 0
    %8354 = vmatprep.subr.bf16.mxu0 0
    %8355 = vmatpush2.bf16.xpose.msra.mxu0 0
    %8356 = vmatprep.subr.bf16.mxu0 0
    %8357 = vmatpush2.bf16.xpose.msra.mxu0 0
    %8358 = vmatprep.subr.bf16.mxu0 0
    %8359 = vmatpush2.bf16.xpose.msra.mxu0 0
    %8360 = vmatprep.mubr.bf16.mxu0 0
    %8361 = vmatmul.mubr.bf16.gmra.mxu0 %v8323
    %v8362 = vpop.f32.mrf.mxu0
    %v8363 = vadd.f32 0.0, %v8362
    %v8364 = vpop.f32.mrf.mxu0
    %v8365 = vpop.f32.mrf.mxu0
    %v8366 = vpop.f32.mrf.mxu0
    %8367 = vdwg.mxu0
    %8368 = vrot.lane.b32.xlu0 %v7647, 80
    %v8369 = vpop.permute.xlu0 %8368
    %8370 = vrot.lane.b32.xlu0 %v7649, 80
    %v8371 = vpop.permute.xlu0 %8370
    %v8373 = vsel %vm955, %v8369, 0
    %v8376 = vsel %vm955, %v8371, 0
    %8378 = vmatprep.subr.bf16.mxu0 0
    %8379 = vmatpush1.bf16.xpose.msra.mxu0 0
    %8380 = vmatprep.subr.bf16.mxu0 0
    %8381 = vmatpush1.bf16.xpose.msra.mxu0 0
    %8382 = vmatprep.subr.bf16.mxu0 0
    %8383 = vmatpush1.bf16.xpose.msra.mxu0 0
    %8384 = vmatprep.subr.bf16.mxu0 0
    %8385 = vmatpush1.bf16.xpose.msra.mxu0 0
    %8386 = vmatprep.subr.bf16.mxu0 0
    %8387 = vmatpush1.bf16.xpose.msra.mxu0 0
    %8388 = vmatprep.subr.bf16.mxu0 0
    %8389 = vmatpush1.bf16.xpose.msra.mxu0 0
    %8390 = vmatprep.subr.bf16.mxu0 0
    %8391 = vmatpush1.bf16.xpose.msra.mxu0 0
    %8392 = vmatprep.subr.bf16.mxu0 0
    %8393 = vmatpush1.bf16.xpose.msra.mxu0 %v8376
    %8394 = vmatprep.subr.bf16.mxu0 0
    %8395 = vmatpush2.bf16.xpose.msra.mxu0 0
    %8396 = vmatprep.subr.bf16.mxu0 0
    %8397 = vmatpush2.bf16.xpose.msra.mxu0 0
    %8398 = vmatprep.subr.bf16.mxu0 0
    %8399 = vmatpush2.bf16.xpose.msra.mxu0 0
    %8400 = vmatprep.subr.bf16.mxu0 0
    %8401 = vmatpush2.bf16.xpose.msra.mxu0 0
    %8402 = vmatprep.subr.bf16.mxu0 0
    %8403 = vmatpush2.bf16.xpose.msra.mxu0 0
    %8404 = vmatprep.subr.bf16.mxu0 0
    %8405 = vmatpush2.bf16.xpose.msra.mxu0 0
    %8406 = vmatprep.subr.bf16.mxu0 0
    %8407 = vmatpush2.bf16.xpose.msra.mxu0 0
    %8408 = vmatprep.subr.bf16.mxu0 0
    %8409 = vmatpush2.bf16.xpose.msra.mxu0 0
    %8410 = vmatprep.mubr.bf16.mxu0 0
    %8411 = vmatmul.mubr.bf16.gmra.mxu0 %v8373
    %v8412 = vpop.f32.mrf.mxu0
    %v8413 = vadd.f32 0.0, %v8412
    %v8414 = vpop.f32.mrf.mxu0
    %v8415 = vpop.f32.mrf.mxu0
    %v8416 = vpop.f32.mrf.mxu0
    %8417 = vdwg.mxu0
    %v8418 = vmul.f32 %v8363, 0.25
    %v8419 = vmul.f32 %v8413, 0.25
    %v8420 = vadd.f32 %v8418, %v601
    %v8421 = vadd.f32 %v8419, %v605
    %v8422 = vsel %vm1055, %v8420, -inf
    %8423 = vmax.xlane.f32.xlu0 %v8422
    %v8424 = vpop.xlane.xlu0 %8423
    %v8425 = vsel %vm1055, %v8421, -inf
    %8426 = vmax.xlane.f32.xlu0 %v8425
    %v8427 = vpop.xlane.xlu0 %8426
    %v8428 = vsub.f32 %v8420, %v8424
    %v8429 = vsub.f32 %v8421, %v8427
    %v8430 = vmul.f32 %v8428, 1.442695
    %v8431 = vpow.pop %v8430
    %v8432 = vmul.f32 %v8429, 1.442695
    %v8433 = vpow.pop %v8432
    %v8434 = vsel %vm1055, %v8431, 0.0
    %8435 = vadd.xlane.f32.xlu0 %v8434
    %v8436 = vpop.xlane.xlu0 %8435
    %v8437 = vsel %vm1055, %v8433, 0.0
    %8438 = vadd.xlane.f32.xlu0 %v8437
    %v8439 = vpop.xlane.xlu0 %8438
    %v8440 = vrcp.pop %v8436
    %v8441 = vrcp.pop %v8439
    %v8442 = vmul.f32 %v8431, %v8440
    %v8443 = vmul.f32 %v8433, %v8441
    %v8444 = vpack.c.bf16 %v8442, %v8442
    %v8445 = vpack.c.bf16 %v8443, %v8443
    %8446 = vrot.lane.b32.xlu0 %v7648, 16
    %v8447 = vpop.permute.xlu0 %8446
    %v8449 = vsel %vm1055, %v8444, 0
    %v8452 = vsel %vm1083, %v8447, 0
    %8454 = vmatprep.subr.bf16.mxu0 0
    %8455 = vmatpush1.bf16.msra.mxu0 0
    %8456 = vmatprep.subr.bf16.mxu0 0
    %8457 = vmatpush1.bf16.msra.mxu0 0
    %8458 = vmatprep.subr.bf16.mxu0 0
    %8459 = vmatpush1.bf16.msra.mxu0 0
    %8460 = vmatprep.subr.bf16.mxu0 0
    %8461 = vmatpush1.bf16.msra.mxu0 0
    %8462 = vmatprep.subr.bf16.mxu0 0
    %8463 = vmatpush1.bf16.msra.mxu0 0
    %8464 = vmatprep.subr.bf16.mxu0 0
    %8465 = vmatpush1.bf16.msra.mxu0 0
    %8466 = vmatprep.subr.bf16.mxu0 0
    %8467 = vmatpush1.bf16.msra.mxu0 0
    %8468 = vmatprep.subr.bf16.mxu0 0
    %8469 = vmatpush1.bf16.msra.mxu0 %v8452
    %8470 = vmatprep.subr.bf16.mxu0 0
    %8471 = vmatpush2.bf16.msra.mxu0 0
    %8472 = vmatprep.subr.bf16.mxu0 0
    %8473 = vmatpush2.bf16.msra.mxu0 0
    %8474 = vmatprep.subr.bf16.mxu0 0
    %8475 = vmatpush2.bf16.msra.mxu0 0
    %8476 = vmatprep.subr.bf16.mxu0 0
    %8477 = vmatpush2.bf16.msra.mxu0 0
    %8478 = vmatprep.subr.bf16.mxu0 0
    %8479 = vmatpush2.bf16.msra.mxu0 0
    %8480 = vmatprep.subr.bf16.mxu0 0
    %8481 = vmatpush2.bf16.msra.mxu0 0
    %8482 = vmatprep.subr.bf16.mxu0 0
    %8483 = vmatpush2.bf16.msra.mxu0 0
    %8484 = vmatprep.subr.bf16.mxu0 0
    %8485 = vmatpush2.bf16.msra.mxu0 0
    %8486 = vmatprep.mubr.bf16.mxu0 0
    %8487 = vmatmul.mubr.bf16.gmra.mxu0 %v8449
    %v8488 = vpop.f32.mrf.mxu0
    %v8489 = vadd.f32 0.0, %v8488
    %v8490 = vpop.f32.mrf.mxu0
    %v8491 = vpop.f32.mrf.mxu0
    %v8492 = vpop.f32.mrf.mxu0
    %8493 = vdwg.mxu0
    %8494 = vrot.lane.b32.xlu0 %v7649, 16
    %v8495 = vpop.permute.xlu0 %8494
    %v8497 = vsel %vm1055, %v8445, 0
    %v8500 = vsel %vm1083, %v8495, 0
    %8502 = vmatprep.subr.bf16.mxu0 0
    %8503 = vmatpush1.bf16.msra.mxu0 0
    %8504 = vmatprep.subr.bf16.mxu0 0
    %8505 = vmatpush1.bf16.msra.mxu0 0
    %8506 = vmatprep.subr.bf16.mxu0 0
    %8507 = vmatpush1.bf16.msra.mxu0 0
    %8508 = vmatprep.subr.bf16.mxu0 0
    %8509 = vmatpush1.bf16.msra.mxu0 0
    %8510 = vmatprep.subr.bf16.mxu0 0
    %8511 = vmatpush1.bf16.msra.mxu0 0
    %8512 = vmatprep.subr.bf16.mxu0 0
    %8513 = vmatpush1.bf16.msra.mxu0 0
    %8514 = vmatprep.subr.bf16.mxu0 0
    %8515 = vmatpush1.bf16.msra.mxu0 0
    %8516 = vmatprep.subr.bf16.mxu0 0
    %8517 = vmatpush1.bf16.msra.mxu0 %v8500
    %8518 = vmatprep.subr.bf16.mxu0 0
    %8519 = vmatpush2.bf16.msra.mxu0 0
    %8520 = vmatprep.subr.bf16.mxu0 0
    %8521 = vmatpush2.bf16.msra.mxu0 0
    %8522 = vmatprep.subr.bf16.mxu0 0
    %8523 = vmatpush2.bf16.msra.mxu0 0
    %8524 = vmatprep.subr.bf16.mxu0 0
    %8525 = vmatpush2.bf16.msra.mxu0 0
    %8526 = vmatprep.subr.bf16.mxu0 0
    %8527 = vmatpush2.bf16.msra.mxu0 0
    %8528 = vmatprep.subr.bf16.mxu0 0
    %8529 = vmatpush2.bf16.msra.mxu0 0
    %8530 = vmatprep.subr.bf16.mxu0 0
    %8531 = vmatpush2.bf16.msra.mxu0 0
    %8532 = vmatprep.subr.bf16.mxu0 0
    %8533 = vmatpush2.bf16.msra.mxu0 0
    %8534 = vmatprep.mubr.bf16.mxu0 0
    %8535 = vmatmul.mubr.bf16.gmra.mxu0 %v8497
    %v8536 = vpop.f32.mrf.mxu0
    %v8537 = vadd.f32 0.0, %v8536
    %v8538 = vpop.f32.mrf.mxu0
    %v8539 = vpop.f32.mrf.mxu0
    %v8540 = vpop.f32.mrf.mxu0
    %8541 = vdwg.mxu0
    %8544 = vrot.lane.b32.xlu0 %v8041, 16
    %v8545 = vpop.permute.xlu0 %8544
    %8546 = vrot.lane.b32.xlu0 %v8089, 16
    %v8547 = vpop.permute.xlu0 %8546
    %8552 = vrot.lane.b32.xlu0 %v8265, 32
    %v8553 = vpop.permute.xlu0 %8552
    %8554 = vrot.lane.b32.xlu0 %v8313, 32
    %v8555 = vpop.permute.xlu0 %8554
    %8560 = vrot.lane.b32.xlu0 %v8489, 48
    %v8561 = vpop.permute.xlu0 %8560
    %8562 = vrot.lane.b32.xlu0 %v8537, 48
    %v8563 = vpop.permute.xlu0 %8562
    %v8566 = vsel %vm955, %v7814, %v8545
    %v8567 = vsel %vm955, %v7863, %v8547
    %v8568 = vsel %vm1873, %v8566, %v8553
    %v8569 = vsel %vm1873, %v8567, %v8555
    %v8570 = vsel %vm1876, %v8568, %v8561
    %v8571 = vsel %vm1876, %v8569, %v8563
    %v8572 = vpack.c.bf16 %v8571, %v8570
    %v8574 = vlaneseq
    %v8575 = vshrl.u32 %v8574, 7
    %v8576 = vsub.s32 0, %v8575
    %v8577 = vrot.slane %v7645, %v8576
    %v8587 = vunpack.c.l.b16 %v7636
    %v8588 = vunpack.c.l.b16 %v7637
    %v8589 = vunpack.c.l.b16 %v7638
    %v8590 = vunpack.c.l.b16 %v7639
    %v8591 = vunpack.c.l.b16 %v7640
    %v8592 = vunpack.c.l.b16 %v7641
    %v8593 = vunpack.c.l.b16 %v7642
    %v8594 = vunpack.c.l.b16 %v7643
    %v8595 = vpack.c.b16 %v8588, %v8587
    %v8596 = vpack.c.b16 %v8590, %v8589
    %v8597 = vpack.c.b16 %v8592, %v8591
    %v8598 = vpack.c.b16 %v8594, %v8593
    %v8604 = vsel %vm892, %v8572, 0
    %8606 = vmatprep.subr.bf16.mxu0 0
    %8607 = vmatpush1.bf16.msra.mxu0 0
    %8608 = vmatprep.subr.bf16.mxu0 0
    %8609 = vmatpush1.bf16.msra.mxu0 0
    %8610 = vmatprep.subr.bf16.mxu0 0
    %8611 = vmatpush1.bf16.msra.mxu0 0
    %8612 = vmatprep.subr.bf16.mxu0 0
    %8613 = vmatpush1.bf16.msra.mxu0 0
    %8614 = vmatprep.subr.bf16.mxu0 0
    %8615 = vmatpush1.bf16.msra.mxu0 %v8598
    %8616 = vmatprep.subr.bf16.mxu0 0
    %8617 = vmatpush1.bf16.msra.mxu0 %v8597
    %8618 = vmatprep.subr.bf16.mxu0 0
    %8619 = vmatpush1.bf16.msra.mxu0 %v8596
    %8620 = vmatprep.subr.bf16.mxu0 0
    %8621 = vmatpush1.bf16.msra.mxu0 %v8595
    %8622 = vmatprep.subr.bf16.mxu0 0
    %8623 = vmatpush2.bf16.msra.mxu0 0
    %8624 = vmatprep.subr.bf16.mxu0 0
    %8625 = vmatpush2.bf16.msra.mxu0 0
    %8626 = vmatprep.subr.bf16.mxu0 0
    %8627 = vmatpush2.bf16.msra.mxu0 0
    %8628 = vmatprep.subr.bf16.mxu0 0
    %8629 = vmatpush2.bf16.msra.mxu0 0
    %8630 = vmatprep.subr.bf16.mxu0 0
    %8631 = vmatpush2.bf16.msra.mxu0 0
    %8632 = vmatprep.subr.bf16.mxu0 0
    %8633 = vmatpush2.bf16.msra.mxu0 0
    %8634 = vmatprep.subr.bf16.mxu0 0
    %8635 = vmatpush2.bf16.msra.mxu0 0
    %8636 = vmatprep.subr.bf16.mxu0 0
    %8637 = vmatpush2.bf16.msra.mxu0 0
    %8638 = vmatprep.mubr.bf16.mxu0 0
    %8639 = vmatmul.mubr.bf16.gmra.mxu0 %v8604
    %v8640 = vpop.f32.mrf.mxu0
    %v8641 = vadd.f32 %v8577, %v8640
    %v8642 = vpop.f32.mrf.mxu0
    %v8643 = vpop.f32.mrf.mxu0
    %v8644 = vadd.f32 %v8577, %v8643
    %v8645 = vpop.f32.mrf.mxu0
    %8646 = vdwg.mxu0
    %v8647 = vadd.f32 %v7465, %v8641
    %v8648 = vadd.f32 %v7466, %v8644
    %s8649 = scalar_lea.vmem [#allocation38], 1
    %v8650 = vld [vmem:[%s8649] sm:$0x1]
    %s8651 = scalar_lea.vmem [#allocation40], 1
    %v8652 = vld [vmem:[%s8651] sm:$0x1]
    %v8653 = vsel %vm892, %v8647, 0.0
    %8654 = vadd.xlane.f32.xlu0 %v8653
    %v8655 = vpop.xlane.xlu0 %8654
    %v8656 = vsel %vm892, %v8648, 0.0
    %8657 = vadd.xlane.f32.xlu0 %v8656
    %v8658 = vpop.xlane.xlu0 %8657
    %v8659 = vmul.f32 %v8655, %v1964
    %v8660 = vmul.f32 %v8658, %v1964
    %v8661 = vsub.f32 %v8647, %v8659
    %v8662 = vsub.f32 %v8648, %v8660
    %v8663 = vmul.f32 %v8661, %v8661
    %v8664 = vmul.f32 %v8662, %v8662
    %v8665 = vsel %vm892, %v8663, 0.0
    %8666 = vadd.xlane.f32.xlu0 %v8665
    %v8667 = vpop.xlane.xlu0 %8666
    %v8668 = vsel %vm892, %v8664, 0.0
    %8669 = vadd.xlane.f32.xlu0 %v8668
    %v8670 = vpop.xlane.xlu0 %8669
    %v8671 = vmul.f32 %v8667, %v1964
    %v8672 = vmul.f32 %v8670, %v1964
    %v8673 = vadd.f32 %v8671, 1e-05
    %v8674 = vadd.f32 %v8672, 1e-05
    %v8675 = vrsqrt.pop %v8673
    %v8676 = vrsqrt.pop %v8674
    %v8677 = vmul.f32 %v8661, %v8675
    %v8678 = vmul.f32 %v8662, %v8676
    %v8680 = vlaneseq
    %v8681 = vshrl.u32 %v8680, 7
    %v8682 = vsub.s32 0, %v8681
    %v8683 = vrot.slane %v8650, %v8682
    %v8685 = vmul.f32 %v8677, %v8683
    %v8686 = vmul.f32 %v8678, %v8683
    %v8688 = vlaneseq
    %v8689 = vshrl.u32 %v8688, 7
    %v8690 = vsub.s32 0, %v8689
    %v8691 = vrot.slane %v8652, %v8690
    %v8693 = vadd.f32 %v8685, %v8691
    %v8694 = vadd.f32 %v8686, %v8691
    %s8695 = scalar_lea.vmem [#allocation41], 32
    %v8696 = vld [vmem:[%s8695] sm:$0xf]
    %v8697 = vld [vmem:[%s8695 + $0x4] sm:$0xf]
    %v8698 = vld [vmem:[%s8695 + $0x8] sm:$0xf]
    %v8699 = vld [vmem:[%s8695 + $0xc] sm:$0xf]
    %v8700 = vld [vmem:[%s8695 + $0x10] sm:$0xf]
    %v8701 = vld [vmem:[%s8695 + $0x14] sm:$0xf]
    %v8702 = vld [vmem:[%s8695 + $0x18] sm:$0xf]
    %v8703 = vld [vmem:[%s8695 + $0x1c] sm:$0xf]
    %s8704 = scalar_lea.vmem [#allocation43], 1
    %v8705 = vld [vmem:[%s8704] sm:$0x1]
    %v8706 = vpack.c.bf16 %v8694, %v8693
    %v8708 = vlaneseq
    %v8709 = vshrl.u32 %v8708, 7
    %v8710 = vsub.s32 0, %v8709
    %v8711 = vrot.slane %v8705, %v8710
    %v8721 = vunpack.c.l.b16 %v8696
    %v8722 = vunpack.c.l.b16 %v8697
    %v8723 = vunpack.c.l.b16 %v8698
    %v8724 = vunpack.c.l.b16 %v8699
    %v8725 = vunpack.c.l.b16 %v8700
    %v8726 = vunpack.c.l.b16 %v8701
    %v8727 = vunpack.c.l.b16 %v8702
    %v8728 = vunpack.c.l.b16 %v8703
    %v8729 = vpack.c.b16 %v8722, %v8721
    %v8730 = vpack.c.b16 %v8724, %v8723
    %v8731 = vpack.c.b16 %v8726, %v8725
    %v8732 = vpack.c.b16 %v8728, %v8727
    %v8738 = vsel %vm892, %v8706, 0
    %8740 = vmatprep.subr.bf16.mxu0 0
    %8741 = vmatpush1.bf16.msra.mxu0 0
    %8742 = vmatprep.subr.bf16.mxu0 0
    %8743 = vmatpush1.bf16.msra.mxu0 0
    %8744 = vmatprep.subr.bf16.mxu0 0
    %8745 = vmatpush1.bf16.msra.mxu0 0
    %8746 = vmatprep.subr.bf16.mxu0 0
    %8747 = vmatpush1.bf16.msra.mxu0 0
    %8748 = vmatprep.subr.bf16.mxu0 0
    %8749 = vmatpush1.bf16.msra.mxu0 %v8732
    %8750 = vmatprep.subr.bf16.mxu0 0
    %8751 = vmatpush1.bf16.msra.mxu0 %v8731
    %8752 = vmatprep.subr.bf16.mxu0 0
    %8753 = vmatpush1.bf16.msra.mxu0 %v8730
    %8754 = vmatprep.subr.bf16.mxu0 0
    %8755 = vmatpush1.bf16.msra.mxu0 %v8729
    %8756 = vmatprep.subr.bf16.mxu0 0
    %8757 = vmatpush2.bf16.msra.mxu0 0
    %8758 = vmatprep.subr.bf16.mxu0 0
    %8759 = vmatpush2.bf16.msra.mxu0 0
    %8760 = vmatprep.subr.bf16.mxu0 0
    %8761 = vmatpush2.bf16.msra.mxu0 0
    %8762 = vmatprep.subr.bf16.mxu0 0
    %8763 = vmatpush2.bf16.msra.mxu0 0
    %8764 = vmatprep.subr.bf16.mxu0 0
    %8765 = vmatpush2.bf16.msra.mxu0 0
    %8766 = vmatprep.subr.bf16.mxu0 0
    %8767 = vmatpush2.bf16.msra.mxu0 0
    %8768 = vmatprep.subr.bf16.mxu0 0
    %8769 = vmatpush2.bf16.msra.mxu0 0
    %8770 = vmatprep.subr.bf16.mxu0 0
    %8771 = vmatpush2.bf16.msra.mxu0 0
    %8772 = vmatprep.mubr.bf16.mxu0 0
    %8773 = vmatmul.mubr.bf16.gmra.mxu0 %v8738
    %v8774 = vpop.f32.mrf.mxu0
    %v8775 = vadd.f32 %v8711, %v8774
    %v8776 = vpop.f32.mrf.mxu0
    %v8777 = vpop.f32.mrf.mxu0
    %v8778 = vadd.f32 %v8711, %v8777
    %v8779 = vpop.f32.mrf.mxu0
    %8780 = vdwg.mxu0
    %v8781 = vmax.f32 %v8775, 0.0
    %v8782 = vmax.f32 %v8778, 0.0
    %s8783 = scalar_lea.vmem %s71, 64
    %v8784 = vld [vmem:[%s8783] sm:$0xf]
    %v8785 = vld [vmem:[%s8783 + $0x4] sm:$0xf]
    %v8786 = vld [vmem:[%s8783 + $0x8] sm:$0xf]
    %v8787 = vld [vmem:[%s8783 + $0xc] sm:$0xf]
    %v8788 = vld [vmem:[%s8783 + $0x10] sm:$0xf]
    %v8789 = vld [vmem:[%s8783 + $0x14] sm:$0xf]
    %v8790 = vld [vmem:[%s8783 + $0x18] sm:$0xf]
    %v8791 = vld [vmem:[%s8783 + $0x1c] sm:$0xf]
    %v8792 = vld [vmem:[%s8783 + $0x20] sm:$0xf]
    %v8793 = vld [vmem:[%s8783 + $0x24] sm:$0xf]
    %v8794 = vld [vmem:[%s8783 + $0x28] sm:$0xf]
    %v8795 = vld [vmem:[%s8783 + $0x2c] sm:$0xf]
    %v8796 = vld [vmem:[%s8783 + $0x30] sm:$0xf]
    %v8797 = vld [vmem:[%s8783 + $0x34] sm:$0xf]
    %v8798 = vld [vmem:[%s8783 + $0x38] sm:$0xf]
    %v8799 = vld [vmem:[%s8783 + $0x3c] sm:$0xf]
    %s8800 = scalar_lea.vmem [#allocation44], 1
    %v8801 = vld [vmem:[%s8800] sm:$0x1]
    %v8802 = vpack.c.bf16 %v8782, %v8781
    %v8804 = vlaneseq
    %v8805 = vshrl.u32 %v8804, 7
    %v8806 = vsub.s32 0, %v8805
    %v8807 = vrot.slane %v8801, %v8806
    %v8825 = vunpack.c.l.b16 %v8784
    %v8826 = vunpack.c.l.b16 %v8785
    %v8827 = vunpack.c.l.b16 %v8786
    %v8828 = vunpack.c.l.b16 %v8787
    %v8829 = vunpack.c.l.b16 %v8788
    %v8830 = vunpack.c.l.b16 %v8789
    %v8831 = vunpack.c.l.b16 %v8790
    %v8832 = vunpack.c.l.b16 %v8791
    %v8833 = vunpack.c.l.b16 %v8792
    %v8834 = vunpack.c.l.b16 %v8793
    %v8835 = vunpack.c.l.b16 %v8794
    %v8836 = vunpack.c.l.b16 %v8795
    %v8837 = vunpack.c.l.b16 %v8796
    %v8838 = vunpack.c.l.b16 %v8797
    %v8839 = vunpack.c.l.b16 %v8798
    %v8840 = vunpack.c.l.b16 %v8799
    %v8841 = vpack.c.b16 %v8826, %v8825
    %v8842 = vpack.c.b16 %v8828, %v8827
    %v8843 = vpack.c.b16 %v8830, %v8829
    %v8844 = vpack.c.b16 %v8832, %v8831
    %v8845 = vpack.c.b16 %v8834, %v8833
    %v8846 = vpack.c.b16 %v8836, %v8835
    %v8847 = vpack.c.b16 %v8838, %v8837
    %v8848 = vpack.c.b16 %v8840, %v8839
    %8857 = vmatprep.subr.bf16.mxu0 0
    %8858 = vmatpush1.bf16.msra.mxu0 %v8848
    %8859 = vmatprep.subr.bf16.mxu0 0
    %8860 = vmatpush1.bf16.msra.mxu0 %v8847
    %8861 = vmatprep.subr.bf16.mxu0 0
    %8862 = vmatpush1.bf16.msra.mxu0 %v8846
    %8863 = vmatprep.subr.bf16.mxu0 0
    %8864 = vmatpush1.bf16.msra.mxu0 %v8845
    %8865 = vmatprep.subr.bf16.mxu0 0
    %8866 = vmatpush1.bf16.msra.mxu0 %v8844
    %8867 = vmatprep.subr.bf16.mxu0 0
    %8868 = vmatpush1.bf16.msra.mxu0 %v8843
    %8869 = vmatprep.subr.bf16.mxu0 0
    %8870 = vmatpush1.bf16.msra.mxu0 %v8842
    %8871 = vmatprep.subr.bf16.mxu0 0
    %8872 = vmatpush1.bf16.msra.mxu0 %v8841
    %8873 = vmatprep.subr.bf16.mxu0 0
    %8874 = vmatpush2.bf16.msra.mxu0 0
    %8875 = vmatprep.subr.bf16.mxu0 0
    %8876 = vmatpush2.bf16.msra.mxu0 0
    %8877 = vmatprep.subr.bf16.mxu0 0
    %8878 = vmatpush2.bf16.msra.mxu0 0
    %8879 = vmatprep.subr.bf16.mxu0 0
    %8880 = vmatpush2.bf16.msra.mxu0 0
    %8881 = vmatprep.subr.bf16.mxu0 0
    %8882 = vmatpush2.bf16.msra.mxu0 0
    %8883 = vmatprep.subr.bf16.mxu0 0
    %8884 = vmatpush2.bf16.msra.mxu0 0
    %8885 = vmatprep.subr.bf16.mxu0 0
    %8886 = vmatpush2.bf16.msra.mxu0 0
    %8887 = vmatprep.subr.bf16.mxu0 0
    %8888 = vmatpush2.bf16.msra.mxu0 0
    %8889 = vmatprep.mubr.bf16.mxu0 0
    %8890 = vmatmul.mubr.bf16.gmra.mxu0 %v8802
    %v8891 = vpop.f32.mrf.mxu0
    %v8892 = vadd.f32 %v8807, %v8891
    %v8893 = vpop.f32.mrf.mxu0
    %v8894 = vpop.f32.mrf.mxu0
    %v8895 = vadd.f32 %v8807, %v8894
    %v8896 = vpop.f32.mrf.mxu0
    %8897 = vdwg.mxu0
    %v8898 = vadd.f32 %v8693, %v8892
    %v8899 = vadd.f32 %v8694, %v8895
    %s8900 = scalar_lea.vmem [#allocation46], 1
    %v8901 = vld [vmem:[%s8900] sm:$0x1]
    %s8902 = scalar_lea.vmem [#allocation47], 1
    %v8903 = vld [vmem:[%s8902] sm:$0x1]
    %v8904 = vsel %vm892, %v8898, 0.0
    %8905 = vadd.xlane.f32.xlu0 %v8904
    %v8906 = vpop.xlane.xlu0 %8905
    %v8907 = vsel %vm892, %v8899, 0.0
    %8908 = vadd.xlane.f32.xlu0 %v8907
    %v8909 = vpop.xlane.xlu0 %8908
    %v8910 = vmul.f32 %v8906, %v1964
    %v8911 = vmul.f32 %v8909, %v1964
    %v8912 = vsub.f32 %v8898, %v8910
    %v8913 = vsub.f32 %v8899, %v8911
    %v8914 = vmul.f32 %v8912, %v8912
    %v8915 = vmul.f32 %v8913, %v8913
    %v8916 = vsel %vm892, %v8914, 0.0
    %8917 = vadd.xlane.f32.xlu0 %v8916
    %v8918 = vpop.xlane.xlu0 %8917
    %v8919 = vsel %vm892, %v8915, 0.0
    %8920 = vadd.xlane.f32.xlu0 %v8919
    %v8921 = vpop.xlane.xlu0 %8920
    %v8922 = vmul.f32 %v8918, %v1964
    %v8923 = vmul.f32 %v8921, %v1964
    %v8924 = vadd.f32 %v8922, 1e-05
    %v8925 = vadd.f32 %v8923, 1e-05
    %v8926 = vrsqrt.pop %v8924
    %v8927 = vrsqrt.pop %v8925
    %v8928 = vmul.f32 %v8912, %v8926
    %v8929 = vmul.f32 %v8913, %v8927
    %v8931 = vlaneseq
    %v8932 = vshrl.u32 %v8931, 7
    %v8933 = vsub.s32 0, %v8932
    %v8934 = vrot.slane %v8901, %v8933
    %v8936 = vmul.f32 %v8928, %v8934
    %v8937 = vmul.f32 %v8929, %v8934
    %v8939 = vlaneseq
    %v8940 = vshrl.u32 %v8939, 7
    %v8941 = vsub.s32 0, %v8940
    %v8942 = vrot.slane %v8903, %v8941
    %v8944 = vadd.f32 %v8936, %v8942
    %v8945 = vadd.f32 %v8937, %v8942
    %v8946 = vpack.c.bf16 %v8945, %v8944
    %v8947 = vld [vmem:[%s79] sm:$0xf]
    %v8948 = vld [vmem:[%s79 + $0x4] sm:$0xf]
    %v8949 = vld [vmem:[%s79 + $0x8] sm:$0xf]
    %v8950 = vld [vmem:[%s79 + $0xc] sm:$0xf]
    %v8951 = vld [vmem:[%s79 + $0x10] sm:$0xf]
    %v8952 = vld [vmem:[%s79 + $0x14] sm:$0xf]
    %v8953 = vld [vmem:[%s79 + $0x18] sm:$0xf]
    %v8954 = vld [vmem:[%s79 + $0x1c] sm:$0xf]
    %v8955 = vld [vmem:[%s81] sm:$0x1]
    %v8957 = vlaneseq
    %v8958 = vshrl.u32 %v8957, 7
    %v8959 = vsub.s32 0, %v8958
    %v8960 = vrot.slane %v8955, %v8959
    %v8970 = vunpack.c.l.b16 %v8947
    %v8971 = vunpack.c.l.b16 %v8948
    %v8972 = vunpack.c.l.b16 %v8949
    %v8973 = vunpack.c.l.b16 %v8950
    %v8974 = vunpack.c.l.b16 %v8951
    %v8975 = vunpack.c.l.b16 %v8952
    %v8976 = vunpack.c.l.b16 %v8953
    %v8977 = vunpack.c.l.b16 %v8954
    %v8978 = vpack.c.b16 %v8971, %v8970
    %v8979 = vpack.c.b16 %v8973, %v8972
    %v8980 = vpack.c.b16 %v8975, %v8974
    %v8981 = vpack.c.b16 %v8977, %v8976
    %v8987 = vsel %vm892, %v8946, 0
    %8989 = vmatprep.subr.bf16.mxu0 0
    %8990 = vmatpush1.bf16.msra.mxu0 0
    %8991 = vmatprep.subr.bf16.mxu0 0
    %8992 = vmatpush1.bf16.msra.mxu0 0
    %8993 = vmatprep.subr.bf16.mxu0 0
    %8994 = vmatpush1.bf16.msra.mxu0 0
    %8995 = vmatprep.subr.bf16.mxu0 0
    %8996 = vmatpush1.bf16.msra.mxu0 0
    %8997 = vmatprep.subr.bf16.mxu0 0
    %8998 = vmatpush1.bf16.msra.mxu0 %v8981
    %8999 = vmatprep.subr.bf16.mxu0 0
    %9000 = vmatpush1.bf16.msra.mxu0 %v8980
    %9001 = vmatprep.subr.bf16.mxu0 0
    %9002 = vmatpush1.bf16.msra.mxu0 %v8979
    %9003 = vmatprep.subr.bf16.mxu0 0
    %9004 = vmatpush1.bf16.msra.mxu0 %v8978
    %9005 = vmatprep.subr.bf16.mxu0 0
    %9006 = vmatpush2.bf16.msra.mxu0 0
    %9007 = vmatprep.subr.bf16.mxu0 0
    %9008 = vmatpush2.bf16.msra.mxu0 0
    %9009 = vmatprep.subr.bf16.mxu0 0
    %9010 = vmatpush2.bf16.msra.mxu0 0
    %9011 = vmatprep.subr.bf16.mxu0 0
    %9012 = vmatpush2.bf16.msra.mxu0 0
    %9013 = vmatprep.subr.bf16.mxu0 0
    %9014 = vmatpush2.bf16.msra.mxu0 0
    %9015 = vmatprep.subr.bf16.mxu0 0
    %9016 = vmatpush2.bf16.msra.mxu0 0
    %9017 = vmatprep.subr.bf16.mxu0 0
    %9018 = vmatpush2.bf16.msra.mxu0 0
    %9019 = vmatprep.subr.bf16.mxu0 0
    %9020 = vmatpush2.bf16.msra.mxu0 0
    %9021 = vmatprep.mubr.bf16.mxu0 0
    %9022 = vmatmul.mubr.bf16.gmra.mxu0 %v8987
    %v9023 = vpop.f32.mrf.mxu0
    %v9024 = vadd.f32 %v8960, %v9023
    %v9025 = vpop.f32.mrf.mxu0
    %v9026 = vpop.f32.mrf.mxu0
    %v9027 = vadd.f32 %v8960, %v9026
    %v9028 = vpop.f32.mrf.mxu0
    %9029 = vdwg.mxu0
    %9030 = vst [vmem:[#allocation49] sm:$0xff] %v9024
    %9031 = vst [vmem:[#allocation49 + $0x8] sm:$0xff] %v9027
    // Predicated region
    $region286: #{transformer_forward.1} parent=1 // pred_check
      _
    $region287: #{transformer_forward.1} parent=1 // pred_check_branch
      %9033 = sbr.rel (0) target = $region289
    $region288: #{transformer_forward.1} parent=1 // pred_region
      %s9035 = ssub.s32 256, 256
      %9036 = vsyncadd [#allocation4], %s9035
      %s9037 = sshll.u32 [#allocation49], 4
      %s9038 = int_to_ptr.vmem [resolvable:$true] %s9037
      %9043 = dma.vmem_to_hbm [thread:$0]  %s9038, 256, %s83, [#allocation4], 128, 128, 8
    $region289: #{transformer_forward.1} parent=1 // pred_fallthru
      _
    // Predicated region
    $region290: #{transformer_forward.1} parent=1 // pred_check
      _
    $region291: #{transformer_forward.1} parent=1 // pred_check_branch
      %9045 = sbr.rel (0) target = $region293
    $region292: #{transformer_forward.1} parent=1 // pred_region
      %9046 = dma.done [#allocation4], 256
    $region293: #{transformer_forward.1} parent=1 // pred_fallthru
      _
    %9047 = vsyncpa [#allocation3], 1
    %9048 = vsyncpa [#allocation6], 1
    %9049 = vsyncpa [#allocation9], 1
    %9050 = vsyncpa [#allocation12], 1
    %9051 = vsyncpa [#allocation15], 1
    %9052 = vsyncpa [#allocation18], 1
    %9053 = vsyncpa [#allocation21], 1
    %9054 = vsyncpa [#allocation24], 1
    %9055 = vsyncpa [#allocation27], 1
    %9056 = vsyncpa [#allocation30], 1
    %9057 = vsyncpa [#allocation33], 1
    %9058 = vsyncpa [#allocation36], 1
    %9059 = vsyncpa [#allocation39], 1
    %9060 = vsyncpa [#allocation42], 1
    %9061 = vsyncpa [#allocation45], 1
    %9062 = vsyncpa [#allocation48], 1
    %9063 = vsyncpa [#allocation4], 1

</llo_original>
